<compile_context>
chip_gen: v5e
topology: v5e:2x2
jax: 0.10.0
libtpu: 0.0.40
codegen_flags: <defaults>
</compile_context>

<pallas_src>
import functools

import jax
import jax.numpy as jnp
from jax.experimental import pallas as pl
from jax.experimental.pallas import tpu as pltpu

EPS = 1e-5


# ---------------------------------------------------------------------------
# Pass 1: conv1 (1x1) + partial BN1 statistics
# ---------------------------------------------------------------------------
def conv1_kernel(x_ref, w1_ref, y1_ref, s_ref, ss_ref):
    p = w1_ref.shape[1]
    y1 = jnp.dot(x_ref[...].astype(jnp.bfloat16), w1_ref[...],
                 preferred_element_type=jnp.float32)
    y1_ref[...] = y1
    s_ref[...] = jnp.sum(y1, axis=0, keepdims=True).reshape(1, 1, p)
    ss_ref[...] = jnp.sum(y1 * y1, axis=0, keepdims=True).reshape(1, 1, p)


# ---------------------------------------------------------------------------
# Pass 2: bn1 + relu -> conv2 (3x3, pad=1) + partial BN2 statistics
# ---------------------------------------------------------------------------
def conv2_kernel(y1_ref, sc1_ref, sh1_ref, w2_ref, y2_ref, s_ref, ss_ref,
                 halo_ref, *, tn, h, w, p):
    m = tn * h * w

    # bn1 + relu (scale/shift precomputed from batch-global partial sums).
    o1 = jnp.maximum(y1_ref[...] * sc1_ref[...] + sh1_ref[...], 0.0)

    # bf16 halo; zero only the 1-pixel ring, the interior is overwritten.
    zrow = jnp.zeros((tn, 1, w + 2, p), jnp.bfloat16)
    zcol = jnp.zeros((tn, h + 2, 1, p), jnp.bfloat16)
    halo_ref[:, 0:1, :, :] = zrow
    halo_ref[:, h + 1:h + 2, :, :] = zrow
    halo_ref[:, :, 0:1, :] = zcol
    halo_ref[:, :, w + 1:w + 2, :] = zcol
    halo_ref[:, 1:h + 1, 1:w + 1, :] = o1.astype(jnp.bfloat16)

    # 3x3 conv: 9 taps read straight from the halo, each contracted on the
    # MXU (no im2col scratch, no extra stores).
    acc = jnp.zeros((m, p), jnp.float32)
    for k in range(9):                                     # static unroll
        kh, kw = divmod(k, 3)
        tap = halo_ref[:, kh:kh + h, kw:kw + w, :]         # (tn, h, w, p) bf16
        acc = acc + jnp.dot(tap.reshape(m, p), w2_ref[k],
                            preferred_element_type=jnp.float32)

    y2_ref[...] = acc
    s_ref[...] = jnp.sum(acc, axis=0, keepdims=True).reshape(1, 1, p)
    ss_ref[...] = jnp.sum(acc * acc, axis=0, keepdims=True).reshape(1, 1, p)


# ---------------------------------------------------------------------------
# Pass 3: bn2 + relu -> conv3 (1x1, 4x expansion) + partial BN3 statistics
# ---------------------------------------------------------------------------
def conv3_kernel(y2_ref, sc2_ref, sh2_ref, w3_ref, y3_ref, s_ref, ss_ref):
    c4 = w3_ref.shape[1]
    o2 = jnp.maximum(y2_ref[...] * sc2_ref[...] + sh2_ref[...], 0.0)
    y3 = jnp.dot(o2.astype(jnp.bfloat16), w3_ref[...],
                 preferred_element_type=jnp.float32)
    y3_ref[...] = y3
    s_ref[...] = jnp.sum(y3, axis=0, keepdims=True).reshape(1, 1, c4)
    ss_ref[...] = jnp.sum(y3 * y3, axis=0, keepdims=True).reshape(1, 1, c4)


# ---------------------------------------------------------------------------
# Pass 4: bn3 -> residual add -> relu  (residual re-read from HBM here only)
# ---------------------------------------------------------------------------
def residual_kernel(y3_ref, x_ref, sc3_ref, sh3_ref, o_ref):
    y = y3_ref[...] * sc3_ref[...] + sh3_ref[...]
    o_ref[...] = jnp.maximum(y + x_ref[...], 0.0)


# ---------------------------------------------------------------------------
# Wrapper: layout glue + O(C) BN finalization between passes
# ---------------------------------------------------------------------------
def _bn_scale_shift(part_sum, part_sumsq, m, gamma, beta):
    """Finalize batch-global training-mode BN from per-tile partial sums.

    Biased variance (like PyTorch training BN).  This is O(C) cross-tile
    reduction glue, not hoisted compute.
    """
    s = jnp.sum(part_sum, axis=0)           # (1, C)
    ss = jnp.sum(part_sumsq, axis=0)        # (1, C)
    mean = s / m
    var = ss / m - mean * mean
    scale = gamma * jax.lax.rsqrt(var + EPS)
    shift = beta - mean * scale
    return scale, shift


@functools.partial(jax.jit, static_argnames=("stride", "images_per_step"))
def bottleneck_forward(x_nchw, params, stride=1, images_per_step=1):
    # NCHW -> NHWC (channels last -> lanes); layout glue only.
    x = jnp.transpose(x_nchw, (0, 2, 3, 1)).astype(jnp.float32)
    if stride > 1:
        # conv1 is 1x1 with `stride`, i.e. spatial subsampling.
        # TODO(synk): stride>1 with downsample=None is inconsistent with the
        # residual add in the reference module; only stride=1 is supported.
        x = x[:, ::stride, ::stride, :]
    N, H, W, Cin = x.shape
    P = params["w1"].shape[1]
    C4 = 4 * P
    assert Cin == C4, "downsample=None requires inplanes == 4 * planes"

    TN = images_per_step                     # whole images per grid step
    assert N % TN == 0
    n_tiles = N // TN
    TM = TN * H * W                          # rows per grid step
    M = N * H * W

    x2d = x.reshape(M, Cin)
    w1 = params["w1"].astype(jnp.bfloat16)   # (Cin, P)
    w2 = params["w2"].astype(jnp.bfloat16)   # (9, P, P), tap-major
    w3 = params["w3"].astype(jnp.bfloat16)   # (P, 4P)

    cparams = pltpu.CompilerParams(
        dimension_semantics=("parallel",),
        vmem_limit_bytes=48 * 1024 * 1024)

    stats_spec = pl.BlockSpec((1, 1, P), lambda i: (i, 0, 0))
    stats_shape = jax.ShapeDtypeStruct((n_tiles, 1, P), jnp.float32)
    stats4_spec = pl.BlockSpec((1, 1, C4), lambda i: (i, 0, 0))
    stats4_shape = jax.ShapeDtypeStruct((n_tiles, 1, C4), jnp.float32)

    def vec_spec(c):
        return pl.BlockSpec((1, c), lambda i: (0, 0))

    # ---- pass 1: conv1 + bn1 partial stats ----
    y1, s1, ss1 = pl.pallas_call(
        conv1_kernel,
        grid=(n_tiles,),
        in_specs=[pl.BlockSpec((TM, Cin), lambda i: (i, 0)),
                  pl.BlockSpec((Cin, P), lambda i: (0, 0))],
        out_specs=(pl.BlockSpec((TM, P), lambda i: (i, 0)),
                   stats_spec, stats_spec),
        out_shape=(jax.ShapeDtypeStruct((M, P), jnp.float32),
                   stats_shape, stats_shape),
        compiler_params=cparams,
        cost_estimate=pl.CostEstimate(
            flops=2 * M * Cin * P, transcendentals=0,
            bytes_accessed=4 * M * Cin + 4 * M * P + 2 * Cin * P),
    )(x2d, w1)
    sc1, sh1 = _bn_scale_shift(s1, ss1, M, params["g1"], params["b1"])

    # ---- pass 2: bn1+relu -> conv2 (3x3) + bn2 partial stats ----
    y2, s2, ss2 = pl.pallas_call(
        functools.partial(conv2_kernel, tn=TN, h=H, w=W, p=P),
        grid=(n_tiles,),
        in_specs=[pl.BlockSpec((TN, H, W, P), lambda i: (i, 0, 0, 0)),
                  vec_spec(P), vec_spec(P),
                  pl.BlockSpec((9, P, P), lambda i: (0, 0, 0))],
        out_specs=(pl.BlockSpec((TM, P), lambda i: (i, 0)),
                   stats_spec, stats_spec),
        out_shape=(jax.ShapeDtypeStruct((M, P), jnp.float32),
                   stats_shape, stats_shape),
        scratch_shapes=[pltpu.VMEM((TN, H + 2, W + 2, P), jnp.bfloat16)],
        compiler_params=cparams,
        cost_estimate=pl.CostEstimate(
            flops=2 * M * 9 * P * P, transcendentals=0,
            bytes_accessed=8 * M * P + 2 * 9 * P * P),
    )(y1.reshape(N, H, W, P), sc1, sh1, w2)
    sc2, sh2 = _bn_scale_shift(s2, ss2, M, params["g2"], params["b2"])

    # ---- pass 3: bn2+relu -> conv3 + bn3 partial stats ----
    y3, s3, ss3 = pl.pallas_call(
        conv3_kernel,
        grid=(n_tiles,),
        in_specs=[pl.BlockSpec((TM, P), lambda i: (i, 0)),
                  vec_spec(P), vec_spec(P),
                  pl.BlockSpec((P, C4), lambda i: (0, 0))],
        out_specs=(pl.BlockSpec((TM, C4), lambda i: (i, 0)),
                   stats4_spec, stats4_spec),
        out_shape=(jax.ShapeDtypeStruct((M, C4), jnp.float32),
                   stats4_shape, stats4_shape),
        compiler_params=cparams,
        cost_estimate=pl.CostEstimate(
            flops=2 * M * P * C4, transcendentals=0,
            bytes_accessed=4 * M * P + 4 * M * C4 + 2 * P * C4),
    )(y2, sc2, sh2, w3)
    sc3, sh3 = _bn_scale_shift(s3, ss3, M, params["g3"], params["b3"])

    # ---- pass 4: bn3 + residual + relu ----
    out2d = pl.pallas_call(
        residual_kernel,
        grid=(n_tiles,),
        in_specs=[pl.BlockSpec((TM, C4), lambda i: (i, 0)),
                  pl.BlockSpec((TM, C4), lambda i: (i, 0)),
                  vec_spec(C4), vec_spec(C4)],
        out_specs=pl.BlockSpec((TM, C4), lambda i: (i, 0)),
        out_shape=jax.ShapeDtypeStruct((M, C4), jnp.float32),
        compiler_params=cparams,
        cost_estimate=pl.CostEstimate(
            flops=3 * M * C4, transcendentals=0,
            bytes_accessed=12 * M * C4),
    )(y3, x2d, sc3, sh3)

    # NHWC -> NCHW
    return jnp.transpose(out2d.reshape(N, H, W, C4), (0, 3, 1, 2))


# ---------------------------------------------------------------------------
# Pure-JAX reference (same bf16 matmul-input precision; correctness check)
# ---------------------------------------------------------------------------
def bottleneck_reference(x_nchw, params):
    bf = jnp.bfloat16
    x = jnp.transpose(x_nchw, (0, 2, 3, 1)).astype(jnp.float32)
    N, H, W, Cin = x.shape
    M = N * H * W
    P = params["w1"].shape[1]

    def bn(y, g, b):
        mean = jnp.mean(y, axis=0, keepdims=True)
        var = jnp.mean((y - mean) ** 2, axis=0, keepdims=True)
        return (y - mean) / jnp.sqrt(var + EPS) * g + b

    x2d = x.reshape(M, Cin)
    y1 = jnp.dot(x2d.astype(bf), params["w1"].astype(bf),
                 preferred_element_type=jnp.float32)
    o1 = jnp.maximum(bn(y1, params["g1"], params["b1"]), 0.0)

    o1p = jnp.pad(o1.reshape(N, H, W, P), ((0, 0), (1, 1), (1, 1), (0, 0)))
    y2 = jnp.zeros((M, P), jnp.float32)
    for k in range(9):
        kh, kw = divmod(k, 3)
        tap = o1p[:, kh:kh + H, kw:kw + W, :].reshape(M, P)
        y2 = y2 + jnp.dot(tap.astype(bf), params["w2"][k].astype(bf),
                          preferred_element_type=jnp.float32)
    o2 = jnp.maximum(bn(y2, params["g2"], params["b2"]), 0.0)

    y3 = jnp.dot(o2.astype(bf), params["w3"].astype(bf),
                 preferred_element_type=jnp.float32)
    o3 = jnp.maximum(bn(y3, params["g3"], params["b3"]) + x2d, 0.0)
    return jnp.transpose(o3.reshape(N, H, W, 4 * P), (0, 3, 1, 2))


# ---------------------------------------------------------------------------
# Deterministic parameter construction (synthetic, matmul layout)
# ---------------------------------------------------------------------------
def make_params(key, inplanes, planes):
    k1, k2, k3 = jax.random.split(key, 3)
    return {
        # conv1.weight (planes, inplanes, 1, 1) -> (inplanes, planes)
        "w1": 0.1 * jax.random.normal(k1, (inplanes, planes), jnp.float32),
        "g1": jnp.ones((1, planes), jnp.float32),
        "b1": jnp.zeros((1, planes), jnp.float32),
        # conv2.weight (planes, planes, 3, 3) -> (kh*3+kw, Cin, Cout)
        "w2": 0.1 * jax.random.normal(k2, (9, planes, planes), jnp.float32),
        "g2": jnp.ones((1, planes), jnp.float32),
        "b2": jnp.zeros((1, planes), jnp.float32),
        # conv3.weight (4*planes, planes, 1, 1) -> (planes, 4*planes)
        "w3": 0.1 * jax.random.normal(k3, (planes, 4 * planes), jnp.float32),
        "g3": jnp.ones((1, 4 * planes), jnp.float32),
        "b3": jnp.zeros((1, 4 * planes), jnp.float32),
    }


if __name__ == "__main__":
    # Residual add with downsample=None requires inplanes == planes * expansion.
    # planes=32 keeps the kernel output 128 lanes wide (unmasked stores).
    planes = 32
    inplanes = planes * 4  # 128
    N, H, W = 2, 16, 16

    key = jax.random.PRNGKey(0)
    kx, kp = jax.random.split(key)
    x = jax.random.normal(kx, (N, inplanes, H, W), jnp.float32)  # NCHW, like PyTorch
    params = make_params(kp, inplanes, planes)

    out = bottleneck_forward(x, params, stride=1)
    out = jax.block_until_ready(out)

    ref = bottleneck_reference(x, params)
    assert out.shape == (N, 4 * planes, H, W), out.shape
    # Kernel and reference both use bf16 MXU inputs with f32 accumulation; the
    # residual difference is accumulation order / BN variance formulation only.
    err = float(jnp.max(jnp.abs(out - ref)))
    assert jnp.allclose(out, ref, atol=1e-2, rtol=1e-2), err

    print("KERNEL_OK")
</pallas_src>

<mosaic_0001>
module attributes {stable_mosaic.version = 11 : i64} {
  func.func @conv1_kernel(%arg0: i32, %arg1: memref<256x128xf32, #tpu.memory_space<vmem>>, %arg2: memref<128x32xbf16, #tpu.memory_space<vmem>>, %arg3: memref<256x32xf32, #tpu.memory_space<vmem>>, %arg4: memref<1x1x32xf32, #tpu.memory_space<vmem>>, %arg5: memref<1x1x32xf32, #tpu.memory_space<vmem>>) attributes {dimension_semantics = [#tpu.dimension_semantics<parallel>], iteration_bounds = array<i64: 2>, scalar_prefetch = 0 : i64, scratch_operands = 0 : i64, tpu.core_type = #tpu.core_type<tc>, window_params = [{transform_indices = @transform_0, window_bounds = array<i64: 256, 128>}, {pipeline_mode = #tpu.pipeline_mode<synchronous>, transform_indices = @transform_1, window_bounds = array<i64: 128, 32>}, {transform_indices = @transform_2, window_bounds = array<i64: 256, 32>}, {transform_indices = @transform_3, window_bounds = array<i64: 1, 1, 32>}, {transform_indices = @transform_4, window_bounds = array<i64: 1, 1, 32>}]} {
    %c0 = arith.constant 0 : index
    %c0_0 = arith.constant 0 : index
    %0 = vector.load %arg1[%c0, %c0_0] : memref<256x128xf32, #tpu.memory_space<vmem>>, vector<256x128xf32>
    %1 = arith.truncf %0 : vector<256x128xf32> to vector<256x128xbf16>
    %c0_1 = arith.constant 0 : index
    %c0_2 = arith.constant 0 : index
    %2 = vector.load %arg2[%c0_1, %c0_2] : memref<128x32xbf16, #tpu.memory_space<vmem>>, vector<128x32xbf16>
    %cst = arith.constant dense<0.000000e+00> : vector<256x32xf32>
    %3 = tpu.matmul %1, %2, %cst {dimension_numbers = #tpu.dot_dimension_numbers<[1], [0], [0], [1], [0, 0, 1, 1], [], []>} : vector<256x128xbf16>, vector<128x32xbf16>, vector<256x32xf32> -> vector<256x32xf32>
    %c0_3 = arith.constant 0 : index
    %c0_4 = arith.constant 0 : index
    %4 = vector.load %arg3[%c0_3, %c0_4] : memref<256x32xf32, #tpu.memory_space<vmem>>, vector<256x32xf32>
    tpu.vector_store %arg3[%c0_3, %c0_4], %3 {strides = array<i32>} : memref<256x32xf32, #tpu.memory_space<vmem>>, vector<256x32xf32>,
    %cst_5 = arith.constant dense<0.000000e+00> : vector<32xf32>
    %5 = vector.multi_reduction <add>, %3, %cst_5 [0] : vector<256x32xf32> to vector<32xf32>
    %6 = vector.shape_cast %5 : vector<32xf32> to vector<1x32xf32>
    %7 = vector.shape_cast %6 : vector<1x32xf32> to vector<1x1x32xf32>
    %c0_6 = arith.constant 0 : index
    %c0_7 = arith.constant 0 : index
    %c0_8 = arith.constant 0 : index
    %8 = vector.load %arg4[%c0_6, %c0_7, %c0_8] : memref<1x1x32xf32, #tpu.memory_space<vmem>>, vector<1x1x32xf32>
    tpu.vector_store %arg4[%c0_6, %c0_7, %c0_8], %7 {strides = array<i32>} : memref<1x1x32xf32, #tpu.memory_space<vmem>>, vector<1x1x32xf32>,
    %9 = arith.mulf %3, %3 : vector<256x32xf32>
    %cst_9 = arith.constant dense<0.000000e+00> : vector<32xf32>
    %10 = vector.multi_reduction <add>, %9, %cst_9 [0] : vector<256x32xf32> to vector<32xf32>
    %11 = vector.shape_cast %10 : vector<32xf32> to vector<1x32xf32>
    %12 = vector.shape_cast %11 : vector<1x32xf32> to vector<1x1x32xf32>
    %c0_10 = arith.constant 0 : index
    %c0_11 = arith.constant 0 : index
    %c0_12 = arith.constant 0 : index
    %13 = vector.load %arg5[%c0_10, %c0_11, %c0_12] : memref<1x1x32xf32, #tpu.memory_space<vmem>>, vector<1x1x32xf32>
    tpu.vector_store %arg5[%c0_10, %c0_11, %c0_12], %12 {strides = array<i32>} : memref<1x1x32xf32, #tpu.memory_space<vmem>>, vector<1x1x32xf32>,
    return
  }
  func.func @transform_0(%arg0: i32) -> (i32, i32) {
    %c0_i32 = arith.constant 0 : i32
    %c0_i32_0 = arith.constant 0 : i32
    return %arg0, %c0_i32 : i32, i32
  }
  func.func @transform_1(%arg0: i32) -> (i32, i32) {
    %c0_i32 = arith.constant 0 : i32
    %c0_i32_0 = arith.constant 0 : i32
    %c0_i32_1 = arith.constant 0 : i32
    return %c0_i32, %c0_i32_0 : i32, i32
  }
  func.func @transform_2(%arg0: i32) -> (i32, i32) {
    %c0_i32 = arith.constant 0 : i32
    %c0_i32_0 = arith.constant 0 : i32
    return %arg0, %c0_i32 : i32, i32
  }
  func.func @transform_3(%arg0: i32) -> (i32, i32, i32) {
    %c0_i32 = arith.constant 0 : i32
    %c0_i32_0 = arith.constant 0 : i32
    %c0_i32_1 = arith.constant 0 : i32
    return %arg0, %c0_i32, %c0_i32_0 : i32, i32, i32
  }
  func.func @transform_4(%arg0: i32) -> (i32, i32, i32) {
    %c0_i32 = arith.constant 0 : i32
    %c0_i32_0 = arith.constant 0 : i32
    %c0_i32_1 = arith.constant 0 : i32
    return %arg0, %c0_i32, %c0_i32_0 : i32, i32, i32
  }
}

module attributes {stable_mosaic.version = 11 : i64} {
  func.func @conv2_kernel(%arg0: i32, %arg1: memref<1x16x16x32xf32, #tpu.memory_space<vmem>>, %arg2: memref<1x32xf32, #tpu.memory_space<vmem>>, %arg3: memref<1x32xf32, #tpu.memory_space<vmem>>, %arg4: memref<9x32x32xbf16, #tpu.memory_space<vmem>>, %arg5: memref<256x32xf32, #tpu.memory_space<vmem>>, %arg6: memref<1x1x32xf32, #tpu.memory_space<vmem>>, %arg7: memref<1x1x32xf32, #tpu.memory_space<vmem>>, %arg8: memref<1x18x18x32xbf16, #tpu.memory_space<vmem>>) attributes {dimension_semantics = [#tpu.dimension_semantics<parallel>], iteration_bounds = array<i64: 2>, scalar_prefetch = 0 : i64, scratch_operands = 1 : i64, tpu.core_type = #tpu.core_type<tc>, window_params = [{transform_indices = @transform_0, window_bounds = array<i64: 1, 16, 16, 32>}, {pipeline_mode = #tpu.pipeline_mode<synchronous>, transform_indices = @transform_1, window_bounds = array<i64: 1, 32>}, {pipeline_mode = #tpu.pipeline_mode<synchronous>, transform_indices = @transform_2, window_bounds = array<i64: 1, 32>}, {pipeline_mode = #tpu.pipeline_mode<synchronous>, transform_indices = @transform_3, window_bounds = array<i64: 9, 32, 32>}, {transform_indices = @transform_4, window_bounds = array<i64: 256, 32>}, {transform_indices = @transform_5, window_bounds = array<i64: 1, 1, 32>}, {transform_indices = @transform_6, window_bounds = array<i64: 1, 1, 32>}]} {
    %c0 = arith.constant 0 : index
    %c0_0 = arith.constant 0 : index
    %c0_1 = arith.constant 0 : index
    %c0_2 = arith.constant 0 : index
    %0 = vector.load %arg1[%c0, %c0_0, %c0_1, %c0_2] : memref<1x16x16x32xf32, #tpu.memory_space<vmem>>, vector<1x16x16x32xf32>
    %c0_3 = arith.constant 0 : index
    %c0_4 = arith.constant 0 : index
    %1 = vector.load %arg2[%c0_3, %c0_4] : memref<1x32xf32, #tpu.memory_space<vmem>>, vector<1x32xf32>
    %2 = vector.shape_cast %1 : vector<1x32xf32> to vector<1x1x1x32xf32>
    %3 = vector.broadcast %2 : vector<1x1x1x32xf32> to vector<1x16x16x32xf32>
    %4 = arith.mulf %0, %3 : vector<1x16x16x32xf32>
    %c0_5 = arith.constant 0 : index
    %c0_6 = arith.constant 0 : index
    %5 = vector.load %arg3[%c0_5, %c0_6] : memref<1x32xf32, #tpu.memory_space<vmem>>, vector<1x32xf32>
    %6 = vector.shape_cast %5 : vector<1x32xf32> to vector<1x1x1x32xf32>
    %7 = vector.broadcast %6 : vector<1x1x1x32xf32> to vector<1x16x16x32xf32>
    %8 = arith.addf %4, %7 : vector<1x16x16x32xf32>
    %cst = arith.constant 0.000000e+00 : f32
    %9 = vector.broadcast %cst : f32 to vector<1x16x16x32xf32>
    %10 = arith.maximumf %8, %9 : vector<1x16x16x32xf32>
    %cst_7 = arith.constant 0.000000e+00 : bf16
    %11 = vector.broadcast %cst_7 : bf16 to vector<1x1x18x32xbf16>
    %cst_8 = arith.constant 0.000000e+00 : bf16
    %12 = vector.broadcast %cst_8 : bf16 to vector<1x18x1x32xbf16>
    %c0_9 = arith.constant 0 : index
    %c0_10 = arith.constant 0 : index
    %c0_11 = arith.constant 0 : index
    %c0_12 = arith.constant 0 : index
    %13 = vector.load %arg8[%c0_9, %c0_10, %c0_11, %c0_12] : memref<1x18x18x32xbf16, #tpu.memory_space<vmem>>, vector<1x1x18x32xbf16>
    tpu.vector_store %arg8[%c0_9, %c0_10, %c0_11, %c0_12], %11 {strides = array<i32>} : memref<1x18x18x32xbf16, #tpu.memory_space<vmem>>, vector<1x1x18x32xbf16>,
    %c0_13 = arith.constant 0 : index
    %c17 = arith.constant 17 : index
    %c0_14 = arith.constant 0 : index
    %c0_15 = arith.constant 0 : index
    %14 = vector.load %arg8[%c0_13, %c17, %c0_14, %c0_15] : memref<1x18x18x32xbf16, #tpu.memory_space<vmem>>, vector<1x1x18x32xbf16>
    tpu.vector_store %arg8[%c0_13, %c17, %c0_14, %c0_15], %11 {strides = array<i32>} : memref<1x18x18x32xbf16, #tpu.memory_space<vmem>>, vector<1x1x18x32xbf16>,
    %c0_16 = arith.constant 0 : index
    %c0_17 = arith.constant 0 : index
    %c0_18 = arith.constant 0 : index
    %c0_19 = arith.constant 0 : index
    %15 = vector.load %arg8[%c0_16, %c0_17, %c0_18, %c0_19] : memref<1x18x18x32xbf16, #tpu.memory_space<vmem>>, vector<1x18x1x32xbf16>
    tpu.vector_store %arg8[%c0_16, %c0_17, %c0_18, %c0_19], %12 {strides = array<i32>} : memref<1x18x18x32xbf16, #tpu.memory_space<vmem>>, vector<1x18x1x32xbf16>,
    %c0_20 = arith.constant 0 : index
    %c0_21 = arith.constant 0 : index
    %c17_22 = arith.constant 17 : index
    %c0_23 = arith.constant 0 : index
    %16 = vector.load %arg8[%c0_20, %c0_21, %c17_22, %c0_23] : memref<1x18x18x32xbf16, #tpu.memory_space<vmem>>, vector<1x18x1x32xbf16>
    tpu.vector_store %arg8[%c0_20, %c0_21, %c17_22, %c0_23], %12 {strides = array<i32>} : memref<1x18x18x32xbf16, #tpu.memory_space<vmem>>, vector<1x18x1x32xbf16>,
    %17 = arith.truncf %10 : vector<1x16x16x32xf32> to vector<1x16x16x32xbf16>
    %c0_24 = arith.constant 0 : index
    %c1 = arith.constant 1 : index
    %c1_25 = arith.constant 1 : index
    %c0_26 = arith.constant 0 : index
    %18 = vector.load %arg8[%c0_24, %c1, %c1_25, %c0_26] : memref<1x18x18x32xbf16, #tpu.memory_space<vmem>>, vector<1x16x16x32xbf16>
    tpu.vector_store %arg8[%c0_24, %c1, %c1_25, %c0_26], %17 {strides = array<i32>} : memref<1x18x18x32xbf16, #tpu.memory_space<vmem>>, vector<1x16x16x32xbf16>,
    %cst_27 = arith.constant 0.000000e+00 : f32
    %19 = vector.broadcast %cst_27 : f32 to vector<256x32xf32>
    %c0_28 = arith.constant 0 : index
    %c0_29 = arith.constant 0 : index
    %c0_30 = arith.constant 0 : index
    %c0_31 = arith.constant 0 : index
    %20 = vector.load %arg8[%c0_28, %c0_29, %c0_30, %c0_31] : memref<1x18x18x32xbf16, #tpu.memory_space<vmem>>, vector<1x16x16x32xbf16>
    %21 = vector.shape_cast %20 : vector<1x16x16x32xbf16> to vector<256x32xbf16>
    %c0_32 = arith.constant 0 : index
    %c0_33 = arith.constant 0 : index
    %c0_34 = arith.constant 0 : index
    %22 = vector.load %arg4[%c0_32, %c0_33, %c0_34] : memref<9x32x32xbf16, #tpu.memory_space<vmem>>, vector<1x32x32xbf16>
    %23 = vector.shape_cast %22 : vector<1x32x32xbf16> to vector<32x32xbf16>
    %cst_35 = arith.constant dense<0.000000e+00> : vector<256x32xf32>
    %24 = tpu.matmul %21, %23, %cst_35 {dimension_numbers = #tpu.dot_dimension_numbers<[1], [0], [0], [1], [0, 0, 1, 1], [], []>} : vector<256x32xbf16>, vector<32x32xbf16>, vector<256x32xf32> -> vector<256x32xf32>
    %25 = arith.addf %19, %24 : vector<256x32xf32>
    %c0_36 = arith.constant 0 : index
    %c0_37 = arith.constant 0 : index
    %c1_38 = arith.constant 1 : index
    %c0_39 = arith.constant 0 : index
    %26 = vector.load %arg8[%c0_36, %c0_37, %c1_38, %c0_39] : memref<1x18x18x32xbf16, #tpu.memory_space<vmem>>, vector<1x16x16x32xbf16>
    %27 = vector.shape_cast %26 : vector<1x16x16x32xbf16> to vector<256x32xbf16>
    %c1_40 = arith.constant 1 : index
    %c0_41 = arith.constant 0 : index
    %c0_42 = arith.constant 0 : index
    %28 = vector.load %arg4[%c1_40, %c0_41, %c0_42] : memref<9x32x32xbf16, #tpu.memory_space<vmem>>, vector<1x32x32xbf16>
    %29 = vector.shape_cast %28 : vector<1x32x32xbf16> to vector<32x32xbf16>
    %cst_43 = arith.constant dense<0.000000e+00> : vector<256x32xf32>
    %30 = tpu.matmul %27, %29, %cst_43 {dimension_numbers = #tpu.dot_dimension_numbers<[1], [0], [0], [1], [0, 0, 1, 1], [], []>} : vector<256x32xbf16>, vector<32x32xbf16>, vector<256x32xf32> -> vector<256x32xf32>
    %31 = arith.addf %25, %30 : vector<256x32xf32>
    %c0_44 = arith.constant 0 : index
    %c0_45 = arith.constant 0 : index
    %c2 = arith.constant 2 : index
    %c0_46 = arith.constant 0 : index
    %32 = vector.load %arg8[%c0_44, %c0_45, %c2, %c0_46] : memref<1x18x18x32xbf16, #tpu.memory_space<vmem>>, vector<1x16x16x32xbf16>
    %33 = vector.shape_cast %32 : vector<1x16x16x32xbf16> to vector<256x32xbf16>
    %c2_47 = arith.constant 2 : index
    %c0_48 = arith.constant 0 : index
    %c0_49 = arith.constant 0 : index
    %34 = vector.load %arg4[%c2_47, %c0_48, %c0_49] : memref<9x32x32xbf16, #tpu.memory_space<vmem>>, vector<1x32x32xbf16>
    %35 = vector.shape_cast %34 : vector<1x32x32xbf16> to vector<32x32xbf16>
    %cst_50 = arith.constant dense<0.000000e+00> : vector<256x32xf32>
    %36 = tpu.matmul %33, %35, %cst_50 {dimension_numbers = #tpu.dot_dimension_numbers<[1], [0], [0], [1], [0, 0, 1, 1], [], []>} : vector<256x32xbf16>, vector<32x32xbf16>, vector<256x32xf32> -> vector<256x32xf32>
    %37 = arith.addf %31, %36 : vector<256x32xf32>
    %c0_51 = arith.constant 0 : index
    %c1_52 = arith.constant 1 : index
    %c0_53 = arith.constant 0 : index
    %c0_54 = arith.constant 0 : index
    %38 = vector.load %arg8[%c0_51, %c1_52, %c0_53, %c0_54] : memref<1x18x18x32xbf16, #tpu.memory_space<vmem>>, vector<1x16x16x32xbf16>
    %39 = vector.shape_cast %38 : vector<1x16x16x32xbf16> to vector<256x32xbf16>
    %c3 = arith.constant 3 : index
    %c0_55 = arith.constant 0 : index
    %c0_56 = arith.constant 0 : index
    %40 = vector.load %arg4[%c3, %c0_55, %c0_56] : memref<9x32x32xbf16, #tpu.memory_space<vmem>>, vector<1x32x32xbf16>
    %41 = vector.shape_cast %40 : vector<1x32x32xbf16> to vector<32x32xbf16>
    %cst_57 = arith.constant dense<0.000000e+00> : vector<256x32xf32>
    %42 = tpu.matmul %39, %41, %cst_57 {dimension_numbers = #tpu.dot_dimension_numbers<[1], [0], [0], [1], [0, 0, 1, 1], [], []>} : vector<256x32xbf16>, vector<32x32xbf16>, vector<256x32xf32> -> vector<256x32xf32>
    %43 = arith.addf %37, %42 : vector<256x32xf32>
    %c0_58 = arith.constant 0 : index
    %c1_59 = arith.constant 1 : index
    %c1_60 = arith.constant 1 : index
    %c0_61 = arith.constant 0 : index
    %44 = vector.load %arg8[%c0_58, %c1_59, %c1_60, %c0_61] : memref<1x18x18x32xbf16, #tpu.memory_space<vmem>>, vector<1x16x16x32xbf16>
    %45 = vector.shape_cast %44 : vector<1x16x16x32xbf16> to vector<256x32xbf16>
    %c4 = arith.constant 4 : index
    %c0_62 = arith.constant 0 : index
    %c0_63 = arith.constant 0 : index
    %46 = vector.load %arg4[%c4, %c0_62, %c0_63] : memref<9x32x32xbf16, #tpu.memory_space<vmem>>, vector<1x32x32xbf16>
    %47 = vector.shape_cast %46 : vector<1x32x32xbf16> to vector<32x32xbf16>
    %cst_64 = arith.constant dense<0.000000e+00> : vector<256x32xf32>
    %48 = tpu.matmul %45, %47, %cst_64 {dimension_numbers = #tpu.dot_dimension_numbers<[1], [0], [0], [1], [0, 0, 1, 1], [], []>} : vector<256x32xbf16>, vector<32x32xbf16>, vector<256x32xf32> -> vector<256x32xf32>
    %49 = arith.addf %43, %48 : vector<256x32xf32>
    %c0_65 = arith.constant 0 : index
    %c1_66 = arith.constant 1 : index
    %c2_67 = arith.constant 2 : index
    %c0_68 = arith.constant 0 : index
    %50 = vector.load %arg8[%c0_65, %c1_66, %c2_67, %c0_68] : memref<1x18x18x32xbf16, #tpu.memory_space<vmem>>, vector<1x16x16x32xbf16>
    %51 = vector.shape_cast %50 : vector<1x16x16x32xbf16> to vector<256x32xbf16>
    %c5 = arith.constant 5 : index
    %c0_69 = arith.constant 0 : index
    %c0_70 = arith.constant 0 : index
    %52 = vector.load %arg4[%c5, %c0_69, %c0_70] : memref<9x32x32xbf16, #tpu.memory_space<vmem>>, vector<1x32x32xbf16>
    %53 = vector.shape_cast %52 : vector<1x32x32xbf16> to vector<32x32xbf16>
    %cst_71 = arith.constant dense<0.000000e+00> : vector<256x32xf32>
    %54 = tpu.matmul %51, %53, %cst_71 {dimension_numbers = #tpu.dot_dimension_numbers<[1], [0], [0], [1], [0, 0, 1, 1], [], []>} : vector<256x32xbf16>, vector<32x32xbf16>, vector<256x32xf32> -> vector<256x32xf32>
    %55 = arith.addf %49, %54 : vector<256x32xf32>
    %c0_72 = arith.constant 0 : index
    %c2_73 = arith.constant 2 : index
    %c0_74 = arith.constant 0 : index
    %c0_75 = arith.constant 0 : index
    %56 = vector.load %arg8[%c0_72, %c2_73, %c0_74, %c0_75] : memref<1x18x18x32xbf16, #tpu.memory_space<vmem>>, vector<1x16x16x32xbf16>
    %57 = vector.shape_cast %56 : vector<1x16x16x32xbf16> to vector<256x32xbf16>
    %c6 = arith.constant 6 : index
    %c0_76 = arith.constant 0 : index
    %c0_77 = arith.constant 0 : index
    %58 = vector.load %arg4[%c6, %c0_76, %c0_77] : memref<9x32x32xbf16, #tpu.memory_space<vmem>>, vector<1x32x32xbf16>
    %59 = vector.shape_cast %58 : vector<1x32x32xbf16> to vector<32x32xbf16>
    %cst_78 = arith.constant dense<0.000000e+00> : vector<256x32xf32>
    %60 = tpu.matmul %57, %59, %cst_78 {dimension_numbers = #tpu.dot_dimension_numbers<[1], [0], [0], [1], [0, 0, 1, 1], [], []>} : vector<256x32xbf16>, vector<32x32xbf16>, vector<256x32xf32> -> vector<256x32xf32>
    %61 = arith.addf %55, %60 : vector<256x32xf32>
    %c0_79 = arith.constant 0 : index
    %c2_80 = arith.constant 2 : index
    %c1_81 = arith.constant 1 : index
    %c0_82 = arith.constant 0 : index
    %62 = vector.load %arg8[%c0_79, %c2_80, %c1_81, %c0_82] : memref<1x18x18x32xbf16, #tpu.memory_space<vmem>>, vector<1x16x16x32xbf16>
    %63 = vector.shape_cast %62 : vector<1x16x16x32xbf16> to vector<256x32xbf16>
    %c7 = arith.constant 7 : index
    %c0_83 = arith.constant 0 : index
    %c0_84 = arith.constant 0 : index
    %64 = vector.load %arg4[%c7, %c0_83, %c0_84] : memref<9x32x32xbf16, #tpu.memory_space<vmem>>, vector<1x32x32xbf16>
    %65 = vector.shape_cast %64 : vector<1x32x32xbf16> to vector<32x32xbf16>
    %cst_85 = arith.constant dense<0.000000e+00> : vector<256x32xf32>
    %66 = tpu.matmul %63, %65, %cst_85 {dimension_numbers = #tpu.dot_dimension_numbers<[1], [0], [0], [1], [0, 0, 1, 1], [], []>} : vector<256x32xbf16>, vector<32x32xbf16>, vector<256x32xf32> -> vector<256x32xf32>
    %67 = arith.addf %61, %66 : vector<256x32xf32>
    %c0_86 = arith.constant 0 : index
    %c2_87 = arith.constant 2 : index
    %c2_88 = arith.constant 2 : index
    %c0_89 = arith.constant 0 : index
    %68 = vector.load %arg8[%c0_86, %c2_87, %c2_88, %c0_89] : memref<1x18x18x32xbf16, #tpu.memory_space<vmem>>, vector<1x16x16x32xbf16>
    %69 = vector.shape_cast %68 : vector<1x16x16x32xbf16> to vector<256x32xbf16>
    %c8 = arith.constant 8 : index
    %c0_90 = arith.constant 0 : index
    %c0_91 = arith.constant 0 : index
    %70 = vector.load %arg4[%c8, %c0_90, %c0_91] : memref<9x32x32xbf16, #tpu.memory_space<vmem>>, vector<1x32x32xbf16>
    %71 = vector.shape_cast %70 : vector<1x32x32xbf16> to vector<32x32xbf16>
    %cst_92 = arith.constant dense<0.000000e+00> : vector<256x32xf32>
    %72 = tpu.matmul %69, %71, %cst_92 {dimension_numbers = #tpu.dot_dimension_numbers<[1], [0], [0], [1], [0, 0, 1, 1], [], []>} : vector<256x32xbf16>, vector<32x32xbf16>, vector<256x32xf32> -> vector<256x32xf32>
    %73 = arith.addf %67, %72 : vector<256x32xf32>
    %c0_93 = arith.constant 0 : index
    %c0_94 = arith.constant 0 : index
    %74 = vector.load %arg5[%c0_93, %c0_94] : memref<256x32xf32, #tpu.memory_space<vmem>>, vector<256x32xf32>
    tpu.vector_store %arg5[%c0_93, %c0_94], %73 {strides = array<i32>} : memref<256x32xf32, #tpu.memory_space<vmem>>, vector<256x32xf32>,
    %cst_95 = arith.constant dense<0.000000e+00> : vector<32xf32>
    %75 = vector.multi_reduction <add>, %73, %cst_95 [0] : vector<256x32xf32> to vector<32xf32>
    %76 = vector.shape_cast %75 : vector<32xf32> to vector<1x32xf32>
    %77 = vector.shape_cast %76 : vector<1x32xf32> to vector<1x1x32xf32>
    %c0_96 = arith.constant 0 : index
    %c0_97 = arith.constant 0 : index
    %c0_98 = arith.constant 0 : index
    %78 = vector.load %arg6[%c0_96, %c0_97, %c0_98] : memref<1x1x32xf32, #tpu.memory_space<vmem>>, vector<1x1x32xf32>
    tpu.vector_store %arg6[%c0_96, %c0_97, %c0_98], %77 {strides = array<i32>} : memref<1x1x32xf32, #tpu.memory_space<vmem>>, vector<1x1x32xf32>,
    %79 = arith.mulf %73, %73 : vector<256x32xf32>
    %cst_99 = arith.constant dense<0.000000e+00> : vector<32xf32>
    %80 = vector.multi_reduction <add>, %79, %cst_99 [0] : vector<256x32xf32> to vector<32xf32>
    %81 = vector.shape_cast %80 : vector<32xf32> to vector<1x32xf32>
    %82 = vector.shape_cast %81 : vector<1x32xf32> to vector<1x1x32xf32>
    %c0_100 = arith.constant 0 : index
    %c0_101 = arith.constant 0 : index
    %c0_102 = arith.constant 0 : index
    %83 = vector.load %arg7[%c0_100, %c0_101, %c0_102] : memref<1x1x32xf32, #tpu.memory_space<vmem>>, vector<1x1x32xf32>
    tpu.vector_store %arg7[%c0_100, %c0_101, %c0_102], %82 {strides = array<i32>} : memref<1x1x32xf32, #tpu.memory_space<vmem>>, vector<1x1x32xf32>,
    return
  }
  func.func @transform_0(%arg0: i32) -> (i32, i32, i32, i32) {
    %c0_i32 = arith.constant 0 : i32
    %c0_i32_0 = arith.constant 0 : i32
    %c0_i32_1 = arith.constant 0 : i32
    %c0_i32_2 = arith.constant 0 : i32
    return %arg0, %c0_i32, %c0_i32_0, %c0_i32_1 : i32, i32, i32, i32
  }
  func.func @transform_1(%arg0: i32) -> (i32, i32) {
    %c0_i32 = arith.constant 0 : i32
    %c0_i32_0 = arith.constant 0 : i32
    %c0_i32_1 = arith.constant 0 : i32
    return %c0_i32, %c0_i32_0 : i32, i32
  }
  func.func @transform_2(%arg0: i32) -> (i32, i32) {
    %c0_i32 = arith.constant 0 : i32
    %c0_i32_0 = arith.constant 0 : i32
    %c0_i32_1 = arith.constant 0 : i32
    return %c0_i32, %c0_i32_0 : i32, i32
  }
  func.func @transform_3(%arg0: i32) -> (i32, i32, i32) {
    %c0_i32 = arith.constant 0 : i32
    %c0_i32_0 = arith.constant 0 : i32
    %c0_i32_1 = arith.constant 0 : i32
    %c0_i32_2 = arith.constant 0 : i32
    return %c0_i32, %c0_i32_0, %c0_i32_1 : i32, i32, i32
  }
  func.func @transform_4(%arg0: i32) -> (i32, i32) {
    %c0_i32 = arith.constant 0 : i32
    %c0_i32_0 = arith.constant 0 : i32
    return %arg0, %c0_i32 : i32, i32
  }
  func.func @transform_5(%arg0: i32) -> (i32, i32, i32) {
    %c0_i32 = arith.constant 0 : i32
    %c0_i32_0 = arith.constant 0 : i32
    %c0_i32_1 = arith.constant 0 : i32
    return %arg0, %c0_i32, %c0_i32_0 : i32, i32, i32
  }
  func.func @transform_6(%arg0: i32) -> (i32, i32, i32) {
    %c0_i32 = arith.constant 0 : i32
    %c0_i32_0 = arith.constant 0 : i32
    %c0_i32_1 = arith.constant 0 : i32
    return %arg0, %c0_i32, %c0_i32_0 : i32, i32, i32
  }
}

module attributes {stable_mosaic.version = 11 : i64} {
  func.func @conv3_kernel(%arg0: i32, %arg1: memref<256x32xf32, #tpu.memory_space<vmem>>, %arg2: memref<1x32xf32, #tpu.memory_space<vmem>>, %arg3: memref<1x32xf32, #tpu.memory_space<vmem>>, %arg4: memref<32x128xbf16, #tpu.memory_space<vmem>>, %arg5: memref<256x128xf32, #tpu.memory_space<vmem>>, %arg6: memref<1x1x128xf32, #tpu.memory_space<vmem>>, %arg7: memref<1x1x128xf32, #tpu.memory_space<vmem>>) attributes {dimension_semantics = [#tpu.dimension_semantics<parallel>], iteration_bounds = array<i64: 2>, scalar_prefetch = 0 : i64, scratch_operands = 0 : i64, tpu.core_type = #tpu.core_type<tc>, window_params = [{transform_indices = @transform_0, window_bounds = array<i64: 256, 32>}, {pipeline_mode = #tpu.pipeline_mode<synchronous>, transform_indices = @transform_1, window_bounds = array<i64: 1, 32>}, {pipeline_mode = #tpu.pipeline_mode<synchronous>, transform_indices = @transform_2, window_bounds = array<i64: 1, 32>}, {pipeline_mode = #tpu.pipeline_mode<synchronous>, transform_indices = @transform_3, window_bounds = array<i64: 32, 128>}, {transform_indices = @transform_4, window_bounds = array<i64: 256, 128>}, {transform_indices = @transform_5, window_bounds = array<i64: 1, 1, 128>}, {transform_indices = @transform_6, window_bounds = array<i64: 1, 1, 128>}]} {
    %c0 = arith.constant 0 : index
    %c0_0 = arith.constant 0 : index
    %0 = vector.load %arg1[%c0, %c0_0] : memref<256x32xf32, #tpu.memory_space<vmem>>, vector<256x32xf32>
    %c0_1 = arith.constant 0 : index
    %c0_2 = arith.constant 0 : index
    %1 = vector.load %arg2[%c0_1, %c0_2] : memref<1x32xf32, #tpu.memory_space<vmem>>, vector<1x32xf32>
    %2 = vector.broadcast %1 : vector<1x32xf32> to vector<256x32xf32>
    %3 = arith.mulf %0, %2 : vector<256x32xf32>
    %c0_3 = arith.constant 0 : index
    %c0_4 = arith.constant 0 : index
    %4 = vector.load %arg3[%c0_3, %c0_4] : memref<1x32xf32, #tpu.memory_space<vmem>>, vector<1x32xf32>
    %5 = vector.broadcast %4 : vector<1x32xf32> to vector<256x32xf32>
    %6 = arith.addf %3, %5 : vector<256x32xf32>
    %cst = arith.constant 0.000000e+00 : f32
    %7 = vector.broadcast %cst : f32 to vector<256x32xf32>
    %8 = arith.maximumf %6, %7 : vector<256x32xf32>
    %9 = arith.truncf %8 : vector<256x32xf32> to vector<256x32xbf16>
    %c0_5 = arith.constant 0 : index
    %c0_6 = arith.constant 0 : index
    %10 = vector.load %arg4[%c0_5, %c0_6] : memref<32x128xbf16, #tpu.memory_space<vmem>>, vector<32x128xbf16>
    %cst_7 = arith.constant dense<0.000000e+00> : vector<256x128xf32>
    %11 = tpu.matmul %9, %10, %cst_7 {dimension_numbers = #tpu.dot_dimension_numbers<[1], [0], [0], [1], [0, 0, 1, 1], [], []>} : vector<256x32xbf16>, vector<32x128xbf16>, vector<256x128xf32> -> vector<256x128xf32>
    %c0_8 = arith.constant 0 : index
    %c0_9 = arith.constant 0 : index
    %12 = vector.load %arg5[%c0_8, %c0_9] : memref<256x128xf32, #tpu.memory_space<vmem>>, vector<256x128xf32>
    tpu.vector_store %arg5[%c0_8, %c0_9], %11 {strides = array<i32>} : memref<256x128xf32, #tpu.memory_space<vmem>>, vector<256x128xf32>,
    %cst_10 = arith.constant dense<0.000000e+00> : vector<128xf32>
    %13 = vector.multi_reduction <add>, %11, %cst_10 [0] : vector<256x128xf32> to vector<128xf32>
    %14 = vector.shape_cast %13 : vector<128xf32> to vector<1x128xf32>
    %15 = vector.shape_cast %14 : vector<1x128xf32> to vector<1x1x128xf32>
    %c0_11 = arith.constant 0 : index
    %c0_12 = arith.constant 0 : index
    %c0_13 = arith.constant 0 : index
    %16 = vector.load %arg6[%c0_11, %c0_12, %c0_13] : memref<1x1x128xf32, #tpu.memory_space<vmem>>, vector<1x1x128xf32>
    tpu.vector_store %arg6[%c0_11, %c0_12, %c0_13], %15 {strides = array<i32>} : memref<1x1x128xf32, #tpu.memory_space<vmem>>, vector<1x1x128xf32>,
    %17 = arith.mulf %11, %11 : vector<256x128xf32>
    %cst_14 = arith.constant dense<0.000000e+00> : vector<128xf32>
    %18 = vector.multi_reduction <add>, %17, %cst_14 [0] : vector<256x128xf32> to vector<128xf32>
    %19 = vector.shape_cast %18 : vector<128xf32> to vector<1x128xf32>
    %20 = vector.shape_cast %19 : vector<1x128xf32> to vector<1x1x128xf32>
    %c0_15 = arith.constant 0 : index
    %c0_16 = arith.constant 0 : index
    %c0_17 = arith.constant 0 : index
    %21 = vector.load %arg7[%c0_15, %c0_16, %c0_17] : memref<1x1x128xf32, #tpu.memory_space<vmem>>, vector<1x1x128xf32>
    tpu.vector_store %arg7[%c0_15, %c0_16, %c0_17], %20 {strides = array<i32>} : memref<1x1x128xf32, #tpu.memory_space<vmem>>, vector<1x1x128xf32>,
    return
  }
  func.func @transform_0(%arg0: i32) -> (i32, i32) {
    %c0_i32 = arith.constant 0 : i32
    %c0_i32_0 = arith.constant 0 : i32
    return %arg0, %c0_i32 : i32, i32
  }
  func.func @transform_1(%arg0: i32) -> (i32, i32) {
    %c0_i32 = arith.constant 0 : i32
    %c0_i32_0 = arith.constant 0 : i32
    %c0_i32_1 = arith.constant 0 : i32
    return %c0_i32, %c0_i32_0 : i32, i32
  }
  func.func @transform_2(%arg0: i32) -> (i32, i32) {
    %c0_i32 = arith.constant 0 : i32
    %c0_i32_0 = arith.constant 0 : i32
    %c0_i32_1 = arith.constant 0 : i32
    return %c0_i32, %c0_i32_0 : i32, i32
  }
  func.func @transform_3(%arg0: i32) -> (i32, i32) {
    %c0_i32 = arith.constant 0 : i32
    %c0_i32_0 = arith.constant 0 : i32
    %c0_i32_1 = arith.constant 0 : i32
    return %c0_i32, %c0_i32_0 : i32, i32
  }
  func.func @transform_4(%arg0: i32) -> (i32, i32) {
    %c0_i32 = arith.constant 0 : i32
    %c0_i32_0 = arith.constant 0 : i32
    return %arg0, %c0_i32 : i32, i32
  }
  func.func @transform_5(%arg0: i32) -> (i32, i32, i32) {
    %c0_i32 = arith.constant 0 : i32
    %c0_i32_0 = arith.constant 0 : i32
    %c0_i32_1 = arith.constant 0 : i32
    return %arg0, %c0_i32, %c0_i32_0 : i32, i32, i32
  }
  func.func @transform_6(%arg0: i32) -> (i32, i32, i32) {
    %c0_i32 = arith.constant 0 : i32
    %c0_i32_0 = arith.constant 0 : i32
    %c0_i32_1 = arith.constant 0 : i32
    return %arg0, %c0_i32, %c0_i32_0 : i32, i32, i32
  }
}

module attributes {stable_mosaic.version = 11 : i64} {
  func.func @residual_kernel(%arg0: i32, %arg1: memref<256x128xf32, #tpu.memory_space<vmem>>, %arg2: memref<256x128xf32, #tpu.memory_space<vmem>>, %arg3: memref<1x128xf32, #tpu.memory_space<vmem>>, %arg4: memref<1x128xf32, #tpu.memory_space<vmem>>, %arg5: memref<256x128xf32, #tpu.memory_space<vmem>>) attributes {dimension_semantics = [#tpu.dimension_semantics<parallel>], iteration_bounds = array<i64: 2>, scalar_prefetch = 0 : i64, scratch_operands = 0 : i64, tpu.core_type = #tpu.core_type<tc>, window_params = [{transform_indices = @transform_0, window_bounds = array<i64: 256, 128>}, {transform_indices = @transform_1, window_bounds = array<i64: 256, 128>}, {pipeline_mode = #tpu.pipeline_mode<synchronous>, transform_indices = @transform_2, window_bounds = array<i64: 1, 128>}, {pipeline_mode = #tpu.pipeline_mode<synchronous>, transform_indices = @transform_3, window_bounds = array<i64: 1, 128>}, {transform_indices = @transform_4, window_bounds = array<i64: 256, 128>}]} {
    %c0 = arith.constant 0 : index
    %c0_0 = arith.constant 0 : index
    %0 = vector.load %arg1[%c0, %c0_0] : memref<256x128xf32, #tpu.memory_space<vmem>>, vector<256x128xf32>
    %c0_1 = arith.constant 0 : index
    %c0_2 = arith.constant 0 : index
    %1 = vector.load %arg3[%c0_1, %c0_2] : memref<1x128xf32, #tpu.memory_space<vmem>>, vector<1x128xf32>
    %2 = vector.broadcast %1 : vector<1x128xf32> to vector<256x128xf32>
    %3 = arith.mulf %0, %2 : vector<256x128xf32>
    %c0_3 = arith.constant 0 : index
    %c0_4 = arith.constant 0 : index
    %4 = vector.load %arg4[%c0_3, %c0_4] : memref<1x128xf32, #tpu.memory_space<vmem>>, vector<1x128xf32>
    %5 = vector.broadcast %4 : vector<1x128xf32> to vector<256x128xf32>
    %6 = arith.addf %3, %5 : vector<256x128xf32>
    %c0_5 = arith.constant 0 : index
    %c0_6 = arith.constant 0 : index
    %7 = vector.load %arg2[%c0_5, %c0_6] : memref<256x128xf32, #tpu.memory_space<vmem>>, vector<256x128xf32>
    %8 = arith.addf %6, %7 : vector<256x128xf32>
    %cst = arith.constant 0.000000e+00 : f32
    %9 = vector.broadcast %cst : f32 to vector<256x128xf32>
    %10 = arith.maximumf %8, %9 : vector<256x128xf32>
    %c0_7 = arith.constant 0 : index
    %c0_8 = arith.constant 0 : index
    %11 = vector.load %arg5[%c0_7, %c0_8] : memref<256x128xf32, #tpu.memory_space<vmem>>, vector<256x128xf32>
    tpu.vector_store %arg5[%c0_7, %c0_8], %10 {strides = array<i32>} : memref<256x128xf32, #tpu.memory_space<vmem>>, vector<256x128xf32>,
    return
  }
  func.func @transform_0(%arg0: i32) -> (i32, i32) {
    %c0_i32 = arith.constant 0 : i32
    %c0_i32_0 = arith.constant 0 : i32
    return %arg0, %c0_i32 : i32, i32
  }
  func.func @transform_1(%arg0: i32) -> (i32, i32) {
    %c0_i32 = arith.constant 0 : i32
    %c0_i32_0 = arith.constant 0 : i32
    return %arg0, %c0_i32 : i32, i32
  }
  func.func @transform_2(%arg0: i32) -> (i32, i32) {
    %c0_i32 = arith.constant 0 : i32
    %c0_i32_0 = arith.constant 0 : i32
    %c0_i32_1 = arith.constant 0 : i32
    return %c0_i32, %c0_i32_0 : i32, i32
  }
  func.func @transform_3(%arg0: i32) -> (i32, i32) {
    %c0_i32 = arith.constant 0 : i32
    %c0_i32_0 = arith.constant 0 : i32
    %c0_i32_1 = arith.constant 0 : i32
    return %c0_i32, %c0_i32_0 : i32, i32
  }
  func.func @transform_4(%arg0: i32) -> (i32, i32) {
    %c0_i32 = arith.constant 0 : i32
    %c0_i32_0 = arith.constant 0 : i32
    return %arg0, %c0_i32 : i32, i32
  }
}

</mosaic_0001>

<llo_original>
// kernel: bottleneck_forward.4
$region0: #{bottleneck_forward.4}
  #allocation0 [shape = 'u32[]', space=smem, size = 0x4, offset = 0x4, fixed_abs, tag = 'smem constant byte address 0x4 - core index']
  #allocation1 [shape = 'u32[72,128]{1,0:T(1,128)}', space=vmem, size = 0x9000, scoped, tag = 'internal scratch']
  %s0 = inlined_call_operand.hbm [shape: f32[512,128], index: 0, kind: input, shape index: {}]
  %s1 = inlined_call_operand.vmem [shape: bf16[128,32], index: 1, kind: input, shape index: {}]
  %s2 = inlined_call_operand.vmem [shape: f32[512,32], index: 2, kind: output, shape index: {0}]
  %s3 = inlined_call_operand.vmem [shape: f32[2,1,32], index: 3, kind: output, shape index: {1}]
  %s4 = inlined_call_operand.vmem [shape: f32[2,1,32], index: 4, kind: output, shape index: {2}]
  %5 = xla_tuple %s2, %s3, %s4
  %s6 = sld [smem:[#allocation0]]
  $region61: #{bottleneck_forward.4} parent=0
    _
  %s8 = ssub.s32 1, %s6
  %s9 = scalar_select 0, %s8, %s6
  $region1: #{bottleneck_forward.4} parent=0
    #allocation2 [shape = 'u8[262144]{0}', space=vmem, size = 0x40000, scoped, tag = 'input window, operand 0']
    #allocation3 [shape = 's32[2]{0}', space=sflag, size = 0x8, scoped, tag = 'scoped memory for bottleneck_forward.4']
    %10 = vsyncpa [#allocation3], 0
    %s11 = scalar_lea.sflag [#allocation3], 1
    %12 = vsyncpa %s11, 0
    loop: start=0, step=1, limit=4
    $region2: #{bottleneck_forward.4} parent=1 // loop_pre_header
      _
    $region3: #{bottleneck_forward.4} parent=1 // loop_header
      %s14 = sphi 0, %s18
      %p15 = scmp.ge.s32.totalorder %s14, 4
      %s24 = sphi 0, %s26
      %s27 = sphi 0, %s24
      %s28 = sphi 0, %s27
      %s44 = sphi 0, %s28
      %s48 = sphi 0, %s48
      %s50 = sphi 0, %s48
      %s51 = sphi 0, %s50
      %s65 = sphi 0, %s51
      %s71 = sphi 0, %s73
      %s74 = sphi 0, %s71
      %s75 = sphi 0, %s74
      %s91 = sphi 0, %s75
      %s97 = sphi 0, %s99
      %s100 = sphi 0, %s97
      %s101 = sphi 0, %s100
      %s117 = sphi 0, %s101
      %s123 = sphi 0, %s125
      %s126 = sphi 0, %s123
      %s127 = sphi 0, %s126
      %s143 = sphi 0, %s127
    $region4: #{bottleneck_forward.4} parent=1 // loop_header_branch
      %17 = sbr.rel (%p15) target = $region8
    $region5: #{bottleneck_forward.4} parent=1 // loop_body
      %s19 = ssub.s32 %s14, 1
      %s20 = ssub.s32 %s14, 2
      %s21 = sadd.s32 %s14, 1
      %s22 = ssub.s32 %s14, %s21
      %p23 = scmp.eq.s32.totalorder %s22, 0
      %s25 = sadd.s32 %s24, 1
      %s26 = scalar_select %p23, %s24, %s25
      %p29 = pneg %p23
      %p30 = scmp.eq.s32.totalorder %s14, 1
      %p31 = por %p29, %p30
      %p32 = scmp.ne.s32.totalorder %s24, %s27
      %p33 = scmp.eq.s32.totalorder %s14, 0
      %p34 = por %p32, %p33
      %p35 = scmp.ne.s32.totalorder %s24, %s27
      %p36 = scmp.eq.s32.totalorder %s19, 1
      %p37 = por %p35, %p36
      %p38 = scmp.ne.s32.totalorder %s27, %s28
      %p39 = scmp.eq.s32.totalorder %s19, 0
      %p40 = por %p38, %p39
      %p41 = scmp.ne.s32.totalorder %s27, %s28
      %p42 = scmp.eq.s32.totalorder %s20, 1
      %p43 = por %p41, %p42
      %p45 = scmp.ne.s32.totalorder %s28, %s44
      %p46 = scmp.eq.s32.totalorder %s20, 0
      %p47 = por %p45, %p46
      %s49 = sadd.s32 %s48, 1
      %p52 = scmp.eq.s32.totalorder %s14, 1
      %p53 = scmp.ne.s32.totalorder %s48, %s50
      %p54 = scmp.eq.s32.totalorder %s14, 0
      %p55 = por %p53, %p54
      %p56 = scmp.ne.s32.totalorder %s48, %s50
      %p57 = scmp.eq.s32.totalorder %s19, 1
      %p58 = por %p56, %p57
      %p59 = scmp.ne.s32.totalorder %s50, %s51
      %p60 = scmp.eq.s32.totalorder %s19, 0
      %p61 = por %p59, %p60
      %p62 = scmp.ne.s32.totalorder %s50, %s51
      %p63 = scmp.eq.s32.totalorder %s20, 1
      %p64 = por %p62, %p63
      %p66 = scmp.ne.s32.totalorder %s51, %s65
      %p67 = scmp.eq.s32.totalorder %s20, 0
      %p68 = por %p66, %p67
      %s69 = ssub.s32 %s14, %s21
      %p70 = scmp.eq.s32.totalorder %s69, 0
      %s72 = sadd.s32 %s71, 1
      %s73 = scalar_select %p70, %s71, %s72
      %p76 = pneg %p70
      %p77 = scmp.eq.s32.totalorder %s14, 1
      %p78 = por %p76, %p77
      %p79 = scmp.ne.s32.totalorder %s71, %s74
      %p80 = scmp.eq.s32.totalorder %s14, 0
      %p81 = por %p79, %p80
      %p82 = scmp.ne.s32.totalorder %s71, %s74
      %p83 = scmp.eq.s32.totalorder %s19, 1
      %p84 = por %p82, %p83
      %p85 = scmp.ne.s32.totalorder %s74, %s75
      %p86 = scmp.eq.s32.totalorder %s19, 0
      %p87 = por %p85, %p86
      %p88 = scmp.ne.s32.totalorder %s74, %s75
      %p89 = scmp.eq.s32.totalorder %s20, 1
      %p90 = por %p88, %p89
      %p92 = scmp.ne.s32.totalorder %s75, %s91
      %p93 = scmp.eq.s32.totalorder %s20, 0
      %p94 = por %p92, %p93
      %s95 = ssub.s32 %s14, %s21
      %p96 = scmp.eq.s32.totalorder %s95, 0
      %s98 = sadd.s32 %s97, 1
      %s99 = scalar_select %p96, %s97, %s98
      %p102 = pneg %p96
      %p103 = scmp.eq.s32.totalorder %s14, 1
      %p104 = por %p102, %p103
      %p105 = scmp.ne.s32.totalorder %s97, %s100
      %p106 = scmp.eq.s32.totalorder %s14, 0
      %p107 = por %p105, %p106
      %p108 = scmp.ne.s32.totalorder %s97, %s100
      %p109 = scmp.eq.s32.totalorder %s19, 1
      %p110 = por %p108, %p109
      %p111 = scmp.ne.s32.totalorder %s100, %s101
      %p112 = scmp.eq.s32.totalorder %s19, 0
      %p113 = por %p111, %p112
      %p114 = scmp.ne.s32.totalorder %s100, %s101
      %p115 = scmp.eq.s32.totalorder %s20, 1
      %p116 = por %p114, %p115
      %p118 = scmp.ne.s32.totalorder %s101, %s117
      %p119 = scmp.eq.s32.totalorder %s20, 0
      %p120 = por %p118, %p119
      %s121 = ssub.s32 %s14, %s21
      %p122 = scmp.eq.s32.totalorder %s121, 0
      %s124 = sadd.s32 %s123, 1
      %s125 = scalar_select %p122, %s123, %s124
      %p128 = pneg %p122
      %p129 = scmp.eq.s32.totalorder %s14, 1
      %p130 = por %p128, %p129
      %p131 = scmp.ne.s32.totalorder %s123, %s126
      %p132 = scmp.eq.s32.totalorder %s14, 0
      %p133 = por %p131, %p132
      %p134 = scmp.ne.s32.totalorder %s123, %s126
      %p135 = scmp.eq.s32.totalorder %s19, 1
      %p136 = por %p134, %p135
      %p137 = scmp.ne.s32.totalorder %s126, %s127
      %p138 = scmp.eq.s32.totalorder %s19, 0
      %p139 = por %p137, %p138
      %p140 = scmp.ne.s32.totalorder %s126, %s127
      %p141 = scmp.eq.s32.totalorder %s20, 1
      %p142 = por %p140, %p141
      %p144 = scmp.ne.s32.totalorder %s127, %s143
      %p145 = scmp.eq.s32.totalorder %s20, 0
      %p146 = por %p144, %p145
      %p147 = scmp.le.s32.totalorder 1, %s14
      %p148 = scmp.lt.s32.totalorder %s14, 3
      %p149 = pnand %p147, %p148
      %p150 = pneg %p149
      // Predicated region
      $region9: #{bottleneck_forward.4} parent=5 // pred_check
        _
      $region10: #{bottleneck_forward.4} parent=5 // pred_check_branch
        %152 = sbr.rel (%p149) target = $region12
      $region11: #{bottleneck_forward.4} parent=5 // pred_region
        %s153 = ssub.s32 %s14, 1
        // Predicated region
        $region13: #{bottleneck_forward.4} parent=11 // pred_check
          %p154 = pneg %p61
        $region14: #{bottleneck_forward.4} parent=11 // pred_check_branch
          %156 = sbr.rel (%p154) target = $region16
        $region15: #{bottleneck_forward.4} parent=11 // pred_region
          _
        $region16: #{bottleneck_forward.4} parent=11 // pred_fallthru
          _
      $region12: #{bottleneck_forward.4} parent=5 // pred_fallthru
        _
      %p157 = scmp.lt.s32.totalorder %s14, 2
      // Predicated region
      $region17: #{bottleneck_forward.4} parent=5 // pred_check
        %p158 = pneg %p157
      $region18: #{bottleneck_forward.4} parent=5 // pred_check_branch
        %160 = sbr.rel (%p158) target = $region20
      $region19: #{bottleneck_forward.4} parent=5 // pred_region
        // Predicated region
        $region21: #{bottleneck_forward.4} parent=19 // pred_check
          %p161 = pneg %p34
        $region22: #{bottleneck_forward.4} parent=19 // pred_check_branch
          %163 = sbr.rel (%p161) target = $region24
        $region23: #{bottleneck_forward.4} parent=19 // pred_region
          %s164 = sand.u32 %s24, 1
          %s165 = scalar_lea.sflag [#allocation3], %s164
          %s166 = sand.u32 %s24, 1
          %s167 = smul.addr %s166, 256
          %s168 = scalar_lea.vmem [#allocation2], %s167
          %s169 = smul.u32 32, %s14
          %171 = vsyncadd %s165, 0
          %s172 = smul.addr %s169, 8
          %s173 = scalar_lea.hbm %s0, %s172
          %s174 = sshll.u32 %s173, 4
          %s175 = int_to_ptr.hbm [resolvable:$true] %s174
          %s176 = sshll.u32 %s168, 4
          %s177 = int_to_ptr.vmem [resolvable:$true] %s176
          %182 = dma.hbm_to_vmem [thread:$0]  %s175, 4096, %s177, %s165, 128, 128, 8
        $region24: #{bottleneck_forward.4} parent=19 // pred_fallthru
          _
      $region20: #{bottleneck_forward.4} parent=5 // pred_fallthru
        _
      %p183 = scmp.le.s32.totalorder 1, %s14
      %p184 = scmp.lt.s32.totalorder %s14, 3
      %p185 = pnand %p183, %p184
      %p186 = pneg %p185
      // Predicated region
      $region25: #{bottleneck_forward.4} parent=5 // pred_check
        _
      $region26: #{bottleneck_forward.4} parent=5 // pred_check_branch
        %188 = sbr.rel (%p185) target = $region28
      $region27: #{bottleneck_forward.4} parent=5 // pred_region
        %s189 = ssub.s32 %s14, 1
        %s190 = sand.u32 %s27, 1
        %s191 = scalar_lea.sflag [#allocation3], %s190
        %s192 = sand.u32 %s27, 1
        %s193 = smul.addr %s192, 256
        %s194 = scalar_lea.vmem [#allocation2], %s193
        // Predicated region
        $region29: #{bottleneck_forward.4} parent=27 // pred_check
          %p195 = pneg %p40
        $region30: #{bottleneck_forward.4} parent=27 // pred_check_branch
          %197 = sbr.rel (%p195) target = $region32
        $region31: #{bottleneck_forward.4} parent=27 // pred_region
          %199 = dma.done %s191, 4096
        $region32: #{bottleneck_forward.4} parent=27 // pred_fallthru
          _
        %s200 = sand.u32 %s27, 1
        %s201 = scalar_lea.sflag [#allocation3], %s200
        %s202 = sand.u32 %s27, 1
        %s203 = smul.addr %s202, 256
        %s204 = scalar_lea.vmem [#allocation2], %s203
        %p205 = pneg %p40
        %p206 = pneg %p37
        %p207 = pneg %p61
        %p208 = pneg %p58
        %p209 = pneg %p87
        %p210 = pneg %p84
        %s211 = smul.u32 32, %s19
        %p212 = scmp.lt.s32.totalorder %s211, 63
        %s213 = scalar_select %p212, %s211, 63
        %s214 = smul.addr %s213, 8
        %s215 = scalar_lea.vmem %s2, %s214
        %p216 = pneg %p113
        %p217 = pneg %p110
        %p218 = scmp.lt.s32.totalorder %s19, 1
        %s219 = scalar_select %p218, %s19, 1
        %s220 = scalar_lea.vmem %s3, %s219
        %p221 = pneg %p139
        %p222 = pneg %p136
        %p223 = scmp.lt.s32.totalorder %s19, 1
        %s224 = scalar_select %p223, %s19, 1
        %s225 = scalar_lea.vmem %s4, %s224
        %s226 = smul.u32 32, %s19
        %s227 = smul.u32 32, %s19
        %p228 = scmp.lt.s32.totalorder %s227, 63
        %s229 = scalar_select %p228, %s227, 63
        %s230 = smul.addr %s229, 8
        %s231 = scalar_lea.vmem %s2, %s230
        %s232 = smul.u32 32, %s19
        %p233 = scmp.lt.s32.totalorder %s19, 1
        %s234 = scalar_select %p233, %s19, 1
        %s235 = scalar_lea.vmem %s3, %s234
        %p236 = scmp.lt.s32.totalorder %s19, 1
        %s237 = scalar_select %p236, %s19, 1
        %s238 = scalar_lea.vmem %s4, %s237
        %v239 = vld [vmem:[%s194] sm:$0xff]
        %v240 = vld [vmem:[%s194 + $0x8] sm:$0xff]
        %v241 = vld [vmem:[%s194 + $0x10] sm:$0xff]
        %v242 = vld [vmem:[%s194 + $0x18] sm:$0xff]
        %v243 = vld [vmem:[%s194 + $0x20] sm:$0xff]
        %v244 = vld [vmem:[%s194 + $0x28] sm:$0xff]
        %v245 = vld [vmem:[%s194 + $0x30] sm:$0xff]
        %v246 = vld [vmem:[%s194 + $0x38] sm:$0xff]
        %v247 = vld [vmem:[%s194 + $0x40] sm:$0xff]
        %v248 = vld [vmem:[%s194 + $0x48] sm:$0xff]
        %v249 = vld [vmem:[%s194 + $0x50] sm:$0xff]
        %v250 = vld [vmem:[%s194 + $0x58] sm:$0xff]
        %v251 = vld [vmem:[%s194 + $0x60] sm:$0xff]
        %v252 = vld [vmem:[%s194 + $0x68] sm:$0xff]
        %v253 = vld [vmem:[%s194 + $0x70] sm:$0xff]
        %v254 = vld [vmem:[%s194 + $0x78] sm:$0xff]
        %v255 = vld [vmem:[%s194 + $0x80] sm:$0xff]
        %v256 = vld [vmem:[%s194 + $0x88] sm:$0xff]
        %v257 = vld [vmem:[%s194 + $0x90] sm:$0xff]
        %v258 = vld [vmem:[%s194 + $0x98] sm:$0xff]
        %v259 = vld [vmem:[%s194 + $0xa0] sm:$0xff]
        %v260 = vld [vmem:[%s194 + $0xa8] sm:$0xff]
        %v261 = vld [vmem:[%s194 + $0xb0] sm:$0xff]
        %v262 = vld [vmem:[%s194 + $0xb8] sm:$0xff]
        %v263 = vld [vmem:[%s194 + $0xc0] sm:$0xff]
        %v264 = vld [vmem:[%s194 + $0xc8] sm:$0xff]
        %v265 = vld [vmem:[%s194 + $0xd0] sm:$0xff]
        %v266 = vld [vmem:[%s194 + $0xd8] sm:$0xff]
        %v267 = vld [vmem:[%s194 + $0xe0] sm:$0xff]
        %v268 = vld [vmem:[%s194 + $0xe8] sm:$0xff]
        %v269 = vld [vmem:[%s194 + $0xf0] sm:$0xff]
        %v270 = vld [vmem:[%s194 + $0xf8] sm:$0xff]
        %v271 = vpack.c.bf16 %v240, %v239
        %v272 = vpack.c.bf16 %v242, %v241
        %v273 = vpack.c.bf16 %v244, %v243
        %v274 = vpack.c.bf16 %v246, %v245
        %v275 = vpack.c.bf16 %v248, %v247
        %v276 = vpack.c.bf16 %v250, %v249
        %v277 = vpack.c.bf16 %v252, %v251
        %v278 = vpack.c.bf16 %v254, %v253
        %v279 = vpack.c.bf16 %v256, %v255
        %v280 = vpack.c.bf16 %v258, %v257
        %v281 = vpack.c.bf16 %v260, %v259
        %v282 = vpack.c.bf16 %v262, %v261
        %v283 = vpack.c.bf16 %v264, %v263
        %v284 = vpack.c.bf16 %v266, %v265
        %v285 = vpack.c.bf16 %v268, %v267
        %v286 = vpack.c.bf16 %v270, %v269
        %v287 = vld [vmem:[%s1] sm:$0xf]
        %v288 = vld [vmem:[%s1 + $0x4] sm:$0xf]
        %v289 = vld [vmem:[%s1 + $0x8] sm:$0xf]
        %v290 = vld [vmem:[%s1 + $0xc] sm:$0xf]
        %v291 = vld [vmem:[%s1 + $0x10] sm:$0xf]
        %v292 = vld [vmem:[%s1 + $0x14] sm:$0xf]
        %v293 = vld [vmem:[%s1 + $0x18] sm:$0xf]
        %v294 = vld [vmem:[%s1 + $0x1c] sm:$0xf]
        %v295 = vld [vmem:[%s1 + $0x20] sm:$0xf]
        %v296 = vld [vmem:[%s1 + $0x24] sm:$0xf]
        %v297 = vld [vmem:[%s1 + $0x28] sm:$0xf]
        %v298 = vld [vmem:[%s1 + $0x2c] sm:$0xf]
        %v299 = vld [vmem:[%s1 + $0x30] sm:$0xf]
        %v300 = vld [vmem:[%s1 + $0x34] sm:$0xf]
        %v301 = vld [vmem:[%s1 + $0x38] sm:$0xf]
        %v302 = vld [vmem:[%s1 + $0x3c] sm:$0xf]
        %v319 = vunpack.c.l.b16 %v287
        %v320 = vunpack.c.l.b16 %v288
        %v321 = vunpack.c.l.b16 %v289
        %v322 = vunpack.c.l.b16 %v290
        %v323 = vunpack.c.l.b16 %v291
        %v324 = vunpack.c.l.b16 %v292
        %v325 = vunpack.c.l.b16 %v293
        %v326 = vunpack.c.l.b16 %v294
        %v327 = vunpack.c.l.b16 %v295
        %v328 = vunpack.c.l.b16 %v296
        %v329 = vunpack.c.l.b16 %v297
        %v330 = vunpack.c.l.b16 %v298
        %v331 = vunpack.c.l.b16 %v299
        %v332 = vunpack.c.l.b16 %v300
        %v333 = vunpack.c.l.b16 %v301
        %v334 = vunpack.c.l.b16 %v302
        %v335 = vpack.c.b16 %v320, %v319
        %v336 = vpack.c.b16 %v322, %v321
        %v337 = vpack.c.b16 %v324, %v323
        %v338 = vpack.c.b16 %v326, %v325
        %v339 = vpack.c.b16 %v328, %v327
        %v340 = vpack.c.b16 %v330, %v329
        %v341 = vpack.c.b16 %v332, %v331
        %v342 = vpack.c.b16 %v334, %v333
        %351 = vmatpush.bf16.msra.mxu0 %v342
        %352 = vmatpush.bf16.msra.mxu0 %v341
        %353 = vmatpush.bf16.msra.mxu0 %v340
        %354 = vmatpush.bf16.msra.mxu0 %v339
        %355 = vmatpush.bf16.msra.mxu0 %v338
        %356 = vmatpush.bf16.msra.mxu0 %v337
        %357 = vmatpush.bf16.msra.mxu0 %v336
        %358 = vmatpush.bf16.msra.mxu0 %v335
        %359 = vmatmul.bf16.gmra.mxu0 %v271
        %v360 = vpop.f32.mrf.mxu0
        %v361 = vadd.f32 0.0, %v360
        %v362 = vpop.f32.mrf.mxu0
        %v363 = vadd.f32 0.0, %v362
        %364 = vmatmul.bf16.gmra.mxu0 %v272
        %v365 = vpop.f32.mrf.mxu0
        %v366 = vadd.f32 0.0, %v365
        %v367 = vpop.f32.mrf.mxu0
        %v368 = vadd.f32 0.0, %v367
        %369 = vmatmul.bf16.gmra.mxu0 %v273
        %v370 = vpop.f32.mrf.mxu0
        %v371 = vadd.f32 0.0, %v370
        %v372 = vpop.f32.mrf.mxu0
        %v373 = vadd.f32 0.0, %v372
        %374 = vmatmul.bf16.gmra.mxu0 %v274
        %v375 = vpop.f32.mrf.mxu0
        %v376 = vadd.f32 0.0, %v375
        %v377 = vpop.f32.mrf.mxu0
        %v378 = vadd.f32 0.0, %v377
        %379 = vmatmul.bf16.gmra.mxu0 %v275
        %v380 = vpop.f32.mrf.mxu0
        %v381 = vadd.f32 0.0, %v380
        %v382 = vpop.f32.mrf.mxu0
        %v383 = vadd.f32 0.0, %v382
        %384 = vmatmul.bf16.gmra.mxu0 %v276
        %v385 = vpop.f32.mrf.mxu0
        %v386 = vadd.f32 0.0, %v385
        %v387 = vpop.f32.mrf.mxu0
        %v388 = vadd.f32 0.0, %v387
        %389 = vmatmul.bf16.gmra.mxu0 %v277
        %v390 = vpop.f32.mrf.mxu0
        %v391 = vadd.f32 0.0, %v390
        %v392 = vpop.f32.mrf.mxu0
        %v393 = vadd.f32 0.0, %v392
        %394 = vmatmul.bf16.gmra.mxu0 %v278
        %v395 = vpop.f32.mrf.mxu0
        %v396 = vadd.f32 0.0, %v395
        %v397 = vpop.f32.mrf.mxu0
        %v398 = vadd.f32 0.0, %v397
        %399 = vmatmul.bf16.gmra.mxu0 %v279
        %v400 = vpop.f32.mrf.mxu0
        %v401 = vadd.f32 0.0, %v400
        %v402 = vpop.f32.mrf.mxu0
        %v403 = vadd.f32 0.0, %v402
        %404 = vmatmul.bf16.gmra.mxu0 %v280
        %v405 = vpop.f32.mrf.mxu0
        %v406 = vadd.f32 0.0, %v405
        %v407 = vpop.f32.mrf.mxu0
        %v408 = vadd.f32 0.0, %v407
        %409 = vmatmul.bf16.gmra.mxu0 %v281
        %v410 = vpop.f32.mrf.mxu0
        %v411 = vadd.f32 0.0, %v410
        %v412 = vpop.f32.mrf.mxu0
        %v413 = vadd.f32 0.0, %v412
        %414 = vmatmul.bf16.gmra.mxu0 %v282
        %v415 = vpop.f32.mrf.mxu0
        %v416 = vadd.f32 0.0, %v415
        %v417 = vpop.f32.mrf.mxu0
        %v418 = vadd.f32 0.0, %v417
        %419 = vmatmul.bf16.gmra.mxu0 %v283
        %v420 = vpop.f32.mrf.mxu0
        %v421 = vadd.f32 0.0, %v420
        %v422 = vpop.f32.mrf.mxu0
        %v423 = vadd.f32 0.0, %v422
        %424 = vmatmul.bf16.gmra.mxu0 %v284
        %v425 = vpop.f32.mrf.mxu0
        %v426 = vadd.f32 0.0, %v425
        %v427 = vpop.f32.mrf.mxu0
        %v428 = vadd.f32 0.0, %v427
        %429 = vmatmul.bf16.gmra.mxu0 %v285
        %v430 = vpop.f32.mrf.mxu0
        %v431 = vadd.f32 0.0, %v430
        %v432 = vpop.f32.mrf.mxu0
        %v433 = vadd.f32 0.0, %v432
        %434 = vmatmul.bf16.gmra.mxu0 %v286
        %v435 = vpop.f32.mrf.mxu0
        %v436 = vadd.f32 0.0, %v435
        %v437 = vpop.f32.mrf.mxu0
        %v438 = vadd.f32 0.0, %v437
        %439 = vdwg.mxu0
        %vm440 = vcmask 261120
        %441 = vst.msk [vmem:[%s231] sm:$0xff] %vm440, %v361
        %442 = vst.msk [vmem:[%s231 + $0x8] sm:$0xff] %vm440, %v363
        %443 = vst.msk [vmem:[%s231 + $0x10] sm:$0xff] %vm440, %v366
        %444 = vst.msk [vmem:[%s231 + $0x18] sm:$0xff] %vm440, %v368
        %445 = vst.msk [vmem:[%s231 + $0x20] sm:$0xff] %vm440, %v371
        %446 = vst.msk [vmem:[%s231 + $0x28] sm:$0xff] %vm440, %v373
        %447 = vst.msk [vmem:[%s231 + $0x30] sm:$0xff] %vm440, %v376
        %448 = vst.msk [vmem:[%s231 + $0x38] sm:$0xff] %vm440, %v378
        %449 = vst.msk [vmem:[%s231 + $0x40] sm:$0xff] %vm440, %v381
        %450 = vst.msk [vmem:[%s231 + $0x48] sm:$0xff] %vm440, %v383
        %451 = vst.msk [vmem:[%s231 + $0x50] sm:$0xff] %vm440, %v386
        %452 = vst.msk [vmem:[%s231 + $0x58] sm:$0xff] %vm440, %v388
        %453 = vst.msk [vmem:[%s231 + $0x60] sm:$0xff] %vm440, %v391
        %454 = vst.msk [vmem:[%s231 + $0x68] sm:$0xff] %vm440, %v393
        %455 = vst.msk [vmem:[%s231 + $0x70] sm:$0xff] %vm440, %v396
        %456 = vst.msk [vmem:[%s231 + $0x78] sm:$0xff] %vm440, %v398
        %457 = vst.msk [vmem:[%s231 + $0x80] sm:$0xff] %vm440, %v401
        %458 = vst.msk [vmem:[%s231 + $0x88] sm:$0xff] %vm440, %v403
        %459 = vst.msk [vmem:[%s231 + $0x90] sm:$0xff] %vm440, %v406
        %460 = vst.msk [vmem:[%s231 + $0x98] sm:$0xff] %vm440, %v408
        %461 = vst.msk [vmem:[%s231 + $0xa0] sm:$0xff] %vm440, %v411
        %462 = vst.msk [vmem:[%s231 + $0xa8] sm:$0xff] %vm440, %v413
        %463 = vst.msk [vmem:[%s231 + $0xb0] sm:$0xff] %vm440, %v416
        %464 = vst.msk [vmem:[%s231 + $0xb8] sm:$0xff] %vm440, %v418
        %465 = vst.msk [vmem:[%s231 + $0xc0] sm:$0xff] %vm440, %v421
        %466 = vst.msk [vmem:[%s231 + $0xc8] sm:$0xff] %vm440, %v423
        %467 = vst.msk [vmem:[%s231 + $0xd0] sm:$0xff] %vm440, %v426
        %468 = vst.msk [vmem:[%s231 + $0xd8] sm:$0xff] %vm440, %v428
        %469 = vst.msk [vmem:[%s231 + $0xe0] sm:$0xff] %vm440, %v431
        %470 = vst.msk [vmem:[%s231 + $0xe8] sm:$0xff] %vm440, %v433
        %471 = vst.msk [vmem:[%s231 + $0xf0] sm:$0xff] %vm440, %v436
        %472 = vst.msk [vmem:[%s231 + $0xf8] sm:$0xff] %vm440, %v438
        %v473 = vsel %vm440, %v361, 0.0
        %v474 = vsel %vm440, %v363, 0.0
        %v475 = vadd.f32 %v473, %v474
        %v476 = vsel %vm440, %v366, 0.0
        %v477 = vadd.f32 %v475, %v476
        %v478 = vsel %vm440, %v368, 0.0
        %v479 = vadd.f32 %v477, %v478
        %v480 = vsel %vm440, %v371, 0.0
        %v481 = vadd.f32 %v479, %v480
        %v482 = vsel %vm440, %v373, 0.0
        %v483 = vadd.f32 %v481, %v482
        %v484 = vsel %vm440, %v376, 0.0
        %v485 = vadd.f32 %v483, %v484
        %v486 = vsel %vm440, %v378, 0.0
        %v487 = vadd.f32 %v485, %v486
        %v488 = vsel %vm440, %v381, 0.0
        %v489 = vadd.f32 %v487, %v488
        %v490 = vsel %vm440, %v383, 0.0
        %v491 = vadd.f32 %v489, %v490
        %v492 = vsel %vm440, %v386, 0.0
        %v493 = vadd.f32 %v491, %v492
        %v494 = vsel %vm440, %v388, 0.0
        %v495 = vadd.f32 %v493, %v494
        %v496 = vsel %vm440, %v391, 0.0
        %v497 = vadd.f32 %v495, %v496
        %v498 = vsel %vm440, %v393, 0.0
        %v499 = vadd.f32 %v497, %v498
        %v500 = vsel %vm440, %v396, 0.0
        %v501 = vadd.f32 %v499, %v500
        %v502 = vsel %vm440, %v398, 0.0
        %v503 = vadd.f32 %v501, %v502
        %v504 = vsel %vm440, %v401, 0.0
        %v505 = vadd.f32 %v503, %v504
        %v506 = vsel %vm440, %v403, 0.0
        %v507 = vadd.f32 %v505, %v506
        %v508 = vsel %vm440, %v406, 0.0
        %v509 = vadd.f32 %v507, %v508
        %v510 = vsel %vm440, %v408, 0.0
        %v511 = vadd.f32 %v509, %v510
        %v512 = vsel %vm440, %v411, 0.0
        %v513 = vadd.f32 %v511, %v512
        %v514 = vsel %vm440, %v413, 0.0
        %v515 = vadd.f32 %v513, %v514
        %v516 = vsel %vm440, %v416, 0.0
        %v517 = vadd.f32 %v515, %v516
        %v518 = vsel %vm440, %v418, 0.0
        %v519 = vadd.f32 %v517, %v518
        %v520 = vsel %vm440, %v421, 0.0
        %v521 = vadd.f32 %v519, %v520
        %v522 = vsel %vm440, %v423, 0.0
        %v523 = vadd.f32 %v521, %v522
        %v524 = vsel %vm440, %v426, 0.0
        %v525 = vadd.f32 %v523, %v524
        %v526 = vsel %vm440, %v428, 0.0
        %v527 = vadd.f32 %v525, %v526
        %v528 = vsel %vm440, %v431, 0.0
        %v529 = vadd.f32 %v527, %v528
        %v530 = vsel %vm440, %v433, 0.0
        %v531 = vadd.f32 %v529, %v530
        %v532 = vsel %vm440, %v436, 0.0
        %v533 = vadd.f32 %v531, %v532
        %v534 = vsel %vm440, %v438, 0.0
        %v535 = vadd.f32 %v533, %v534
        %v536 = vrot.slane %v535, 4
        %v537 = vadd.f32 %v535, %v536
        %v538 = vrot.slane %v537, 2
        %v539 = vadd.f32 %v537, %v538
        %v540 = vrot.slane %v539, 1
        %v541 = vadd.f32 %v539, %v540
        %vm542 = vcmask 253952
        %543 = vst.msk [vmem:[%s235] sm:$0x1] %vm542, %v541
        %v544 = vmul.f32 %v361, %v361
        %v545 = vmul.f32 %v363, %v363
        %v546 = vmul.f32 %v366, %v366
        %v547 = vmul.f32 %v368, %v368
        %v548 = vmul.f32 %v371, %v371
        %v549 = vmul.f32 %v373, %v373
        %v550 = vmul.f32 %v376, %v376
        %v551 = vmul.f32 %v378, %v378
        %v552 = vmul.f32 %v381, %v381
        %v553 = vmul.f32 %v383, %v383
        %v554 = vmul.f32 %v386, %v386
        %v555 = vmul.f32 %v388, %v388
        %v556 = vmul.f32 %v391, %v391
        %v557 = vmul.f32 %v393, %v393
        %v558 = vmul.f32 %v396, %v396
        %v559 = vmul.f32 %v398, %v398
        %v560 = vmul.f32 %v401, %v401
        %v561 = vmul.f32 %v403, %v403
        %v562 = vmul.f32 %v406, %v406
        %v563 = vmul.f32 %v408, %v408
        %v564 = vmul.f32 %v411, %v411
        %v565 = vmul.f32 %v413, %v413
        %v566 = vmul.f32 %v416, %v416
        %v567 = vmul.f32 %v418, %v418
        %v568 = vmul.f32 %v421, %v421
        %v569 = vmul.f32 %v423, %v423
        %v570 = vmul.f32 %v426, %v426
        %v571 = vmul.f32 %v428, %v428
        %v572 = vmul.f32 %v431, %v431
        %v573 = vmul.f32 %v433, %v433
        %v574 = vmul.f32 %v436, %v436
        %v575 = vmul.f32 %v438, %v438
        %v576 = vsel %vm440, %v544, 0.0
        %v577 = vsel %vm440, %v545, 0.0
        %v578 = vadd.f32 %v576, %v577
        %v579 = vsel %vm440, %v546, 0.0
        %v580 = vadd.f32 %v578, %v579
        %v581 = vsel %vm440, %v547, 0.0
        %v582 = vadd.f32 %v580, %v581
        %v583 = vsel %vm440, %v548, 0.0
        %v584 = vadd.f32 %v582, %v583
        %v585 = vsel %vm440, %v549, 0.0
        %v586 = vadd.f32 %v584, %v585
        %v587 = vsel %vm440, %v550, 0.0
        %v588 = vadd.f32 %v586, %v587
        %v589 = vsel %vm440, %v551, 0.0
        %v590 = vadd.f32 %v588, %v589
        %v591 = vsel %vm440, %v552, 0.0
        %v592 = vadd.f32 %v590, %v591
        %v593 = vsel %vm440, %v553, 0.0
        %v594 = vadd.f32 %v592, %v593
        %v595 = vsel %vm440, %v554, 0.0
        %v596 = vadd.f32 %v594, %v595
        %v597 = vsel %vm440, %v555, 0.0
        %v598 = vadd.f32 %v596, %v597
        %v599 = vsel %vm440, %v556, 0.0
        %v600 = vadd.f32 %v598, %v599
        %v601 = vsel %vm440, %v557, 0.0
        %v602 = vadd.f32 %v600, %v601
        %v603 = vsel %vm440, %v558, 0.0
        %v604 = vadd.f32 %v602, %v603
        %v605 = vsel %vm440, %v559, 0.0
        %v606 = vadd.f32 %v604, %v605
        %v607 = vsel %vm440, %v560, 0.0
        %v608 = vadd.f32 %v606, %v607
        %v609 = vsel %vm440, %v561, 0.0
        %v610 = vadd.f32 %v608, %v609
        %v611 = vsel %vm440, %v562, 0.0
        %v612 = vadd.f32 %v610, %v611
        %v613 = vsel %vm440, %v563, 0.0
        %v614 = vadd.f32 %v612, %v613
        %v615 = vsel %vm440, %v564, 0.0
        %v616 = vadd.f32 %v614, %v615
        %v617 = vsel %vm440, %v565, 0.0
        %v618 = vadd.f32 %v616, %v617
        %v619 = vsel %vm440, %v566, 0.0
        %v620 = vadd.f32 %v618, %v619
        %v621 = vsel %vm440, %v567, 0.0
        %v622 = vadd.f32 %v620, %v621
        %v623 = vsel %vm440, %v568, 0.0
        %v624 = vadd.f32 %v622, %v623
        %v625 = vsel %vm440, %v569, 0.0
        %v626 = vadd.f32 %v624, %v625
        %v627 = vsel %vm440, %v570, 0.0
        %v628 = vadd.f32 %v626, %v627
        %v629 = vsel %vm440, %v571, 0.0
        %v630 = vadd.f32 %v628, %v629
        %v631 = vsel %vm440, %v572, 0.0
        %v632 = vadd.f32 %v630, %v631
        %v633 = vsel %vm440, %v573, 0.0
        %v634 = vadd.f32 %v632, %v633
        %v635 = vsel %vm440, %v574, 0.0
        %v636 = vadd.f32 %v634, %v635
        %v637 = vsel %vm440, %v575, 0.0
        %v638 = vadd.f32 %v636, %v637
        %v639 = vrot.slane %v638, 4
        %v640 = vadd.f32 %v638, %v639
        %v641 = vrot.slane %v640, 2
        %v642 = vadd.f32 %v640, %v641
        %v643 = vrot.slane %v642, 1
        %v644 = vadd.f32 %v642, %v643
        %645 = vst.msk [vmem:[%s238] sm:$0x1] %vm542, %v644
        %s646 = smul.u32 32, %s19
        %p647 = scmp.lt.s32.totalorder %s646, 63
        %s648 = scalar_select %p647, %s646, 63
        %s649 = smul.addr %s648, 8
        %s650 = scalar_lea.vmem %s2, %s649
        %p651 = scmp.lt.s32.totalorder %s19, 1
        %s652 = scalar_select %p651, %s19, 1
        %s653 = scalar_lea.vmem %s3, %s652
        %p654 = scmp.lt.s32.totalorder %s19, 1
        %s655 = scalar_select %p654, %s19, 1
        %s656 = scalar_lea.vmem %s4, %s655
        // Predicated region
        $region33: #{bottleneck_forward.4} parent=27 // pred_check
          %p657 = pneg %p84
        $region34: #{bottleneck_forward.4} parent=27 // pred_check_branch
          %659 = sbr.rel (%p657) target = $region36
        $region35: #{bottleneck_forward.4} parent=27 // pred_region
          %s660 = smul.u32 32, %s19
        $region36: #{bottleneck_forward.4} parent=27 // pred_fallthru
          _
        // Predicated region
        $region37: #{bottleneck_forward.4} parent=27 // pred_check
          %p661 = pneg %p110
        $region38: #{bottleneck_forward.4} parent=27 // pred_check_branch
          %663 = sbr.rel (%p661) target = $region40
        $region39: #{bottleneck_forward.4} parent=27 // pred_region
          _
        $region40: #{bottleneck_forward.4} parent=27 // pred_fallthru
          _
        // Predicated region
        $region41: #{bottleneck_forward.4} parent=27 // pred_check
          %p664 = pneg %p136
        $region42: #{bottleneck_forward.4} parent=27 // pred_check_branch
          %666 = sbr.rel (%p664) target = $region44
        $region43: #{bottleneck_forward.4} parent=27 // pred_region
          _
        $region44: #{bottleneck_forward.4} parent=27 // pred_fallthru
          _
      $region28: #{bottleneck_forward.4} parent=5 // pred_fallthru
        _
      %p667 = scmp.le.s32.totalorder 2, %s14
      // Predicated region
      $region45: #{bottleneck_forward.4} parent=5 // pred_check
        %p668 = pneg %p667
      $region46: #{bottleneck_forward.4} parent=5 // pred_check_branch
        %670 = sbr.rel (%p668) target = $region48
      $region47: #{bottleneck_forward.4} parent=5 // pred_region
        %s671 = ssub.s32 %s14, 2
        // Predicated region
        $region49: #{bottleneck_forward.4} parent=47 // pred_check
          %p672 = pneg %p90
        $region50: #{bottleneck_forward.4} parent=47 // pred_check_branch
          %674 = sbr.rel (%p672) target = $region52
        $region51: #{bottleneck_forward.4} parent=47 // pred_region
          %s675 = smul.u32 32, %s20
          %p676 = scmp.lt.s32.totalorder %s675, 63
          %s677 = scalar_select %p676, %s675, 63
          %s678 = smul.addr %s677, 8
          %s679 = scalar_lea.vmem %s2, %s678
        $region52: #{bottleneck_forward.4} parent=47 // pred_fallthru
          _
        // Predicated region
        $region53: #{bottleneck_forward.4} parent=47 // pred_check
          %p680 = pneg %p116
        $region54: #{bottleneck_forward.4} parent=47 // pred_check_branch
          %682 = sbr.rel (%p680) target = $region56
        $region55: #{bottleneck_forward.4} parent=47 // pred_region
          %p683 = scmp.lt.s32.totalorder %s20, 1
          %s684 = scalar_select %p683, %s20, 1
          %s685 = scalar_lea.vmem %s3, %s684
        $region56: #{bottleneck_forward.4} parent=47 // pred_fallthru
          _
        // Predicated region
        $region57: #{bottleneck_forward.4} parent=47 // pred_check
          %p686 = pneg %p142
        $region58: #{bottleneck_forward.4} parent=47 // pred_check_branch
          %688 = sbr.rel (%p686) target = $region60
        $region59: #{bottleneck_forward.4} parent=47 // pred_region
          %p689 = scmp.lt.s32.totalorder %s20, 1
          %s690 = scalar_select %p689, %s20, 1
          %s691 = scalar_lea.vmem %s4, %s690
        $region60: #{bottleneck_forward.4} parent=47 // pred_fallthru
          _
      $region48: #{bottleneck_forward.4} parent=5 // pred_fallthru
        _
    $region6: #{bottleneck_forward.4} parent=1 // loop_footer
      %s18 = sadd.s32 1, %s14
    $region7: #{bottleneck_forward.4} parent=1 // loop_footer_branch
      %13 = sbr.rel target = $region3
    $region8: #{bottleneck_forward.4} parent=1 // loop_exit
      _
    %692 = vsyncpa [#allocation3], 1
    %s693 = scalar_lea.sflag [#allocation3], 1
    %694 = vsyncpa %s693, 1

// kernel: bottleneck_forward.7
$region0: #{bottleneck_forward.7}
  #allocation0 [shape = 'u32[]', space=smem, size = 0x4, offset = 0x4, fixed_abs, tag = 'smem constant byte address 0x4 - core index']
  #allocation1 [shape = 'u32[72,128]{1,0:T(1,128)}', space=vmem, size = 0x9000, scoped, tag = 'internal scratch']
  %s0 = inlined_call_operand.vmem [shape: f32[512,128], index: 0, kind: input, shape index: {}]
  %s1 = inlined_call_operand.vmem [shape: f32[512,128], index: 1, kind: input, shape index: {}]
  %s2 = inlined_call_operand.vmem [shape: f32[1,128], index: 2, kind: input, shape index: {}]
  %s3 = inlined_call_operand.vmem [shape: f32[1,128], index: 3, kind: input, shape index: {}]
  %s4 = inlined_call_operand.hbm [shape: f32[512,128], index: 4, kind: output, shape index: {}]
  %s5 = sld [smem:[#allocation0]]
  $region49: #{bottleneck_forward.7} parent=0
    _
  %s7 = ssub.s32 1, %s5
  %s8 = scalar_select 0, %s7, %s5
  $region1: #{bottleneck_forward.7} parent=0
    #allocation2 [shape = 'u8[262144]{0}', space=vmem, size = 0x40000, scoped, tag = 'output window, operand 0']
    #allocation3 [shape = 's32[2]{0}', space=sflag, size = 0x8, scoped, tag = 'scoped memory for bottleneck_forward.7']
    %9 = vsyncpa [#allocation3], 0
    %s10 = scalar_lea.sflag [#allocation3], 1
    %11 = vsyncpa %s10, 0
    loop: start=0, step=1, limit=4
    $region2: #{bottleneck_forward.7} parent=1 // loop_pre_header
      _
    $region3: #{bottleneck_forward.7} parent=1 // loop_header
      %s13 = sphi 0, %s17
      %p14 = scmp.ge.s32.totalorder %s13, 4
      %s23 = sphi 0, %s25
      %s26 = sphi 0, %s23
      %s27 = sphi 0, %s26
      %s43 = sphi 0, %s27
      %s49 = sphi 0, %s51
      %s52 = sphi 0, %s49
      %s53 = sphi 0, %s52
      %s69 = sphi 0, %s53
      %s73 = sphi 0, %s73
      %s75 = sphi 0, %s73
      %s76 = sphi 0, %s75
      %s90 = sphi 0, %s76
      %s94 = sphi 0, %s94
      %s96 = sphi 0, %s94
      %s97 = sphi 0, %s96
      %s111 = sphi 0, %s97
      %s117 = sphi 0, %s119
      %s120 = sphi 0, %s117
      %s121 = sphi 0, %s120
      %s137 = sphi 0, %s121
    $region4: #{bottleneck_forward.7} parent=1 // loop_header_branch
      %16 = sbr.rel (%p14) target = $region8
    $region5: #{bottleneck_forward.7} parent=1 // loop_body
      %s18 = ssub.s32 %s13, 1
      %s19 = ssub.s32 %s13, 2
      %s20 = sadd.s32 %s13, 1
      %s21 = ssub.s32 %s13, %s20
      %p22 = scmp.eq.s32.totalorder %s21, 0
      %s24 = sadd.s32 %s23, 1
      %s25 = scalar_select %p22, %s23, %s24
      %p28 = pneg %p22
      %p29 = scmp.eq.s32.totalorder %s13, 1
      %p30 = por %p28, %p29
      %p31 = scmp.ne.s32.totalorder %s23, %s26
      %p32 = scmp.eq.s32.totalorder %s13, 0
      %p33 = por %p31, %p32
      %p34 = scmp.ne.s32.totalorder %s23, %s26
      %p35 = scmp.eq.s32.totalorder %s18, 1
      %p36 = por %p34, %p35
      %p37 = scmp.ne.s32.totalorder %s26, %s27
      %p38 = scmp.eq.s32.totalorder %s18, 0
      %p39 = por %p37, %p38
      %p40 = scmp.ne.s32.totalorder %s26, %s27
      %p41 = scmp.eq.s32.totalorder %s19, 1
      %p42 = por %p40, %p41
      %p44 = scmp.ne.s32.totalorder %s27, %s43
      %p45 = scmp.eq.s32.totalorder %s19, 0
      %p46 = por %p44, %p45
      %s47 = ssub.s32 %s13, %s20
      %p48 = scmp.eq.s32.totalorder %s47, 0
      %s50 = sadd.s32 %s49, 1
      %s51 = scalar_select %p48, %s49, %s50
      %p54 = pneg %p48
      %p55 = scmp.eq.s32.totalorder %s13, 1
      %p56 = por %p54, %p55
      %p57 = scmp.ne.s32.totalorder %s49, %s52
      %p58 = scmp.eq.s32.totalorder %s13, 0
      %p59 = por %p57, %p58
      %p60 = scmp.ne.s32.totalorder %s49, %s52
      %p61 = scmp.eq.s32.totalorder %s18, 1
      %p62 = por %p60, %p61
      %p63 = scmp.ne.s32.totalorder %s52, %s53
      %p64 = scmp.eq.s32.totalorder %s18, 0
      %p65 = por %p63, %p64
      %p66 = scmp.ne.s32.totalorder %s52, %s53
      %p67 = scmp.eq.s32.totalorder %s19, 1
      %p68 = por %p66, %p67
      %p70 = scmp.ne.s32.totalorder %s53, %s69
      %p71 = scmp.eq.s32.totalorder %s19, 0
      %p72 = por %p70, %p71
      %s74 = sadd.s32 %s73, 1
      %p77 = scmp.eq.s32.totalorder %s13, 1
      %p78 = scmp.ne.s32.totalorder %s73, %s75
      %p79 = scmp.eq.s32.totalorder %s13, 0
      %p80 = por %p78, %p79
      %p81 = scmp.ne.s32.totalorder %s73, %s75
      %p82 = scmp.eq.s32.totalorder %s18, 1
      %p83 = por %p81, %p82
      %p84 = scmp.ne.s32.totalorder %s75, %s76
      %p85 = scmp.eq.s32.totalorder %s18, 0
      %p86 = por %p84, %p85
      %p87 = scmp.ne.s32.totalorder %s75, %s76
      %p88 = scmp.eq.s32.totalorder %s19, 1
      %p89 = por %p87, %p88
      %p91 = scmp.ne.s32.totalorder %s76, %s90
      %p92 = scmp.eq.s32.totalorder %s19, 0
      %p93 = por %p91, %p92
      %s95 = sadd.s32 %s94, 1
      %p98 = scmp.eq.s32.totalorder %s13, 1
      %p99 = scmp.ne.s32.totalorder %s94, %s96
      %p100 = scmp.eq.s32.totalorder %s13, 0
      %p101 = por %p99, %p100
      %p102 = scmp.ne.s32.totalorder %s94, %s96
      %p103 = scmp.eq.s32.totalorder %s18, 1
      %p104 = por %p102, %p103
      %p105 = scmp.ne.s32.totalorder %s96, %s97
      %p106 = scmp.eq.s32.totalorder %s18, 0
      %p107 = por %p105, %p106
      %p108 = scmp.ne.s32.totalorder %s96, %s97
      %p109 = scmp.eq.s32.totalorder %s19, 1
      %p110 = por %p108, %p109
      %p112 = scmp.ne.s32.totalorder %s97, %s111
      %p113 = scmp.eq.s32.totalorder %s19, 0
      %p114 = por %p112, %p113
      %s115 = ssub.s32 %s13, %s20
      %p116 = scmp.eq.s32.totalorder %s115, 0
      %s118 = sadd.s32 %s117, 1
      %s119 = scalar_select %p116, %s117, %s118
      %p122 = pneg %p116
      %p123 = scmp.eq.s32.totalorder %s13, 1
      %p124 = por %p122, %p123
      %p125 = scmp.ne.s32.totalorder %s117, %s120
      %p126 = scmp.eq.s32.totalorder %s13, 0
      %p127 = por %p125, %p126
      %p128 = scmp.ne.s32.totalorder %s117, %s120
      %p129 = scmp.eq.s32.totalorder %s18, 1
      %p130 = por %p128, %p129
      %p131 = scmp.ne.s32.totalorder %s120, %s121
      %p132 = scmp.eq.s32.totalorder %s18, 0
      %p133 = por %p131, %p132
      %p134 = scmp.ne.s32.totalorder %s120, %s121
      %p135 = scmp.eq.s32.totalorder %s19, 1
      %p136 = por %p134, %p135
      %p138 = scmp.ne.s32.totalorder %s121, %s137
      %p139 = scmp.eq.s32.totalorder %s19, 0
      %p140 = por %p138, %p139
      %p141 = scmp.le.s32.totalorder 1, %s13
      %p142 = scmp.lt.s32.totalorder %s13, 3
      %p143 = pnand %p141, %p142
      %p144 = pneg %p143
      // Predicated region
      $region9: #{bottleneck_forward.7} parent=5 // pred_check
        _
      $region10: #{bottleneck_forward.7} parent=5 // pred_check_branch
        %146 = sbr.rel (%p143) target = $region12
      $region11: #{bottleneck_forward.7} parent=5 // pred_region
        %s147 = ssub.s32 %s13, 1
        // Predicated region
        $region13: #{bottleneck_forward.7} parent=11 // pred_check
          %p148 = pneg %p86
        $region14: #{bottleneck_forward.7} parent=11 // pred_check_branch
          %150 = sbr.rel (%p148) target = $region16
        $region15: #{bottleneck_forward.7} parent=11 // pred_region
          _
        $region16: #{bottleneck_forward.7} parent=11 // pred_fallthru
          _
        // Predicated region
        $region17: #{bottleneck_forward.7} parent=11 // pred_check
          %p151 = pneg %p107
        $region18: #{bottleneck_forward.7} parent=11 // pred_check_branch
          %153 = sbr.rel (%p151) target = $region20
        $region19: #{bottleneck_forward.7} parent=11 // pred_region
          _
        $region20: #{bottleneck_forward.7} parent=11 // pred_fallthru
          _
      $region12: #{bottleneck_forward.7} parent=5 // pred_fallthru
        _
      %p154 = scmp.lt.s32.totalorder %s13, 2
      // Predicated region
      $region21: #{bottleneck_forward.7} parent=5 // pred_check
        %p155 = pneg %p154
      $region22: #{bottleneck_forward.7} parent=5 // pred_check_branch
        %157 = sbr.rel (%p155) target = $region24
      $region23: #{bottleneck_forward.7} parent=5 // pred_region
        // Predicated region
        $region25: #{bottleneck_forward.7} parent=23 // pred_check
          %p158 = pneg %p33
        $region26: #{bottleneck_forward.7} parent=23 // pred_check_branch
          %160 = sbr.rel (%p158) target = $region28
        $region27: #{bottleneck_forward.7} parent=23 // pred_region
          %s161 = smul.u32 32, %s13
          %p162 = scmp.lt.s32.totalorder %s161, 63
          %s163 = scalar_select %p162, %s161, 63
          %s164 = smul.addr %s163, 8
          %s165 = scalar_lea.vmem %s0, %s164
          %s166 = smul.u32 32, %s13
        $region28: #{bottleneck_forward.7} parent=23 // pred_fallthru
          _
        // Predicated region
        $region29: #{bottleneck_forward.7} parent=23 // pred_check
          %p167 = pneg %p59
        $region30: #{bottleneck_forward.7} parent=23 // pred_check_branch
          %169 = sbr.rel (%p167) target = $region32
        $region31: #{bottleneck_forward.7} parent=23 // pred_region
          %s170 = smul.u32 32, %s13
          %p171 = scmp.lt.s32.totalorder %s170, 63
          %s172 = scalar_select %p171, %s170, 63
          %s173 = smul.addr %s172, 8
          %s174 = scalar_lea.vmem %s1, %s173
          %s175 = smul.u32 32, %s13
        $region32: #{bottleneck_forward.7} parent=23 // pred_fallthru
          _
      $region24: #{bottleneck_forward.7} parent=5 // pred_fallthru
        _
      %p176 = scmp.le.s32.totalorder 1, %s13
      %p177 = scmp.lt.s32.totalorder %s13, 3
      %p178 = pnand %p176, %p177
      %p179 = pneg %p178
      // Predicated region
      $region33: #{bottleneck_forward.7} parent=5 // pred_check
        _
      $region34: #{bottleneck_forward.7} parent=5 // pred_check_branch
        %181 = sbr.rel (%p178) target = $region36
      $region35: #{bottleneck_forward.7} parent=5 // pred_region
        %s182 = ssub.s32 %s13, 1
        %s183 = smul.u32 32, %s18
        %p184 = scmp.lt.s32.totalorder %s183, 63
        %s185 = scalar_select %p184, %s183, 63
        %s186 = smul.addr %s185, 8
        %s187 = scalar_lea.vmem %s0, %s186
        %p188 = pneg %p39
        %p189 = pneg %p36
        %s190 = smul.u32 32, %s18
        %p191 = scmp.lt.s32.totalorder %s190, 63
        %s192 = scalar_select %p191, %s190, 63
        %s193 = smul.addr %s192, 8
        %s194 = scalar_lea.vmem %s1, %s193
        %p195 = pneg %p65
        %p196 = pneg %p62
        %p197 = pneg %p86
        %p198 = pneg %p83
        %p199 = pneg %p107
        %p200 = pneg %p104
        %p201 = pneg %p133
        %p202 = pneg %p130
        %s203 = sand.u32 %s120, 1
        %s204 = scalar_lea.sflag [#allocation3], %s203
        %s205 = sand.u32 %s120, 1
        %s206 = smul.addr %s205, 256
        %s207 = scalar_lea.vmem [#allocation2], %s206
        %s208 = smul.u32 32, %s18
        %p209 = scmp.lt.s32.totalorder %s208, 63
        %s210 = scalar_select %p209, %s208, 63
        %s211 = smul.addr %s210, 8
        %s212 = scalar_lea.vmem %s0, %s211
        %s213 = smul.u32 32, %s18
        %s214 = smul.u32 32, %s18
        %p215 = scmp.lt.s32.totalorder %s214, 63
        %s216 = scalar_select %p215, %s214, 63
        %s217 = smul.addr %s216, 8
        %s218 = scalar_lea.vmem %s1, %s217
        %s219 = smul.u32 32, %s18
        %s220 = smul.u32 32, %s18
        %v221 = vld [vmem:[%s212] sm:$0xff]
        %v222 = vld [vmem:[%s212 + $0x8] sm:$0xff]
        %v223 = vld [vmem:[%s212 + $0x10] sm:$0xff]
        %v224 = vld [vmem:[%s212 + $0x18] sm:$0xff]
        %v225 = vld [vmem:[%s212 + $0x20] sm:$0xff]
        %v226 = vld [vmem:[%s212 + $0x28] sm:$0xff]
        %v227 = vld [vmem:[%s212 + $0x30] sm:$0xff]
        %v228 = vld [vmem:[%s212 + $0x38] sm:$0xff]
        %v229 = vld [vmem:[%s212 + $0x40] sm:$0xff]
        %v230 = vld [vmem:[%s212 + $0x48] sm:$0xff]
        %v231 = vld [vmem:[%s212 + $0x50] sm:$0xff]
        %v232 = vld [vmem:[%s212 + $0x58] sm:$0xff]
        %v233 = vld [vmem:[%s212 + $0x60] sm:$0xff]
        %v234 = vld [vmem:[%s212 + $0x68] sm:$0xff]
        %v235 = vld [vmem:[%s212 + $0x70] sm:$0xff]
        %v236 = vld [vmem:[%s212 + $0x78] sm:$0xff]
        %v237 = vld [vmem:[%s212 + $0x80] sm:$0xff]
        %v238 = vld [vmem:[%s212 + $0x88] sm:$0xff]
        %v239 = vld [vmem:[%s212 + $0x90] sm:$0xff]
        %v240 = vld [vmem:[%s212 + $0x98] sm:$0xff]
        %v241 = vld [vmem:[%s212 + $0xa0] sm:$0xff]
        %v242 = vld [vmem:[%s212 + $0xa8] sm:$0xff]
        %v243 = vld [vmem:[%s212 + $0xb0] sm:$0xff]
        %v244 = vld [vmem:[%s212 + $0xb8] sm:$0xff]
        %v245 = vld [vmem:[%s212 + $0xc0] sm:$0xff]
        %v246 = vld [vmem:[%s212 + $0xc8] sm:$0xff]
        %v247 = vld [vmem:[%s212 + $0xd0] sm:$0xff]
        %v248 = vld [vmem:[%s212 + $0xd8] sm:$0xff]
        %v249 = vld [vmem:[%s212 + $0xe0] sm:$0xff]
        %v250 = vld [vmem:[%s212 + $0xe8] sm:$0xff]
        %v251 = vld [vmem:[%s212 + $0xf0] sm:$0xff]
        %v252 = vld [vmem:[%s212 + $0xf8] sm:$0xff]
        %v253 = vld [vmem:[%s2] sm:$0x1]
        %v255 = vperm.slane %v253, 0
        %v257 = vmul.f32 %v221, %v255
        %v258 = vmul.f32 %v222, %v255
        %v259 = vmul.f32 %v223, %v255
        %v260 = vmul.f32 %v224, %v255
        %v261 = vmul.f32 %v225, %v255
        %v262 = vmul.f32 %v226, %v255
        %v263 = vmul.f32 %v227, %v255
        %v264 = vmul.f32 %v228, %v255
        %v265 = vmul.f32 %v229, %v255
        %v266 = vmul.f32 %v230, %v255
        %v267 = vmul.f32 %v231, %v255
        %v268 = vmul.f32 %v232, %v255
        %v269 = vmul.f32 %v233, %v255
        %v270 = vmul.f32 %v234, %v255
        %v271 = vmul.f32 %v235, %v255
        %v272 = vmul.f32 %v236, %v255
        %v273 = vmul.f32 %v237, %v255
        %v274 = vmul.f32 %v238, %v255
        %v275 = vmul.f32 %v239, %v255
        %v276 = vmul.f32 %v240, %v255
        %v277 = vmul.f32 %v241, %v255
        %v278 = vmul.f32 %v242, %v255
        %v279 = vmul.f32 %v243, %v255
        %v280 = vmul.f32 %v244, %v255
        %v281 = vmul.f32 %v245, %v255
        %v282 = vmul.f32 %v246, %v255
        %v283 = vmul.f32 %v247, %v255
        %v284 = vmul.f32 %v248, %v255
        %v285 = vmul.f32 %v249, %v255
        %v286 = vmul.f32 %v250, %v255
        %v287 = vmul.f32 %v251, %v255
        %v288 = vmul.f32 %v252, %v255
        %v289 = vld [vmem:[%s3] sm:$0x1]
        %v291 = vperm.slane %v289, 0
        %v293 = vadd.f32 %v257, %v291
        %v294 = vadd.f32 %v258, %v291
        %v295 = vadd.f32 %v259, %v291
        %v296 = vadd.f32 %v260, %v291
        %v297 = vadd.f32 %v261, %v291
        %v298 = vadd.f32 %v262, %v291
        %v299 = vadd.f32 %v263, %v291
        %v300 = vadd.f32 %v264, %v291
        %v301 = vadd.f32 %v265, %v291
        %v302 = vadd.f32 %v266, %v291
        %v303 = vadd.f32 %v267, %v291
        %v304 = vadd.f32 %v268, %v291
        %v305 = vadd.f32 %v269, %v291
        %v306 = vadd.f32 %v270, %v291
        %v307 = vadd.f32 %v271, %v291
        %v308 = vadd.f32 %v272, %v291
        %v309 = vadd.f32 %v273, %v291
        %v310 = vadd.f32 %v274, %v291
        %v311 = vadd.f32 %v275, %v291
        %v312 = vadd.f32 %v276, %v291
        %v313 = vadd.f32 %v277, %v291
        %v314 = vadd.f32 %v278, %v291
        %v315 = vadd.f32 %v279, %v291
        %v316 = vadd.f32 %v280, %v291
        %v317 = vadd.f32 %v281, %v291
        %v318 = vadd.f32 %v282, %v291
        %v319 = vadd.f32 %v283, %v291
        %v320 = vadd.f32 %v284, %v291
        %v321 = vadd.f32 %v285, %v291
        %v322 = vadd.f32 %v286, %v291
        %v323 = vadd.f32 %v287, %v291
        %v324 = vadd.f32 %v288, %v291
        %v325 = vld [vmem:[%s218] sm:$0xff]
        %v326 = vld [vmem:[%s218 + $0x8] sm:$0xff]
        %v327 = vld [vmem:[%s218 + $0x10] sm:$0xff]
        %v328 = vld [vmem:[%s218 + $0x18] sm:$0xff]
        %v329 = vld [vmem:[%s218 + $0x20] sm:$0xff]
        %v330 = vld [vmem:[%s218 + $0x28] sm:$0xff]
        %v331 = vld [vmem:[%s218 + $0x30] sm:$0xff]
        %v332 = vld [vmem:[%s218 + $0x38] sm:$0xff]
        %v333 = vld [vmem:[%s218 + $0x40] sm:$0xff]
        %v334 = vld [vmem:[%s218 + $0x48] sm:$0xff]
        %v335 = vld [vmem:[%s218 + $0x50] sm:$0xff]
        %v336 = vld [vmem:[%s218 + $0x58] sm:$0xff]
        %v337 = vld [vmem:[%s218 + $0x60] sm:$0xff]
        %v338 = vld [vmem:[%s218 + $0x68] sm:$0xff]
        %v339 = vld [vmem:[%s218 + $0x70] sm:$0xff]
        %v340 = vld [vmem:[%s218 + $0x78] sm:$0xff]
        %v341 = vld [vmem:[%s218 + $0x80] sm:$0xff]
        %v342 = vld [vmem:[%s218 + $0x88] sm:$0xff]
        %v343 = vld [vmem:[%s218 + $0x90] sm:$0xff]
        %v344 = vld [vmem:[%s218 + $0x98] sm:$0xff]
        %v345 = vld [vmem:[%s218 + $0xa0] sm:$0xff]
        %v346 = vld [vmem:[%s218 + $0xa8] sm:$0xff]
        %v347 = vld [vmem:[%s218 + $0xb0] sm:$0xff]
        %v348 = vld [vmem:[%s218 + $0xb8] sm:$0xff]
        %v349 = vld [vmem:[%s218 + $0xc0] sm:$0xff]
        %v350 = vld [vmem:[%s218 + $0xc8] sm:$0xff]
        %v351 = vld [vmem:[%s218 + $0xd0] sm:$0xff]
        %v352 = vld [vmem:[%s218 + $0xd8] sm:$0xff]
        %v353 = vld [vmem:[%s218 + $0xe0] sm:$0xff]
        %v354 = vld [vmem:[%s218 + $0xe8] sm:$0xff]
        %v355 = vld [vmem:[%s218 + $0xf0] sm:$0xff]
        %v356 = vld [vmem:[%s218 + $0xf8] sm:$0xff]
        %v357 = vadd.f32 %v293, %v325
        %v358 = vadd.f32 %v294, %v326
        %v359 = vadd.f32 %v295, %v327
        %v360 = vadd.f32 %v296, %v328
        %v361 = vadd.f32 %v297, %v329
        %v362 = vadd.f32 %v298, %v330
        %v363 = vadd.f32 %v299, %v331
        %v364 = vadd.f32 %v300, %v332
        %v365 = vadd.f32 %v301, %v333
        %v366 = vadd.f32 %v302, %v334
        %v367 = vadd.f32 %v303, %v335
        %v368 = vadd.f32 %v304, %v336
        %v369 = vadd.f32 %v305, %v337
        %v370 = vadd.f32 %v306, %v338
        %v371 = vadd.f32 %v307, %v339
        %v372 = vadd.f32 %v308, %v340
        %v373 = vadd.f32 %v309, %v341
        %v374 = vadd.f32 %v310, %v342
        %v375 = vadd.f32 %v311, %v343
        %v376 = vadd.f32 %v312, %v344
        %v377 = vadd.f32 %v313, %v345
        %v378 = vadd.f32 %v314, %v346
        %v379 = vadd.f32 %v315, %v347
        %v380 = vadd.f32 %v316, %v348
        %v381 = vadd.f32 %v317, %v349
        %v382 = vadd.f32 %v318, %v350
        %v383 = vadd.f32 %v319, %v351
        %v384 = vadd.f32 %v320, %v352
        %v385 = vadd.f32 %v321, %v353
        %v386 = vadd.f32 %v322, %v354
        %v387 = vadd.f32 %v323, %v355
        %v388 = vadd.f32 %v324, %v356
        %v389 = vmax.f32 %v357, 0.0
        %v390 = vmax.f32 %v358, 0.0
        %v391 = vmax.f32 %v359, 0.0
        %v392 = vmax.f32 %v360, 0.0
        %v393 = vmax.f32 %v361, 0.0
        %v394 = vmax.f32 %v362, 0.0
        %v395 = vmax.f32 %v363, 0.0
        %v396 = vmax.f32 %v364, 0.0
        %v397 = vmax.f32 %v365, 0.0
        %v398 = vmax.f32 %v366, 0.0
        %v399 = vmax.f32 %v367, 0.0
        %v400 = vmax.f32 %v368, 0.0
        %v401 = vmax.f32 %v369, 0.0
        %v402 = vmax.f32 %v370, 0.0
        %v403 = vmax.f32 %v371, 0.0
        %v404 = vmax.f32 %v372, 0.0
        %v405 = vmax.f32 %v373, 0.0
        %v406 = vmax.f32 %v374, 0.0
        %v407 = vmax.f32 %v375, 0.0
        %v408 = vmax.f32 %v376, 0.0
        %v409 = vmax.f32 %v377, 0.0
        %v410 = vmax.f32 %v378, 0.0
        %v411 = vmax.f32 %v379, 0.0
        %v412 = vmax.f32 %v380, 0.0
        %v413 = vmax.f32 %v381, 0.0
        %v414 = vmax.f32 %v382, 0.0
        %v415 = vmax.f32 %v383, 0.0
        %v416 = vmax.f32 %v384, 0.0
        %v417 = vmax.f32 %v385, 0.0
        %v418 = vmax.f32 %v386, 0.0
        %v419 = vmax.f32 %v387, 0.0
        %v420 = vmax.f32 %v388, 0.0
        %421 = vst [vmem:[%s207] sm:$0xff] %v389
        %422 = vst [vmem:[%s207 + $0x8] sm:$0xff] %v390
        %423 = vst [vmem:[%s207 + $0x10] sm:$0xff] %v391
        %424 = vst [vmem:[%s207 + $0x18] sm:$0xff] %v392
        %425 = vst [vmem:[%s207 + $0x20] sm:$0xff] %v393
        %426 = vst [vmem:[%s207 + $0x28] sm:$0xff] %v394
        %427 = vst [vmem:[%s207 + $0x30] sm:$0xff] %v395
        %428 = vst [vmem:[%s207 + $0x38] sm:$0xff] %v396
        %429 = vst [vmem:[%s207 + $0x40] sm:$0xff] %v397
        %430 = vst [vmem:[%s207 + $0x48] sm:$0xff] %v398
        %431 = vst [vmem:[%s207 + $0x50] sm:$0xff] %v399
        %432 = vst [vmem:[%s207 + $0x58] sm:$0xff] %v400
        %433 = vst [vmem:[%s207 + $0x60] sm:$0xff] %v401
        %434 = vst [vmem:[%s207 + $0x68] sm:$0xff] %v402
        %435 = vst [vmem:[%s207 + $0x70] sm:$0xff] %v403
        %436 = vst [vmem:[%s207 + $0x78] sm:$0xff] %v404
        %437 = vst [vmem:[%s207 + $0x80] sm:$0xff] %v405
        %438 = vst [vmem:[%s207 + $0x88] sm:$0xff] %v406
        %439 = vst [vmem:[%s207 + $0x90] sm:$0xff] %v407
        %440 = vst [vmem:[%s207 + $0x98] sm:$0xff] %v408
        %441 = vst [vmem:[%s207 + $0xa0] sm:$0xff] %v409
        %442 = vst [vmem:[%s207 + $0xa8] sm:$0xff] %v410
        %443 = vst [vmem:[%s207 + $0xb0] sm:$0xff] %v411
        %444 = vst [vmem:[%s207 + $0xb8] sm:$0xff] %v412
        %445 = vst [vmem:[%s207 + $0xc0] sm:$0xff] %v413
        %446 = vst [vmem:[%s207 + $0xc8] sm:$0xff] %v414
        %447 = vst [vmem:[%s207 + $0xd0] sm:$0xff] %v415
        %448 = vst [vmem:[%s207 + $0xd8] sm:$0xff] %v416
        %449 = vst [vmem:[%s207 + $0xe0] sm:$0xff] %v417
        %450 = vst [vmem:[%s207 + $0xe8] sm:$0xff] %v418
        %451 = vst [vmem:[%s207 + $0xf0] sm:$0xff] %v419
        %452 = vst [vmem:[%s207 + $0xf8] sm:$0xff] %v420
        %s453 = sand.u32 %s120, 1
        %s454 = scalar_lea.sflag [#allocation3], %s453
        %s455 = sand.u32 %s120, 1
        %s456 = smul.addr %s455, 256
        %s457 = scalar_lea.vmem [#allocation2], %s456
        // Predicated region
        $region37: #{bottleneck_forward.7} parent=35 // pred_check
          %p458 = pneg %p130
        $region38: #{bottleneck_forward.7} parent=35 // pred_check_branch
          %460 = sbr.rel (%p458) target = $region40
        $region39: #{bottleneck_forward.7} parent=35 // pred_region
          %s461 = smul.u32 32, %s18
          %463 = vsyncadd %s454, 0
          %s464 = smul.addr %s461, 8
          %s465 = scalar_lea.hbm %s4, %s464
          %s466 = sshll.u32 %s457, 4
          %s467 = int_to_ptr.vmem [resolvable:$true] %s466
          %s468 = sshll.u32 %s465, 4
          %s469 = int_to_ptr.hbm [resolvable:$true] %s468
          %474 = dma.vmem_to_hbm [thread:$0]  %s467, 4096, %s469, %s454, 128, 128, 8
        $region40: #{bottleneck_forward.7} parent=35 // pred_fallthru
          _
      $region36: #{bottleneck_forward.7} parent=5 // pred_fallthru
        _
      %p475 = scmp.le.s32.totalorder 2, %s13
      // Predicated region
      $region41: #{bottleneck_forward.7} parent=5 // pred_check
        %p476 = pneg %p475
      $region42: #{bottleneck_forward.7} parent=5 // pred_check_branch
        %478 = sbr.rel (%p476) target = $region44
      $region43: #{bottleneck_forward.7} parent=5 // pred_region
        %s479 = ssub.s32 %s13, 2
        // Predicated region
        $region45: #{bottleneck_forward.7} parent=43 // pred_check
          %p480 = pneg %p136
        $region46: #{bottleneck_forward.7} parent=43 // pred_check_branch
          %482 = sbr.rel (%p480) target = $region48
        $region47: #{bottleneck_forward.7} parent=43 // pred_region
          %s483 = sand.u32 %s121, 1
          %s484 = scalar_lea.sflag [#allocation3], %s483
          %s485 = sand.u32 %s121, 1
          %s486 = smul.addr %s485, 256
          %s487 = scalar_lea.vmem [#allocation2], %s486
          %489 = dma.done %s484, 4096
        $region48: #{bottleneck_forward.7} parent=43 // pred_fallthru
          _
      $region44: #{bottleneck_forward.7} parent=5 // pred_fallthru
        _
    $region6: #{bottleneck_forward.7} parent=1 // loop_footer
      %s17 = sadd.s32 1, %s13
    $region7: #{bottleneck_forward.7} parent=1 // loop_footer_branch
      %12 = sbr.rel target = $region3
    $region8: #{bottleneck_forward.7} parent=1 // loop_exit
      _
    %490 = vsyncpa [#allocation3], 1
    %s491 = scalar_lea.sflag [#allocation3], 1
    %492 = vsyncpa %s491, 1

// kernel: bottleneck_forward.6
$region0: #{bottleneck_forward.6}
  #allocation0 [shape = 'u32[]', space=smem, size = 0x4, offset = 0x4, fixed_abs, tag = 'smem constant byte address 0x4 - core index']
  #allocation1 [shape = 'u32[72,128]{1,0:T(1,128)}', space=vmem, size = 0x9000, scoped, tag = 'internal scratch']
  %s0 = inlined_call_operand.vmem [shape: f32[512,32], index: 0, kind: input, shape index: {}]
  %s1 = inlined_call_operand.vmem [shape: f32[1,32], index: 1, kind: input, shape index: {}]
  %s2 = inlined_call_operand.vmem [shape: f32[1,32], index: 2, kind: input, shape index: {}]
  %s3 = inlined_call_operand.vmem [shape: bf16[32,128], index: 3, kind: input, shape index: {}]
  %s4 = inlined_call_operand.vmem [shape: f32[512,128], index: 4, kind: output, shape index: {0}]
  %s5 = inlined_call_operand.vmem [shape: f32[2,1,128], index: 5, kind: output, shape index: {1}]
  %s6 = inlined_call_operand.vmem [shape: f32[2,1,128], index: 6, kind: output, shape index: {2}]
  %7 = xla_tuple %s4, %s5, %s6
  %s8 = sld [smem:[#allocation0]]
  $region65: #{bottleneck_forward.6} parent=0
    _
  %s10 = ssub.s32 1, %s8
  %s11 = scalar_select 0, %s10, %s8
  loop: start=0, step=1, limit=4
  $region2: #{bottleneck_forward.6} parent=0 // loop_pre_header
    _
  $region3: #{bottleneck_forward.6} parent=0 // loop_header
    %s13 = sphi 0, %s17
    %p14 = scmp.ge.s32.totalorder %s13, 4
    %s23 = sphi 0, %s25
    %s26 = sphi 0, %s23
    %s27 = sphi 0, %s26
    %s43 = sphi 0, %s27
    %s47 = sphi 0, %s47
    %s49 = sphi 0, %s47
    %s50 = sphi 0, %s49
    %s64 = sphi 0, %s50
    %s68 = sphi 0, %s68
    %s70 = sphi 0, %s68
    %s71 = sphi 0, %s70
    %s85 = sphi 0, %s71
    %s89 = sphi 0, %s89
    %s91 = sphi 0, %s89
    %s92 = sphi 0, %s91
    %s106 = sphi 0, %s92
    %s112 = sphi 0, %s114
    %s115 = sphi 0, %s112
    %s116 = sphi 0, %s115
    %s132 = sphi 0, %s116
    %s138 = sphi 0, %s140
    %s141 = sphi 0, %s138
    %s142 = sphi 0, %s141
    %s158 = sphi 0, %s142
    %s164 = sphi 0, %s166
    %s167 = sphi 0, %s164
    %s168 = sphi 0, %s167
    %s184 = sphi 0, %s168
  $region4: #{bottleneck_forward.6} parent=0 // loop_header_branch
    %16 = sbr.rel (%p14) target = $region8
  $region5: #{bottleneck_forward.6} parent=0 // loop_body
    %s18 = ssub.s32 %s13, 1
    %s19 = ssub.s32 %s13, 2
    %s20 = sadd.s32 %s13, 1
    %s21 = ssub.s32 %s13, %s20
    %p22 = scmp.eq.s32.totalorder %s21, 0
    %s24 = sadd.s32 %s23, 1
    %s25 = scalar_select %p22, %s23, %s24
    %p28 = pneg %p22
    %p29 = scmp.eq.s32.totalorder %s13, 1
    %p30 = por %p28, %p29
    %p31 = scmp.ne.s32.totalorder %s23, %s26
    %p32 = scmp.eq.s32.totalorder %s13, 0
    %p33 = por %p31, %p32
    %p34 = scmp.ne.s32.totalorder %s23, %s26
    %p35 = scmp.eq.s32.totalorder %s18, 1
    %p36 = por %p34, %p35
    %p37 = scmp.ne.s32.totalorder %s26, %s27
    %p38 = scmp.eq.s32.totalorder %s18, 0
    %p39 = por %p37, %p38
    %p40 = scmp.ne.s32.totalorder %s26, %s27
    %p41 = scmp.eq.s32.totalorder %s19, 1
    %p42 = por %p40, %p41
    %p44 = scmp.ne.s32.totalorder %s27, %s43
    %p45 = scmp.eq.s32.totalorder %s19, 0
    %p46 = por %p44, %p45
    %s48 = sadd.s32 %s47, 1
    %p51 = scmp.eq.s32.totalorder %s13, 1
    %p52 = scmp.ne.s32.totalorder %s47, %s49
    %p53 = scmp.eq.s32.totalorder %s13, 0
    %p54 = por %p52, %p53
    %p55 = scmp.ne.s32.totalorder %s47, %s49
    %p56 = scmp.eq.s32.totalorder %s18, 1
    %p57 = por %p55, %p56
    %p58 = scmp.ne.s32.totalorder %s49, %s50
    %p59 = scmp.eq.s32.totalorder %s18, 0
    %p60 = por %p58, %p59
    %p61 = scmp.ne.s32.totalorder %s49, %s50
    %p62 = scmp.eq.s32.totalorder %s19, 1
    %p63 = por %p61, %p62
    %p65 = scmp.ne.s32.totalorder %s50, %s64
    %p66 = scmp.eq.s32.totalorder %s19, 0
    %p67 = por %p65, %p66
    %s69 = sadd.s32 %s68, 1
    %p72 = scmp.eq.s32.totalorder %s13, 1
    %p73 = scmp.ne.s32.totalorder %s68, %s70
    %p74 = scmp.eq.s32.totalorder %s13, 0
    %p75 = por %p73, %p74
    %p76 = scmp.ne.s32.totalorder %s68, %s70
    %p77 = scmp.eq.s32.totalorder %s18, 1
    %p78 = por %p76, %p77
    %p79 = scmp.ne.s32.totalorder %s70, %s71
    %p80 = scmp.eq.s32.totalorder %s18, 0
    %p81 = por %p79, %p80
    %p82 = scmp.ne.s32.totalorder %s70, %s71
    %p83 = scmp.eq.s32.totalorder %s19, 1
    %p84 = por %p82, %p83
    %p86 = scmp.ne.s32.totalorder %s71, %s85
    %p87 = scmp.eq.s32.totalorder %s19, 0
    %p88 = por %p86, %p87
    %s90 = sadd.s32 %s89, 1
    %p93 = scmp.eq.s32.totalorder %s13, 1
    %p94 = scmp.ne.s32.totalorder %s89, %s91
    %p95 = scmp.eq.s32.totalorder %s13, 0
    %p96 = por %p94, %p95
    %p97 = scmp.ne.s32.totalorder %s89, %s91
    %p98 = scmp.eq.s32.totalorder %s18, 1
    %p99 = por %p97, %p98
    %p100 = scmp.ne.s32.totalorder %s91, %s92
    %p101 = scmp.eq.s32.totalorder %s18, 0
    %p102 = por %p100, %p101
    %p103 = scmp.ne.s32.totalorder %s91, %s92
    %p104 = scmp.eq.s32.totalorder %s19, 1
    %p105 = por %p103, %p104
    %p107 = scmp.ne.s32.totalorder %s92, %s106
    %p108 = scmp.eq.s32.totalorder %s19, 0
    %p109 = por %p107, %p108
    %s110 = ssub.s32 %s13, %s20
    %p111 = scmp.eq.s32.totalorder %s110, 0
    %s113 = sadd.s32 %s112, 1
    %s114 = scalar_select %p111, %s112, %s113
    %p117 = pneg %p111
    %p118 = scmp.eq.s32.totalorder %s13, 1
    %p119 = por %p117, %p118
    %p120 = scmp.ne.s32.totalorder %s112, %s115
    %p121 = scmp.eq.s32.totalorder %s13, 0
    %p122 = por %p120, %p121
    %p123 = scmp.ne.s32.totalorder %s112, %s115
    %p124 = scmp.eq.s32.totalorder %s18, 1
    %p125 = por %p123, %p124
    %p126 = scmp.ne.s32.totalorder %s115, %s116
    %p127 = scmp.eq.s32.totalorder %s18, 0
    %p128 = por %p126, %p127
    %p129 = scmp.ne.s32.totalorder %s115, %s116
    %p130 = scmp.eq.s32.totalorder %s19, 1
    %p131 = por %p129, %p130
    %p133 = scmp.ne.s32.totalorder %s116, %s132
    %p134 = scmp.eq.s32.totalorder %s19, 0
    %p135 = por %p133, %p134
    %s136 = ssub.s32 %s13, %s20
    %p137 = scmp.eq.s32.totalorder %s136, 0
    %s139 = sadd.s32 %s138, 1
    %s140 = scalar_select %p137, %s138, %s139
    %p143 = pneg %p137
    %p144 = scmp.eq.s32.totalorder %s13, 1
    %p145 = por %p143, %p144
    %p146 = scmp.ne.s32.totalorder %s138, %s141
    %p147 = scmp.eq.s32.totalorder %s13, 0
    %p148 = por %p146, %p147
    %p149 = scmp.ne.s32.totalorder %s138, %s141
    %p150 = scmp.eq.s32.totalorder %s18, 1
    %p151 = por %p149, %p150
    %p152 = scmp.ne.s32.totalorder %s141, %s142
    %p153 = scmp.eq.s32.totalorder %s18, 0
    %p154 = por %p152, %p153
    %p155 = scmp.ne.s32.totalorder %s141, %s142
    %p156 = scmp.eq.s32.totalorder %s19, 1
    %p157 = por %p155, %p156
    %p159 = scmp.ne.s32.totalorder %s142, %s158
    %p160 = scmp.eq.s32.totalorder %s19, 0
    %p161 = por %p159, %p160
    %s162 = ssub.s32 %s13, %s20
    %p163 = scmp.eq.s32.totalorder %s162, 0
    %s165 = sadd.s32 %s164, 1
    %s166 = scalar_select %p163, %s164, %s165
    %p169 = pneg %p163
    %p170 = scmp.eq.s32.totalorder %s13, 1
    %p171 = por %p169, %p170
    %p172 = scmp.ne.s32.totalorder %s164, %s167
    %p173 = scmp.eq.s32.totalorder %s13, 0
    %p174 = por %p172, %p173
    %p175 = scmp.ne.s32.totalorder %s164, %s167
    %p176 = scmp.eq.s32.totalorder %s18, 1
    %p177 = por %p175, %p176
    %p178 = scmp.ne.s32.totalorder %s167, %s168
    %p179 = scmp.eq.s32.totalorder %s18, 0
    %p180 = por %p178, %p179
    %p181 = scmp.ne.s32.totalorder %s167, %s168
    %p182 = scmp.eq.s32.totalorder %s19, 1
    %p183 = por %p181, %p182
    %p185 = scmp.ne.s32.totalorder %s168, %s184
    %p186 = scmp.eq.s32.totalorder %s19, 0
    %p187 = por %p185, %p186
    %p188 = scmp.le.s32.totalorder 1, %s13
    %p189 = scmp.lt.s32.totalorder %s13, 3
    %p190 = pnand %p188, %p189
    %p191 = pneg %p190
    // Predicated region
    $region9: #{bottleneck_forward.6} parent=5 // pred_check
      _
    $region10: #{bottleneck_forward.6} parent=5 // pred_check_branch
      %193 = sbr.rel (%p190) target = $region12
    $region11: #{bottleneck_forward.6} parent=5 // pred_region
      %s194 = ssub.s32 %s13, 1
      // Predicated region
      $region13: #{bottleneck_forward.6} parent=11 // pred_check
        %p195 = pneg %p60
      $region14: #{bottleneck_forward.6} parent=11 // pred_check_branch
        %197 = sbr.rel (%p195) target = $region16
      $region15: #{bottleneck_forward.6} parent=11 // pred_region
        _
      $region16: #{bottleneck_forward.6} parent=11 // pred_fallthru
        _
      // Predicated region
      $region17: #{bottleneck_forward.6} parent=11 // pred_check
        %p198 = pneg %p81
      $region18: #{bottleneck_forward.6} parent=11 // pred_check_branch
        %200 = sbr.rel (%p198) target = $region20
      $region19: #{bottleneck_forward.6} parent=11 // pred_region
        _
      $region20: #{bottleneck_forward.6} parent=11 // pred_fallthru
        _
      // Predicated region
      $region21: #{bottleneck_forward.6} parent=11 // pred_check
        %p201 = pneg %p102
      $region22: #{bottleneck_forward.6} parent=11 // pred_check_branch
        %203 = sbr.rel (%p201) target = $region24
      $region23: #{bottleneck_forward.6} parent=11 // pred_region
        _
      $region24: #{bottleneck_forward.6} parent=11 // pred_fallthru
        _
    $region12: #{bottleneck_forward.6} parent=5 // pred_fallthru
      _
    %p204 = scmp.lt.s32.totalorder %s13, 2
    // Predicated region
    $region25: #{bottleneck_forward.6} parent=5 // pred_check
      %p205 = pneg %p204
    $region26: #{bottleneck_forward.6} parent=5 // pred_check_branch
      %207 = sbr.rel (%p205) target = $region28
    $region27: #{bottleneck_forward.6} parent=5 // pred_region
      // Predicated region
      $region29: #{bottleneck_forward.6} parent=27 // pred_check
        %p208 = pneg %p33
      $region30: #{bottleneck_forward.6} parent=27 // pred_check_branch
        %210 = sbr.rel (%p208) target = $region32
      $region31: #{bottleneck_forward.6} parent=27 // pred_region
        %s211 = smul.u32 32, %s13
        %p212 = scmp.lt.s32.totalorder %s211, 63
        %s213 = scalar_select %p212, %s211, 63
        %s214 = smul.addr %s213, 8
        %s215 = scalar_lea.vmem %s0, %s214
        %s216 = smul.u32 32, %s13
      $region32: #{bottleneck_forward.6} parent=27 // pred_fallthru
        _
    $region28: #{bottleneck_forward.6} parent=5 // pred_fallthru
      _
    %p217 = scmp.le.s32.totalorder 1, %s13
    %p218 = scmp.lt.s32.totalorder %s13, 3
    %p219 = pnand %p217, %p218
    %p220 = pneg %p219
    // Predicated region
    $region33: #{bottleneck_forward.6} parent=5 // pred_check
      _
    $region34: #{bottleneck_forward.6} parent=5 // pred_check_branch
      %222 = sbr.rel (%p219) target = $region36
    $region35: #{bottleneck_forward.6} parent=5 // pred_region
      %s223 = ssub.s32 %s13, 1
      %s224 = smul.u32 32, %s18
      %p225 = scmp.lt.s32.totalorder %s224, 63
      %s226 = scalar_select %p225, %s224, 63
      %s227 = smul.addr %s226, 8
      %s228 = scalar_lea.vmem %s0, %s227
      %p229 = pneg %p39
      %p230 = pneg %p36
      %p231 = pneg %p60
      %p232 = pneg %p57
      %p233 = pneg %p81
      %p234 = pneg %p78
      %p235 = pneg %p102
      %p236 = pneg %p99
      %p237 = pneg %p128
      %p238 = pneg %p125
      %s239 = smul.u32 32, %s18
      %p240 = scmp.lt.s32.totalorder %s239, 63
      %s241 = scalar_select %p240, %s239, 63
      %s242 = smul.addr %s241, 8
      %s243 = scalar_lea.vmem %s4, %s242
      %p244 = pneg %p154
      %p245 = pneg %p151
      %p246 = scmp.lt.s32.totalorder %s18, 1
      %s247 = scalar_select %p246, %s18, 1
      %s248 = scalar_lea.vmem %s5, %s247
      %p249 = pneg %p180
      %p250 = pneg %p177
      %p251 = scmp.lt.s32.totalorder %s18, 1
      %s252 = scalar_select %p251, %s18, 1
      %s253 = scalar_lea.vmem %s6, %s252
      %s254 = smul.u32 32, %s18
      %p255 = scmp.lt.s32.totalorder %s254, 63
      %s256 = scalar_select %p255, %s254, 63
      %s257 = smul.addr %s256, 8
      %s258 = scalar_lea.vmem %s0, %s257
      %s259 = smul.u32 32, %s18
      %s260 = smul.u32 32, %s18
      %p261 = scmp.lt.s32.totalorder %s260, 63
      %s262 = scalar_select %p261, %s260, 63
      %s263 = smul.addr %s262, 8
      %s264 = scalar_lea.vmem %s4, %s263
      %s265 = smul.u32 32, %s18
      %p266 = scmp.lt.s32.totalorder %s18, 1
      %s267 = scalar_select %p266, %s18, 1
      %s268 = scalar_lea.vmem %s5, %s267
      %p269 = scmp.lt.s32.totalorder %s18, 1
      %s270 = scalar_select %p269, %s18, 1
      %s271 = scalar_lea.vmem %s6, %s270
      %v273 = vld [vmem:[%s258] sm:$0xff]
      %v274 = vld [vmem:[%s258 + $0x8] sm:$0xff]
      %v275 = vld [vmem:[%s258 + $0x10] sm:$0xff]
      %v276 = vld [vmem:[%s258 + $0x18] sm:$0xff]
      %v277 = vld [vmem:[%s258 + $0x20] sm:$0xff]
      %v278 = vld [vmem:[%s258 + $0x28] sm:$0xff]
      %v279 = vld [vmem:[%s258 + $0x30] sm:$0xff]
      %v280 = vld [vmem:[%s258 + $0x38] sm:$0xff]
      %v281 = vld [vmem:[%s258 + $0x40] sm:$0xff]
      %v282 = vld [vmem:[%s258 + $0x48] sm:$0xff]
      %v283 = vld [vmem:[%s258 + $0x50] sm:$0xff]
      %v284 = vld [vmem:[%s258 + $0x58] sm:$0xff]
      %v285 = vld [vmem:[%s258 + $0x60] sm:$0xff]
      %v286 = vld [vmem:[%s258 + $0x68] sm:$0xff]
      %v287 = vld [vmem:[%s258 + $0x70] sm:$0xff]
      %v288 = vld [vmem:[%s258 + $0x78] sm:$0xff]
      %v289 = vld [vmem:[%s258 + $0x80] sm:$0xff]
      %v290 = vld [vmem:[%s258 + $0x88] sm:$0xff]
      %v291 = vld [vmem:[%s258 + $0x90] sm:$0xff]
      %v292 = vld [vmem:[%s258 + $0x98] sm:$0xff]
      %v293 = vld [vmem:[%s258 + $0xa0] sm:$0xff]
      %v294 = vld [vmem:[%s258 + $0xa8] sm:$0xff]
      %v295 = vld [vmem:[%s258 + $0xb0] sm:$0xff]
      %v296 = vld [vmem:[%s258 + $0xb8] sm:$0xff]
      %v297 = vld [vmem:[%s258 + $0xc0] sm:$0xff]
      %v298 = vld [vmem:[%s258 + $0xc8] sm:$0xff]
      %v299 = vld [vmem:[%s258 + $0xd0] sm:$0xff]
      %v300 = vld [vmem:[%s258 + $0xd8] sm:$0xff]
      %v301 = vld [vmem:[%s258 + $0xe0] sm:$0xff]
      %v302 = vld [vmem:[%s258 + $0xe8] sm:$0xff]
      %v303 = vld [vmem:[%s258 + $0xf0] sm:$0xff]
      %v304 = vld [vmem:[%s258 + $0xf8] sm:$0xff]
      %v305 = vld [vmem:[%s1] sm:$0x1]
      %v307 = vperm.slane %v305, 0
      %v309 = vmul.f32 %v273, %v307
      %v310 = vmul.f32 %v274, %v307
      %v311 = vmul.f32 %v275, %v307
      %v312 = vmul.f32 %v276, %v307
      %v313 = vmul.f32 %v277, %v307
      %v314 = vmul.f32 %v278, %v307
      %v315 = vmul.f32 %v279, %v307
      %v316 = vmul.f32 %v280, %v307
      %v317 = vmul.f32 %v281, %v307
      %v318 = vmul.f32 %v282, %v307
      %v319 = vmul.f32 %v283, %v307
      %v320 = vmul.f32 %v284, %v307
      %v321 = vmul.f32 %v285, %v307
      %v322 = vmul.f32 %v286, %v307
      %v323 = vmul.f32 %v287, %v307
      %v324 = vmul.f32 %v288, %v307
      %v325 = vmul.f32 %v289, %v307
      %v326 = vmul.f32 %v290, %v307
      %v327 = vmul.f32 %v291, %v307
      %v328 = vmul.f32 %v292, %v307
      %v329 = vmul.f32 %v293, %v307
      %v330 = vmul.f32 %v294, %v307
      %v331 = vmul.f32 %v295, %v307
      %v332 = vmul.f32 %v296, %v307
      %v333 = vmul.f32 %v297, %v307
      %v334 = vmul.f32 %v298, %v307
      %v335 = vmul.f32 %v299, %v307
      %v336 = vmul.f32 %v300, %v307
      %v337 = vmul.f32 %v301, %v307
      %v338 = vmul.f32 %v302, %v307
      %v339 = vmul.f32 %v303, %v307
      %v340 = vmul.f32 %v304, %v307
      %v341 = vld [vmem:[%s2] sm:$0x1]
      %v343 = vperm.slane %v341, 0
      %v345 = vadd.f32 %v309, %v343
      %v346 = vadd.f32 %v310, %v343
      %v347 = vadd.f32 %v311, %v343
      %v348 = vadd.f32 %v312, %v343
      %v349 = vadd.f32 %v313, %v343
      %v350 = vadd.f32 %v314, %v343
      %v351 = vadd.f32 %v315, %v343
      %v352 = vadd.f32 %v316, %v343
      %v353 = vadd.f32 %v317, %v343
      %v354 = vadd.f32 %v318, %v343
      %v355 = vadd.f32 %v319, %v343
      %v356 = vadd.f32 %v320, %v343
      %v357 = vadd.f32 %v321, %v343
      %v358 = vadd.f32 %v322, %v343
      %v359 = vadd.f32 %v323, %v343
      %v360 = vadd.f32 %v324, %v343
      %v361 = vadd.f32 %v325, %v343
      %v362 = vadd.f32 %v326, %v343
      %v363 = vadd.f32 %v327, %v343
      %v364 = vadd.f32 %v328, %v343
      %v365 = vadd.f32 %v329, %v343
      %v366 = vadd.f32 %v330, %v343
      %v367 = vadd.f32 %v331, %v343
      %v368 = vadd.f32 %v332, %v343
      %v369 = vadd.f32 %v333, %v343
      %v370 = vadd.f32 %v334, %v343
      %v371 = vadd.f32 %v335, %v343
      %v372 = vadd.f32 %v336, %v343
      %v373 = vadd.f32 %v337, %v343
      %v374 = vadd.f32 %v338, %v343
      %v375 = vadd.f32 %v339, %v343
      %v376 = vadd.f32 %v340, %v343
      %v377 = vmax.f32 %v345, 0.0
      %v378 = vmax.f32 %v346, 0.0
      %v379 = vmax.f32 %v347, 0.0
      %v380 = vmax.f32 %v348, 0.0
      %v381 = vmax.f32 %v349, 0.0
      %v382 = vmax.f32 %v350, 0.0
      %v383 = vmax.f32 %v351, 0.0
      %v384 = vmax.f32 %v352, 0.0
      %v385 = vmax.f32 %v353, 0.0
      %v386 = vmax.f32 %v354, 0.0
      %v387 = vmax.f32 %v355, 0.0
      %v388 = vmax.f32 %v356, 0.0
      %v389 = vmax.f32 %v357, 0.0
      %v390 = vmax.f32 %v358, 0.0
      %v391 = vmax.f32 %v359, 0.0
      %v392 = vmax.f32 %v360, 0.0
      %v393 = vmax.f32 %v361, 0.0
      %v394 = vmax.f32 %v362, 0.0
      %v395 = vmax.f32 %v363, 0.0
      %v396 = vmax.f32 %v364, 0.0
      %v397 = vmax.f32 %v365, 0.0
      %v398 = vmax.f32 %v366, 0.0
      %v399 = vmax.f32 %v367, 0.0
      %v400 = vmax.f32 %v368, 0.0
      %v401 = vmax.f32 %v369, 0.0
      %v402 = vmax.f32 %v370, 0.0
      %v403 = vmax.f32 %v371, 0.0
      %v404 = vmax.f32 %v372, 0.0
      %v405 = vmax.f32 %v373, 0.0
      %v406 = vmax.f32 %v374, 0.0
      %v407 = vmax.f32 %v375, 0.0
      %v408 = vmax.f32 %v376, 0.0
      %v409 = vpack.c.bf16 %v378, %v377
      %v410 = vpack.c.bf16 %v380, %v379
      %v411 = vpack.c.bf16 %v382, %v381
      %v412 = vpack.c.bf16 %v384, %v383
      %v413 = vpack.c.bf16 %v386, %v385
      %v414 = vpack.c.bf16 %v388, %v387
      %v415 = vpack.c.bf16 %v390, %v389
      %v416 = vpack.c.bf16 %v392, %v391
      %v417 = vpack.c.bf16 %v394, %v393
      %v418 = vpack.c.bf16 %v396, %v395
      %v419 = vpack.c.bf16 %v398, %v397
      %v420 = vpack.c.bf16 %v400, %v399
      %v421 = vpack.c.bf16 %v402, %v401
      %v422 = vpack.c.bf16 %v404, %v403
      %v423 = vpack.c.bf16 %v406, %v405
      %v424 = vpack.c.bf16 %v408, %v407
      %v425 = vld [vmem:[%s3] sm:$0xf]
      %v426 = vld [vmem:[%s3 + $0x4] sm:$0xf]
      %v427 = vld [vmem:[%s3 + $0x8] sm:$0xf]
      %v428 = vld [vmem:[%s3 + $0xc] sm:$0xf]
      %v433 = vunpack.c.l.b16 %v425
      %v434 = vunpack.c.l.b16 %v426
      %v435 = vunpack.c.l.b16 %v427
      %v436 = vunpack.c.l.b16 %v428
      %v437 = vpack.c.b16 %v434, %v433
      %v438 = vpack.c.b16 %v436, %v435
      %vm441 = vcmask 261120
      %v443 = vsel %vm441, %v409, 0
      %v446 = vsel %vm441, %v410, 0
      %v449 = vsel %vm441, %v411, 0
      %v452 = vsel %vm441, %v412, 0
      %v455 = vsel %vm441, %v413, 0
      %v458 = vsel %vm441, %v414, 0
      %v461 = vsel %vm441, %v415, 0
      %v464 = vsel %vm441, %v416, 0
      %v467 = vsel %vm441, %v417, 0
      %v470 = vsel %vm441, %v418, 0
      %v473 = vsel %vm441, %v419, 0
      %v476 = vsel %vm441, %v420, 0
      %v479 = vsel %vm441, %v421, 0
      %v482 = vsel %vm441, %v422, 0
      %v485 = vsel %vm441, %v423, 0
      %v488 = vsel %vm441, %v424, 0
      %490 = vmatpush.bf16.msra.mxu0 0
      %491 = vmatpush.bf16.msra.mxu0 0
      %492 = vmatpush.bf16.msra.mxu0 0
      %493 = vmatpush.bf16.msra.mxu0 0
      %494 = vmatpush.bf16.msra.mxu0 0
      %495 = vmatpush.bf16.msra.mxu0 0
      %496 = vmatpush.bf16.msra.mxu0 %v438
      %497 = vmatpush.bf16.msra.mxu0 %v437
      %498 = vmatmul.bf16.gmra.mxu0 %v443
      %v499 = vpop.f32.mrf.mxu0
      %v500 = vadd.f32 0.0, %v499
      %v501 = vpop.f32.mrf.mxu0
      %v502 = vadd.f32 0.0, %v501
      %503 = vmatmul.bf16.gmra.mxu0 %v446
      %v504 = vpop.f32.mrf.mxu0
      %v505 = vadd.f32 0.0, %v504
      %v506 = vpop.f32.mrf.mxu0
      %v507 = vadd.f32 0.0, %v506
      %508 = vmatmul.bf16.gmra.mxu0 %v449
      %v509 = vpop.f32.mrf.mxu0
      %v510 = vadd.f32 0.0, %v509
      %v511 = vpop.f32.mrf.mxu0
      %v512 = vadd.f32 0.0, %v511
      %513 = vmatmul.bf16.gmra.mxu0 %v452
      %v514 = vpop.f32.mrf.mxu0
      %v515 = vadd.f32 0.0, %v514
      %v516 = vpop.f32.mrf.mxu0
      %v517 = vadd.f32 0.0, %v516
      %518 = vmatmul.bf16.gmra.mxu0 %v455
      %v519 = vpop.f32.mrf.mxu0
      %v520 = vadd.f32 0.0, %v519
      %v521 = vpop.f32.mrf.mxu0
      %v522 = vadd.f32 0.0, %v521
      %523 = vmatmul.bf16.gmra.mxu0 %v458
      %v524 = vpop.f32.mrf.mxu0
      %v525 = vadd.f32 0.0, %v524
      %v526 = vpop.f32.mrf.mxu0
      %v527 = vadd.f32 0.0, %v526
      %528 = vmatmul.bf16.gmra.mxu0 %v461
      %v529 = vpop.f32.mrf.mxu0
      %v530 = vadd.f32 0.0, %v529
      %v531 = vpop.f32.mrf.mxu0
      %v532 = vadd.f32 0.0, %v531
      %533 = vmatmul.bf16.gmra.mxu0 %v464
      %v534 = vpop.f32.mrf.mxu0
      %v535 = vadd.f32 0.0, %v534
      %v536 = vpop.f32.mrf.mxu0
      %v537 = vadd.f32 0.0, %v536
      %538 = vmatmul.bf16.gmra.mxu0 %v467
      %v539 = vpop.f32.mrf.mxu0
      %v540 = vadd.f32 0.0, %v539
      %v541 = vpop.f32.mrf.mxu0
      %v542 = vadd.f32 0.0, %v541
      %543 = vmatmul.bf16.gmra.mxu0 %v470
      %v544 = vpop.f32.mrf.mxu0
      %v545 = vadd.f32 0.0, %v544
      %v546 = vpop.f32.mrf.mxu0
      %v547 = vadd.f32 0.0, %v546
      %548 = vmatmul.bf16.gmra.mxu0 %v473
      %v549 = vpop.f32.mrf.mxu0
      %v550 = vadd.f32 0.0, %v549
      %v551 = vpop.f32.mrf.mxu0
      %v552 = vadd.f32 0.0, %v551
      %553 = vmatmul.bf16.gmra.mxu0 %v476
      %v554 = vpop.f32.mrf.mxu0
      %v555 = vadd.f32 0.0, %v554
      %v556 = vpop.f32.mrf.mxu0
      %v557 = vadd.f32 0.0, %v556
      %558 = vmatmul.bf16.gmra.mxu0 %v479
      %v559 = vpop.f32.mrf.mxu0
      %v560 = vadd.f32 0.0, %v559
      %v561 = vpop.f32.mrf.mxu0
      %v562 = vadd.f32 0.0, %v561
      %563 = vmatmul.bf16.gmra.mxu0 %v482
      %v564 = vpop.f32.mrf.mxu0
      %v565 = vadd.f32 0.0, %v564
      %v566 = vpop.f32.mrf.mxu0
      %v567 = vadd.f32 0.0, %v566
      %568 = vmatmul.bf16.gmra.mxu0 %v485
      %v569 = vpop.f32.mrf.mxu0
      %v570 = vadd.f32 0.0, %v569
      %v571 = vpop.f32.mrf.mxu0
      %v572 = vadd.f32 0.0, %v571
      %573 = vmatmul.bf16.gmra.mxu0 %v488
      %v574 = vpop.f32.mrf.mxu0
      %v575 = vadd.f32 0.0, %v574
      %v576 = vpop.f32.mrf.mxu0
      %v577 = vadd.f32 0.0, %v576
      %578 = vdwg.mxu0
      %579 = vst [vmem:[%s264] sm:$0xff] %v500
      %580 = vst [vmem:[%s264 + $0x8] sm:$0xff] %v502
      %581 = vst [vmem:[%s264 + $0x10] sm:$0xff] %v505
      %582 = vst [vmem:[%s264 + $0x18] sm:$0xff] %v507
      %583 = vst [vmem:[%s264 + $0x20] sm:$0xff] %v510
      %584 = vst [vmem:[%s264 + $0x28] sm:$0xff] %v512
      %585 = vst [vmem:[%s264 + $0x30] sm:$0xff] %v515
      %586 = vst [vmem:[%s264 + $0x38] sm:$0xff] %v517
      %587 = vst [vmem:[%s264 + $0x40] sm:$0xff] %v520
      %588 = vst [vmem:[%s264 + $0x48] sm:$0xff] %v522
      %589 = vst [vmem:[%s264 + $0x50] sm:$0xff] %v525
      %590 = vst [vmem:[%s264 + $0x58] sm:$0xff] %v527
      %591 = vst [vmem:[%s264 + $0x60] sm:$0xff] %v530
      %592 = vst [vmem:[%s264 + $0x68] sm:$0xff] %v532
      %593 = vst [vmem:[%s264 + $0x70] sm:$0xff] %v535
      %594 = vst [vmem:[%s264 + $0x78] sm:$0xff] %v537
      %595 = vst [vmem:[%s264 + $0x80] sm:$0xff] %v540
      %596 = vst [vmem:[%s264 + $0x88] sm:$0xff] %v542
      %597 = vst [vmem:[%s264 + $0x90] sm:$0xff] %v545
      %598 = vst [vmem:[%s264 + $0x98] sm:$0xff] %v547
      %599 = vst [vmem:[%s264 + $0xa0] sm:$0xff] %v550
      %600 = vst [vmem:[%s264 + $0xa8] sm:$0xff] %v552
      %601 = vst [vmem:[%s264 + $0xb0] sm:$0xff] %v555
      %602 = vst [vmem:[%s264 + $0xb8] sm:$0xff] %v557
      %603 = vst [vmem:[%s264 + $0xc0] sm:$0xff] %v560
      %604 = vst [vmem:[%s264 + $0xc8] sm:$0xff] %v562
      %605 = vst [vmem:[%s264 + $0xd0] sm:$0xff] %v565
      %606 = vst [vmem:[%s264 + $0xd8] sm:$0xff] %v567
      %607 = vst [vmem:[%s264 + $0xe0] sm:$0xff] %v570
      %608 = vst [vmem:[%s264 + $0xe8] sm:$0xff] %v572
      %609 = vst [vmem:[%s264 + $0xf0] sm:$0xff] %v575
      %610 = vst [vmem:[%s264 + $0xf8] sm:$0xff] %v577
      %v611 = vadd.f32 %v500, %v502
      %v612 = vadd.f32 %v611, %v505
      %v613 = vadd.f32 %v612, %v507
      %v614 = vadd.f32 %v613, %v510
      %v615 = vadd.f32 %v614, %v512
      %v616 = vadd.f32 %v615, %v515
      %v617 = vadd.f32 %v616, %v517
      %v618 = vadd.f32 %v617, %v520
      %v619 = vadd.f32 %v618, %v522
      %v620 = vadd.f32 %v619, %v525
      %v621 = vadd.f32 %v620, %v527
      %v622 = vadd.f32 %v621, %v530
      %v623 = vadd.f32 %v622, %v532
      %v624 = vadd.f32 %v623, %v535
      %v625 = vadd.f32 %v624, %v537
      %v626 = vadd.f32 %v625, %v540
      %v627 = vadd.f32 %v626, %v542
      %v628 = vadd.f32 %v627, %v545
      %v629 = vadd.f32 %v628, %v547
      %v630 = vadd.f32 %v629, %v550
      %v631 = vadd.f32 %v630, %v552
      %v632 = vadd.f32 %v631, %v555
      %v633 = vadd.f32 %v632, %v557
      %v634 = vadd.f32 %v633, %v560
      %v635 = vadd.f32 %v634, %v562
      %v636 = vadd.f32 %v635, %v565
      %v637 = vadd.f32 %v636, %v567
      %v638 = vadd.f32 %v637, %v570
      %v639 = vadd.f32 %v638, %v572
      %v640 = vadd.f32 %v639, %v575
      %v641 = vadd.f32 %v640, %v577
      %v642 = vrot.slane %v641, 4
      %v643 = vadd.f32 %v641, %v642
      %v644 = vrot.slane %v643, 2
      %v645 = vadd.f32 %v643, %v644
      %v646 = vrot.slane %v645, 1
      %v647 = vadd.f32 %v645, %v646
      %648 = vst [vmem:[%s268] sm:$0x1] %v647
      %v649 = vmul.f32 %v500, %v500
      %v650 = vmul.f32 %v502, %v502
      %v651 = vmul.f32 %v505, %v505
      %v652 = vmul.f32 %v507, %v507
      %v653 = vmul.f32 %v510, %v510
      %v654 = vmul.f32 %v512, %v512
      %v655 = vmul.f32 %v515, %v515
      %v656 = vmul.f32 %v517, %v517
      %v657 = vmul.f32 %v520, %v520
      %v658 = vmul.f32 %v522, %v522
      %v659 = vmul.f32 %v525, %v525
      %v660 = vmul.f32 %v527, %v527
      %v661 = vmul.f32 %v530, %v530
      %v662 = vmul.f32 %v532, %v532
      %v663 = vmul.f32 %v535, %v535
      %v664 = vmul.f32 %v537, %v537
      %v665 = vmul.f32 %v540, %v540
      %v666 = vmul.f32 %v542, %v542
      %v667 = vmul.f32 %v545, %v545
      %v668 = vmul.f32 %v547, %v547
      %v669 = vmul.f32 %v550, %v550
      %v670 = vmul.f32 %v552, %v552
      %v671 = vmul.f32 %v555, %v555
      %v672 = vmul.f32 %v557, %v557
      %v673 = vmul.f32 %v560, %v560
      %v674 = vmul.f32 %v562, %v562
      %v675 = vmul.f32 %v565, %v565
      %v676 = vmul.f32 %v567, %v567
      %v677 = vmul.f32 %v570, %v570
      %v678 = vmul.f32 %v572, %v572
      %v679 = vmul.f32 %v575, %v575
      %v680 = vmul.f32 %v577, %v577
      %v681 = vadd.f32 %v649, %v650
      %v682 = vadd.f32 %v681, %v651
      %v683 = vadd.f32 %v682, %v652
      %v684 = vadd.f32 %v683, %v653
      %v685 = vadd.f32 %v684, %v654
      %v686 = vadd.f32 %v685, %v655
      %v687 = vadd.f32 %v686, %v656
      %v688 = vadd.f32 %v687, %v657
      %v689 = vadd.f32 %v688, %v658
      %v690 = vadd.f32 %v689, %v659
      %v691 = vadd.f32 %v690, %v660
      %v692 = vadd.f32 %v691, %v661
      %v693 = vadd.f32 %v692, %v662
      %v694 = vadd.f32 %v693, %v663
      %v695 = vadd.f32 %v694, %v664
      %v696 = vadd.f32 %v695, %v665
      %v697 = vadd.f32 %v696, %v666
      %v698 = vadd.f32 %v697, %v667
      %v699 = vadd.f32 %v698, %v668
      %v700 = vadd.f32 %v699, %v669
      %v701 = vadd.f32 %v700, %v670
      %v702 = vadd.f32 %v701, %v671
      %v703 = vadd.f32 %v702, %v672
      %v704 = vadd.f32 %v703, %v673
      %v705 = vadd.f32 %v704, %v674
      %v706 = vadd.f32 %v705, %v675
      %v707 = vadd.f32 %v706, %v676
      %v708 = vadd.f32 %v707, %v677
      %v709 = vadd.f32 %v708, %v678
      %v710 = vadd.f32 %v709, %v679
      %v711 = vadd.f32 %v710, %v680
      %v712 = vrot.slane %v711, 4
      %v713 = vadd.f32 %v711, %v712
      %v714 = vrot.slane %v713, 2
      %v715 = vadd.f32 %v713, %v714
      %v716 = vrot.slane %v715, 1
      %v717 = vadd.f32 %v715, %v716
      %718 = vst [vmem:[%s271] sm:$0x1] %v717
      %s719 = smul.u32 32, %s18
      %p720 = scmp.lt.s32.totalorder %s719, 63
      %s721 = scalar_select %p720, %s719, 63
      %s722 = smul.addr %s721, 8
      %s723 = scalar_lea.vmem %s4, %s722
      %p724 = scmp.lt.s32.totalorder %s18, 1
      %s725 = scalar_select %p724, %s18, 1
      %s726 = scalar_lea.vmem %s5, %s725
      %p727 = scmp.lt.s32.totalorder %s18, 1
      %s728 = scalar_select %p727, %s18, 1
      %s729 = scalar_lea.vmem %s6, %s728
      // Predicated region
      $region37: #{bottleneck_forward.6} parent=35 // pred_check
        %p730 = pneg %p125
      $region38: #{bottleneck_forward.6} parent=35 // pred_check_branch
        %732 = sbr.rel (%p730) target = $region40
      $region39: #{bottleneck_forward.6} parent=35 // pred_region
        %s733 = smul.u32 32, %s18
      $region40: #{bottleneck_forward.6} parent=35 // pred_fallthru
        _
      // Predicated region
      $region41: #{bottleneck_forward.6} parent=35 // pred_check
        %p734 = pneg %p151
      $region42: #{bottleneck_forward.6} parent=35 // pred_check_branch
        %736 = sbr.rel (%p734) target = $region44
      $region43: #{bottleneck_forward.6} parent=35 // pred_region
        _
      $region44: #{bottleneck_forward.6} parent=35 // pred_fallthru
        _
      // Predicated region
      $region45: #{bottleneck_forward.6} parent=35 // pred_check
        %p737 = pneg %p177
      $region46: #{bottleneck_forward.6} parent=35 // pred_check_branch
        %739 = sbr.rel (%p737) target = $region48
      $region47: #{bottleneck_forward.6} parent=35 // pred_region
        _
      $region48: #{bottleneck_forward.6} parent=35 // pred_fallthru
        _
    $region36: #{bottleneck_forward.6} parent=5 // pred_fallthru
      _
    %p740 = scmp.le.s32.totalorder 2, %s13
    // Predicated region
    $region49: #{bottleneck_forward.6} parent=5 // pred_check
      %p741 = pneg %p740
    $region50: #{bottleneck_forward.6} parent=5 // pred_check_branch
      %743 = sbr.rel (%p741) target = $region52
    $region51: #{bottleneck_forward.6} parent=5 // pred_region
      %s744 = ssub.s32 %s13, 2
      // Predicated region
      $region53: #{bottleneck_forward.6} parent=51 // pred_check
        %p745 = pneg %p131
      $region54: #{bottleneck_forward.6} parent=51 // pred_check_branch
        %747 = sbr.rel (%p745) target = $region56
      $region55: #{bottleneck_forward.6} parent=51 // pred_region
        %s748 = smul.u32 32, %s19
        %p749 = scmp.lt.s32.totalorder %s748, 63
        %s750 = scalar_select %p749, %s748, 63
        %s751 = smul.addr %s750, 8
        %s752 = scalar_lea.vmem %s4, %s751
      $region56: #{bottleneck_forward.6} parent=51 // pred_fallthru
        _
      // Predicated region
      $region57: #{bottleneck_forward.6} parent=51 // pred_check
        %p753 = pneg %p157
      $region58: #{bottleneck_forward.6} parent=51 // pred_check_branch
        %755 = sbr.rel (%p753) target = $region60
      $region59: #{bottleneck_forward.6} parent=51 // pred_region
        %p756 = scmp.lt.s32.totalorder %s19, 1
        %s757 = scalar_select %p756, %s19, 1
        %s758 = scalar_lea.vmem %s5, %s757
      $region60: #{bottleneck_forward.6} parent=51 // pred_fallthru
        _
      // Predicated region
      $region61: #{bottleneck_forward.6} parent=51 // pred_check
        %p759 = pneg %p183
      $region62: #{bottleneck_forward.6} parent=51 // pred_check_branch
        %761 = sbr.rel (%p759) target = $region64
      $region63: #{bottleneck_forward.6} parent=51 // pred_region
        %p762 = scmp.lt.s32.totalorder %s19, 1
        %s763 = scalar_select %p762, %s19, 1
        %s764 = scalar_lea.vmem %s6, %s763
      $region64: #{bottleneck_forward.6} parent=51 // pred_fallthru
        _
    $region52: #{bottleneck_forward.6} parent=5 // pred_fallthru
      _
  $region6: #{bottleneck_forward.6} parent=0 // loop_footer
    %s17 = sadd.s32 1, %s13
  $region7: #{bottleneck_forward.6} parent=0 // loop_footer_branch
    %12 = sbr.rel target = $region3
  $region8: #{bottleneck_forward.6} parent=0 // loop_exit
    _

// kernel: bottleneck_forward.5
$region0: #{bottleneck_forward.5}
  #allocation0 [shape = 'u32[]', space=smem, size = 0x4, offset = 0x4, fixed_abs, tag = 'smem constant byte address 0x4 - core index']
  #allocation1 [shape = 'u32[72,128]{1,0:T(1,128)}', space=vmem, size = 0x9000, scoped, tag = 'internal scratch']
  #allocation2 [shape = 'bf16[1,18,18,32]{3,2,1,0:T(8,128)(2,1)}', space=vmem, size = 0x1b000, scoped, tag = 'scratch operand']
  %s0 = inlined_call_operand.vmem [shape: f32[2,16,16,32], index: 0, kind: input, shape index: {}]
  %s1 = inlined_call_operand.vmem [shape: f32[1,32], index: 1, kind: input, shape index: {}]
  %s2 = inlined_call_operand.vmem [shape: f32[1,32], index: 2, kind: input, shape index: {}]
  %s3 = inlined_call_operand.vmem [shape: bf16[9,32,32], index: 3, kind: input, shape index: {}]
  %s4 = inlined_call_operand.vmem [shape: f32[512,32], index: 4, kind: output, shape index: {0}]
  %s5 = inlined_call_operand.vmem [shape: f32[2,1,32], index: 5, kind: output, shape index: {1}]
  %s6 = inlined_call_operand.vmem [shape: f32[2,1,32], index: 6, kind: output, shape index: {2}]
  %7 = xla_tuple %s4, %s5, %s6
  %s8 = sld [smem:[#allocation0]]
  $region65: #{bottleneck_forward.5} parent=0
    _
  %s10 = ssub.s32 1, %s8
  %s11 = scalar_select 0, %s10, %s8
  loop: start=0, step=1, limit=4
  $region2: #{bottleneck_forward.5} parent=0 // loop_pre_header
    _
  $region3: #{bottleneck_forward.5} parent=0 // loop_header
    %s13 = sphi 0, %s17
    %p14 = scmp.ge.s32.totalorder %s13, 4
    %s23 = sphi 0, %s25
    %s26 = sphi 0, %s23
    %s27 = sphi 0, %s26
    %s43 = sphi 0, %s27
    %s47 = sphi 0, %s47
    %s49 = sphi 0, %s47
    %s50 = sphi 0, %s49
    %s64 = sphi 0, %s50
    %s68 = sphi 0, %s68
    %s70 = sphi 0, %s68
    %s71 = sphi 0, %s70
    %s85 = sphi 0, %s71
    %s89 = sphi 0, %s89
    %s91 = sphi 0, %s89
    %s92 = sphi 0, %s91
    %s106 = sphi 0, %s92
    %s112 = sphi 0, %s114
    %s115 = sphi 0, %s112
    %s116 = sphi 0, %s115
    %s132 = sphi 0, %s116
    %s138 = sphi 0, %s140
    %s141 = sphi 0, %s138
    %s142 = sphi 0, %s141
    %s158 = sphi 0, %s142
    %s164 = sphi 0, %s166
    %s167 = sphi 0, %s164
    %s168 = sphi 0, %s167
    %s184 = sphi 0, %s168
  $region4: #{bottleneck_forward.5} parent=0 // loop_header_branch
    %16 = sbr.rel (%p14) target = $region8
  $region5: #{bottleneck_forward.5} parent=0 // loop_body
    %s18 = ssub.s32 %s13, 1
    %s19 = ssub.s32 %s13, 2
    %s20 = sadd.s32 %s13, 1
    %s21 = ssub.s32 %s13, %s20
    %p22 = scmp.eq.s32.totalorder %s21, 0
    %s24 = sadd.s32 %s23, 1
    %s25 = scalar_select %p22, %s23, %s24
    %p28 = pneg %p22
    %p29 = scmp.eq.s32.totalorder %s13, 1
    %p30 = por %p28, %p29
    %p31 = scmp.ne.s32.totalorder %s23, %s26
    %p32 = scmp.eq.s32.totalorder %s13, 0
    %p33 = por %p31, %p32
    %p34 = scmp.ne.s32.totalorder %s23, %s26
    %p35 = scmp.eq.s32.totalorder %s18, 1
    %p36 = por %p34, %p35
    %p37 = scmp.ne.s32.totalorder %s26, %s27
    %p38 = scmp.eq.s32.totalorder %s18, 0
    %p39 = por %p37, %p38
    %p40 = scmp.ne.s32.totalorder %s26, %s27
    %p41 = scmp.eq.s32.totalorder %s19, 1
    %p42 = por %p40, %p41
    %p44 = scmp.ne.s32.totalorder %s27, %s43
    %p45 = scmp.eq.s32.totalorder %s19, 0
    %p46 = por %p44, %p45
    %s48 = sadd.s32 %s47, 1
    %p51 = scmp.eq.s32.totalorder %s13, 1
    %p52 = scmp.ne.s32.totalorder %s47, %s49
    %p53 = scmp.eq.s32.totalorder %s13, 0
    %p54 = por %p52, %p53
    %p55 = scmp.ne.s32.totalorder %s47, %s49
    %p56 = scmp.eq.s32.totalorder %s18, 1
    %p57 = por %p55, %p56
    %p58 = scmp.ne.s32.totalorder %s49, %s50
    %p59 = scmp.eq.s32.totalorder %s18, 0
    %p60 = por %p58, %p59
    %p61 = scmp.ne.s32.totalorder %s49, %s50
    %p62 = scmp.eq.s32.totalorder %s19, 1
    %p63 = por %p61, %p62
    %p65 = scmp.ne.s32.totalorder %s50, %s64
    %p66 = scmp.eq.s32.totalorder %s19, 0
    %p67 = por %p65, %p66
    %s69 = sadd.s32 %s68, 1
    %p72 = scmp.eq.s32.totalorder %s13, 1
    %p73 = scmp.ne.s32.totalorder %s68, %s70
    %p74 = scmp.eq.s32.totalorder %s13, 0
    %p75 = por %p73, %p74
    %p76 = scmp.ne.s32.totalorder %s68, %s70
    %p77 = scmp.eq.s32.totalorder %s18, 1
    %p78 = por %p76, %p77
    %p79 = scmp.ne.s32.totalorder %s70, %s71
    %p80 = scmp.eq.s32.totalorder %s18, 0
    %p81 = por %p79, %p80
    %p82 = scmp.ne.s32.totalorder %s70, %s71
    %p83 = scmp.eq.s32.totalorder %s19, 1
    %p84 = por %p82, %p83
    %p86 = scmp.ne.s32.totalorder %s71, %s85
    %p87 = scmp.eq.s32.totalorder %s19, 0
    %p88 = por %p86, %p87
    %s90 = sadd.s32 %s89, 1
    %p93 = scmp.eq.s32.totalorder %s13, 1
    %p94 = scmp.ne.s32.totalorder %s89, %s91
    %p95 = scmp.eq.s32.totalorder %s13, 0
    %p96 = por %p94, %p95
    %p97 = scmp.ne.s32.totalorder %s89, %s91
    %p98 = scmp.eq.s32.totalorder %s18, 1
    %p99 = por %p97, %p98
    %p100 = scmp.ne.s32.totalorder %s91, %s92
    %p101 = scmp.eq.s32.totalorder %s18, 0
    %p102 = por %p100, %p101
    %p103 = scmp.ne.s32.totalorder %s91, %s92
    %p104 = scmp.eq.s32.totalorder %s19, 1
    %p105 = por %p103, %p104
    %p107 = scmp.ne.s32.totalorder %s92, %s106
    %p108 = scmp.eq.s32.totalorder %s19, 0
    %p109 = por %p107, %p108
    %s110 = ssub.s32 %s13, %s20
    %p111 = scmp.eq.s32.totalorder %s110, 0
    %s113 = sadd.s32 %s112, 1
    %s114 = scalar_select %p111, %s112, %s113
    %p117 = pneg %p111
    %p118 = scmp.eq.s32.totalorder %s13, 1
    %p119 = por %p117, %p118
    %p120 = scmp.ne.s32.totalorder %s112, %s115
    %p121 = scmp.eq.s32.totalorder %s13, 0
    %p122 = por %p120, %p121
    %p123 = scmp.ne.s32.totalorder %s112, %s115
    %p124 = scmp.eq.s32.totalorder %s18, 1
    %p125 = por %p123, %p124
    %p126 = scmp.ne.s32.totalorder %s115, %s116
    %p127 = scmp.eq.s32.totalorder %s18, 0
    %p128 = por %p126, %p127
    %p129 = scmp.ne.s32.totalorder %s115, %s116
    %p130 = scmp.eq.s32.totalorder %s19, 1
    %p131 = por %p129, %p130
    %p133 = scmp.ne.s32.totalorder %s116, %s132
    %p134 = scmp.eq.s32.totalorder %s19, 0
    %p135 = por %p133, %p134
    %s136 = ssub.s32 %s13, %s20
    %p137 = scmp.eq.s32.totalorder %s136, 0
    %s139 = sadd.s32 %s138, 1
    %s140 = scalar_select %p137, %s138, %s139
    %p143 = pneg %p137
    %p144 = scmp.eq.s32.totalorder %s13, 1
    %p145 = por %p143, %p144
    %p146 = scmp.ne.s32.totalorder %s138, %s141
    %p147 = scmp.eq.s32.totalorder %s13, 0
    %p148 = por %p146, %p147
    %p149 = scmp.ne.s32.totalorder %s138, %s141
    %p150 = scmp.eq.s32.totalorder %s18, 1
    %p151 = por %p149, %p150
    %p152 = scmp.ne.s32.totalorder %s141, %s142
    %p153 = scmp.eq.s32.totalorder %s18, 0
    %p154 = por %p152, %p153
    %p155 = scmp.ne.s32.totalorder %s141, %s142
    %p156 = scmp.eq.s32.totalorder %s19, 1
    %p157 = por %p155, %p156
    %p159 = scmp.ne.s32.totalorder %s142, %s158
    %p160 = scmp.eq.s32.totalorder %s19, 0
    %p161 = por %p159, %p160
    %s162 = ssub.s32 %s13, %s20
    %p163 = scmp.eq.s32.totalorder %s162, 0
    %s165 = sadd.s32 %s164, 1
    %s166 = scalar_select %p163, %s164, %s165
    %p169 = pneg %p163
    %p170 = scmp.eq.s32.totalorder %s13, 1
    %p171 = por %p169, %p170
    %p172 = scmp.ne.s32.totalorder %s164, %s167
    %p173 = scmp.eq.s32.totalorder %s13, 0
    %p174 = por %p172, %p173
    %p175 = scmp.ne.s32.totalorder %s164, %s167
    %p176 = scmp.eq.s32.totalorder %s18, 1
    %p177 = por %p175, %p176
    %p178 = scmp.ne.s32.totalorder %s167, %s168
    %p179 = scmp.eq.s32.totalorder %s18, 0
    %p180 = por %p178, %p179
    %p181 = scmp.ne.s32.totalorder %s167, %s168
    %p182 = scmp.eq.s32.totalorder %s19, 1
    %p183 = por %p181, %p182
    %p185 = scmp.ne.s32.totalorder %s168, %s184
    %p186 = scmp.eq.s32.totalorder %s19, 0
    %p187 = por %p185, %p186
    %p188 = scmp.le.s32.totalorder 1, %s13
    %p189 = scmp.lt.s32.totalorder %s13, 3
    %p190 = pnand %p188, %p189
    %p191 = pneg %p190
    // Predicated region
    $region9: #{bottleneck_forward.5} parent=5 // pred_check
      _
    $region10: #{bottleneck_forward.5} parent=5 // pred_check_branch
      %193 = sbr.rel (%p190) target = $region12
    $region11: #{bottleneck_forward.5} parent=5 // pred_region
      %s194 = ssub.s32 %s13, 1
      // Predicated region
      $region13: #{bottleneck_forward.5} parent=11 // pred_check
        %p195 = pneg %p60
      $region14: #{bottleneck_forward.5} parent=11 // pred_check_branch
        %197 = sbr.rel (%p195) target = $region16
      $region15: #{bottleneck_forward.5} parent=11 // pred_region
        _
      $region16: #{bottleneck_forward.5} parent=11 // pred_fallthru
        _
      // Predicated region
      $region17: #{bottleneck_forward.5} parent=11 // pred_check
        %p198 = pneg %p81
      $region18: #{bottleneck_forward.5} parent=11 // pred_check_branch
        %200 = sbr.rel (%p198) target = $region20
      $region19: #{bottleneck_forward.5} parent=11 // pred_region
        _
      $region20: #{bottleneck_forward.5} parent=11 // pred_fallthru
        _
      // Predicated region
      $region21: #{bottleneck_forward.5} parent=11 // pred_check
        %p201 = pneg %p102
      $region22: #{bottleneck_forward.5} parent=11 // pred_check_branch
        %203 = sbr.rel (%p201) target = $region24
      $region23: #{bottleneck_forward.5} parent=11 // pred_region
        _
      $region24: #{bottleneck_forward.5} parent=11 // pred_fallthru
        _
    $region12: #{bottleneck_forward.5} parent=5 // pred_fallthru
      _
    %p204 = scmp.lt.s32.totalorder %s13, 2
    // Predicated region
    $region25: #{bottleneck_forward.5} parent=5 // pred_check
      %p205 = pneg %p204
    $region26: #{bottleneck_forward.5} parent=5 // pred_check_branch
      %207 = sbr.rel (%p205) target = $region28
    $region27: #{bottleneck_forward.5} parent=5 // pred_region
      // Predicated region
      $region29: #{bottleneck_forward.5} parent=27 // pred_check
        %p208 = pneg %p33
      $region30: #{bottleneck_forward.5} parent=27 // pred_check_branch
        %210 = sbr.rel (%p208) target = $region32
      $region31: #{bottleneck_forward.5} parent=27 // pred_region
        %p211 = scmp.lt.s32.totalorder %s13, 1
        %s212 = scalar_select %p211, %s13, 1
        %s213 = smul.addr %s212, 32
        %s214 = smul.addr %s213, 8
        %s215 = scalar_lea.vmem %s0, %s214
      $region32: #{bottleneck_forward.5} parent=27 // pred_fallthru
        _
    $region28: #{bottleneck_forward.5} parent=5 // pred_fallthru
      _
    %p216 = scmp.le.s32.totalorder 1, %s13
    %p217 = scmp.lt.s32.totalorder %s13, 3
    %p218 = pnand %p216, %p217
    %p219 = pneg %p218
    // Predicated region
    $region33: #{bottleneck_forward.5} parent=5 // pred_check
      _
    $region34: #{bottleneck_forward.5} parent=5 // pred_check_branch
      %221 = sbr.rel (%p218) target = $region36
    $region35: #{bottleneck_forward.5} parent=5 // pred_region
      %s222 = ssub.s32 %s13, 1
      %p223 = scmp.lt.s32.totalorder %s18, 1
      %s224 = scalar_select %p223, %s18, 1
      %s225 = smul.addr %s224, 32
      %s226 = smul.addr %s225, 8
      %s227 = scalar_lea.vmem %s0, %s226
      %p228 = pneg %p39
      %p229 = pneg %p36
      %p230 = pneg %p60
      %p231 = pneg %p57
      %p232 = pneg %p81
      %p233 = pneg %p78
      %p234 = pneg %p102
      %p235 = pneg %p99
      %p236 = pneg %p128
      %p237 = pneg %p125
      %s238 = smul.u32 32, %s18
      %p239 = scmp.lt.s32.totalorder %s238, 63
      %s240 = scalar_select %p239, %s238, 63
      %s241 = smul.addr %s240, 8
      %s242 = scalar_lea.vmem %s4, %s241
      %p243 = pneg %p154
      %p244 = pneg %p151
      %p245 = scmp.lt.s32.totalorder %s18, 1
      %s246 = scalar_select %p245, %s18, 1
      %s247 = scalar_lea.vmem %s5, %s246
      %p248 = pneg %p180
      %p249 = pneg %p177
      %p250 = scmp.lt.s32.totalorder %s18, 1
      %s251 = scalar_select %p250, %s18, 1
      %s252 = scalar_lea.vmem %s6, %s251
      %p253 = scmp.lt.s32.totalorder %s18, 1
      %s254 = scalar_select %p253, %s18, 1
      %s255 = smul.addr %s254, 32
      %s256 = smul.addr %s255, 8
      %s257 = scalar_lea.vmem %s0, %s256
      %s258 = smul.u32 32, %s18
      %p259 = scmp.lt.s32.totalorder %s258, 63
      %s260 = scalar_select %p259, %s258, 63
      %s261 = smul.addr %s260, 8
      %s262 = scalar_lea.vmem %s4, %s261
      %s263 = smul.u32 32, %s18
      %p264 = scmp.lt.s32.totalorder %s18, 1
      %s265 = scalar_select %p264, %s18, 1
      %s266 = scalar_lea.vmem %s5, %s265
      %p267 = scmp.lt.s32.totalorder %s18, 1
      %s268 = scalar_select %p267, %s18, 1
      %s269 = scalar_lea.vmem %s6, %s268
      %v271 = vld [vmem:[%s257] sm:$0xff]
      %v272 = vld [vmem:[%s257 + $0x8] sm:$0xff]
      %v273 = vld [vmem:[%s257 + $0x10] sm:$0xff]
      %v274 = vld [vmem:[%s257 + $0x18] sm:$0xff]
      %v275 = vld [vmem:[%s257 + $0x20] sm:$0xff]
      %v276 = vld [vmem:[%s257 + $0x28] sm:$0xff]
      %v277 = vld [vmem:[%s257 + $0x30] sm:$0xff]
      %v278 = vld [vmem:[%s257 + $0x38] sm:$0xff]
      %v279 = vld [vmem:[%s257 + $0x40] sm:$0xff]
      %v280 = vld [vmem:[%s257 + $0x48] sm:$0xff]
      %v281 = vld [vmem:[%s257 + $0x50] sm:$0xff]
      %v282 = vld [vmem:[%s257 + $0x58] sm:$0xff]
      %v283 = vld [vmem:[%s257 + $0x60] sm:$0xff]
      %v284 = vld [vmem:[%s257 + $0x68] sm:$0xff]
      %v285 = vld [vmem:[%s257 + $0x70] sm:$0xff]
      %v286 = vld [vmem:[%s257 + $0x78] sm:$0xff]
      %v287 = vld [vmem:[%s257 + $0x80] sm:$0xff]
      %v288 = vld [vmem:[%s257 + $0x88] sm:$0xff]
      %v289 = vld [vmem:[%s257 + $0x90] sm:$0xff]
      %v290 = vld [vmem:[%s257 + $0x98] sm:$0xff]
      %v291 = vld [vmem:[%s257 + $0xa0] sm:$0xff]
      %v292 = vld [vmem:[%s257 + $0xa8] sm:$0xff]
      %v293 = vld [vmem:[%s257 + $0xb0] sm:$0xff]
      %v294 = vld [vmem:[%s257 + $0xb8] sm:$0xff]
      %v295 = vld [vmem:[%s257 + $0xc0] sm:$0xff]
      %v296 = vld [vmem:[%s257 + $0xc8] sm:$0xff]
      %v297 = vld [vmem:[%s257 + $0xd0] sm:$0xff]
      %v298 = vld [vmem:[%s257 + $0xd8] sm:$0xff]
      %v299 = vld [vmem:[%s257 + $0xe0] sm:$0xff]
      %v300 = vld [vmem:[%s257 + $0xe8] sm:$0xff]
      %v301 = vld [vmem:[%s257 + $0xf0] sm:$0xff]
      %v302 = vld [vmem:[%s257 + $0xf8] sm:$0xff]
      %v303 = vld [vmem:[%s1] sm:$0x1]
      %v305 = vperm.slane %v303, 0
      %v307 = vmul.f32 %v271, %v305
      %v308 = vmul.f32 %v272, %v305
      %v309 = vmul.f32 %v273, %v305
      %v310 = vmul.f32 %v274, %v305
      %v311 = vmul.f32 %v275, %v305
      %v312 = vmul.f32 %v276, %v305
      %v313 = vmul.f32 %v277, %v305
      %v314 = vmul.f32 %v278, %v305
      %v315 = vmul.f32 %v279, %v305
      %v316 = vmul.f32 %v280, %v305
      %v317 = vmul.f32 %v281, %v305
      %v318 = vmul.f32 %v282, %v305
      %v319 = vmul.f32 %v283, %v305
      %v320 = vmul.f32 %v284, %v305
      %v321 = vmul.f32 %v285, %v305
      %v322 = vmul.f32 %v286, %v305
      %v323 = vmul.f32 %v287, %v305
      %v324 = vmul.f32 %v288, %v305
      %v325 = vmul.f32 %v289, %v305
      %v326 = vmul.f32 %v290, %v305
      %v327 = vmul.f32 %v291, %v305
      %v328 = vmul.f32 %v292, %v305
      %v329 = vmul.f32 %v293, %v305
      %v330 = vmul.f32 %v294, %v305
      %v331 = vmul.f32 %v295, %v305
      %v332 = vmul.f32 %v296, %v305
      %v333 = vmul.f32 %v297, %v305
      %v334 = vmul.f32 %v298, %v305
      %v335 = vmul.f32 %v299, %v305
      %v336 = vmul.f32 %v300, %v305
      %v337 = vmul.f32 %v301, %v305
      %v338 = vmul.f32 %v302, %v305
      %v339 = vld [vmem:[%s2] sm:$0x1]
      %v341 = vperm.slane %v339, 0
      %v343 = vadd.f32 %v307, %v341
      %v344 = vadd.f32 %v308, %v341
      %v345 = vadd.f32 %v309, %v341
      %v346 = vadd.f32 %v310, %v341
      %v347 = vadd.f32 %v311, %v341
      %v348 = vadd.f32 %v312, %v341
      %v349 = vadd.f32 %v313, %v341
      %v350 = vadd.f32 %v314, %v341
      %v351 = vadd.f32 %v315, %v341
      %v352 = vadd.f32 %v316, %v341
      %v353 = vadd.f32 %v317, %v341
      %v354 = vadd.f32 %v318, %v341
      %v355 = vadd.f32 %v319, %v341
      %v356 = vadd.f32 %v320, %v341
      %v357 = vadd.f32 %v321, %v341
      %v358 = vadd.f32 %v322, %v341
      %v359 = vadd.f32 %v323, %v341
      %v360 = vadd.f32 %v324, %v341
      %v361 = vadd.f32 %v325, %v341
      %v362 = vadd.f32 %v326, %v341
      %v363 = vadd.f32 %v327, %v341
      %v364 = vadd.f32 %v328, %v341
      %v365 = vadd.f32 %v329, %v341
      %v366 = vadd.f32 %v330, %v341
      %v367 = vadd.f32 %v331, %v341
      %v368 = vadd.f32 %v332, %v341
      %v369 = vadd.f32 %v333, %v341
      %v370 = vadd.f32 %v334, %v341
      %v371 = vadd.f32 %v335, %v341
      %v372 = vadd.f32 %v336, %v341
      %v373 = vadd.f32 %v337, %v341
      %v374 = vadd.f32 %v338, %v341
      %v375 = vmax.f32 %v343, 0.0
      %v376 = vmax.f32 %v344, 0.0
      %v377 = vmax.f32 %v345, 0.0
      %v378 = vmax.f32 %v346, 0.0
      %v379 = vmax.f32 %v347, 0.0
      %v380 = vmax.f32 %v348, 0.0
      %v381 = vmax.f32 %v349, 0.0
      %v382 = vmax.f32 %v350, 0.0
      %v383 = vmax.f32 %v351, 0.0
      %v384 = vmax.f32 %v352, 0.0
      %v385 = vmax.f32 %v353, 0.0
      %v386 = vmax.f32 %v354, 0.0
      %v387 = vmax.f32 %v355, 0.0
      %v388 = vmax.f32 %v356, 0.0
      %v389 = vmax.f32 %v357, 0.0
      %v390 = vmax.f32 %v358, 0.0
      %v391 = vmax.f32 %v359, 0.0
      %v392 = vmax.f32 %v360, 0.0
      %v393 = vmax.f32 %v361, 0.0
      %v394 = vmax.f32 %v362, 0.0
      %v395 = vmax.f32 %v363, 0.0
      %v396 = vmax.f32 %v364, 0.0
      %v397 = vmax.f32 %v365, 0.0
      %v398 = vmax.f32 %v366, 0.0
      %v399 = vmax.f32 %v367, 0.0
      %v400 = vmax.f32 %v368, 0.0
      %v401 = vmax.f32 %v369, 0.0
      %v402 = vmax.f32 %v370, 0.0
      %v403 = vmax.f32 %v371, 0.0
      %v404 = vmax.f32 %v372, 0.0
      %v405 = vmax.f32 %v373, 0.0
      %v406 = vmax.f32 %v374, 0.0
      %vm407 = vcmask 257024
      %408 = vst.msk [vmem:[#allocation2] sm:$0xf] %vm407, 0
      %409 = vst.msk [vmem:[#allocation2 + $0x4] sm:$0xf] %vm407, 0
      %vm410 = vcmask 253952
      %411 = vst.msk [vmem:[#allocation2 + $0x8] sm:$0x1] %vm410, 0
      %s412 = scalar_lea.vmem [#allocation2], 204
      %413 = vst.msk [vmem:[%s412] sm:$0xf] %vm407, 0
      %414 = vst.msk [vmem:[%s412 + $0x4] sm:$0xf] %vm407, 0
      %415 = vst.msk [vmem:[%s412 + $0x8] sm:$0x1] %vm410, 0
      %vm416 = vcmask 253952
      %vm417 = vsmask.f32 256
      %vm418 = vmand %vm416, %vm417
      %v419 = vld [vmem:[#allocation2] sm:$0x1]
      %v420 = vsel %vm418, 0, %v419
      %421 = vst [vmem:[#allocation2] sm:$0x1] %v420
      %v422 = vld [vmem:[#allocation2 + $0xc] sm:$0x1]
      %v423 = vsel %vm418, 0, %v422
      %424 = vst [vmem:[#allocation2 + $0xc] sm:$0x1] %v423
      %v425 = vld [vmem:[#allocation2 + $0x18] sm:$0x1]
      %v426 = vsel %vm418, 0, %v425
      %427 = vst [vmem:[#allocation2 + $0x18] sm:$0x1] %v426
      %v428 = vld [vmem:[#allocation2 + $0x24] sm:$0x1]
      %v429 = vsel %vm418, 0, %v428
      %430 = vst [vmem:[#allocation2 + $0x24] sm:$0x1] %v429
      %v431 = vld [vmem:[#allocation2 + $0x30] sm:$0x1]
      %v432 = vsel %vm418, 0, %v431
      %433 = vst [vmem:[#allocation2 + $0x30] sm:$0x1] %v432
      %v434 = vld [vmem:[#allocation2 + $0x3c] sm:$0x1]
      %v435 = vsel %vm418, 0, %v434
      %436 = vst [vmem:[#allocation2 + $0x3c] sm:$0x1] %v435
      %v437 = vld [vmem:[#allocation2 + $0x48] sm:$0x1]
      %v438 = vsel %vm418, 0, %v437
      %439 = vst [vmem:[#allocation2 + $0x48] sm:$0x1] %v438
      %v440 = vld [vmem:[#allocation2 + $0x54] sm:$0x1]
      %v441 = vsel %vm418, 0, %v440
      %442 = vst [vmem:[#allocation2 + $0x54] sm:$0x1] %v441
      %v443 = vld [vmem:[#allocation2 + $0x60] sm:$0x1]
      %v444 = vsel %vm418, 0, %v443
      %445 = vst [vmem:[#allocation2 + $0x60] sm:$0x1] %v444
      %v446 = vld [vmem:[#allocation2 + $0x6c] sm:$0x1]
      %v447 = vsel %vm418, 0, %v446
      %448 = vst [vmem:[#allocation2 + $0x6c] sm:$0x1] %v447
      %v449 = vld [vmem:[#allocation2 + $0x78] sm:$0x1]
      %v450 = vsel %vm418, 0, %v449
      %451 = vst [vmem:[#allocation2 + $0x78] sm:$0x1] %v450
      %v452 = vld [vmem:[#allocation2 + $0x84] sm:$0x1]
      %v453 = vsel %vm418, 0, %v452
      %454 = vst [vmem:[#allocation2 + $0x84] sm:$0x1] %v453
      %v455 = vld [vmem:[#allocation2 + $0x90] sm:$0x1]
      %v456 = vsel %vm418, 0, %v455
      %457 = vst [vmem:[#allocation2 + $0x90] sm:$0x1] %v456
      %v458 = vld [vmem:[#allocation2 + $0x9c] sm:$0x1]
      %v459 = vsel %vm418, 0, %v458
      %460 = vst [vmem:[#allocation2 + $0x9c] sm:$0x1] %v459
      %v461 = vld [vmem:[#allocation2 + $0xa8] sm:$0x1]
      %v462 = vsel %vm418, 0, %v461
      %463 = vst [vmem:[#allocation2 + $0xa8] sm:$0x1] %v462
      %v464 = vld [vmem:[#allocation2 + $0xb4] sm:$0x1]
      %v465 = vsel %vm418, 0, %v464
      %466 = vst [vmem:[#allocation2 + $0xb4] sm:$0x1] %v465
      %v467 = vld [vmem:[#allocation2 + $0xc0] sm:$0x1]
      %v468 = vsel %vm418, 0, %v467
      %469 = vst [vmem:[#allocation2 + $0xc0] sm:$0x1] %v468
      %v470 = vld [vmem:[#allocation2 + $0xcc] sm:$0x1]
      %v471 = vsel %vm418, 0, %v470
      %472 = vst [vmem:[#allocation2 + $0xcc] sm:$0x1] %v471
      %vm473 = vsmask.f32 7938
      %vm474 = vmand %vm416, %vm473
      %v475 = vld [vmem:[#allocation2 + $0x8] sm:$0x1]
      %v476 = vsel %vm474, 0, %v475
      %477 = vst [vmem:[#allocation2 + $0x8] sm:$0x1] %v476
      %v478 = vld [vmem:[#allocation2 + $0x14] sm:$0x1]
      %v479 = vsel %vm474, 0, %v478
      %480 = vst [vmem:[#allocation2 + $0x14] sm:$0x1] %v479
      %v481 = vld [vmem:[#allocation2 + $0x20] sm:$0x1]
      %v482 = vsel %vm474, 0, %v481
      %483 = vst [vmem:[#allocation2 + $0x20] sm:$0x1] %v482
      %v484 = vld [vmem:[#allocation2 + $0x2c] sm:$0x1]
      %v485 = vsel %vm474, 0, %v484
      %486 = vst [vmem:[#allocation2 + $0x2c] sm:$0x1] %v485
      %v487 = vld [vmem:[#allocation2 + $0x38] sm:$0x1]
      %v488 = vsel %vm474, 0, %v487
      %489 = vst [vmem:[#allocation2 + $0x38] sm:$0x1] %v488
      %v490 = vld [vmem:[#allocation2 + $0x44] sm:$0x1]
      %v491 = vsel %vm474, 0, %v490
      %492 = vst [vmem:[#allocation2 + $0x44] sm:$0x1] %v491
      %v493 = vld [vmem:[#allocation2 + $0x50] sm:$0x1]
      %v494 = vsel %vm474, 0, %v493
      %495 = vst [vmem:[#allocation2 + $0x50] sm:$0x1] %v494
      %v496 = vld [vmem:[#allocation2 + $0x5c] sm:$0x1]
      %v497 = vsel %vm474, 0, %v496
      %498 = vst [vmem:[#allocation2 + $0x5c] sm:$0x1] %v497
      %v499 = vld [vmem:[#allocation2 + $0x68] sm:$0x1]
      %v500 = vsel %vm474, 0, %v499
      %501 = vst [vmem:[#allocation2 + $0x68] sm:$0x1] %v500
      %v502 = vld [vmem:[#allocation2 + $0x74] sm:$0x1]
      %v503 = vsel %vm474, 0, %v502
      %504 = vst [vmem:[#allocation2 + $0x74] sm:$0x1] %v503
      %v505 = vld [vmem:[#allocation2 + $0x80] sm:$0x1]
      %v506 = vsel %vm474, 0, %v505
      %507 = vst [vmem:[#allocation2 + $0x80] sm:$0x1] %v506
      %v508 = vld [vmem:[#allocation2 + $0x8c] sm:$0x1]
      %v509 = vsel %vm474, 0, %v508
      %510 = vst [vmem:[#allocation2 + $0x8c] sm:$0x1] %v509
      %v511 = vld [vmem:[#allocation2 + $0x98] sm:$0x1]
      %v512 = vsel %vm474, 0, %v511
      %513 = vst [vmem:[#allocation2 + $0x98] sm:$0x1] %v512
      %v514 = vld [vmem:[#allocation2 + $0xa4] sm:$0x1]
      %v515 = vsel %vm474, 0, %v514
      %516 = vst [vmem:[#allocation2 + $0xa4] sm:$0x1] %v515
      %v517 = vld [vmem:[#allocation2 + $0xb0] sm:$0x1]
      %v518 = vsel %vm474, 0, %v517
      %519 = vst [vmem:[#allocation2 + $0xb0] sm:$0x1] %v518
      %v520 = vld [vmem:[#allocation2 + $0xbc] sm:$0x1]
      %v521 = vsel %vm474, 0, %v520
      %522 = vst [vmem:[#allocation2 + $0xbc] sm:$0x1] %v521
      %v523 = vld [vmem:[#allocation2 + $0xc8] sm:$0x1]
      %v524 = vsel %vm474, 0, %v523
      %525 = vst [vmem:[#allocation2 + $0xc8] sm:$0x1] %v524
      %v526 = vld [vmem:[#allocation2 + $0xd4] sm:$0x1]
      %v527 = vsel %vm474, 0, %v526
      %528 = vst [vmem:[#allocation2 + $0xd4] sm:$0x1] %v527
      %v529 = vpack.c.bf16 %v375, %v375
      %v530 = vpack.c.bf16 %v376, %v376
      %v531 = vpack.c.bf16 %v377, %v377
      %v532 = vpack.c.bf16 %v378, %v378
      %v533 = vpack.c.bf16 %v379, %v379
      %v534 = vpack.c.bf16 %v380, %v380
      %v535 = vpack.c.bf16 %v381, %v381
      %v536 = vpack.c.bf16 %v382, %v382
      %v537 = vpack.c.bf16 %v383, %v383
      %v538 = vpack.c.bf16 %v384, %v384
      %v539 = vpack.c.bf16 %v385, %v385
      %v540 = vpack.c.bf16 %v386, %v386
      %v541 = vpack.c.bf16 %v387, %v387
      %v542 = vpack.c.bf16 %v388, %v388
      %v543 = vpack.c.bf16 %v389, %v389
      %v544 = vpack.c.bf16 %v390, %v390
      %v545 = vpack.c.bf16 %v391, %v391
      %v546 = vpack.c.bf16 %v392, %v392
      %v547 = vpack.c.bf16 %v393, %v393
      %v548 = vpack.c.bf16 %v394, %v394
      %v549 = vpack.c.bf16 %v395, %v395
      %v550 = vpack.c.bf16 %v396, %v396
      %v551 = vpack.c.bf16 %v397, %v397
      %v552 = vpack.c.bf16 %v398, %v398
      %v553 = vpack.c.bf16 %v399, %v399
      %v554 = vpack.c.bf16 %v400, %v400
      %v555 = vpack.c.bf16 %v401, %v401
      %v556 = vpack.c.bf16 %v402, %v402
      %v557 = vpack.c.bf16 %v403, %v403
      %v558 = vpack.c.bf16 %v404, %v404
      %v559 = vpack.c.bf16 %v405, %v405
      %v560 = vpack.c.bf16 %v406, %v406
      %vm561 = vsmask.f32 4368
      %vm562 = vmor %vm417, %vm561
      %v564 = vshrl.u32 %v529, 16
      %v566 = vrot.slane %v564, 7
      %v567 = vshll.u32 %v529, 16
      %v569 = vor.u32 %v566, %v567
      %v570 = vrot.slane %v566, 4
      %v572 = vshrl.u32 %v530, 16
      %v574 = vrot.slane %v572, 7
      %v575 = vshll.u32 %v530, 16
      %v577 = vor.u32 %v574, %v575
      %v578 = vsel %vm562, %v570, %v577
      %v579 = vrot.slane %v574, 4
      %v581 = vshrl.u32 %v531, 16
      %v583 = vrot.slane %v581, 7
      %v584 = vshll.u32 %v531, 16
      %v586 = vor.u32 %v583, %v584
      %v587 = vrot.slane %v583, 4
      %v589 = vshrl.u32 %v532, 16
      %v591 = vrot.slane %v589, 7
      %v592 = vshll.u32 %v532, 16
      %v594 = vor.u32 %v591, %v592
      %v595 = vsel %vm562, %v587, %v594
      %v596 = vrot.slane %v591, 4
      %v598 = vshrl.u32 %v533, 16
      %v600 = vrot.slane %v598, 7
      %v601 = vshll.u32 %v533, 16
      %v603 = vor.u32 %v600, %v601
      %v604 = vrot.slane %v600, 4
      %v606 = vshrl.u32 %v534, 16
      %v608 = vrot.slane %v606, 7
      %v609 = vshll.u32 %v534, 16
      %v611 = vor.u32 %v608, %v609
      %v612 = vsel %vm562, %v604, %v611
      %v613 = vrot.slane %v608, 4
      %v615 = vshrl.u32 %v535, 16
      %v617 = vrot.slane %v615, 7
      %v618 = vshll.u32 %v535, 16
      %v620 = vor.u32 %v617, %v618
      %v621 = vrot.slane %v617, 4
      %v623 = vshrl.u32 %v536, 16
      %v625 = vrot.slane %v623, 7
      %v626 = vshll.u32 %v536, 16
      %v628 = vor.u32 %v625, %v626
      %v629 = vsel %vm562, %v621, %v628
      %v630 = vrot.slane %v625, 4
      %v632 = vshrl.u32 %v537, 16
      %v634 = vrot.slane %v632, 7
      %v635 = vshll.u32 %v537, 16
      %v637 = vor.u32 %v634, %v635
      %v638 = vrot.slane %v634, 4
      %v640 = vshrl.u32 %v538, 16
      %v642 = vrot.slane %v640, 7
      %v643 = vshll.u32 %v538, 16
      %v645 = vor.u32 %v642, %v643
      %v646 = vsel %vm562, %v638, %v645
      %v647 = vrot.slane %v642, 4
      %v649 = vshrl.u32 %v539, 16
      %v651 = vrot.slane %v649, 7
      %v652 = vshll.u32 %v539, 16
      %v654 = vor.u32 %v651, %v652
      %v655 = vrot.slane %v651, 4
      %v657 = vshrl.u32 %v540, 16
      %v659 = vrot.slane %v657, 7
      %v660 = vshll.u32 %v540, 16
      %v662 = vor.u32 %v659, %v660
      %v663 = vsel %vm562, %v655, %v662
      %v664 = vrot.slane %v659, 4
      %v666 = vshrl.u32 %v541, 16
      %v668 = vrot.slane %v666, 7
      %v669 = vshll.u32 %v541, 16
      %v671 = vor.u32 %v668, %v669
      %v672 = vrot.slane %v668, 4
      %v674 = vshrl.u32 %v542, 16
      %v676 = vrot.slane %v674, 7
      %v677 = vshll.u32 %v542, 16
      %v679 = vor.u32 %v676, %v677
      %v680 = vsel %vm562, %v672, %v679
      %v681 = vrot.slane %v676, 4
      %v683 = vshrl.u32 %v543, 16
      %v685 = vrot.slane %v683, 7
      %v686 = vshll.u32 %v543, 16
      %v688 = vor.u32 %v685, %v686
      %v689 = vrot.slane %v685, 4
      %v691 = vshrl.u32 %v544, 16
      %v693 = vrot.slane %v691, 7
      %v694 = vshll.u32 %v544, 16
      %v696 = vor.u32 %v693, %v694
      %v697 = vsel %vm562, %v689, %v696
      %v698 = vrot.slane %v693, 4
      %v700 = vshrl.u32 %v545, 16
      %v702 = vrot.slane %v700, 7
      %v703 = vshll.u32 %v545, 16
      %v705 = vor.u32 %v702, %v703
      %v706 = vrot.slane %v702, 4
      %v708 = vshrl.u32 %v546, 16
      %v710 = vrot.slane %v708, 7
      %v711 = vshll.u32 %v546, 16
      %v713 = vor.u32 %v710, %v711
      %v714 = vsel %vm562, %v706, %v713
      %v715 = vrot.slane %v710, 4
      %v717 = vshrl.u32 %v547, 16
      %v719 = vrot.slane %v717, 7
      %v720 = vshll.u32 %v547, 16
      %v722 = vor.u32 %v719, %v720
      %v723 = vrot.slane %v719, 4
      %v725 = vshrl.u32 %v548, 16
      %v727 = vrot.slane %v725, 7
      %v728 = vshll.u32 %v548, 16
      %v730 = vor.u32 %v727, %v728
      %v731 = vsel %vm562, %v723, %v730
      %v732 = vrot.slane %v727, 4
      %v734 = vshrl.u32 %v549, 16
      %v736 = vrot.slane %v734, 7
      %v737 = vshll.u32 %v549, 16
      %v739 = vor.u32 %v736, %v737
      %v740 = vrot.slane %v736, 4
      %v742 = vshrl.u32 %v550, 16
      %v744 = vrot.slane %v742, 7
      %v745 = vshll.u32 %v550, 16
      %v747 = vor.u32 %v744, %v745
      %v748 = vsel %vm562, %v740, %v747
      %v749 = vrot.slane %v744, 4
      %v751 = vshrl.u32 %v551, 16
      %v753 = vrot.slane %v751, 7
      %v754 = vshll.u32 %v551, 16
      %v756 = vor.u32 %v753, %v754
      %v757 = vrot.slane %v753, 4
      %v759 = vshrl.u32 %v552, 16
      %v761 = vrot.slane %v759, 7
      %v762 = vshll.u32 %v552, 16
      %v764 = vor.u32 %v761, %v762
      %v765 = vsel %vm562, %v757, %v764
      %v766 = vrot.slane %v761, 4
      %v768 = vshrl.u32 %v553, 16
      %v770 = vrot.slane %v768, 7
      %v771 = vshll.u32 %v553, 16
      %v773 = vor.u32 %v770, %v771
      %v774 = vrot.slane %v770, 4
      %v776 = vshrl.u32 %v554, 16
      %v778 = vrot.slane %v776, 7
      %v779 = vshll.u32 %v554, 16
      %v781 = vor.u32 %v778, %v779
      %v782 = vsel %vm562, %v774, %v781
      %v783 = vrot.slane %v778, 4
      %v785 = vshrl.u32 %v555, 16
      %v787 = vrot.slane %v785, 7
      %v788 = vshll.u32 %v555, 16
      %v790 = vor.u32 %v787, %v788
      %v791 = vrot.slane %v787, 4
      %v793 = vshrl.u32 %v556, 16
      %v795 = vrot.slane %v793, 7
      %v796 = vshll.u32 %v556, 16
      %v798 = vor.u32 %v795, %v796
      %v799 = vsel %vm562, %v791, %v798
      %v800 = vrot.slane %v795, 4
      %v802 = vshrl.u32 %v557, 16
      %v804 = vrot.slane %v802, 7
      %v805 = vshll.u32 %v557, 16
      %v807 = vor.u32 %v804, %v805
      %v808 = vrot.slane %v804, 4
      %v810 = vshrl.u32 %v558, 16
      %v812 = vrot.slane %v810, 7
      %v813 = vshll.u32 %v558, 16
      %v815 = vor.u32 %v812, %v813
      %v816 = vsel %vm562, %v808, %v815
      %v817 = vrot.slane %v812, 4
      %v819 = vshrl.u32 %v559, 16
      %v821 = vrot.slane %v819, 7
      %v822 = vshll.u32 %v559, 16
      %v824 = vor.u32 %v821, %v822
      %v825 = vrot.slane %v821, 4
      %v827 = vshrl.u32 %v560, 16
      %v829 = vrot.slane %v827, 7
      %v830 = vshll.u32 %v560, 16
      %v832 = vor.u32 %v829, %v830
      %v833 = vsel %vm562, %v825, %v832
      %v834 = vrot.slane %v829, 4
      %s883 = scalar_lea.vmem [#allocation2], 12
      %vm884 = vcmask 257024
      %vm885 = vmand %vm884, %vm473
      %v886 = vld [vmem:[%s883] sm:$0xf]
      %v887 = vsel %vm885, %v569, %v886
      %888 = vst [vmem:[%s883] sm:$0xf] %v887
      %889 = vst.msk [vmem:[%s883 + $0x4] sm:$0xf] %vm407, %v578
      %v890 = vld [vmem:[%s883 + $0x8] sm:$0x1]
      %v891 = vsel %vm418, %v579, %v890
      %892 = vst [vmem:[%s883 + $0x8] sm:$0x1] %v891
      %v893 = vld [vmem:[%s883 + $0xc] sm:$0xf]
      %v894 = vsel %vm885, %v586, %v893
      %895 = vst [vmem:[%s883 + $0xc] sm:$0xf] %v894
      %896 = vst.msk [vmem:[%s883 + $0x10] sm:$0xf] %vm407, %v595
      %v897 = vld [vmem:[%s883 + $0x14] sm:$0x1]
      %v898 = vsel %vm418, %v596, %v897
      %899 = vst [vmem:[%s883 + $0x14] sm:$0x1] %v898
      %v900 = vld [vmem:[%s883 + $0x18] sm:$0xf]
      %v901 = vsel %vm885, %v603, %v900
      %902 = vst [vmem:[%s883 + $0x18] sm:$0xf] %v901
      %903 = vst.msk [vmem:[%s883 + $0x1c] sm:$0xf] %vm407, %v612
      %v904 = vld [vmem:[%s883 + $0x20] sm:$0x1]
      %v905 = vsel %vm418, %v613, %v904
      %906 = vst [vmem:[%s883 + $0x20] sm:$0x1] %v905
      %v907 = vld [vmem:[%s883 + $0x24] sm:$0xf]
      %v908 = vsel %vm885, %v620, %v907
      %909 = vst [vmem:[%s883 + $0x24] sm:$0xf] %v908
      %910 = vst.msk [vmem:[%s883 + $0x28] sm:$0xf] %vm407, %v629
      %v911 = vld [vmem:[%s883 + $0x2c] sm:$0x1]
      %v912 = vsel %vm418, %v630, %v911
      %913 = vst [vmem:[%s883 + $0x2c] sm:$0x1] %v912
      %v914 = vld [vmem:[%s883 + $0x30] sm:$0xf]
      %v915 = vsel %vm885, %v637, %v914
      %916 = vst [vmem:[%s883 + $0x30] sm:$0xf] %v915
      %917 = vst.msk [vmem:[%s883 + $0x34] sm:$0xf] %vm407, %v646
      %v918 = vld [vmem:[%s883 + $0x38] sm:$0x1]
      %v919 = vsel %vm418, %v647, %v918
      %920 = vst [vmem:[%s883 + $0x38] sm:$0x1] %v919
      %v921 = vld [vmem:[%s883 + $0x3c] sm:$0xf]
      %v922 = vsel %vm885, %v654, %v921
      %923 = vst [vmem:[%s883 + $0x3c] sm:$0xf] %v922
      %924 = vst.msk [vmem:[%s883 + $0x40] sm:$0xf] %vm407, %v663
      %v925 = vld [vmem:[%s883 + $0x44] sm:$0x1]
      %v926 = vsel %vm418, %v664, %v925
      %927 = vst [vmem:[%s883 + $0x44] sm:$0x1] %v926
      %v928 = vld [vmem:[%s883 + $0x48] sm:$0xf]
      %v929 = vsel %vm885, %v671, %v928
      %930 = vst [vmem:[%s883 + $0x48] sm:$0xf] %v929
      %931 = vst.msk [vmem:[%s883 + $0x4c] sm:$0xf] %vm407, %v680
      %v932 = vld [vmem:[%s883 + $0x50] sm:$0x1]
      %v933 = vsel %vm418, %v681, %v932
      %934 = vst [vmem:[%s883 + $0x50] sm:$0x1] %v933
      %v935 = vld [vmem:[%s883 + $0x54] sm:$0xf]
      %v936 = vsel %vm885, %v688, %v935
      %937 = vst [vmem:[%s883 + $0x54] sm:$0xf] %v936
      %938 = vst.msk [vmem:[%s883 + $0x58] sm:$0xf] %vm407, %v697
      %v939 = vld [vmem:[%s883 + $0x5c] sm:$0x1]
      %v940 = vsel %vm418, %v698, %v939
      %941 = vst [vmem:[%s883 + $0x5c] sm:$0x1] %v940
      %v942 = vld [vmem:[%s883 + $0x60] sm:$0xf]
      %v943 = vsel %vm885, %v705, %v942
      %944 = vst [vmem:[%s883 + $0x60] sm:$0xf] %v943
      %945 = vst.msk [vmem:[%s883 + $0x64] sm:$0xf] %vm407, %v714
      %v946 = vld [vmem:[%s883 + $0x68] sm:$0x1]
      %v947 = vsel %vm418, %v715, %v946
      %948 = vst [vmem:[%s883 + $0x68] sm:$0x1] %v947
      %v949 = vld [vmem:[%s883 + $0x6c] sm:$0xf]
      %v950 = vsel %vm885, %v722, %v949
      %951 = vst [vmem:[%s883 + $0x6c] sm:$0xf] %v950
      %952 = vst.msk [vmem:[%s883 + $0x70] sm:$0xf] %vm407, %v731
      %v953 = vld [vmem:[%s883 + $0x74] sm:$0x1]
      %v954 = vsel %vm418, %v732, %v953
      %955 = vst [vmem:[%s883 + $0x74] sm:$0x1] %v954
      %v956 = vld [vmem:[%s883 + $0x78] sm:$0xf]
      %v957 = vsel %vm885, %v739, %v956
      %958 = vst [vmem:[%s883 + $0x78] sm:$0xf] %v957
      %959 = vst.msk [vmem:[%s883 + $0x7c] sm:$0xf] %vm407, %v748
      %v960 = vld [vmem:[%s883 + $0x80] sm:$0x1]
      %v961 = vsel %vm418, %v749, %v960
      %962 = vst [vmem:[%s883 + $0x80] sm:$0x1] %v961
      %v963 = vld [vmem:[%s883 + $0x84] sm:$0xf]
      %v964 = vsel %vm885, %v756, %v963
      %965 = vst [vmem:[%s883 + $0x84] sm:$0xf] %v964
      %966 = vst.msk [vmem:[%s883 + $0x88] sm:$0xf] %vm407, %v765
      %v967 = vld [vmem:[%s883 + $0x8c] sm:$0x1]
      %v968 = vsel %vm418, %v766, %v967
      %969 = vst [vmem:[%s883 + $0x8c] sm:$0x1] %v968
      %v970 = vld [vmem:[%s883 + $0x90] sm:$0xf]
      %v971 = vsel %vm885, %v773, %v970
      %972 = vst [vmem:[%s883 + $0x90] sm:$0xf] %v971
      %973 = vst.msk [vmem:[%s883 + $0x94] sm:$0xf] %vm407, %v782
      %v974 = vld [vmem:[%s883 + $0x98] sm:$0x1]
      %v975 = vsel %vm418, %v783, %v974
      %976 = vst [vmem:[%s883 + $0x98] sm:$0x1] %v975
      %v977 = vld [vmem:[%s883 + $0x9c] sm:$0xf]
      %v978 = vsel %vm885, %v790, %v977
      %979 = vst [vmem:[%s883 + $0x9c] sm:$0xf] %v978
      %980 = vst.msk [vmem:[%s883 + $0xa0] sm:$0xf] %vm407, %v799
      %v981 = vld [vmem:[%s883 + $0xa4] sm:$0x1]
      %v982 = vsel %vm418, %v800, %v981
      %983 = vst [vmem:[%s883 + $0xa4] sm:$0x1] %v982
      %v984 = vld [vmem:[%s883 + $0xa8] sm:$0xf]
      %v985 = vsel %vm885, %v807, %v984
      %986 = vst [vmem:[%s883 + $0xa8] sm:$0xf] %v985
      %987 = vst.msk [vmem:[%s883 + $0xac] sm:$0xf] %vm407, %v816
      %v988 = vld [vmem:[%s883 + $0xb0] sm:$0x1]
      %v989 = vsel %vm418, %v817, %v988
      %990 = vst [vmem:[%s883 + $0xb0] sm:$0x1] %v989
      %v991 = vld [vmem:[%s883 + $0xb4] sm:$0xf]
      %v992 = vsel %vm885, %v824, %v991
      %993 = vst [vmem:[%s883 + $0xb4] sm:$0xf] %v992
      %994 = vst.msk [vmem:[%s883 + $0xb8] sm:$0xf] %vm407, %v833
      %v995 = vld [vmem:[%s883 + $0xbc] sm:$0x1]
      %v996 = vsel %vm418, %v834, %v995
      %997 = vst [vmem:[%s883 + $0xbc] sm:$0x1] %v996
      %v998 = vld [vmem:[#allocation2] sm:$0xf]
      %v999 = vld [vmem:[#allocation2 + $0x4] sm:$0xf]
      %v1000 = vld [vmem:[#allocation2 + $0xc] sm:$0xf]
      %v1001 = vld [vmem:[#allocation2 + $0x10] sm:$0xf]
      %v1002 = vld [vmem:[#allocation2 + $0x18] sm:$0xf]
      %v1003 = vld [vmem:[#allocation2 + $0x1c] sm:$0xf]
      %v1004 = vld [vmem:[#allocation2 + $0x24] sm:$0xf]
      %v1005 = vld [vmem:[#allocation2 + $0x28] sm:$0xf]
      %v1006 = vld [vmem:[#allocation2 + $0x30] sm:$0xf]
      %v1007 = vld [vmem:[#allocation2 + $0x34] sm:$0xf]
      %v1008 = vld [vmem:[#allocation2 + $0x3c] sm:$0xf]
      %v1009 = vld [vmem:[#allocation2 + $0x40] sm:$0xf]
      %v1010 = vld [vmem:[#allocation2 + $0x48] sm:$0xf]
      %v1011 = vld [vmem:[#allocation2 + $0x4c] sm:$0xf]
      %v1012 = vld [vmem:[#allocation2 + $0x54] sm:$0xf]
      %v1013 = vld [vmem:[#allocation2 + $0x58] sm:$0xf]
      %v1014 = vld [vmem:[#allocation2 + $0x60] sm:$0xf]
      %v1015 = vld [vmem:[#allocation2 + $0x64] sm:$0xf]
      %v1016 = vld [vmem:[#allocation2 + $0x6c] sm:$0xf]
      %v1017 = vld [vmem:[#allocation2 + $0x70] sm:$0xf]
      %v1018 = vld [vmem:[#allocation2 + $0x78] sm:$0xf]
      %v1019 = vld [vmem:[#allocation2 + $0x7c] sm:$0xf]
      %v1020 = vld [vmem:[#allocation2 + $0x84] sm:$0xf]
      %v1021 = vld [vmem:[#allocation2 + $0x88] sm:$0xf]
      %v1022 = vld [vmem:[#allocation2 + $0x90] sm:$0xf]
      %v1023 = vld [vmem:[#allocation2 + $0x94] sm:$0xf]
      %v1024 = vld [vmem:[#allocation2 + $0x9c] sm:$0xf]
      %v1025 = vld [vmem:[#allocation2 + $0xa0] sm:$0xf]
      %v1026 = vld [vmem:[#allocation2 + $0xa8] sm:$0xf]
      %v1027 = vld [vmem:[#allocation2 + $0xac] sm:$0xf]
      %v1028 = vld [vmem:[#allocation2 + $0xb4] sm:$0xf]
      %v1029 = vld [vmem:[#allocation2 + $0xb8] sm:$0xf]
      %v1030 = vld [vmem:[%s3] sm:$0xf]
      %v1031 = vld [vmem:[%s3 + $0x4] sm:$0xf]
      %v1032 = vld [vmem:[%s3 + $0x8] sm:$0xf]
      %v1033 = vld [vmem:[%s3 + $0xc] sm:$0xf]
      %v1034 = vld [vmem:[#allocation2 + $0x8] sm:$0x1]
      %v1035 = vld [vmem:[#allocation2 + $0x14] sm:$0x1]
      %v1036 = vld [vmem:[#allocation2 + $0x20] sm:$0x1]
      %v1037 = vld [vmem:[#allocation2 + $0x2c] sm:$0x1]
      %v1038 = vld [vmem:[#allocation2 + $0x38] sm:$0x1]
      %v1039 = vld [vmem:[#allocation2 + $0x44] sm:$0x1]
      %v1040 = vld [vmem:[#allocation2 + $0x50] sm:$0x1]
      %v1041 = vld [vmem:[#allocation2 + $0x5c] sm:$0x1]
      %v1042 = vld [vmem:[#allocation2 + $0x68] sm:$0x1]
      %v1043 = vld [vmem:[#allocation2 + $0x74] sm:$0x1]
      %v1044 = vld [vmem:[#allocation2 + $0x80] sm:$0x1]
      %v1045 = vld [vmem:[#allocation2 + $0x8c] sm:$0x1]
      %v1046 = vld [vmem:[#allocation2 + $0x98] sm:$0x1]
      %v1047 = vld [vmem:[#allocation2 + $0xa4] sm:$0x1]
      %v1048 = vld [vmem:[#allocation2 + $0xb0] sm:$0x1]
      %v1049 = vld [vmem:[#allocation2 + $0xbc] sm:$0x1]
      %vm1050 = vsmask.f32 3328
      %vm1051 = vsmask.f32 7440
      %vm1052 = vmor %vm1050, %vm1051
      %v1054 = vshrl.u32 %v998, 16
      %v1056 = vrot.slane %v1054, 4
      %v1057 = vshll.u32 %v998, 16
      %v1059 = vrot.slane %v1057, 5
      %v1060 = vor.u32 %v1056, %v1059
      %v1061 = vrot.slane %v1060, 4
      %v1063 = vshll.u32 %v999, 16
      %v1065 = vrot.slane %v1063, 5
      %v1066 = vsel %vm1052, %v1061, %v1065
      %v1067 = vshrl.u32 %v999, 16
      %v1069 = vrot.slane %v1067, 4
      %v1070 = vor.u32 %v1069, %v1065
      %v1071 = vrot.slane %v1070, 4
      %v1073 = vshll.u32 %v1034, 16
      %v1075 = vrot.slane %v1073, 5
      %v1076 = vsel %vm1052, %v1071, %v1075
      %v1078 = vshrl.u32 %v1000, 16
      %v1080 = vrot.slane %v1078, 4
      %v1081 = vshll.u32 %v1000, 16
      %v1083 = vrot.slane %v1081, 5
      %v1084 = vor.u32 %v1080, %v1083
      %v1085 = vrot.slane %v1084, 4
      %v1087 = vshll.u32 %v1001, 16
      %v1089 = vrot.slane %v1087, 5
      %v1090 = vsel %vm1052, %v1085, %v1089
      %v1091 = vshrl.u32 %v1001, 16
      %v1093 = vrot.slane %v1091, 4
      %v1094 = vor.u32 %v1093, %v1089
      %v1095 = vrot.slane %v1094, 4
      %v1097 = vshll.u32 %v1035, 16
      %v1099 = vrot.slane %v1097, 5
      %v1100 = vsel %vm1052, %v1095, %v1099
      %v1102 = vshrl.u32 %v1002, 16
      %v1104 = vrot.slane %v1102, 4
      %v1105 = vshll.u32 %v1002, 16
      %v1107 = vrot.slane %v1105, 5
      %v1108 = vor.u32 %v1104, %v1107
      %v1109 = vrot.slane %v1108, 4
      %v1111 = vshll.u32 %v1003, 16
      %v1113 = vrot.slane %v1111, 5
      %v1114 = vsel %vm1052, %v1109, %v1113
      %v1115 = vshrl.u32 %v1003, 16
      %v1117 = vrot.slane %v1115, 4
      %v1118 = vor.u32 %v1117, %v1113
      %v1119 = vrot.slane %v1118, 4
      %v1121 = vshll.u32 %v1036, 16
      %v1123 = vrot.slane %v1121, 5
      %v1124 = vsel %vm1052, %v1119, %v1123
      %v1126 = vshrl.u32 %v1004, 16
      %v1128 = vrot.slane %v1126, 4
      %v1129 = vshll.u32 %v1004, 16
      %v1131 = vrot.slane %v1129, 5
      %v1132 = vor.u32 %v1128, %v1131
      %v1133 = vrot.slane %v1132, 4
      %v1135 = vshll.u32 %v1005, 16
      %v1137 = vrot.slane %v1135, 5
      %v1138 = vsel %vm1052, %v1133, %v1137
      %v1139 = vshrl.u32 %v1005, 16
      %v1141 = vrot.slane %v1139, 4
      %v1142 = vor.u32 %v1141, %v1137
      %v1143 = vrot.slane %v1142, 4
      %v1145 = vshll.u32 %v1037, 16
      %v1147 = vrot.slane %v1145, 5
      %v1148 = vsel %vm1052, %v1143, %v1147
      %v1150 = vshrl.u32 %v1006, 16
      %v1152 = vrot.slane %v1150, 4
      %v1153 = vshll.u32 %v1006, 16
      %v1155 = vrot.slane %v1153, 5
      %v1156 = vor.u32 %v1152, %v1155
      %v1157 = vrot.slane %v1156, 4
      %v1159 = vshll.u32 %v1007, 16
      %v1161 = vrot.slane %v1159, 5
      %v1162 = vsel %vm1052, %v1157, %v1161
      %v1163 = vshrl.u32 %v1007, 16
      %v1165 = vrot.slane %v1163, 4
      %v1166 = vor.u32 %v1165, %v1161
      %v1167 = vrot.slane %v1166, 4
      %v1169 = vshll.u32 %v1038, 16
      %v1171 = vrot.slane %v1169, 5
      %v1172 = vsel %vm1052, %v1167, %v1171
      %v1174 = vshrl.u32 %v1008, 16
      %v1176 = vrot.slane %v1174, 4
      %v1177 = vshll.u32 %v1008, 16
      %v1179 = vrot.slane %v1177, 5
      %v1180 = vor.u32 %v1176, %v1179
      %v1181 = vrot.slane %v1180, 4
      %v1183 = vshll.u32 %v1009, 16
      %v1185 = vrot.slane %v1183, 5
      %v1186 = vsel %vm1052, %v1181, %v1185
      %v1187 = vshrl.u32 %v1009, 16
      %v1189 = vrot.slane %v1187, 4
      %v1190 = vor.u32 %v1189, %v1185
      %v1191 = vrot.slane %v1190, 4
      %v1193 = vshll.u32 %v1039, 16
      %v1195 = vrot.slane %v1193, 5
      %v1196 = vsel %vm1052, %v1191, %v1195
      %v1198 = vshrl.u32 %v1010, 16
      %v1200 = vrot.slane %v1198, 4
      %v1201 = vshll.u32 %v1010, 16
      %v1203 = vrot.slane %v1201, 5
      %v1204 = vor.u32 %v1200, %v1203
      %v1205 = vrot.slane %v1204, 4
      %v1207 = vshll.u32 %v1011, 16
      %v1209 = vrot.slane %v1207, 5
      %v1210 = vsel %vm1052, %v1205, %v1209
      %v1211 = vshrl.u32 %v1011, 16
      %v1213 = vrot.slane %v1211, 4
      %v1214 = vor.u32 %v1213, %v1209
      %v1215 = vrot.slane %v1214, 4
      %v1217 = vshll.u32 %v1040, 16
      %v1219 = vrot.slane %v1217, 5
      %v1220 = vsel %vm1052, %v1215, %v1219
      %v1222 = vshrl.u32 %v1012, 16
      %v1224 = vrot.slane %v1222, 4
      %v1225 = vshll.u32 %v1012, 16
      %v1227 = vrot.slane %v1225, 5
      %v1228 = vor.u32 %v1224, %v1227
      %v1229 = vrot.slane %v1228, 4
      %v1231 = vshll.u32 %v1013, 16
      %v1233 = vrot.slane %v1231, 5
      %v1234 = vsel %vm1052, %v1229, %v1233
      %v1235 = vshrl.u32 %v1013, 16
      %v1237 = vrot.slane %v1235, 4
      %v1238 = vor.u32 %v1237, %v1233
      %v1239 = vrot.slane %v1238, 4
      %v1241 = vshll.u32 %v1041, 16
      %v1243 = vrot.slane %v1241, 5
      %v1244 = vsel %vm1052, %v1239, %v1243
      %v1246 = vshrl.u32 %v1014, 16
      %v1248 = vrot.slane %v1246, 4
      %v1249 = vshll.u32 %v1014, 16
      %v1251 = vrot.slane %v1249, 5
      %v1252 = vor.u32 %v1248, %v1251
      %v1253 = vrot.slane %v1252, 4
      %v1255 = vshll.u32 %v1015, 16
      %v1257 = vrot.slane %v1255, 5
      %v1258 = vsel %vm1052, %v1253, %v1257
      %v1259 = vshrl.u32 %v1015, 16
      %v1261 = vrot.slane %v1259, 4
      %v1262 = vor.u32 %v1261, %v1257
      %v1263 = vrot.slane %v1262, 4
      %v1265 = vshll.u32 %v1042, 16
      %v1267 = vrot.slane %v1265, 5
      %v1268 = vsel %vm1052, %v1263, %v1267
      %v1270 = vshrl.u32 %v1016, 16
      %v1272 = vrot.slane %v1270, 4
      %v1273 = vshll.u32 %v1016, 16
      %v1275 = vrot.slane %v1273, 5
      %v1276 = vor.u32 %v1272, %v1275
      %v1277 = vrot.slane %v1276, 4
      %v1279 = vshll.u32 %v1017, 16
      %v1281 = vrot.slane %v1279, 5
      %v1282 = vsel %vm1052, %v1277, %v1281
      %v1283 = vshrl.u32 %v1017, 16
      %v1285 = vrot.slane %v1283, 4
      %v1286 = vor.u32 %v1285, %v1281
      %v1287 = vrot.slane %v1286, 4
      %v1289 = vshll.u32 %v1043, 16
      %v1291 = vrot.slane %v1289, 5
      %v1292 = vsel %vm1052, %v1287, %v1291
      %v1294 = vshrl.u32 %v1018, 16
      %v1296 = vrot.slane %v1294, 4
      %v1297 = vshll.u32 %v1018, 16
      %v1299 = vrot.slane %v1297, 5
      %v1300 = vor.u32 %v1296, %v1299
      %v1301 = vrot.slane %v1300, 4
      %v1303 = vshll.u32 %v1019, 16
      %v1305 = vrot.slane %v1303, 5
      %v1306 = vsel %vm1052, %v1301, %v1305
      %v1307 = vshrl.u32 %v1019, 16
      %v1309 = vrot.slane %v1307, 4
      %v1310 = vor.u32 %v1309, %v1305
      %v1311 = vrot.slane %v1310, 4
      %v1313 = vshll.u32 %v1044, 16
      %v1315 = vrot.slane %v1313, 5
      %v1316 = vsel %vm1052, %v1311, %v1315
      %v1318 = vshrl.u32 %v1020, 16
      %v1320 = vrot.slane %v1318, 4
      %v1321 = vshll.u32 %v1020, 16
      %v1323 = vrot.slane %v1321, 5
      %v1324 = vor.u32 %v1320, %v1323
      %v1325 = vrot.slane %v1324, 4
      %v1327 = vshll.u32 %v1021, 16
      %v1329 = vrot.slane %v1327, 5
      %v1330 = vsel %vm1052, %v1325, %v1329
      %v1331 = vshrl.u32 %v1021, 16
      %v1333 = vrot.slane %v1331, 4
      %v1334 = vor.u32 %v1333, %v1329
      %v1335 = vrot.slane %v1334, 4
      %v1337 = vshll.u32 %v1045, 16
      %v1339 = vrot.slane %v1337, 5
      %v1340 = vsel %vm1052, %v1335, %v1339
      %v1342 = vshrl.u32 %v1022, 16
      %v1344 = vrot.slane %v1342, 4
      %v1345 = vshll.u32 %v1022, 16
      %v1347 = vrot.slane %v1345, 5
      %v1348 = vor.u32 %v1344, %v1347
      %v1349 = vrot.slane %v1348, 4
      %v1351 = vshll.u32 %v1023, 16
      %v1353 = vrot.slane %v1351, 5
      %v1354 = vsel %vm1052, %v1349, %v1353
      %v1355 = vshrl.u32 %v1023, 16
      %v1357 = vrot.slane %v1355, 4
      %v1358 = vor.u32 %v1357, %v1353
      %v1359 = vrot.slane %v1358, 4
      %v1361 = vshll.u32 %v1046, 16
      %v1363 = vrot.slane %v1361, 5
      %v1364 = vsel %vm1052, %v1359, %v1363
      %v1366 = vshrl.u32 %v1024, 16
      %v1368 = vrot.slane %v1366, 4
      %v1369 = vshll.u32 %v1024, 16
      %v1371 = vrot.slane %v1369, 5
      %v1372 = vor.u32 %v1368, %v1371
      %v1373 = vrot.slane %v1372, 4
      %v1375 = vshll.u32 %v1025, 16
      %v1377 = vrot.slane %v1375, 5
      %v1378 = vsel %vm1052, %v1373, %v1377
      %v1379 = vshrl.u32 %v1025, 16
      %v1381 = vrot.slane %v1379, 4
      %v1382 = vor.u32 %v1381, %v1377
      %v1383 = vrot.slane %v1382, 4
      %v1385 = vshll.u32 %v1047, 16
      %v1387 = vrot.slane %v1385, 5
      %v1388 = vsel %vm1052, %v1383, %v1387
      %v1390 = vshrl.u32 %v1026, 16
      %v1392 = vrot.slane %v1390, 4
      %v1393 = vshll.u32 %v1026, 16
      %v1395 = vrot.slane %v1393, 5
      %v1396 = vor.u32 %v1392, %v1395
      %v1397 = vrot.slane %v1396, 4
      %v1399 = vshll.u32 %v1027, 16
      %v1401 = vrot.slane %v1399, 5
      %v1402 = vsel %vm1052, %v1397, %v1401
      %v1403 = vshrl.u32 %v1027, 16
      %v1405 = vrot.slane %v1403, 4
      %v1406 = vor.u32 %v1405, %v1401
      %v1407 = vrot.slane %v1406, 4
      %v1409 = vshll.u32 %v1048, 16
      %v1411 = vrot.slane %v1409, 5
      %v1412 = vsel %vm1052, %v1407, %v1411
      %v1414 = vshrl.u32 %v1028, 16
      %v1416 = vrot.slane %v1414, 4
      %v1417 = vshll.u32 %v1028, 16
      %v1419 = vrot.slane %v1417, 5
      %v1420 = vor.u32 %v1416, %v1419
      %v1421 = vrot.slane %v1420, 4
      %v1423 = vshll.u32 %v1029, 16
      %v1425 = vrot.slane %v1423, 5
      %v1426 = vsel %vm1052, %v1421, %v1425
      %v1427 = vshrl.u32 %v1029, 16
      %v1429 = vrot.slane %v1427, 4
      %v1430 = vor.u32 %v1429, %v1425
      %v1431 = vrot.slane %v1430, 4
      %v1433 = vshll.u32 %v1049, 16
      %v1435 = vrot.slane %v1433, 5
      %v1436 = vsel %vm1052, %v1431, %v1435
      %s1437 = scalar_lea.vmem %s3, 16
      %v1438 = vld [vmem:[%s1437] sm:$0xf]
      %v1439 = vld [vmem:[%s1437 + $0x4] sm:$0xf]
      %v1440 = vld [vmem:[%s1437 + $0x8] sm:$0xf]
      %v1441 = vld [vmem:[%s1437 + $0xc] sm:$0xf]
      %v1442 = vunpack.c.l.b16 %v1066
      %v1443 = vunpack.c.l.b16 %v1076
      %v1444 = vunpack.c.l.b16 %v1090
      %v1445 = vunpack.c.l.b16 %v1100
      %v1446 = vunpack.c.l.b16 %v1114
      %v1447 = vunpack.c.l.b16 %v1124
      %v1448 = vunpack.c.l.b16 %v1138
      %v1449 = vunpack.c.l.b16 %v1148
      %v1450 = vunpack.c.l.b16 %v1162
      %v1451 = vunpack.c.l.b16 %v1172
      %v1452 = vunpack.c.l.b16 %v1186
      %v1453 = vunpack.c.l.b16 %v1196
      %v1454 = vunpack.c.l.b16 %v1210
      %v1455 = vunpack.c.l.b16 %v1220
      %v1456 = vunpack.c.l.b16 %v1234
      %v1457 = vunpack.c.l.b16 %v1244
      %v1458 = vunpack.c.l.b16 %v1258
      %v1459 = vunpack.c.l.b16 %v1268
      %v1460 = vunpack.c.l.b16 %v1282
      %v1461 = vunpack.c.l.b16 %v1292
      %v1462 = vunpack.c.l.b16 %v1306
      %v1463 = vunpack.c.l.b16 %v1316
      %v1464 = vunpack.c.l.b16 %v1330
      %v1465 = vunpack.c.l.b16 %v1340
      %v1466 = vunpack.c.l.b16 %v1354
      %v1467 = vunpack.c.l.b16 %v1364
      %v1468 = vunpack.c.l.b16 %v1378
      %v1469 = vunpack.c.l.b16 %v1388
      %v1470 = vunpack.c.l.b16 %v1402
      %v1471 = vunpack.c.l.b16 %v1412
      %v1472 = vunpack.c.l.b16 %v1426
      %v1473 = vunpack.c.l.b16 %v1436
      %v1474 = vpack.c.b16 %v1443, %v1442
      %v1475 = vpack.c.b16 %v1445, %v1444
      %v1476 = vpack.c.b16 %v1447, %v1446
      %v1477 = vpack.c.b16 %v1449, %v1448
      %v1478 = vpack.c.b16 %v1451, %v1450
      %v1479 = vpack.c.b16 %v1453, %v1452
      %v1480 = vpack.c.b16 %v1455, %v1454
      %v1481 = vpack.c.b16 %v1457, %v1456
      %v1482 = vpack.c.b16 %v1459, %v1458
      %v1483 = vpack.c.b16 %v1461, %v1460
      %v1484 = vpack.c.b16 %v1463, %v1462
      %v1485 = vpack.c.b16 %v1465, %v1464
      %v1486 = vpack.c.b16 %v1467, %v1466
      %v1487 = vpack.c.b16 %v1469, %v1468
      %v1488 = vpack.c.b16 %v1471, %v1470
      %v1489 = vpack.c.b16 %v1473, %v1472
      %v1494 = vunpack.c.l.b16 %v1438
      %v1495 = vunpack.c.l.b16 %v1439
      %v1496 = vunpack.c.l.b16 %v1440
      %v1497 = vunpack.c.l.b16 %v1441
      %v1498 = vpack.c.b16 %v1495, %v1494
      %v1499 = vpack.c.b16 %v1497, %v1496
      %vm1502 = vcmask 261120
      %v1504 = vsel %vm1502, %v1474, 0
      %v1507 = vsel %vm1502, %v1475, 0
      %v1510 = vsel %vm1502, %v1476, 0
      %v1513 = vsel %vm1502, %v1477, 0
      %v1516 = vsel %vm1502, %v1478, 0
      %v1519 = vsel %vm1502, %v1479, 0
      %v1522 = vsel %vm1502, %v1480, 0
      %v1525 = vsel %vm1502, %v1481, 0
      %v1528 = vsel %vm1502, %v1482, 0
      %v1531 = vsel %vm1502, %v1483, 0
      %v1534 = vsel %vm1502, %v1484, 0
      %v1537 = vsel %vm1502, %v1485, 0
      %v1540 = vsel %vm1502, %v1486, 0
      %v1543 = vsel %vm1502, %v1487, 0
      %v1546 = vsel %vm1502, %v1488, 0
      %v1549 = vsel %vm1502, %v1489, 0
      %1551 = vmatpush.bf16.msra.mxu0 0
      %1552 = vmatpush.bf16.msra.mxu0 0
      %1553 = vmatpush.bf16.msra.mxu0 0
      %1554 = vmatpush.bf16.msra.mxu0 0
      %1555 = vmatpush.bf16.msra.mxu0 0
      %1556 = vmatpush.bf16.msra.mxu0 0
      %1557 = vmatpush.bf16.msra.mxu0 %v1499
      %1558 = vmatpush.bf16.msra.mxu0 %v1498
      %1559 = vmatmul.bf16.gmra.mxu0 %v1504
      %v1560 = vpop.f32.mrf.mxu0
      %v1561 = vadd.f32 0.0, %v1560
      %v1562 = vpop.f32.mrf.mxu0
      %v1563 = vadd.f32 0.0, %v1562
      %1564 = vmatmul.bf16.gmra.mxu0 %v1507
      %v1565 = vpop.f32.mrf.mxu0
      %v1566 = vadd.f32 0.0, %v1565
      %v1567 = vpop.f32.mrf.mxu0
      %v1568 = vadd.f32 0.0, %v1567
      %1569 = vmatmul.bf16.gmra.mxu0 %v1510
      %v1570 = vpop.f32.mrf.mxu0
      %v1571 = vadd.f32 0.0, %v1570
      %v1572 = vpop.f32.mrf.mxu0
      %v1573 = vadd.f32 0.0, %v1572
      %1574 = vmatmul.bf16.gmra.mxu0 %v1513
      %v1575 = vpop.f32.mrf.mxu0
      %v1576 = vadd.f32 0.0, %v1575
      %v1577 = vpop.f32.mrf.mxu0
      %v1578 = vadd.f32 0.0, %v1577
      %1579 = vmatmul.bf16.gmra.mxu0 %v1516
      %v1580 = vpop.f32.mrf.mxu0
      %v1581 = vadd.f32 0.0, %v1580
      %v1582 = vpop.f32.mrf.mxu0
      %v1583 = vadd.f32 0.0, %v1582
      %1584 = vmatmul.bf16.gmra.mxu0 %v1519
      %v1585 = vpop.f32.mrf.mxu0
      %v1586 = vadd.f32 0.0, %v1585
      %v1587 = vpop.f32.mrf.mxu0
      %v1588 = vadd.f32 0.0, %v1587
      %1589 = vmatmul.bf16.gmra.mxu0 %v1522
      %v1590 = vpop.f32.mrf.mxu0
      %v1591 = vadd.f32 0.0, %v1590
      %v1592 = vpop.f32.mrf.mxu0
      %v1593 = vadd.f32 0.0, %v1592
      %1594 = vmatmul.bf16.gmra.mxu0 %v1525
      %v1595 = vpop.f32.mrf.mxu0
      %v1596 = vadd.f32 0.0, %v1595
      %v1597 = vpop.f32.mrf.mxu0
      %v1598 = vadd.f32 0.0, %v1597
      %1599 = vmatmul.bf16.gmra.mxu0 %v1528
      %v1600 = vpop.f32.mrf.mxu0
      %v1601 = vadd.f32 0.0, %v1600
      %v1602 = vpop.f32.mrf.mxu0
      %v1603 = vadd.f32 0.0, %v1602
      %1604 = vmatmul.bf16.gmra.mxu0 %v1531
      %v1605 = vpop.f32.mrf.mxu0
      %v1606 = vadd.f32 0.0, %v1605
      %v1607 = vpop.f32.mrf.mxu0
      %v1608 = vadd.f32 0.0, %v1607
      %1609 = vmatmul.bf16.gmra.mxu0 %v1534
      %v1610 = vpop.f32.mrf.mxu0
      %v1611 = vadd.f32 0.0, %v1610
      %v1612 = vpop.f32.mrf.mxu0
      %v1613 = vadd.f32 0.0, %v1612
      %1614 = vmatmul.bf16.gmra.mxu0 %v1537
      %v1615 = vpop.f32.mrf.mxu0
      %v1616 = vadd.f32 0.0, %v1615
      %v1617 = vpop.f32.mrf.mxu0
      %v1618 = vadd.f32 0.0, %v1617
      %1619 = vmatmul.bf16.gmra.mxu0 %v1540
      %v1620 = vpop.f32.mrf.mxu0
      %v1621 = vadd.f32 0.0, %v1620
      %v1622 = vpop.f32.mrf.mxu0
      %v1623 = vadd.f32 0.0, %v1622
      %1624 = vmatmul.bf16.gmra.mxu0 %v1543
      %v1625 = vpop.f32.mrf.mxu0
      %v1626 = vadd.f32 0.0, %v1625
      %v1627 = vpop.f32.mrf.mxu0
      %v1628 = vadd.f32 0.0, %v1627
      %1629 = vmatmul.bf16.gmra.mxu0 %v1546
      %v1630 = vpop.f32.mrf.mxu0
      %v1631 = vadd.f32 0.0, %v1630
      %v1632 = vpop.f32.mrf.mxu0
      %v1633 = vadd.f32 0.0, %v1632
      %1634 = vmatmul.bf16.gmra.mxu0 %v1549
      %v1635 = vpop.f32.mrf.mxu0
      %v1636 = vadd.f32 0.0, %v1635
      %v1637 = vpop.f32.mrf.mxu0
      %v1638 = vadd.f32 0.0, %v1637
      %1639 = vdwg.mxu0
      %v1672 = vunpack.c.l.b16 %v998
      %v1673 = vunpack.c.l.b16 %v999
      %v1674 = vunpack.c.l.b16 %v1000
      %v1675 = vunpack.c.l.b16 %v1001
      %v1676 = vunpack.c.l.b16 %v1002
      %v1677 = vunpack.c.l.b16 %v1003
      %v1678 = vunpack.c.l.b16 %v1004
      %v1679 = vunpack.c.l.b16 %v1005
      %v1680 = vunpack.c.l.b16 %v1006
      %v1681 = vunpack.c.l.b16 %v1007
      %v1682 = vunpack.c.l.b16 %v1008
      %v1683 = vunpack.c.l.b16 %v1009
      %v1684 = vunpack.c.l.b16 %v1010
      %v1685 = vunpack.c.l.b16 %v1011
      %v1686 = vunpack.c.l.b16 %v1012
      %v1687 = vunpack.c.l.b16 %v1013
      %v1688 = vunpack.c.l.b16 %v1014
      %v1689 = vunpack.c.l.b16 %v1015
      %v1690 = vunpack.c.l.b16 %v1016
      %v1691 = vunpack.c.l.b16 %v1017
      %v1692 = vunpack.c.l.b16 %v1018
      %v1693 = vunpack.c.l.b16 %v1019
      %v1694 = vunpack.c.l.b16 %v1020
      %v1695 = vunpack.c.l.b16 %v1021
      %v1696 = vunpack.c.l.b16 %v1022
      %v1697 = vunpack.c.l.b16 %v1023
      %v1698 = vunpack.c.l.b16 %v1024
      %v1699 = vunpack.c.l.b16 %v1025
      %v1700 = vunpack.c.l.b16 %v1026
      %v1701 = vunpack.c.l.b16 %v1027
      %v1702 = vunpack.c.l.b16 %v1028
      %v1703 = vunpack.c.l.b16 %v1029
      %v1704 = vpack.c.b16 %v1673, %v1672
      %v1705 = vpack.c.b16 %v1675, %v1674
      %v1706 = vpack.c.b16 %v1677, %v1676
      %v1707 = vpack.c.b16 %v1679, %v1678
      %v1708 = vpack.c.b16 %v1681, %v1680
      %v1709 = vpack.c.b16 %v1683, %v1682
      %v1710 = vpack.c.b16 %v1685, %v1684
      %v1711 = vpack.c.b16 %v1687, %v1686
      %v1712 = vpack.c.b16 %v1689, %v1688
      %v1713 = vpack.c.b16 %v1691, %v1690
      %v1714 = vpack.c.b16 %v1693, %v1692
      %v1715 = vpack.c.b16 %v1695, %v1694
      %v1716 = vpack.c.b16 %v1697, %v1696
      %v1717 = vpack.c.b16 %v1699, %v1698
      %v1718 = vpack.c.b16 %v1701, %v1700
      %v1719 = vpack.c.b16 %v1703, %v1702
      %v1724 = vunpack.c.l.b16 %v1030
      %v1725 = vunpack.c.l.b16 %v1031
      %v1726 = vunpack.c.l.b16 %v1032
      %v1727 = vunpack.c.l.b16 %v1033
      %v1728 = vpack.c.b16 %v1725, %v1724
      %v1729 = vpack.c.b16 %v1727, %v1726
      %v1733 = vsel %vm1502, %v1704, 0
      %v1736 = vsel %vm1502, %v1705, 0
      %v1739 = vsel %vm1502, %v1706, 0
      %v1742 = vsel %vm1502, %v1707, 0
      %v1745 = vsel %vm1502, %v1708, 0
      %v1748 = vsel %vm1502, %v1709, 0
      %v1751 = vsel %vm1502, %v1710, 0
      %v1754 = vsel %vm1502, %v1711, 0
      %v1757 = vsel %vm1502, %v1712, 0
      %v1760 = vsel %vm1502, %v1713, 0
      %v1763 = vsel %vm1502, %v1714, 0
      %v1766 = vsel %vm1502, %v1715, 0
      %v1769 = vsel %vm1502, %v1716, 0
      %v1772 = vsel %vm1502, %v1717, 0
      %v1775 = vsel %vm1502, %v1718, 0
      %v1778 = vsel %vm1502, %v1719, 0
      %1780 = vmatpush.bf16.msra.mxu0 0
      %1781 = vmatpush.bf16.msra.mxu0 0
      %1782 = vmatpush.bf16.msra.mxu0 0
      %1783 = vmatpush.bf16.msra.mxu0 0
      %1784 = vmatpush.bf16.msra.mxu0 0
      %1785 = vmatpush.bf16.msra.mxu0 0
      %1786 = vmatpush.bf16.msra.mxu0 %v1729
      %1787 = vmatpush.bf16.msra.mxu0 %v1728
      %1788 = vmatmul.bf16.gmra.mxu0 %v1733
      %v1789 = vpop.f32.mrf.mxu0
      %v1790 = vadd.f32 %v1561, %v1789
      %v1791 = vpop.f32.mrf.mxu0
      %v1792 = vadd.f32 %v1563, %v1791
      %1793 = vmatmul.bf16.gmra.mxu0 %v1736
      %v1794 = vpop.f32.mrf.mxu0
      %v1795 = vadd.f32 %v1566, %v1794
      %v1796 = vpop.f32.mrf.mxu0
      %v1797 = vadd.f32 %v1568, %v1796
      %1798 = vmatmul.bf16.gmra.mxu0 %v1739
      %v1799 = vpop.f32.mrf.mxu0
      %v1800 = vadd.f32 %v1571, %v1799
      %v1801 = vpop.f32.mrf.mxu0
      %v1802 = vadd.f32 %v1573, %v1801
      %1803 = vmatmul.bf16.gmra.mxu0 %v1742
      %v1804 = vpop.f32.mrf.mxu0
      %v1805 = vadd.f32 %v1576, %v1804
      %v1806 = vpop.f32.mrf.mxu0
      %v1807 = vadd.f32 %v1578, %v1806
      %1808 = vmatmul.bf16.gmra.mxu0 %v1745
      %v1809 = vpop.f32.mrf.mxu0
      %v1810 = vadd.f32 %v1581, %v1809
      %v1811 = vpop.f32.mrf.mxu0
      %v1812 = vadd.f32 %v1583, %v1811
      %1813 = vmatmul.bf16.gmra.mxu0 %v1748
      %v1814 = vpop.f32.mrf.mxu0
      %v1815 = vadd.f32 %v1586, %v1814
      %v1816 = vpop.f32.mrf.mxu0
      %v1817 = vadd.f32 %v1588, %v1816
      %1818 = vmatmul.bf16.gmra.mxu0 %v1751
      %v1819 = vpop.f32.mrf.mxu0
      %v1820 = vadd.f32 %v1591, %v1819
      %v1821 = vpop.f32.mrf.mxu0
      %v1822 = vadd.f32 %v1593, %v1821
      %1823 = vmatmul.bf16.gmra.mxu0 %v1754
      %v1824 = vpop.f32.mrf.mxu0
      %v1825 = vadd.f32 %v1596, %v1824
      %v1826 = vpop.f32.mrf.mxu0
      %v1827 = vadd.f32 %v1598, %v1826
      %1828 = vmatmul.bf16.gmra.mxu0 %v1757
      %v1829 = vpop.f32.mrf.mxu0
      %v1830 = vadd.f32 %v1601, %v1829
      %v1831 = vpop.f32.mrf.mxu0
      %v1832 = vadd.f32 %v1603, %v1831
      %1833 = vmatmul.bf16.gmra.mxu0 %v1760
      %v1834 = vpop.f32.mrf.mxu0
      %v1835 = vadd.f32 %v1606, %v1834
      %v1836 = vpop.f32.mrf.mxu0
      %v1837 = vadd.f32 %v1608, %v1836
      %1838 = vmatmul.bf16.gmra.mxu0 %v1763
      %v1839 = vpop.f32.mrf.mxu0
      %v1840 = vadd.f32 %v1611, %v1839
      %v1841 = vpop.f32.mrf.mxu0
      %v1842 = vadd.f32 %v1613, %v1841
      %1843 = vmatmul.bf16.gmra.mxu0 %v1766
      %v1844 = vpop.f32.mrf.mxu0
      %v1845 = vadd.f32 %v1616, %v1844
      %v1846 = vpop.f32.mrf.mxu0
      %v1847 = vadd.f32 %v1618, %v1846
      %1848 = vmatmul.bf16.gmra.mxu0 %v1769
      %v1849 = vpop.f32.mrf.mxu0
      %v1850 = vadd.f32 %v1621, %v1849
      %v1851 = vpop.f32.mrf.mxu0
      %v1852 = vadd.f32 %v1623, %v1851
      %1853 = vmatmul.bf16.gmra.mxu0 %v1772
      %v1854 = vpop.f32.mrf.mxu0
      %v1855 = vadd.f32 %v1626, %v1854
      %v1856 = vpop.f32.mrf.mxu0
      %v1857 = vadd.f32 %v1628, %v1856
      %1858 = vmatmul.bf16.gmra.mxu0 %v1775
      %v1859 = vpop.f32.mrf.mxu0
      %v1860 = vadd.f32 %v1631, %v1859
      %v1861 = vpop.f32.mrf.mxu0
      %v1862 = vadd.f32 %v1633, %v1861
      %1863 = vmatmul.bf16.gmra.mxu0 %v1778
      %v1864 = vpop.f32.mrf.mxu0
      %v1865 = vadd.f32 %v1636, %v1864
      %v1866 = vpop.f32.mrf.mxu0
      %v1867 = vadd.f32 %v1638, %v1866
      %1868 = vdwg.mxu0
      %v1869 = vld [vmem:[#allocation2] sm:$0xe]
      %v1870 = vld [vmem:[#allocation2 + $0xc] sm:$0xe]
      %v1871 = vld [vmem:[#allocation2 + $0x18] sm:$0xe]
      %v1872 = vld [vmem:[#allocation2 + $0x24] sm:$0xe]
      %v1873 = vld [vmem:[#allocation2 + $0x30] sm:$0xe]
      %v1874 = vld [vmem:[#allocation2 + $0x3c] sm:$0xe]
      %v1875 = vld [vmem:[#allocation2 + $0x48] sm:$0xe]
      %v1876 = vld [vmem:[#allocation2 + $0x54] sm:$0xe]
      %v1877 = vld [vmem:[#allocation2 + $0x60] sm:$0xe]
      %v1878 = vld [vmem:[#allocation2 + $0x6c] sm:$0xe]
      %v1879 = vld [vmem:[#allocation2 + $0x78] sm:$0xe]
      %v1880 = vld [vmem:[#allocation2 + $0x84] sm:$0xe]
      %v1881 = vld [vmem:[#allocation2 + $0x90] sm:$0xe]
      %v1882 = vld [vmem:[#allocation2 + $0x9c] sm:$0xe]
      %v1883 = vld [vmem:[#allocation2 + $0xa8] sm:$0xe]
      %v1884 = vld [vmem:[#allocation2 + $0xb4] sm:$0xe]
      %vm1917 = vcmask 1042432
      %vm1918 = vcmask 1046532
      %vm1919 = vmor %vm1917, %vm1918
      %v1920 = vrot.slane %v1869, 5
      %v1921 = vrot.slane %v1920, 4
      %v1922 = vrot.slane %v999, 5
      %v1923 = vsel %vm1919, %v1921, %v1922
      %v1924 = vrot.slane %v1922, 4
      %v1925 = vrot.slane %v1034, 5
      %v1926 = vsel %vm1919, %v1924, %v1925
      %v1927 = vrot.slane %v1870, 5
      %v1928 = vrot.slane %v1927, 4
      %v1929 = vrot.slane %v1001, 5
      %v1930 = vsel %vm1919, %v1928, %v1929
      %v1931 = vrot.slane %v1929, 4
      %v1932 = vrot.slane %v1035, 5
      %v1933 = vsel %vm1919, %v1931, %v1932
      %v1934 = vrot.slane %v1871, 5
      %v1935 = vrot.slane %v1934, 4
      %v1936 = vrot.slane %v1003, 5
      %v1937 = vsel %vm1919, %v1935, %v1936
      %v1938 = vrot.slane %v1936, 4
      %v1939 = vrot.slane %v1036, 5
      %v1940 = vsel %vm1919, %v1938, %v1939
      %v1941 = vrot.slane %v1872, 5
      %v1942 = vrot.slane %v1941, 4
      %v1943 = vrot.slane %v1005, 5
      %v1944 = vsel %vm1919, %v1942, %v1943
      %v1945 = vrot.slane %v1943, 4
      %v1946 = vrot.slane %v1037, 5
      %v1947 = vsel %vm1919, %v1945, %v1946
      %v1948 = vrot.slane %v1873, 5
      %v1949 = vrot.slane %v1948, 4
      %v1950 = vrot.slane %v1007, 5
      %v1951 = vsel %vm1919, %v1949, %v1950
      %v1952 = vrot.slane %v1950, 4
      %v1953 = vrot.slane %v1038, 5
      %v1954 = vsel %vm1919, %v1952, %v1953
      %v1955 = vrot.slane %v1874, 5
      %v1956 = vrot.slane %v1955, 4
      %v1957 = vrot.slane %v1009, 5
      %v1958 = vsel %vm1919, %v1956, %v1957
      %v1959 = vrot.slane %v1957, 4
      %v1960 = vrot.slane %v1039, 5
      %v1961 = vsel %vm1919, %v1959, %v1960
      %v1962 = vrot.slane %v1875, 5
      %v1963 = vrot.slane %v1962, 4
      %v1964 = vrot.slane %v1011, 5
      %v1965 = vsel %vm1919, %v1963, %v1964
      %v1966 = vrot.slane %v1964, 4
      %v1967 = vrot.slane %v1040, 5
      %v1968 = vsel %vm1919, %v1966, %v1967
      %v1969 = vrot.slane %v1876, 5
      %v1970 = vrot.slane %v1969, 4
      %v1971 = vrot.slane %v1013, 5
      %v1972 = vsel %vm1919, %v1970, %v1971
      %v1973 = vrot.slane %v1971, 4
      %v1974 = vrot.slane %v1041, 5
      %v1975 = vsel %vm1919, %v1973, %v1974
      %v1976 = vrot.slane %v1877, 5
      %v1977 = vrot.slane %v1976, 4
      %v1978 = vrot.slane %v1015, 5
      %v1979 = vsel %vm1919, %v1977, %v1978
      %v1980 = vrot.slane %v1978, 4
      %v1981 = vrot.slane %v1042, 5
      %v1982 = vsel %vm1919, %v1980, %v1981
      %v1983 = vrot.slane %v1878, 5
      %v1984 = vrot.slane %v1983, 4
      %v1985 = vrot.slane %v1017, 5
      %v1986 = vsel %vm1919, %v1984, %v1985
      %v1987 = vrot.slane %v1985, 4
      %v1988 = vrot.slane %v1043, 5
      %v1989 = vsel %vm1919, %v1987, %v1988
      %v1990 = vrot.slane %v1879, 5
      %v1991 = vrot.slane %v1990, 4
      %v1992 = vrot.slane %v1019, 5
      %v1993 = vsel %vm1919, %v1991, %v1992
      %v1994 = vrot.slane %v1992, 4
      %v1995 = vrot.slane %v1044, 5
      %v1996 = vsel %vm1919, %v1994, %v1995
      %v1997 = vrot.slane %v1880, 5
      %v1998 = vrot.slane %v1997, 4
      %v1999 = vrot.slane %v1021, 5
      %v2000 = vsel %vm1919, %v1998, %v1999
      %v2001 = vrot.slane %v1999, 4
      %v2002 = vrot.slane %v1045, 5
      %v2003 = vsel %vm1919, %v2001, %v2002
      %v2004 = vrot.slane %v1881, 5
      %v2005 = vrot.slane %v2004, 4
      %v2006 = vrot.slane %v1023, 5
      %v2007 = vsel %vm1919, %v2005, %v2006
      %v2008 = vrot.slane %v2006, 4
      %v2009 = vrot.slane %v1046, 5
      %v2010 = vsel %vm1919, %v2008, %v2009
      %v2011 = vrot.slane %v1882, 5
      %v2012 = vrot.slane %v2011, 4
      %v2013 = vrot.slane %v1025, 5
      %v2014 = vsel %vm1919, %v2012, %v2013
      %v2015 = vrot.slane %v2013, 4
      %v2016 = vrot.slane %v1047, 5
      %v2017 = vsel %vm1919, %v2015, %v2016
      %v2018 = vrot.slane %v1883, 5
      %v2019 = vrot.slane %v2018, 4
      %v2020 = vrot.slane %v1027, 5
      %v2021 = vsel %vm1919, %v2019, %v2020
      %v2022 = vrot.slane %v2020, 4
      %v2023 = vrot.slane %v1048, 5
      %v2024 = vsel %vm1919, %v2022, %v2023
      %v2025 = vrot.slane %v1884, 5
      %v2026 = vrot.slane %v2025, 4
      %v2027 = vrot.slane %v1029, 5
      %v2028 = vsel %vm1919, %v2026, %v2027
      %v2029 = vrot.slane %v2027, 4
      %v2030 = vrot.slane %v1049, 5
      %v2031 = vsel %vm1919, %v2029, %v2030
      %s2032 = scalar_lea.vmem %s3, 32
      %v2033 = vld [vmem:[%s2032] sm:$0xf]
      %v2034 = vld [vmem:[%s2032 + $0x4] sm:$0xf]
      %v2035 = vld [vmem:[%s2032 + $0x8] sm:$0xf]
      %v2036 = vld [vmem:[%s2032 + $0xc] sm:$0xf]
      %v2037 = vunpack.c.l.b16 %v1923
      %v2038 = vunpack.c.l.b16 %v1926
      %v2039 = vunpack.c.l.b16 %v1930
      %v2040 = vunpack.c.l.b16 %v1933
      %v2041 = vunpack.c.l.b16 %v1937
      %v2042 = vunpack.c.l.b16 %v1940
      %v2043 = vunpack.c.l.b16 %v1944
      %v2044 = vunpack.c.l.b16 %v1947
      %v2045 = vunpack.c.l.b16 %v1951
      %v2046 = vunpack.c.l.b16 %v1954
      %v2047 = vunpack.c.l.b16 %v1958
      %v2048 = vunpack.c.l.b16 %v1961
      %v2049 = vunpack.c.l.b16 %v1965
      %v2050 = vunpack.c.l.b16 %v1968
      %v2051 = vunpack.c.l.b16 %v1972
      %v2052 = vunpack.c.l.b16 %v1975
      %v2053 = vunpack.c.l.b16 %v1979
      %v2054 = vunpack.c.l.b16 %v1982
      %v2055 = vunpack.c.l.b16 %v1986
      %v2056 = vunpack.c.l.b16 %v1989
      %v2057 = vunpack.c.l.b16 %v1993
      %v2058 = vunpack.c.l.b16 %v1996
      %v2059 = vunpack.c.l.b16 %v2000
      %v2060 = vunpack.c.l.b16 %v2003
      %v2061 = vunpack.c.l.b16 %v2007
      %v2062 = vunpack.c.l.b16 %v2010
      %v2063 = vunpack.c.l.b16 %v2014
      %v2064 = vunpack.c.l.b16 %v2017
      %v2065 = vunpack.c.l.b16 %v2021
      %v2066 = vunpack.c.l.b16 %v2024
      %v2067 = vunpack.c.l.b16 %v2028
      %v2068 = vunpack.c.l.b16 %v2031
      %v2069 = vpack.c.b16 %v2038, %v2037
      %v2070 = vpack.c.b16 %v2040, %v2039
      %v2071 = vpack.c.b16 %v2042, %v2041
      %v2072 = vpack.c.b16 %v2044, %v2043
      %v2073 = vpack.c.b16 %v2046, %v2045
      %v2074 = vpack.c.b16 %v2048, %v2047
      %v2075 = vpack.c.b16 %v2050, %v2049
      %v2076 = vpack.c.b16 %v2052, %v2051
      %v2077 = vpack.c.b16 %v2054, %v2053
      %v2078 = vpack.c.b16 %v2056, %v2055
      %v2079 = vpack.c.b16 %v2058, %v2057
      %v2080 = vpack.c.b16 %v2060, %v2059
      %v2081 = vpack.c.b16 %v2062, %v2061
      %v2082 = vpack.c.b16 %v2064, %v2063
      %v2083 = vpack.c.b16 %v2066, %v2065
      %v2084 = vpack.c.b16 %v2068, %v2067
      %v2089 = vunpack.c.l.b16 %v2033
      %v2090 = vunpack.c.l.b16 %v2034
      %v2091 = vunpack.c.l.b16 %v2035
      %v2092 = vunpack.c.l.b16 %v2036
      %v2093 = vpack.c.b16 %v2090, %v2089
      %v2094 = vpack.c.b16 %v2092, %v2091
      %v2098 = vsel %vm1502, %v2069, 0
      %v2101 = vsel %vm1502, %v2070, 0
      %v2104 = vsel %vm1502, %v2071, 0
      %v2107 = vsel %vm1502, %v2072, 0
      %v2110 = vsel %vm1502, %v2073, 0
      %v2113 = vsel %vm1502, %v2074, 0
      %v2116 = vsel %vm1502, %v2075, 0
      %v2119 = vsel %vm1502, %v2076, 0
      %v2122 = vsel %vm1502, %v2077, 0
      %v2125 = vsel %vm1502, %v2078, 0
      %v2128 = vsel %vm1502, %v2079, 0
      %v2131 = vsel %vm1502, %v2080, 0
      %v2134 = vsel %vm1502, %v2081, 0
      %v2137 = vsel %vm1502, %v2082, 0
      %v2140 = vsel %vm1502, %v2083, 0
      %v2143 = vsel %vm1502, %v2084, 0
      %2145 = vmatpush.bf16.msra.mxu0 0
      %2146 = vmatpush.bf16.msra.mxu0 0
      %2147 = vmatpush.bf16.msra.mxu0 0
      %2148 = vmatpush.bf16.msra.mxu0 0
      %2149 = vmatpush.bf16.msra.mxu0 0
      %2150 = vmatpush.bf16.msra.mxu0 0
      %2151 = vmatpush.bf16.msra.mxu0 %v2094
      %2152 = vmatpush.bf16.msra.mxu0 %v2093
      %2153 = vmatmul.bf16.gmra.mxu0 %v2098
      %v2154 = vpop.f32.mrf.mxu0
      %v2155 = vadd.f32 0.0, %v2154
      %v2156 = vpop.f32.mrf.mxu0
      %v2157 = vadd.f32 0.0, %v2156
      %2158 = vmatmul.bf16.gmra.mxu0 %v2101
      %v2159 = vpop.f32.mrf.mxu0
      %v2160 = vadd.f32 0.0, %v2159
      %v2161 = vpop.f32.mrf.mxu0
      %v2162 = vadd.f32 0.0, %v2161
      %2163 = vmatmul.bf16.gmra.mxu0 %v2104
      %v2164 = vpop.f32.mrf.mxu0
      %v2165 = vadd.f32 0.0, %v2164
      %v2166 = vpop.f32.mrf.mxu0
      %v2167 = vadd.f32 0.0, %v2166
      %2168 = vmatmul.bf16.gmra.mxu0 %v2107
      %v2169 = vpop.f32.mrf.mxu0
      %v2170 = vadd.f32 0.0, %v2169
      %v2171 = vpop.f32.mrf.mxu0
      %v2172 = vadd.f32 0.0, %v2171
      %2173 = vmatmul.bf16.gmra.mxu0 %v2110
      %v2174 = vpop.f32.mrf.mxu0
      %v2175 = vadd.f32 0.0, %v2174
      %v2176 = vpop.f32.mrf.mxu0
      %v2177 = vadd.f32 0.0, %v2176
      %2178 = vmatmul.bf16.gmra.mxu0 %v2113
      %v2179 = vpop.f32.mrf.mxu0
      %v2180 = vadd.f32 0.0, %v2179
      %v2181 = vpop.f32.mrf.mxu0
      %v2182 = vadd.f32 0.0, %v2181
      %2183 = vmatmul.bf16.gmra.mxu0 %v2116
      %v2184 = vpop.f32.mrf.mxu0
      %v2185 = vadd.f32 0.0, %v2184
      %v2186 = vpop.f32.mrf.mxu0
      %v2187 = vadd.f32 0.0, %v2186
      %2188 = vmatmul.bf16.gmra.mxu0 %v2119
      %v2189 = vpop.f32.mrf.mxu0
      %v2190 = vadd.f32 0.0, %v2189
      %v2191 = vpop.f32.mrf.mxu0
      %v2192 = vadd.f32 0.0, %v2191
      %2193 = vmatmul.bf16.gmra.mxu0 %v2122
      %v2194 = vpop.f32.mrf.mxu0
      %v2195 = vadd.f32 0.0, %v2194
      %v2196 = vpop.f32.mrf.mxu0
      %v2197 = vadd.f32 0.0, %v2196
      %2198 = vmatmul.bf16.gmra.mxu0 %v2125
      %v2199 = vpop.f32.mrf.mxu0
      %v2200 = vadd.f32 0.0, %v2199
      %v2201 = vpop.f32.mrf.mxu0
      %v2202 = vadd.f32 0.0, %v2201
      %2203 = vmatmul.bf16.gmra.mxu0 %v2128
      %v2204 = vpop.f32.mrf.mxu0
      %v2205 = vadd.f32 0.0, %v2204
      %v2206 = vpop.f32.mrf.mxu0
      %v2207 = vadd.f32 0.0, %v2206
      %2208 = vmatmul.bf16.gmra.mxu0 %v2131
      %v2209 = vpop.f32.mrf.mxu0
      %v2210 = vadd.f32 0.0, %v2209
      %v2211 = vpop.f32.mrf.mxu0
      %v2212 = vadd.f32 0.0, %v2211
      %2213 = vmatmul.bf16.gmra.mxu0 %v2134
      %v2214 = vpop.f32.mrf.mxu0
      %v2215 = vadd.f32 0.0, %v2214
      %v2216 = vpop.f32.mrf.mxu0
      %v2217 = vadd.f32 0.0, %v2216
      %2218 = vmatmul.bf16.gmra.mxu0 %v2137
      %v2219 = vpop.f32.mrf.mxu0
      %v2220 = vadd.f32 0.0, %v2219
      %v2221 = vpop.f32.mrf.mxu0
      %v2222 = vadd.f32 0.0, %v2221
      %2223 = vmatmul.bf16.gmra.mxu0 %v2140
      %v2224 = vpop.f32.mrf.mxu0
      %v2225 = vadd.f32 0.0, %v2224
      %v2226 = vpop.f32.mrf.mxu0
      %v2227 = vadd.f32 0.0, %v2226
      %2228 = vmatmul.bf16.gmra.mxu0 %v2143
      %v2229 = vpop.f32.mrf.mxu0
      %v2230 = vadd.f32 0.0, %v2229
      %v2231 = vpop.f32.mrf.mxu0
      %v2232 = vadd.f32 0.0, %v2231
      %2233 = vdwg.mxu0
      %v2234 = vadd.f32 %v1790, %v2155
      %v2235 = vadd.f32 %v1792, %v2157
      %v2236 = vadd.f32 %v1795, %v2160
      %v2237 = vadd.f32 %v1797, %v2162
      %v2238 = vadd.f32 %v1800, %v2165
      %v2239 = vadd.f32 %v1802, %v2167
      %v2240 = vadd.f32 %v1805, %v2170
      %v2241 = vadd.f32 %v1807, %v2172
      %v2242 = vadd.f32 %v1810, %v2175
      %v2243 = vadd.f32 %v1812, %v2177
      %v2244 = vadd.f32 %v1815, %v2180
      %v2245 = vadd.f32 %v1817, %v2182
      %v2246 = vadd.f32 %v1820, %v2185
      %v2247 = vadd.f32 %v1822, %v2187
      %v2248 = vadd.f32 %v1825, %v2190
      %v2249 = vadd.f32 %v1827, %v2192
      %v2250 = vadd.f32 %v1830, %v2195
      %v2251 = vadd.f32 %v1832, %v2197
      %v2252 = vadd.f32 %v1835, %v2200
      %v2253 = vadd.f32 %v1837, %v2202
      %v2254 = vadd.f32 %v1840, %v2205
      %v2255 = vadd.f32 %v1842, %v2207
      %v2256 = vadd.f32 %v1845, %v2210
      %v2257 = vadd.f32 %v1847, %v2212
      %v2258 = vadd.f32 %v1850, %v2215
      %v2259 = vadd.f32 %v1852, %v2217
      %v2260 = vadd.f32 %v1855, %v2220
      %v2261 = vadd.f32 %v1857, %v2222
      %v2262 = vadd.f32 %v1860, %v2225
      %v2263 = vadd.f32 %v1862, %v2227
      %v2264 = vadd.f32 %v1865, %v2230
      %v2265 = vadd.f32 %v1867, %v2232
      %v2266 = vld [vmem:[%s883] sm:$0xf]
      %v2267 = vld [vmem:[%s883 + $0x4] sm:$0xf]
      %v2268 = vld [vmem:[%s883 + $0xc] sm:$0xf]
      %v2269 = vld [vmem:[%s883 + $0x10] sm:$0xf]
      %v2270 = vld [vmem:[%s883 + $0x18] sm:$0xf]
      %v2271 = vld [vmem:[%s883 + $0x1c] sm:$0xf]
      %v2272 = vld [vmem:[%s883 + $0x24] sm:$0xf]
      %v2273 = vld [vmem:[%s883 + $0x28] sm:$0xf]
      %v2274 = vld [vmem:[%s883 + $0x30] sm:$0xf]
      %v2275 = vld [vmem:[%s883 + $0x34] sm:$0xf]
      %v2276 = vld [vmem:[%s883 + $0x3c] sm:$0xf]
      %v2277 = vld [vmem:[%s883 + $0x40] sm:$0xf]
      %v2278 = vld [vmem:[%s883 + $0x48] sm:$0xf]
      %v2279 = vld [vmem:[%s883 + $0x4c] sm:$0xf]
      %v2280 = vld [vmem:[%s883 + $0x54] sm:$0xf]
      %v2281 = vld [vmem:[%s883 + $0x58] sm:$0xf]
      %v2282 = vld [vmem:[%s883 + $0x60] sm:$0xf]
      %v2283 = vld [vmem:[%s883 + $0x64] sm:$0xf]
      %v2284 = vld [vmem:[%s883 + $0x6c] sm:$0xf]
      %v2285 = vld [vmem:[%s883 + $0x70] sm:$0xf]
      %v2286 = vld [vmem:[%s883 + $0x78] sm:$0xf]
      %v2287 = vld [vmem:[%s883 + $0x7c] sm:$0xf]
      %v2288 = vld [vmem:[%s883 + $0x84] sm:$0xf]
      %v2289 = vld [vmem:[%s883 + $0x88] sm:$0xf]
      %v2290 = vld [vmem:[%s883 + $0x90] sm:$0xf]
      %v2291 = vld [vmem:[%s883 + $0x94] sm:$0xf]
      %v2292 = vld [vmem:[%s883 + $0x9c] sm:$0xf]
      %v2293 = vld [vmem:[%s883 + $0xa0] sm:$0xf]
      %v2294 = vld [vmem:[%s883 + $0xa8] sm:$0xf]
      %v2295 = vld [vmem:[%s883 + $0xac] sm:$0xf]
      %v2296 = vld [vmem:[%s883 + $0xb4] sm:$0xf]
      %v2297 = vld [vmem:[%s883 + $0xb8] sm:$0xf]
      %s2298 = scalar_lea.vmem %s3, 48
      %v2299 = vld [vmem:[%s2298] sm:$0xf]
      %v2300 = vld [vmem:[%s2298 + $0x4] sm:$0xf]
      %v2301 = vld [vmem:[%s2298 + $0x8] sm:$0xf]
      %v2302 = vld [vmem:[%s2298 + $0xc] sm:$0xf]
      %v2335 = vunpack.c.l.b16 %v2266
      %v2336 = vunpack.c.l.b16 %v2267
      %v2337 = vunpack.c.l.b16 %v2268
      %v2338 = vunpack.c.l.b16 %v2269
      %v2339 = vunpack.c.l.b16 %v2270
      %v2340 = vunpack.c.l.b16 %v2271
      %v2341 = vunpack.c.l.b16 %v2272
      %v2342 = vunpack.c.l.b16 %v2273
      %v2343 = vunpack.c.l.b16 %v2274
      %v2344 = vunpack.c.l.b16 %v2275
      %v2345 = vunpack.c.l.b16 %v2276
      %v2346 = vunpack.c.l.b16 %v2277
      %v2347 = vunpack.c.l.b16 %v2278
      %v2348 = vunpack.c.l.b16 %v2279
      %v2349 = vunpack.c.l.b16 %v2280
      %v2350 = vunpack.c.l.b16 %v2281
      %v2351 = vunpack.c.l.b16 %v2282
      %v2352 = vunpack.c.l.b16 %v2283
      %v2353 = vunpack.c.l.b16 %v2284
      %v2354 = vunpack.c.l.b16 %v2285
      %v2355 = vunpack.c.l.b16 %v2286
      %v2356 = vunpack.c.l.b16 %v2287
      %v2357 = vunpack.c.l.b16 %v2288
      %v2358 = vunpack.c.l.b16 %v2289
      %v2359 = vunpack.c.l.b16 %v2290
      %v2360 = vunpack.c.l.b16 %v2291
      %v2361 = vunpack.c.l.b16 %v2292
      %v2362 = vunpack.c.l.b16 %v2293
      %v2363 = vunpack.c.l.b16 %v2294
      %v2364 = vunpack.c.l.b16 %v2295
      %v2365 = vunpack.c.l.b16 %v2296
      %v2366 = vunpack.c.l.b16 %v2297
      %v2367 = vpack.c.b16 %v2336, %v2335
      %v2368 = vpack.c.b16 %v2338, %v2337
      %v2369 = vpack.c.b16 %v2340, %v2339
      %v2370 = vpack.c.b16 %v2342, %v2341
      %v2371 = vpack.c.b16 %v2344, %v2343
      %v2372 = vpack.c.b16 %v2346, %v2345
      %v2373 = vpack.c.b16 %v2348, %v2347
      %v2374 = vpack.c.b16 %v2350, %v2349
      %v2375 = vpack.c.b16 %v2352, %v2351
      %v2376 = vpack.c.b16 %v2354, %v2353
      %v2377 = vpack.c.b16 %v2356, %v2355
      %v2378 = vpack.c.b16 %v2358, %v2357
      %v2379 = vpack.c.b16 %v2360, %v2359
      %v2380 = vpack.c.b16 %v2362, %v2361
      %v2381 = vpack.c.b16 %v2364, %v2363
      %v2382 = vpack.c.b16 %v2366, %v2365
      %v2387 = vunpack.c.l.b16 %v2299
      %v2388 = vunpack.c.l.b16 %v2300
      %v2389 = vunpack.c.l.b16 %v2301
      %v2390 = vunpack.c.l.b16 %v2302
      %v2391 = vpack.c.b16 %v2388, %v2387
      %v2392 = vpack.c.b16 %v2390, %v2389
      %v2396 = vsel %vm1502, %v2367, 0
      %v2399 = vsel %vm1502, %v2368, 0
      %v2402 = vsel %vm1502, %v2369, 0
      %v2405 = vsel %vm1502, %v2370, 0
      %v2408 = vsel %vm1502, %v2371, 0
      %v2411 = vsel %vm1502, %v2372, 0
      %v2414 = vsel %vm1502, %v2373, 0
      %v2417 = vsel %vm1502, %v2374, 0
      %v2420 = vsel %vm1502, %v2375, 0
      %v2423 = vsel %vm1502, %v2376, 0
      %v2426 = vsel %vm1502, %v2377, 0
      %v2429 = vsel %vm1502, %v2378, 0
      %v2432 = vsel %vm1502, %v2379, 0
      %v2435 = vsel %vm1502, %v2380, 0
      %v2438 = vsel %vm1502, %v2381, 0
      %v2441 = vsel %vm1502, %v2382, 0
      %2443 = vmatpush.bf16.msra.mxu0 0
      %2444 = vmatpush.bf16.msra.mxu0 0
      %2445 = vmatpush.bf16.msra.mxu0 0
      %2446 = vmatpush.bf16.msra.mxu0 0
      %2447 = vmatpush.bf16.msra.mxu0 0
      %2448 = vmatpush.bf16.msra.mxu0 0
      %2449 = vmatpush.bf16.msra.mxu0 %v2392
      %2450 = vmatpush.bf16.msra.mxu0 %v2391
      %2451 = vmatmul.bf16.gmra.mxu0 %v2396
      %v2452 = vpop.f32.mrf.mxu0
      %v2453 = vadd.f32 0.0, %v2452
      %v2454 = vpop.f32.mrf.mxu0
      %v2455 = vadd.f32 0.0, %v2454
      %2456 = vmatmul.bf16.gmra.mxu0 %v2399
      %v2457 = vpop.f32.mrf.mxu0
      %v2458 = vadd.f32 0.0, %v2457
      %v2459 = vpop.f32.mrf.mxu0
      %v2460 = vadd.f32 0.0, %v2459
      %2461 = vmatmul.bf16.gmra.mxu0 %v2402
      %v2462 = vpop.f32.mrf.mxu0
      %v2463 = vadd.f32 0.0, %v2462
      %v2464 = vpop.f32.mrf.mxu0
      %v2465 = vadd.f32 0.0, %v2464
      %2466 = vmatmul.bf16.gmra.mxu0 %v2405
      %v2467 = vpop.f32.mrf.mxu0
      %v2468 = vadd.f32 0.0, %v2467
      %v2469 = vpop.f32.mrf.mxu0
      %v2470 = vadd.f32 0.0, %v2469
      %2471 = vmatmul.bf16.gmra.mxu0 %v2408
      %v2472 = vpop.f32.mrf.mxu0
      %v2473 = vadd.f32 0.0, %v2472
      %v2474 = vpop.f32.mrf.mxu0
      %v2475 = vadd.f32 0.0, %v2474
      %2476 = vmatmul.bf16.gmra.mxu0 %v2411
      %v2477 = vpop.f32.mrf.mxu0
      %v2478 = vadd.f32 0.0, %v2477
      %v2479 = vpop.f32.mrf.mxu0
      %v2480 = vadd.f32 0.0, %v2479
      %2481 = vmatmul.bf16.gmra.mxu0 %v2414
      %v2482 = vpop.f32.mrf.mxu0
      %v2483 = vadd.f32 0.0, %v2482
      %v2484 = vpop.f32.mrf.mxu0
      %v2485 = vadd.f32 0.0, %v2484
      %2486 = vmatmul.bf16.gmra.mxu0 %v2417
      %v2487 = vpop.f32.mrf.mxu0
      %v2488 = vadd.f32 0.0, %v2487
      %v2489 = vpop.f32.mrf.mxu0
      %v2490 = vadd.f32 0.0, %v2489
      %2491 = vmatmul.bf16.gmra.mxu0 %v2420
      %v2492 = vpop.f32.mrf.mxu0
      %v2493 = vadd.f32 0.0, %v2492
      %v2494 = vpop.f32.mrf.mxu0
      %v2495 = vadd.f32 0.0, %v2494
      %2496 = vmatmul.bf16.gmra.mxu0 %v2423
      %v2497 = vpop.f32.mrf.mxu0
      %v2498 = vadd.f32 0.0, %v2497
      %v2499 = vpop.f32.mrf.mxu0
      %v2500 = vadd.f32 0.0, %v2499
      %2501 = vmatmul.bf16.gmra.mxu0 %v2426
      %v2502 = vpop.f32.mrf.mxu0
      %v2503 = vadd.f32 0.0, %v2502
      %v2504 = vpop.f32.mrf.mxu0
      %v2505 = vadd.f32 0.0, %v2504
      %2506 = vmatmul.bf16.gmra.mxu0 %v2429
      %v2507 = vpop.f32.mrf.mxu0
      %v2508 = vadd.f32 0.0, %v2507
      %v2509 = vpop.f32.mrf.mxu0
      %v2510 = vadd.f32 0.0, %v2509
      %2511 = vmatmul.bf16.gmra.mxu0 %v2432
      %v2512 = vpop.f32.mrf.mxu0
      %v2513 = vadd.f32 0.0, %v2512
      %v2514 = vpop.f32.mrf.mxu0
      %v2515 = vadd.f32 0.0, %v2514
      %2516 = vmatmul.bf16.gmra.mxu0 %v2435
      %v2517 = vpop.f32.mrf.mxu0
      %v2518 = vadd.f32 0.0, %v2517
      %v2519 = vpop.f32.mrf.mxu0
      %v2520 = vadd.f32 0.0, %v2519
      %2521 = vmatmul.bf16.gmra.mxu0 %v2438
      %v2522 = vpop.f32.mrf.mxu0
      %v2523 = vadd.f32 0.0, %v2522
      %v2524 = vpop.f32.mrf.mxu0
      %v2525 = vadd.f32 0.0, %v2524
      %2526 = vmatmul.bf16.gmra.mxu0 %v2441
      %v2527 = vpop.f32.mrf.mxu0
      %v2528 = vadd.f32 0.0, %v2527
      %v2529 = vpop.f32.mrf.mxu0
      %v2530 = vadd.f32 0.0, %v2529
      %2531 = vdwg.mxu0
      %v2532 = vadd.f32 %v2234, %v2453
      %v2533 = vadd.f32 %v2235, %v2455
      %v2534 = vadd.f32 %v2236, %v2458
      %v2535 = vadd.f32 %v2237, %v2460
      %v2536 = vadd.f32 %v2238, %v2463
      %v2537 = vadd.f32 %v2239, %v2465
      %v2538 = vadd.f32 %v2240, %v2468
      %v2539 = vadd.f32 %v2241, %v2470
      %v2540 = vadd.f32 %v2242, %v2473
      %v2541 = vadd.f32 %v2243, %v2475
      %v2542 = vadd.f32 %v2244, %v2478
      %v2543 = vadd.f32 %v2245, %v2480
      %v2544 = vadd.f32 %v2246, %v2483
      %v2545 = vadd.f32 %v2247, %v2485
      %v2546 = vadd.f32 %v2248, %v2488
      %v2547 = vadd.f32 %v2249, %v2490
      %v2548 = vadd.f32 %v2250, %v2493
      %v2549 = vadd.f32 %v2251, %v2495
      %v2550 = vadd.f32 %v2252, %v2498
      %v2551 = vadd.f32 %v2253, %v2500
      %v2552 = vadd.f32 %v2254, %v2503
      %v2553 = vadd.f32 %v2255, %v2505
      %v2554 = vadd.f32 %v2256, %v2508
      %v2555 = vadd.f32 %v2257, %v2510
      %v2556 = vadd.f32 %v2258, %v2513
      %v2557 = vadd.f32 %v2259, %v2515
      %v2558 = vadd.f32 %v2260, %v2518
      %v2559 = vadd.f32 %v2261, %v2520
      %v2560 = vadd.f32 %v2262, %v2523
      %v2561 = vadd.f32 %v2263, %v2525
      %v2562 = vadd.f32 %v2264, %v2528
      %v2563 = vadd.f32 %v2265, %v2530
      %v2564 = vld [vmem:[%s883] sm:$0xf]
      %v2565 = vld [vmem:[%s883 + $0x4] sm:$0xf]
      %v2566 = vld [vmem:[%s883 + $0x8] sm:$0x1]
      %v2567 = vld [vmem:[%s883 + $0xc] sm:$0xf]
      %v2568 = vld [vmem:[%s883 + $0x10] sm:$0xf]
      %v2569 = vld [vmem:[%s883 + $0x14] sm:$0x1]
      %v2570 = vld [vmem:[%s883 + $0x18] sm:$0xf]
      %v2571 = vld [vmem:[%s883 + $0x1c] sm:$0xf]
      %v2572 = vld [vmem:[%s883 + $0x20] sm:$0x1]
      %v2573 = vld [vmem:[%s883 + $0x24] sm:$0xf]
      %v2574 = vld [vmem:[%s883 + $0x28] sm:$0xf]
      %v2575 = vld [vmem:[%s883 + $0x2c] sm:$0x1]
      %v2576 = vld [vmem:[%s883 + $0x30] sm:$0xf]
      %v2577 = vld [vmem:[%s883 + $0x34] sm:$0xf]
      %v2578 = vld [vmem:[%s883 + $0x38] sm:$0x1]
      %v2579 = vld [vmem:[%s883 + $0x3c] sm:$0xf]
      %v2580 = vld [vmem:[%s883 + $0x40] sm:$0xf]
      %v2581 = vld [vmem:[%s883 + $0x44] sm:$0x1]
      %v2582 = vld [vmem:[%s883 + $0x48] sm:$0xf]
      %v2583 = vld [vmem:[%s883 + $0x4c] sm:$0xf]
      %v2584 = vld [vmem:[%s883 + $0x50] sm:$0x1]
      %v2585 = vld [vmem:[%s883 + $0x54] sm:$0xf]
      %v2586 = vld [vmem:[%s883 + $0x58] sm:$0xf]
      %v2587 = vld [vmem:[%s883 + $0x5c] sm:$0x1]
      %v2588 = vld [vmem:[%s883 + $0x60] sm:$0xf]
      %v2589 = vld [vmem:[%s883 + $0x64] sm:$0xf]
      %v2590 = vld [vmem:[%s883 + $0x68] sm:$0x1]
      %v2591 = vld [vmem:[%s883 + $0x6c] sm:$0xf]
      %v2592 = vld [vmem:[%s883 + $0x70] sm:$0xf]
      %v2593 = vld [vmem:[%s883 + $0x74] sm:$0x1]
      %v2594 = vld [vmem:[%s883 + $0x78] sm:$0xf]
      %v2595 = vld [vmem:[%s883 + $0x7c] sm:$0xf]
      %v2596 = vld [vmem:[%s883 + $0x80] sm:$0x1]
      %v2597 = vld [vmem:[%s883 + $0x84] sm:$0xf]
      %v2598 = vld [vmem:[%s883 + $0x88] sm:$0xf]
      %v2599 = vld [vmem:[%s883 + $0x8c] sm:$0x1]
      %v2600 = vld [vmem:[%s883 + $0x90] sm:$0xf]
      %v2601 = vld [vmem:[%s883 + $0x94] sm:$0xf]
      %v2602 = vld [vmem:[%s883 + $0x98] sm:$0x1]
      %v2603 = vld [vmem:[%s883 + $0x9c] sm:$0xf]
      %v2604 = vld [vmem:[%s883 + $0xa0] sm:$0xf]
      %v2605 = vld [vmem:[%s883 + $0xa4] sm:$0x1]
      %v2606 = vld [vmem:[%s883 + $0xa8] sm:$0xf]
      %v2607 = vld [vmem:[%s883 + $0xac] sm:$0xf]
      %v2608 = vld [vmem:[%s883 + $0xb0] sm:$0x1]
      %v2609 = vld [vmem:[%s883 + $0xb4] sm:$0xf]
      %v2610 = vld [vmem:[%s883 + $0xb8] sm:$0xf]
      %v2611 = vld [vmem:[%s883 + $0xbc] sm:$0x1]
      %v2613 = vshrl.u32 %v2564, 16
      %v2615 = vrot.slane %v2613, 4
      %v2616 = vshll.u32 %v2564, 16
      %v2618 = vrot.slane %v2616, 5
      %v2619 = vor.u32 %v2615, %v2618
      %v2620 = vrot.slane %v2619, 4
      %v2622 = vshll.u32 %v2565, 16
      %v2624 = vrot.slane %v2622, 5
      %v2625 = vsel %vm1052, %v2620, %v2624
      %v2626 = vshrl.u32 %v2565, 16
      %v2628 = vrot.slane %v2626, 4
      %v2629 = vor.u32 %v2628, %v2624
      %v2630 = vrot.slane %v2629, 4
      %v2632 = vshll.u32 %v2566, 16
      %v2634 = vrot.slane %v2632, 5
      %v2635 = vsel %vm1052, %v2630, %v2634
      %v2637 = vshrl.u32 %v2567, 16
      %v2639 = vrot.slane %v2637, 4
      %v2640 = vshll.u32 %v2567, 16
      %v2642 = vrot.slane %v2640, 5
      %v2643 = vor.u32 %v2639, %v2642
      %v2644 = vrot.slane %v2643, 4
      %v2646 = vshll.u32 %v2568, 16
      %v2648 = vrot.slane %v2646, 5
      %v2649 = vsel %vm1052, %v2644, %v2648
      %v2650 = vshrl.u32 %v2568, 16
      %v2652 = vrot.slane %v2650, 4
      %v2653 = vor.u32 %v2652, %v2648
      %v2654 = vrot.slane %v2653, 4
      %v2656 = vshll.u32 %v2569, 16
      %v2658 = vrot.slane %v2656, 5
      %v2659 = vsel %vm1052, %v2654, %v2658
      %v2661 = vshrl.u32 %v2570, 16
      %v2663 = vrot.slane %v2661, 4
      %v2664 = vshll.u32 %v2570, 16
      %v2666 = vrot.slane %v2664, 5
      %v2667 = vor.u32 %v2663, %v2666
      %v2668 = vrot.slane %v2667, 4
      %v2670 = vshll.u32 %v2571, 16
      %v2672 = vrot.slane %v2670, 5
      %v2673 = vsel %vm1052, %v2668, %v2672
      %v2674 = vshrl.u32 %v2571, 16
      %v2676 = vrot.slane %v2674, 4
      %v2677 = vor.u32 %v2676, %v2672
      %v2678 = vrot.slane %v2677, 4
      %v2680 = vshll.u32 %v2572, 16
      %v2682 = vrot.slane %v2680, 5
      %v2683 = vsel %vm1052, %v2678, %v2682
      %v2685 = vshrl.u32 %v2573, 16
      %v2687 = vrot.slane %v2685, 4
      %v2688 = vshll.u32 %v2573, 16
      %v2690 = vrot.slane %v2688, 5
      %v2691 = vor.u32 %v2687, %v2690
      %v2692 = vrot.slane %v2691, 4
      %v2694 = vshll.u32 %v2574, 16
      %v2696 = vrot.slane %v2694, 5
      %v2697 = vsel %vm1052, %v2692, %v2696
      %v2698 = vshrl.u32 %v2574, 16
      %v2700 = vrot.slane %v2698, 4
      %v2701 = vor.u32 %v2700, %v2696
      %v2702 = vrot.slane %v2701, 4
      %v2704 = vshll.u32 %v2575, 16
      %v2706 = vrot.slane %v2704, 5
      %v2707 = vsel %vm1052, %v2702, %v2706
      %v2709 = vshrl.u32 %v2576, 16
      %v2711 = vrot.slane %v2709, 4
      %v2712 = vshll.u32 %v2576, 16
      %v2714 = vrot.slane %v2712, 5
      %v2715 = vor.u32 %v2711, %v2714
      %v2716 = vrot.slane %v2715, 4
      %v2718 = vshll.u32 %v2577, 16
      %v2720 = vrot.slane %v2718, 5
      %v2721 = vsel %vm1052, %v2716, %v2720
      %v2722 = vshrl.u32 %v2577, 16
      %v2724 = vrot.slane %v2722, 4
      %v2725 = vor.u32 %v2724, %v2720
      %v2726 = vrot.slane %v2725, 4
      %v2728 = vshll.u32 %v2578, 16
      %v2730 = vrot.slane %v2728, 5
      %v2731 = vsel %vm1052, %v2726, %v2730
      %v2733 = vshrl.u32 %v2579, 16
      %v2735 = vrot.slane %v2733, 4
      %v2736 = vshll.u32 %v2579, 16
      %v2738 = vrot.slane %v2736, 5
      %v2739 = vor.u32 %v2735, %v2738
      %v2740 = vrot.slane %v2739, 4
      %v2742 = vshll.u32 %v2580, 16
      %v2744 = vrot.slane %v2742, 5
      %v2745 = vsel %vm1052, %v2740, %v2744
      %v2746 = vshrl.u32 %v2580, 16
      %v2748 = vrot.slane %v2746, 4
      %v2749 = vor.u32 %v2748, %v2744
      %v2750 = vrot.slane %v2749, 4
      %v2752 = vshll.u32 %v2581, 16
      %v2754 = vrot.slane %v2752, 5
      %v2755 = vsel %vm1052, %v2750, %v2754
      %v2757 = vshrl.u32 %v2582, 16
      %v2759 = vrot.slane %v2757, 4
      %v2760 = vshll.u32 %v2582, 16
      %v2762 = vrot.slane %v2760, 5
      %v2763 = vor.u32 %v2759, %v2762
      %v2764 = vrot.slane %v2763, 4
      %v2766 = vshll.u32 %v2583, 16
      %v2768 = vrot.slane %v2766, 5
      %v2769 = vsel %vm1052, %v2764, %v2768
      %v2770 = vshrl.u32 %v2583, 16
      %v2772 = vrot.slane %v2770, 4
      %v2773 = vor.u32 %v2772, %v2768
      %v2774 = vrot.slane %v2773, 4
      %v2776 = vshll.u32 %v2584, 16
      %v2778 = vrot.slane %v2776, 5
      %v2779 = vsel %vm1052, %v2774, %v2778
      %v2781 = vshrl.u32 %v2585, 16
      %v2783 = vrot.slane %v2781, 4
      %v2784 = vshll.u32 %v2585, 16
      %v2786 = vrot.slane %v2784, 5
      %v2787 = vor.u32 %v2783, %v2786
      %v2788 = vrot.slane %v2787, 4
      %v2790 = vshll.u32 %v2586, 16
      %v2792 = vrot.slane %v2790, 5
      %v2793 = vsel %vm1052, %v2788, %v2792
      %v2794 = vshrl.u32 %v2586, 16
      %v2796 = vrot.slane %v2794, 4
      %v2797 = vor.u32 %v2796, %v2792
      %v2798 = vrot.slane %v2797, 4
      %v2800 = vshll.u32 %v2587, 16
      %v2802 = vrot.slane %v2800, 5
      %v2803 = vsel %vm1052, %v2798, %v2802
      %v2805 = vshrl.u32 %v2588, 16
      %v2807 = vrot.slane %v2805, 4
      %v2808 = vshll.u32 %v2588, 16
      %v2810 = vrot.slane %v2808, 5
      %v2811 = vor.u32 %v2807, %v2810
      %v2812 = vrot.slane %v2811, 4
      %v2814 = vshll.u32 %v2589, 16
      %v2816 = vrot.slane %v2814, 5
      %v2817 = vsel %vm1052, %v2812, %v2816
      %v2818 = vshrl.u32 %v2589, 16
      %v2820 = vrot.slane %v2818, 4
      %v2821 = vor.u32 %v2820, %v2816
      %v2822 = vrot.slane %v2821, 4
      %v2824 = vshll.u32 %v2590, 16
      %v2826 = vrot.slane %v2824, 5
      %v2827 = vsel %vm1052, %v2822, %v2826
      %v2829 = vshrl.u32 %v2591, 16
      %v2831 = vrot.slane %v2829, 4
      %v2832 = vshll.u32 %v2591, 16
      %v2834 = vrot.slane %v2832, 5
      %v2835 = vor.u32 %v2831, %v2834
      %v2836 = vrot.slane %v2835, 4
      %v2838 = vshll.u32 %v2592, 16
      %v2840 = vrot.slane %v2838, 5
      %v2841 = vsel %vm1052, %v2836, %v2840
      %v2842 = vshrl.u32 %v2592, 16
      %v2844 = vrot.slane %v2842, 4
      %v2845 = vor.u32 %v2844, %v2840
      %v2846 = vrot.slane %v2845, 4
      %v2848 = vshll.u32 %v2593, 16
      %v2850 = vrot.slane %v2848, 5
      %v2851 = vsel %vm1052, %v2846, %v2850
      %v2853 = vshrl.u32 %v2594, 16
      %v2855 = vrot.slane %v2853, 4
      %v2856 = vshll.u32 %v2594, 16
      %v2858 = vrot.slane %v2856, 5
      %v2859 = vor.u32 %v2855, %v2858
      %v2860 = vrot.slane %v2859, 4
      %v2862 = vshll.u32 %v2595, 16
      %v2864 = vrot.slane %v2862, 5
      %v2865 = vsel %vm1052, %v2860, %v2864
      %v2866 = vshrl.u32 %v2595, 16
      %v2868 = vrot.slane %v2866, 4
      %v2869 = vor.u32 %v2868, %v2864
      %v2870 = vrot.slane %v2869, 4
      %v2872 = vshll.u32 %v2596, 16
      %v2874 = vrot.slane %v2872, 5
      %v2875 = vsel %vm1052, %v2870, %v2874
      %v2877 = vshrl.u32 %v2597, 16
      %v2879 = vrot.slane %v2877, 4
      %v2880 = vshll.u32 %v2597, 16
      %v2882 = vrot.slane %v2880, 5
      %v2883 = vor.u32 %v2879, %v2882
      %v2884 = vrot.slane %v2883, 4
      %v2886 = vshll.u32 %v2598, 16
      %v2888 = vrot.slane %v2886, 5
      %v2889 = vsel %vm1052, %v2884, %v2888
      %v2890 = vshrl.u32 %v2598, 16
      %v2892 = vrot.slane %v2890, 4
      %v2893 = vor.u32 %v2892, %v2888
      %v2894 = vrot.slane %v2893, 4
      %v2896 = vshll.u32 %v2599, 16
      %v2898 = vrot.slane %v2896, 5
      %v2899 = vsel %vm1052, %v2894, %v2898
      %v2901 = vshrl.u32 %v2600, 16
      %v2903 = vrot.slane %v2901, 4
      %v2904 = vshll.u32 %v2600, 16
      %v2906 = vrot.slane %v2904, 5
      %v2907 = vor.u32 %v2903, %v2906
      %v2908 = vrot.slane %v2907, 4
      %v2910 = vshll.u32 %v2601, 16
      %v2912 = vrot.slane %v2910, 5
      %v2913 = vsel %vm1052, %v2908, %v2912
      %v2914 = vshrl.u32 %v2601, 16
      %v2916 = vrot.slane %v2914, 4
      %v2917 = vor.u32 %v2916, %v2912
      %v2918 = vrot.slane %v2917, 4
      %v2920 = vshll.u32 %v2602, 16
      %v2922 = vrot.slane %v2920, 5
      %v2923 = vsel %vm1052, %v2918, %v2922
      %v2925 = vshrl.u32 %v2603, 16
      %v2927 = vrot.slane %v2925, 4
      %v2928 = vshll.u32 %v2603, 16
      %v2930 = vrot.slane %v2928, 5
      %v2931 = vor.u32 %v2927, %v2930
      %v2932 = vrot.slane %v2931, 4
      %v2934 = vshll.u32 %v2604, 16
      %v2936 = vrot.slane %v2934, 5
      %v2937 = vsel %vm1052, %v2932, %v2936
      %v2938 = vshrl.u32 %v2604, 16
      %v2940 = vrot.slane %v2938, 4
      %v2941 = vor.u32 %v2940, %v2936
      %v2942 = vrot.slane %v2941, 4
      %v2944 = vshll.u32 %v2605, 16
      %v2946 = vrot.slane %v2944, 5
      %v2947 = vsel %vm1052, %v2942, %v2946
      %v2949 = vshrl.u32 %v2606, 16
      %v2951 = vrot.slane %v2949, 4
      %v2952 = vshll.u32 %v2606, 16
      %v2954 = vrot.slane %v2952, 5
      %v2955 = vor.u32 %v2951, %v2954
      %v2956 = vrot.slane %v2955, 4
      %v2958 = vshll.u32 %v2607, 16
      %v2960 = vrot.slane %v2958, 5
      %v2961 = vsel %vm1052, %v2956, %v2960
      %v2962 = vshrl.u32 %v2607, 16
      %v2964 = vrot.slane %v2962, 4
      %v2965 = vor.u32 %v2964, %v2960
      %v2966 = vrot.slane %v2965, 4
      %v2968 = vshll.u32 %v2608, 16
      %v2970 = vrot.slane %v2968, 5
      %v2971 = vsel %vm1052, %v2966, %v2970
      %v2973 = vshrl.u32 %v2609, 16
      %v2975 = vrot.slane %v2973, 4
      %v2976 = vshll.u32 %v2609, 16
      %v2978 = vrot.slane %v2976, 5
      %v2979 = vor.u32 %v2975, %v2978
      %v2980 = vrot.slane %v2979, 4
      %v2982 = vshll.u32 %v2610, 16
      %v2984 = vrot.slane %v2982, 5
      %v2985 = vsel %vm1052, %v2980, %v2984
      %v2986 = vshrl.u32 %v2610, 16
      %v2988 = vrot.slane %v2986, 4
      %v2989 = vor.u32 %v2988, %v2984
      %v2990 = vrot.slane %v2989, 4
      %v2992 = vshll.u32 %v2611, 16
      %v2994 = vrot.slane %v2992, 5
      %v2995 = vsel %vm1052, %v2990, %v2994
      %s2996 = scalar_lea.vmem %s3, 64
      %v2997 = vld [vmem:[%s2996] sm:$0xf]
      %v2998 = vld [vmem:[%s2996 + $0x4] sm:$0xf]
      %v2999 = vld [vmem:[%s2996 + $0x8] sm:$0xf]
      %v3000 = vld [vmem:[%s2996 + $0xc] sm:$0xf]
      %v3001 = vunpack.c.l.b16 %v2625
      %v3002 = vunpack.c.l.b16 %v2635
      %v3003 = vunpack.c.l.b16 %v2649
      %v3004 = vunpack.c.l.b16 %v2659
      %v3005 = vunpack.c.l.b16 %v2673
      %v3006 = vunpack.c.l.b16 %v2683
      %v3007 = vunpack.c.l.b16 %v2697
      %v3008 = vunpack.c.l.b16 %v2707
      %v3009 = vunpack.c.l.b16 %v2721
      %v3010 = vunpack.c.l.b16 %v2731
      %v3011 = vunpack.c.l.b16 %v2745
      %v3012 = vunpack.c.l.b16 %v2755
      %v3013 = vunpack.c.l.b16 %v2769
      %v3014 = vunpack.c.l.b16 %v2779
      %v3015 = vunpack.c.l.b16 %v2793
      %v3016 = vunpack.c.l.b16 %v2803
      %v3017 = vunpack.c.l.b16 %v2817
      %v3018 = vunpack.c.l.b16 %v2827
      %v3019 = vunpack.c.l.b16 %v2841
      %v3020 = vunpack.c.l.b16 %v2851
      %v3021 = vunpack.c.l.b16 %v2865
      %v3022 = vunpack.c.l.b16 %v2875
      %v3023 = vunpack.c.l.b16 %v2889
      %v3024 = vunpack.c.l.b16 %v2899
      %v3025 = vunpack.c.l.b16 %v2913
      %v3026 = vunpack.c.l.b16 %v2923
      %v3027 = vunpack.c.l.b16 %v2937
      %v3028 = vunpack.c.l.b16 %v2947
      %v3029 = vunpack.c.l.b16 %v2961
      %v3030 = vunpack.c.l.b16 %v2971
      %v3031 = vunpack.c.l.b16 %v2985
      %v3032 = vunpack.c.l.b16 %v2995
      %v3033 = vpack.c.b16 %v3002, %v3001
      %v3034 = vpack.c.b16 %v3004, %v3003
      %v3035 = vpack.c.b16 %v3006, %v3005
      %v3036 = vpack.c.b16 %v3008, %v3007
      %v3037 = vpack.c.b16 %v3010, %v3009
      %v3038 = vpack.c.b16 %v3012, %v3011
      %v3039 = vpack.c.b16 %v3014, %v3013
      %v3040 = vpack.c.b16 %v3016, %v3015
      %v3041 = vpack.c.b16 %v3018, %v3017
      %v3042 = vpack.c.b16 %v3020, %v3019
      %v3043 = vpack.c.b16 %v3022, %v3021
      %v3044 = vpack.c.b16 %v3024, %v3023
      %v3045 = vpack.c.b16 %v3026, %v3025
      %v3046 = vpack.c.b16 %v3028, %v3027
      %v3047 = vpack.c.b16 %v3030, %v3029
      %v3048 = vpack.c.b16 %v3032, %v3031
      %v3053 = vunpack.c.l.b16 %v2997
      %v3054 = vunpack.c.l.b16 %v2998
      %v3055 = vunpack.c.l.b16 %v2999
      %v3056 = vunpack.c.l.b16 %v3000
      %v3057 = vpack.c.b16 %v3054, %v3053
      %v3058 = vpack.c.b16 %v3056, %v3055
      %v3062 = vsel %vm1502, %v3033, 0
      %v3065 = vsel %vm1502, %v3034, 0
      %v3068 = vsel %vm1502, %v3035, 0
      %v3071 = vsel %vm1502, %v3036, 0
      %v3074 = vsel %vm1502, %v3037, 0
      %v3077 = vsel %vm1502, %v3038, 0
      %v3080 = vsel %vm1502, %v3039, 0
      %v3083 = vsel %vm1502, %v3040, 0
      %v3086 = vsel %vm1502, %v3041, 0
      %v3089 = vsel %vm1502, %v3042, 0
      %v3092 = vsel %vm1502, %v3043, 0
      %v3095 = vsel %vm1502, %v3044, 0
      %v3098 = vsel %vm1502, %v3045, 0
      %v3101 = vsel %vm1502, %v3046, 0
      %v3104 = vsel %vm1502, %v3047, 0
      %v3107 = vsel %vm1502, %v3048, 0
      %3109 = vmatpush.bf16.msra.mxu0 0
      %3110 = vmatpush.bf16.msra.mxu0 0
      %3111 = vmatpush.bf16.msra.mxu0 0
      %3112 = vmatpush.bf16.msra.mxu0 0
      %3113 = vmatpush.bf16.msra.mxu0 0
      %3114 = vmatpush.bf16.msra.mxu0 0
      %3115 = vmatpush.bf16.msra.mxu0 %v3058
      %3116 = vmatpush.bf16.msra.mxu0 %v3057
      %3117 = vmatmul.bf16.gmra.mxu0 %v3062
      %v3118 = vpop.f32.mrf.mxu0
      %v3119 = vadd.f32 0.0, %v3118
      %v3120 = vpop.f32.mrf.mxu0
      %v3121 = vadd.f32 0.0, %v3120
      %3122 = vmatmul.bf16.gmra.mxu0 %v3065
      %v3123 = vpop.f32.mrf.mxu0
      %v3124 = vadd.f32 0.0, %v3123
      %v3125 = vpop.f32.mrf.mxu0
      %v3126 = vadd.f32 0.0, %v3125
      %3127 = vmatmul.bf16.gmra.mxu0 %v3068
      %v3128 = vpop.f32.mrf.mxu0
      %v3129 = vadd.f32 0.0, %v3128
      %v3130 = vpop.f32.mrf.mxu0
      %v3131 = vadd.f32 0.0, %v3130
      %3132 = vmatmul.bf16.gmra.mxu0 %v3071
      %v3133 = vpop.f32.mrf.mxu0
      %v3134 = vadd.f32 0.0, %v3133
      %v3135 = vpop.f32.mrf.mxu0
      %v3136 = vadd.f32 0.0, %v3135
      %3137 = vmatmul.bf16.gmra.mxu0 %v3074
      %v3138 = vpop.f32.mrf.mxu0
      %v3139 = vadd.f32 0.0, %v3138
      %v3140 = vpop.f32.mrf.mxu0
      %v3141 = vadd.f32 0.0, %v3140
      %3142 = vmatmul.bf16.gmra.mxu0 %v3077
      %v3143 = vpop.f32.mrf.mxu0
      %v3144 = vadd.f32 0.0, %v3143
      %v3145 = vpop.f32.mrf.mxu0
      %v3146 = vadd.f32 0.0, %v3145
      %3147 = vmatmul.bf16.gmra.mxu0 %v3080
      %v3148 = vpop.f32.mrf.mxu0
      %v3149 = vadd.f32 0.0, %v3148
      %v3150 = vpop.f32.mrf.mxu0
      %v3151 = vadd.f32 0.0, %v3150
      %3152 = vmatmul.bf16.gmra.mxu0 %v3083
      %v3153 = vpop.f32.mrf.mxu0
      %v3154 = vadd.f32 0.0, %v3153
      %v3155 = vpop.f32.mrf.mxu0
      %v3156 = vadd.f32 0.0, %v3155
      %3157 = vmatmul.bf16.gmra.mxu0 %v3086
      %v3158 = vpop.f32.mrf.mxu0
      %v3159 = vadd.f32 0.0, %v3158
      %v3160 = vpop.f32.mrf.mxu0
      %v3161 = vadd.f32 0.0, %v3160
      %3162 = vmatmul.bf16.gmra.mxu0 %v3089
      %v3163 = vpop.f32.mrf.mxu0
      %v3164 = vadd.f32 0.0, %v3163
      %v3165 = vpop.f32.mrf.mxu0
      %v3166 = vadd.f32 0.0, %v3165
      %3167 = vmatmul.bf16.gmra.mxu0 %v3092
      %v3168 = vpop.f32.mrf.mxu0
      %v3169 = vadd.f32 0.0, %v3168
      %v3170 = vpop.f32.mrf.mxu0
      %v3171 = vadd.f32 0.0, %v3170
      %3172 = vmatmul.bf16.gmra.mxu0 %v3095
      %v3173 = vpop.f32.mrf.mxu0
      %v3174 = vadd.f32 0.0, %v3173
      %v3175 = vpop.f32.mrf.mxu0
      %v3176 = vadd.f32 0.0, %v3175
      %3177 = vmatmul.bf16.gmra.mxu0 %v3098
      %v3178 = vpop.f32.mrf.mxu0
      %v3179 = vadd.f32 0.0, %v3178
      %v3180 = vpop.f32.mrf.mxu0
      %v3181 = vadd.f32 0.0, %v3180
      %3182 = vmatmul.bf16.gmra.mxu0 %v3101
      %v3183 = vpop.f32.mrf.mxu0
      %v3184 = vadd.f32 0.0, %v3183
      %v3185 = vpop.f32.mrf.mxu0
      %v3186 = vadd.f32 0.0, %v3185
      %3187 = vmatmul.bf16.gmra.mxu0 %v3104
      %v3188 = vpop.f32.mrf.mxu0
      %v3189 = vadd.f32 0.0, %v3188
      %v3190 = vpop.f32.mrf.mxu0
      %v3191 = vadd.f32 0.0, %v3190
      %3192 = vmatmul.bf16.gmra.mxu0 %v3107
      %v3193 = vpop.f32.mrf.mxu0
      %v3194 = vadd.f32 0.0, %v3193
      %v3195 = vpop.f32.mrf.mxu0
      %v3196 = vadd.f32 0.0, %v3195
      %3197 = vdwg.mxu0
      %v3198 = vadd.f32 %v2532, %v3119
      %v3199 = vadd.f32 %v2533, %v3121
      %v3200 = vadd.f32 %v2534, %v3124
      %v3201 = vadd.f32 %v2535, %v3126
      %v3202 = vadd.f32 %v2536, %v3129
      %v3203 = vadd.f32 %v2537, %v3131
      %v3204 = vadd.f32 %v2538, %v3134
      %v3205 = vadd.f32 %v2539, %v3136
      %v3206 = vadd.f32 %v2540, %v3139
      %v3207 = vadd.f32 %v2541, %v3141
      %v3208 = vadd.f32 %v2542, %v3144
      %v3209 = vadd.f32 %v2543, %v3146
      %v3210 = vadd.f32 %v2544, %v3149
      %v3211 = vadd.f32 %v2545, %v3151
      %v3212 = vadd.f32 %v2546, %v3154
      %v3213 = vadd.f32 %v2547, %v3156
      %v3214 = vadd.f32 %v2548, %v3159
      %v3215 = vadd.f32 %v2549, %v3161
      %v3216 = vadd.f32 %v2550, %v3164
      %v3217 = vadd.f32 %v2551, %v3166
      %v3218 = vadd.f32 %v2552, %v3169
      %v3219 = vadd.f32 %v2553, %v3171
      %v3220 = vadd.f32 %v2554, %v3174
      %v3221 = vadd.f32 %v2555, %v3176
      %v3222 = vadd.f32 %v2556, %v3179
      %v3223 = vadd.f32 %v2557, %v3181
      %v3224 = vadd.f32 %v2558, %v3184
      %v3225 = vadd.f32 %v2559, %v3186
      %v3226 = vadd.f32 %v2560, %v3189
      %v3227 = vadd.f32 %v2561, %v3191
      %v3228 = vadd.f32 %v2562, %v3194
      %v3229 = vadd.f32 %v2563, %v3196
      %v3230 = vld [vmem:[%s883] sm:$0xe]
      %v3231 = vld [vmem:[%s883 + $0xc] sm:$0xe]
      %v3232 = vld [vmem:[%s883 + $0x18] sm:$0xe]
      %v3233 = vld [vmem:[%s883 + $0x24] sm:$0xe]
      %v3234 = vld [vmem:[%s883 + $0x30] sm:$0xe]
      %v3235 = vld [vmem:[%s883 + $0x3c] sm:$0xe]
      %v3236 = vld [vmem:[%s883 + $0x48] sm:$0xe]
      %v3237 = vld [vmem:[%s883 + $0x54] sm:$0xe]
      %v3238 = vld [vmem:[%s883 + $0x60] sm:$0xe]
      %v3239 = vld [vmem:[%s883 + $0x6c] sm:$0xe]
      %v3240 = vld [vmem:[%s883 + $0x78] sm:$0xe]
      %v3241 = vld [vmem:[%s883 + $0x84] sm:$0xe]
      %v3242 = vld [vmem:[%s883 + $0x90] sm:$0xe]
      %v3243 = vld [vmem:[%s883 + $0x9c] sm:$0xe]
      %v3244 = vld [vmem:[%s883 + $0xa8] sm:$0xe]
      %v3245 = vld [vmem:[%s883 + $0xb4] sm:$0xe]
      %v3294 = vrot.slane %v3230, 5
      %v3295 = vrot.slane %v3294, 4
      %v3296 = vrot.slane %v2565, 5
      %v3297 = vsel %vm1919, %v3295, %v3296
      %v3298 = vrot.slane %v3296, 4
      %v3299 = vrot.slane %v2566, 5
      %v3300 = vsel %vm1919, %v3298, %v3299
      %v3301 = vrot.slane %v3231, 5
      %v3302 = vrot.slane %v3301, 4
      %v3303 = vrot.slane %v2568, 5
      %v3304 = vsel %vm1919, %v3302, %v3303
      %v3305 = vrot.slane %v3303, 4
      %v3306 = vrot.slane %v2569, 5
      %v3307 = vsel %vm1919, %v3305, %v3306
      %v3308 = vrot.slane %v3232, 5
      %v3309 = vrot.slane %v3308, 4
      %v3310 = vrot.slane %v2571, 5
      %v3311 = vsel %vm1919, %v3309, %v3310
      %v3312 = vrot.slane %v3310, 4
      %v3313 = vrot.slane %v2572, 5
      %v3314 = vsel %vm1919, %v3312, %v3313
      %v3315 = vrot.slane %v3233, 5
      %v3316 = vrot.slane %v3315, 4
      %v3317 = vrot.slane %v2574, 5
      %v3318 = vsel %vm1919, %v3316, %v3317
      %v3319 = vrot.slane %v3317, 4
      %v3320 = vrot.slane %v2575, 5
      %v3321 = vsel %vm1919, %v3319, %v3320
      %v3322 = vrot.slane %v3234, 5
      %v3323 = vrot.slane %v3322, 4
      %v3324 = vrot.slane %v2577, 5
      %v3325 = vsel %vm1919, %v3323, %v3324
      %v3326 = vrot.slane %v3324, 4
      %v3327 = vrot.slane %v2578, 5
      %v3328 = vsel %vm1919, %v3326, %v3327
      %v3329 = vrot.slane %v3235, 5
      %v3330 = vrot.slane %v3329, 4
      %v3331 = vrot.slane %v2580, 5
      %v3332 = vsel %vm1919, %v3330, %v3331
      %v3333 = vrot.slane %v3331, 4
      %v3334 = vrot.slane %v2581, 5
      %v3335 = vsel %vm1919, %v3333, %v3334
      %v3336 = vrot.slane %v3236, 5
      %v3337 = vrot.slane %v3336, 4
      %v3338 = vrot.slane %v2583, 5
      %v3339 = vsel %vm1919, %v3337, %v3338
      %v3340 = vrot.slane %v3338, 4
      %v3341 = vrot.slane %v2584, 5
      %v3342 = vsel %vm1919, %v3340, %v3341
      %v3343 = vrot.slane %v3237, 5
      %v3344 = vrot.slane %v3343, 4
      %v3345 = vrot.slane %v2586, 5
      %v3346 = vsel %vm1919, %v3344, %v3345
      %v3347 = vrot.slane %v3345, 4
      %v3348 = vrot.slane %v2587, 5
      %v3349 = vsel %vm1919, %v3347, %v3348
      %v3350 = vrot.slane %v3238, 5
      %v3351 = vrot.slane %v3350, 4
      %v3352 = vrot.slane %v2589, 5
      %v3353 = vsel %vm1919, %v3351, %v3352
      %v3354 = vrot.slane %v3352, 4
      %v3355 = vrot.slane %v2590, 5
      %v3356 = vsel %vm1919, %v3354, %v3355
      %v3357 = vrot.slane %v3239, 5
      %v3358 = vrot.slane %v3357, 4
      %v3359 = vrot.slane %v2592, 5
      %v3360 = vsel %vm1919, %v3358, %v3359
      %v3361 = vrot.slane %v3359, 4
      %v3362 = vrot.slane %v2593, 5
      %v3363 = vsel %vm1919, %v3361, %v3362
      %v3364 = vrot.slane %v3240, 5
      %v3365 = vrot.slane %v3364, 4
      %v3366 = vrot.slane %v2595, 5
      %v3367 = vsel %vm1919, %v3365, %v3366
      %v3368 = vrot.slane %v3366, 4
      %v3369 = vrot.slane %v2596, 5
      %v3370 = vsel %vm1919, %v3368, %v3369
      %v3371 = vrot.slane %v3241, 5
      %v3372 = vrot.slane %v3371, 4
      %v3373 = vrot.slane %v2598, 5
      %v3374 = vsel %vm1919, %v3372, %v3373
      %v3375 = vrot.slane %v3373, 4
      %v3376 = vrot.slane %v2599, 5
      %v3377 = vsel %vm1919, %v3375, %v3376
      %v3378 = vrot.slane %v3242, 5
      %v3379 = vrot.slane %v3378, 4
      %v3380 = vrot.slane %v2601, 5
      %v3381 = vsel %vm1919, %v3379, %v3380
      %v3382 = vrot.slane %v3380, 4
      %v3383 = vrot.slane %v2602, 5
      %v3384 = vsel %vm1919, %v3382, %v3383
      %v3385 = vrot.slane %v3243, 5
      %v3386 = vrot.slane %v3385, 4
      %v3387 = vrot.slane %v2604, 5
      %v3388 = vsel %vm1919, %v3386, %v3387
      %v3389 = vrot.slane %v3387, 4
      %v3390 = vrot.slane %v2605, 5
      %v3391 = vsel %vm1919, %v3389, %v3390
      %v3392 = vrot.slane %v3244, 5
      %v3393 = vrot.slane %v3392, 4
      %v3394 = vrot.slane %v2607, 5
      %v3395 = vsel %vm1919, %v3393, %v3394
      %v3396 = vrot.slane %v3394, 4
      %v3397 = vrot.slane %v2608, 5
      %v3398 = vsel %vm1919, %v3396, %v3397
      %v3399 = vrot.slane %v3245, 5
      %v3400 = vrot.slane %v3399, 4
      %v3401 = vrot.slane %v2610, 5
      %v3402 = vsel %vm1919, %v3400, %v3401
      %v3403 = vrot.slane %v3401, 4
      %v3404 = vrot.slane %v2611, 5
      %v3405 = vsel %vm1919, %v3403, %v3404
      %s3406 = scalar_lea.vmem %s3, 80
      %v3407 = vld [vmem:[%s3406] sm:$0xf]
      %v3408 = vld [vmem:[%s3406 + $0x4] sm:$0xf]
      %v3409 = vld [vmem:[%s3406 + $0x8] sm:$0xf]
      %v3410 = vld [vmem:[%s3406 + $0xc] sm:$0xf]
      %v3411 = vunpack.c.l.b16 %v3297
      %v3412 = vunpack.c.l.b16 %v3300
      %v3413 = vunpack.c.l.b16 %v3304
      %v3414 = vunpack.c.l.b16 %v3307
      %v3415 = vunpack.c.l.b16 %v3311
      %v3416 = vunpack.c.l.b16 %v3314
      %v3417 = vunpack.c.l.b16 %v3318
      %v3418 = vunpack.c.l.b16 %v3321
      %v3419 = vunpack.c.l.b16 %v3325
      %v3420 = vunpack.c.l.b16 %v3328
      %v3421 = vunpack.c.l.b16 %v3332
      %v3422 = vunpack.c.l.b16 %v3335
      %v3423 = vunpack.c.l.b16 %v3339
      %v3424 = vunpack.c.l.b16 %v3342
      %v3425 = vunpack.c.l.b16 %v3346
      %v3426 = vunpack.c.l.b16 %v3349
      %v3427 = vunpack.c.l.b16 %v3353
      %v3428 = vunpack.c.l.b16 %v3356
      %v3429 = vunpack.c.l.b16 %v3360
      %v3430 = vunpack.c.l.b16 %v3363
      %v3431 = vunpack.c.l.b16 %v3367
      %v3432 = vunpack.c.l.b16 %v3370
      %v3433 = vunpack.c.l.b16 %v3374
      %v3434 = vunpack.c.l.b16 %v3377
      %v3435 = vunpack.c.l.b16 %v3381
      %v3436 = vunpack.c.l.b16 %v3384
      %v3437 = vunpack.c.l.b16 %v3388
      %v3438 = vunpack.c.l.b16 %v3391
      %v3439 = vunpack.c.l.b16 %v3395
      %v3440 = vunpack.c.l.b16 %v3398
      %v3441 = vunpack.c.l.b16 %v3402
      %v3442 = vunpack.c.l.b16 %v3405
      %v3443 = vpack.c.b16 %v3412, %v3411
      %v3444 = vpack.c.b16 %v3414, %v3413
      %v3445 = vpack.c.b16 %v3416, %v3415
      %v3446 = vpack.c.b16 %v3418, %v3417
      %v3447 = vpack.c.b16 %v3420, %v3419
      %v3448 = vpack.c.b16 %v3422, %v3421
      %v3449 = vpack.c.b16 %v3424, %v3423
      %v3450 = vpack.c.b16 %v3426, %v3425
      %v3451 = vpack.c.b16 %v3428, %v3427
      %v3452 = vpack.c.b16 %v3430, %v3429
      %v3453 = vpack.c.b16 %v3432, %v3431
      %v3454 = vpack.c.b16 %v3434, %v3433
      %v3455 = vpack.c.b16 %v3436, %v3435
      %v3456 = vpack.c.b16 %v3438, %v3437
      %v3457 = vpack.c.b16 %v3440, %v3439
      %v3458 = vpack.c.b16 %v3442, %v3441
      %v3463 = vunpack.c.l.b16 %v3407
      %v3464 = vunpack.c.l.b16 %v3408
      %v3465 = vunpack.c.l.b16 %v3409
      %v3466 = vunpack.c.l.b16 %v3410
      %v3467 = vpack.c.b16 %v3464, %v3463
      %v3468 = vpack.c.b16 %v3466, %v3465
      %v3472 = vsel %vm1502, %v3443, 0
      %v3475 = vsel %vm1502, %v3444, 0
      %v3478 = vsel %vm1502, %v3445, 0
      %v3481 = vsel %vm1502, %v3446, 0
      %v3484 = vsel %vm1502, %v3447, 0
      %v3487 = vsel %vm1502, %v3448, 0
      %v3490 = vsel %vm1502, %v3449, 0
      %v3493 = vsel %vm1502, %v3450, 0
      %v3496 = vsel %vm1502, %v3451, 0
      %v3499 = vsel %vm1502, %v3452, 0
      %v3502 = vsel %vm1502, %v3453, 0
      %v3505 = vsel %vm1502, %v3454, 0
      %v3508 = vsel %vm1502, %v3455, 0
      %v3511 = vsel %vm1502, %v3456, 0
      %v3514 = vsel %vm1502, %v3457, 0
      %v3517 = vsel %vm1502, %v3458, 0
      %3519 = vmatpush.bf16.msra.mxu0 0
      %3520 = vmatpush.bf16.msra.mxu0 0
      %3521 = vmatpush.bf16.msra.mxu0 0
      %3522 = vmatpush.bf16.msra.mxu0 0
      %3523 = vmatpush.bf16.msra.mxu0 0
      %3524 = vmatpush.bf16.msra.mxu0 0
      %3525 = vmatpush.bf16.msra.mxu0 %v3468
      %3526 = vmatpush.bf16.msra.mxu0 %v3467
      %3527 = vmatmul.bf16.gmra.mxu0 %v3472
      %v3528 = vpop.f32.mrf.mxu0
      %v3529 = vadd.f32 0.0, %v3528
      %v3530 = vpop.f32.mrf.mxu0
      %v3531 = vadd.f32 0.0, %v3530
      %3532 = vmatmul.bf16.gmra.mxu0 %v3475
      %v3533 = vpop.f32.mrf.mxu0
      %v3534 = vadd.f32 0.0, %v3533
      %v3535 = vpop.f32.mrf.mxu0
      %v3536 = vadd.f32 0.0, %v3535
      %3537 = vmatmul.bf16.gmra.mxu0 %v3478
      %v3538 = vpop.f32.mrf.mxu0
      %v3539 = vadd.f32 0.0, %v3538
      %v3540 = vpop.f32.mrf.mxu0
      %v3541 = vadd.f32 0.0, %v3540
      %3542 = vmatmul.bf16.gmra.mxu0 %v3481
      %v3543 = vpop.f32.mrf.mxu0
      %v3544 = vadd.f32 0.0, %v3543
      %v3545 = vpop.f32.mrf.mxu0
      %v3546 = vadd.f32 0.0, %v3545
      %3547 = vmatmul.bf16.gmra.mxu0 %v3484
      %v3548 = vpop.f32.mrf.mxu0
      %v3549 = vadd.f32 0.0, %v3548
      %v3550 = vpop.f32.mrf.mxu0
      %v3551 = vadd.f32 0.0, %v3550
      %3552 = vmatmul.bf16.gmra.mxu0 %v3487
      %v3553 = vpop.f32.mrf.mxu0
      %v3554 = vadd.f32 0.0, %v3553
      %v3555 = vpop.f32.mrf.mxu0
      %v3556 = vadd.f32 0.0, %v3555
      %3557 = vmatmul.bf16.gmra.mxu0 %v3490
      %v3558 = vpop.f32.mrf.mxu0
      %v3559 = vadd.f32 0.0, %v3558
      %v3560 = vpop.f32.mrf.mxu0
      %v3561 = vadd.f32 0.0, %v3560
      %3562 = vmatmul.bf16.gmra.mxu0 %v3493
      %v3563 = vpop.f32.mrf.mxu0
      %v3564 = vadd.f32 0.0, %v3563
      %v3565 = vpop.f32.mrf.mxu0
      %v3566 = vadd.f32 0.0, %v3565
      %3567 = vmatmul.bf16.gmra.mxu0 %v3496
      %v3568 = vpop.f32.mrf.mxu0
      %v3569 = vadd.f32 0.0, %v3568
      %v3570 = vpop.f32.mrf.mxu0
      %v3571 = vadd.f32 0.0, %v3570
      %3572 = vmatmul.bf16.gmra.mxu0 %v3499
      %v3573 = vpop.f32.mrf.mxu0
      %v3574 = vadd.f32 0.0, %v3573
      %v3575 = vpop.f32.mrf.mxu0
      %v3576 = vadd.f32 0.0, %v3575
      %3577 = vmatmul.bf16.gmra.mxu0 %v3502
      %v3578 = vpop.f32.mrf.mxu0
      %v3579 = vadd.f32 0.0, %v3578
      %v3580 = vpop.f32.mrf.mxu0
      %v3581 = vadd.f32 0.0, %v3580
      %3582 = vmatmul.bf16.gmra.mxu0 %v3505
      %v3583 = vpop.f32.mrf.mxu0
      %v3584 = vadd.f32 0.0, %v3583
      %v3585 = vpop.f32.mrf.mxu0
      %v3586 = vadd.f32 0.0, %v3585
      %3587 = vmatmul.bf16.gmra.mxu0 %v3508
      %v3588 = vpop.f32.mrf.mxu0
      %v3589 = vadd.f32 0.0, %v3588
      %v3590 = vpop.f32.mrf.mxu0
      %v3591 = vadd.f32 0.0, %v3590
      %3592 = vmatmul.bf16.gmra.mxu0 %v3511
      %v3593 = vpop.f32.mrf.mxu0
      %v3594 = vadd.f32 0.0, %v3593
      %v3595 = vpop.f32.mrf.mxu0
      %v3596 = vadd.f32 0.0, %v3595
      %3597 = vmatmul.bf16.gmra.mxu0 %v3514
      %v3598 = vpop.f32.mrf.mxu0
      %v3599 = vadd.f32 0.0, %v3598
      %v3600 = vpop.f32.mrf.mxu0
      %v3601 = vadd.f32 0.0, %v3600
      %3602 = vmatmul.bf16.gmra.mxu0 %v3517
      %v3603 = vpop.f32.mrf.mxu0
      %v3604 = vadd.f32 0.0, %v3603
      %v3605 = vpop.f32.mrf.mxu0
      %v3606 = vadd.f32 0.0, %v3605
      %3607 = vdwg.mxu0
      %v3608 = vadd.f32 %v3198, %v3529
      %v3609 = vadd.f32 %v3199, %v3531
      %v3610 = vadd.f32 %v3200, %v3534
      %v3611 = vadd.f32 %v3201, %v3536
      %v3612 = vadd.f32 %v3202, %v3539
      %v3613 = vadd.f32 %v3203, %v3541
      %v3614 = vadd.f32 %v3204, %v3544
      %v3615 = vadd.f32 %v3205, %v3546
      %v3616 = vadd.f32 %v3206, %v3549
      %v3617 = vadd.f32 %v3207, %v3551
      %v3618 = vadd.f32 %v3208, %v3554
      %v3619 = vadd.f32 %v3209, %v3556
      %v3620 = vadd.f32 %v3210, %v3559
      %v3621 = vadd.f32 %v3211, %v3561
      %v3622 = vadd.f32 %v3212, %v3564
      %v3623 = vadd.f32 %v3213, %v3566
      %v3624 = vadd.f32 %v3214, %v3569
      %v3625 = vadd.f32 %v3215, %v3571
      %v3626 = vadd.f32 %v3216, %v3574
      %v3627 = vadd.f32 %v3217, %v3576
      %v3628 = vadd.f32 %v3218, %v3579
      %v3629 = vadd.f32 %v3219, %v3581
      %v3630 = vadd.f32 %v3220, %v3584
      %v3631 = vadd.f32 %v3221, %v3586
      %v3632 = vadd.f32 %v3222, %v3589
      %v3633 = vadd.f32 %v3223, %v3591
      %v3634 = vadd.f32 %v3224, %v3594
      %v3635 = vadd.f32 %v3225, %v3596
      %v3636 = vadd.f32 %v3226, %v3599
      %v3637 = vadd.f32 %v3227, %v3601
      %v3638 = vadd.f32 %v3228, %v3604
      %v3639 = vadd.f32 %v3229, %v3606
      %s3640 = scalar_lea.vmem [#allocation2], 24
      %v3641 = vld [vmem:[%s3640] sm:$0xf]
      %v3642 = vld [vmem:[%s3640 + $0x4] sm:$0xf]
      %v3643 = vld [vmem:[%s3640 + $0xc] sm:$0xf]
      %v3644 = vld [vmem:[%s3640 + $0x10] sm:$0xf]
      %v3645 = vld [vmem:[%s3640 + $0x18] sm:$0xf]
      %v3646 = vld [vmem:[%s3640 + $0x1c] sm:$0xf]
      %v3647 = vld [vmem:[%s3640 + $0x24] sm:$0xf]
      %v3648 = vld [vmem:[%s3640 + $0x28] sm:$0xf]
      %v3649 = vld [vmem:[%s3640 + $0x30] sm:$0xf]
      %v3650 = vld [vmem:[%s3640 + $0x34] sm:$0xf]
      %v3651 = vld [vmem:[%s3640 + $0x3c] sm:$0xf]
      %v3652 = vld [vmem:[%s3640 + $0x40] sm:$0xf]
      %v3653 = vld [vmem:[%s3640 + $0x48] sm:$0xf]
      %v3654 = vld [vmem:[%s3640 + $0x4c] sm:$0xf]
      %v3655 = vld [vmem:[%s3640 + $0x54] sm:$0xf]
      %v3656 = vld [vmem:[%s3640 + $0x58] sm:$0xf]
      %v3657 = vld [vmem:[%s3640 + $0x60] sm:$0xf]
      %v3658 = vld [vmem:[%s3640 + $0x64] sm:$0xf]
      %v3659 = vld [vmem:[%s3640 + $0x6c] sm:$0xf]
      %v3660 = vld [vmem:[%s3640 + $0x70] sm:$0xf]
      %v3661 = vld [vmem:[%s3640 + $0x78] sm:$0xf]
      %v3662 = vld [vmem:[%s3640 + $0x7c] sm:$0xf]
      %v3663 = vld [vmem:[%s3640 + $0x84] sm:$0xf]
      %v3664 = vld [vmem:[%s3640 + $0x88] sm:$0xf]
      %v3665 = vld [vmem:[%s3640 + $0x90] sm:$0xf]
      %v3666 = vld [vmem:[%s3640 + $0x94] sm:$0xf]
      %v3667 = vld [vmem:[%s3640 + $0x9c] sm:$0xf]
      %v3668 = vld [vmem:[%s3640 + $0xa0] sm:$0xf]
      %v3669 = vld [vmem:[%s3640 + $0xa8] sm:$0xf]
      %v3670 = vld [vmem:[%s3640 + $0xac] sm:$0xf]
      %v3671 = vld [vmem:[%s3640 + $0xb4] sm:$0xf]
      %v3672 = vld [vmem:[%s3640 + $0xb8] sm:$0xf]
      %s3673 = scalar_lea.vmem %s3, 96
      %v3674 = vld [vmem:[%s3673] sm:$0xf]
      %v3675 = vld [vmem:[%s3673 + $0x4] sm:$0xf]
      %v3676 = vld [vmem:[%s3673 + $0x8] sm:$0xf]
      %v3677 = vld [vmem:[%s3673 + $0xc] sm:$0xf]
      %v3710 = vunpack.c.l.b16 %v3641
      %v3711 = vunpack.c.l.b16 %v3642
      %v3712 = vunpack.c.l.b16 %v3643
      %v3713 = vunpack.c.l.b16 %v3644
      %v3714 = vunpack.c.l.b16 %v3645
      %v3715 = vunpack.c.l.b16 %v3646
      %v3716 = vunpack.c.l.b16 %v3647
      %v3717 = vunpack.c.l.b16 %v3648
      %v3718 = vunpack.c.l.b16 %v3649
      %v3719 = vunpack.c.l.b16 %v3650
      %v3720 = vunpack.c.l.b16 %v3651
      %v3721 = vunpack.c.l.b16 %v3652
      %v3722 = vunpack.c.l.b16 %v3653
      %v3723 = vunpack.c.l.b16 %v3654
      %v3724 = vunpack.c.l.b16 %v3655
      %v3725 = vunpack.c.l.b16 %v3656
      %v3726 = vunpack.c.l.b16 %v3657
      %v3727 = vunpack.c.l.b16 %v3658
      %v3728 = vunpack.c.l.b16 %v3659
      %v3729 = vunpack.c.l.b16 %v3660
      %v3730 = vunpack.c.l.b16 %v3661
      %v3731 = vunpack.c.l.b16 %v3662
      %v3732 = vunpack.c.l.b16 %v3663
      %v3733 = vunpack.c.l.b16 %v3664
      %v3734 = vunpack.c.l.b16 %v3665
      %v3735 = vunpack.c.l.b16 %v3666
      %v3736 = vunpack.c.l.b16 %v3667
      %v3737 = vunpack.c.l.b16 %v3668
      %v3738 = vunpack.c.l.b16 %v3669
      %v3739 = vunpack.c.l.b16 %v3670
      %v3740 = vunpack.c.l.b16 %v3671
      %v3741 = vunpack.c.l.b16 %v3672
      %v3742 = vpack.c.b16 %v3711, %v3710
      %v3743 = vpack.c.b16 %v3713, %v3712
      %v3744 = vpack.c.b16 %v3715, %v3714
      %v3745 = vpack.c.b16 %v3717, %v3716
      %v3746 = vpack.c.b16 %v3719, %v3718
      %v3747 = vpack.c.b16 %v3721, %v3720
      %v3748 = vpack.c.b16 %v3723, %v3722
      %v3749 = vpack.c.b16 %v3725, %v3724
      %v3750 = vpack.c.b16 %v3727, %v3726
      %v3751 = vpack.c.b16 %v3729, %v3728
      %v3752 = vpack.c.b16 %v3731, %v3730
      %v3753 = vpack.c.b16 %v3733, %v3732
      %v3754 = vpack.c.b16 %v3735, %v3734
      %v3755 = vpack.c.b16 %v3737, %v3736
      %v3756 = vpack.c.b16 %v3739, %v3738
      %v3757 = vpack.c.b16 %v3741, %v3740
      %v3762 = vunpack.c.l.b16 %v3674
      %v3763 = vunpack.c.l.b16 %v3675
      %v3764 = vunpack.c.l.b16 %v3676
      %v3765 = vunpack.c.l.b16 %v3677
      %v3766 = vpack.c.b16 %v3763, %v3762
      %v3767 = vpack.c.b16 %v3765, %v3764
      %v3771 = vsel %vm1502, %v3742, 0
      %v3774 = vsel %vm1502, %v3743, 0
      %v3777 = vsel %vm1502, %v3744, 0
      %v3780 = vsel %vm1502, %v3745, 0
      %v3783 = vsel %vm1502, %v3746, 0
      %v3786 = vsel %vm1502, %v3747, 0
      %v3789 = vsel %vm1502, %v3748, 0
      %v3792 = vsel %vm1502, %v3749, 0
      %v3795 = vsel %vm1502, %v3750, 0
      %v3798 = vsel %vm1502, %v3751, 0
      %v3801 = vsel %vm1502, %v3752, 0
      %v3804 = vsel %vm1502, %v3753, 0
      %v3807 = vsel %vm1502, %v3754, 0
      %v3810 = vsel %vm1502, %v3755, 0
      %v3813 = vsel %vm1502, %v3756, 0
      %v3816 = vsel %vm1502, %v3757, 0
      %3818 = vmatpush.bf16.msra.mxu0 0
      %3819 = vmatpush.bf16.msra.mxu0 0
      %3820 = vmatpush.bf16.msra.mxu0 0
      %3821 = vmatpush.bf16.msra.mxu0 0
      %3822 = vmatpush.bf16.msra.mxu0 0
      %3823 = vmatpush.bf16.msra.mxu0 0
      %3824 = vmatpush.bf16.msra.mxu0 %v3767
      %3825 = vmatpush.bf16.msra.mxu0 %v3766
      %3826 = vmatmul.bf16.gmra.mxu0 %v3771
      %v3827 = vpop.f32.mrf.mxu0
      %v3828 = vadd.f32 0.0, %v3827
      %v3829 = vpop.f32.mrf.mxu0
      %v3830 = vadd.f32 0.0, %v3829
      %3831 = vmatmul.bf16.gmra.mxu0 %v3774
      %v3832 = vpop.f32.mrf.mxu0
      %v3833 = vadd.f32 0.0, %v3832
      %v3834 = vpop.f32.mrf.mxu0
      %v3835 = vadd.f32 0.0, %v3834
      %3836 = vmatmul.bf16.gmra.mxu0 %v3777
      %v3837 = vpop.f32.mrf.mxu0
      %v3838 = vadd.f32 0.0, %v3837
      %v3839 = vpop.f32.mrf.mxu0
      %v3840 = vadd.f32 0.0, %v3839
      %3841 = vmatmul.bf16.gmra.mxu0 %v3780
      %v3842 = vpop.f32.mrf.mxu0
      %v3843 = vadd.f32 0.0, %v3842
      %v3844 = vpop.f32.mrf.mxu0
      %v3845 = vadd.f32 0.0, %v3844
      %3846 = vmatmul.bf16.gmra.mxu0 %v3783
      %v3847 = vpop.f32.mrf.mxu0
      %v3848 = vadd.f32 0.0, %v3847
      %v3849 = vpop.f32.mrf.mxu0
      %v3850 = vadd.f32 0.0, %v3849
      %3851 = vmatmul.bf16.gmra.mxu0 %v3786
      %v3852 = vpop.f32.mrf.mxu0
      %v3853 = vadd.f32 0.0, %v3852
      %v3854 = vpop.f32.mrf.mxu0
      %v3855 = vadd.f32 0.0, %v3854
      %3856 = vmatmul.bf16.gmra.mxu0 %v3789
      %v3857 = vpop.f32.mrf.mxu0
      %v3858 = vadd.f32 0.0, %v3857
      %v3859 = vpop.f32.mrf.mxu0
      %v3860 = vadd.f32 0.0, %v3859
      %3861 = vmatmul.bf16.gmra.mxu0 %v3792
      %v3862 = vpop.f32.mrf.mxu0
      %v3863 = vadd.f32 0.0, %v3862
      %v3864 = vpop.f32.mrf.mxu0
      %v3865 = vadd.f32 0.0, %v3864
      %3866 = vmatmul.bf16.gmra.mxu0 %v3795
      %v3867 = vpop.f32.mrf.mxu0
      %v3868 = vadd.f32 0.0, %v3867
      %v3869 = vpop.f32.mrf.mxu0
      %v3870 = vadd.f32 0.0, %v3869
      %3871 = vmatmul.bf16.gmra.mxu0 %v3798
      %v3872 = vpop.f32.mrf.mxu0
      %v3873 = vadd.f32 0.0, %v3872
      %v3874 = vpop.f32.mrf.mxu0
      %v3875 = vadd.f32 0.0, %v3874
      %3876 = vmatmul.bf16.gmra.mxu0 %v3801
      %v3877 = vpop.f32.mrf.mxu0
      %v3878 = vadd.f32 0.0, %v3877
      %v3879 = vpop.f32.mrf.mxu0
      %v3880 = vadd.f32 0.0, %v3879
      %3881 = vmatmul.bf16.gmra.mxu0 %v3804
      %v3882 = vpop.f32.mrf.mxu0
      %v3883 = vadd.f32 0.0, %v3882
      %v3884 = vpop.f32.mrf.mxu0
      %v3885 = vadd.f32 0.0, %v3884
      %3886 = vmatmul.bf16.gmra.mxu0 %v3807
      %v3887 = vpop.f32.mrf.mxu0
      %v3888 = vadd.f32 0.0, %v3887
      %v3889 = vpop.f32.mrf.mxu0
      %v3890 = vadd.f32 0.0, %v3889
      %3891 = vmatmul.bf16.gmra.mxu0 %v3810
      %v3892 = vpop.f32.mrf.mxu0
      %v3893 = vadd.f32 0.0, %v3892
      %v3894 = vpop.f32.mrf.mxu0
      %v3895 = vadd.f32 0.0, %v3894
      %3896 = vmatmul.bf16.gmra.mxu0 %v3813
      %v3897 = vpop.f32.mrf.mxu0
      %v3898 = vadd.f32 0.0, %v3897
      %v3899 = vpop.f32.mrf.mxu0
      %v3900 = vadd.f32 0.0, %v3899
      %3901 = vmatmul.bf16.gmra.mxu0 %v3816
      %v3902 = vpop.f32.mrf.mxu0
      %v3903 = vadd.f32 0.0, %v3902
      %v3904 = vpop.f32.mrf.mxu0
      %v3905 = vadd.f32 0.0, %v3904
      %3906 = vdwg.mxu0
      %v3907 = vadd.f32 %v3608, %v3828
      %v3908 = vadd.f32 %v3609, %v3830
      %v3909 = vadd.f32 %v3610, %v3833
      %v3910 = vadd.f32 %v3611, %v3835
      %v3911 = vadd.f32 %v3612, %v3838
      %v3912 = vadd.f32 %v3613, %v3840
      %v3913 = vadd.f32 %v3614, %v3843
      %v3914 = vadd.f32 %v3615, %v3845
      %v3915 = vadd.f32 %v3616, %v3848
      %v3916 = vadd.f32 %v3617, %v3850
      %v3917 = vadd.f32 %v3618, %v3853
      %v3918 = vadd.f32 %v3619, %v3855
      %v3919 = vadd.f32 %v3620, %v3858
      %v3920 = vadd.f32 %v3621, %v3860
      %v3921 = vadd.f32 %v3622, %v3863
      %v3922 = vadd.f32 %v3623, %v3865
      %v3923 = vadd.f32 %v3624, %v3868
      %v3924 = vadd.f32 %v3625, %v3870
      %v3925 = vadd.f32 %v3626, %v3873
      %v3926 = vadd.f32 %v3627, %v3875
      %v3927 = vadd.f32 %v3628, %v3878
      %v3928 = vadd.f32 %v3629, %v3880
      %v3929 = vadd.f32 %v3630, %v3883
      %v3930 = vadd.f32 %v3631, %v3885
      %v3931 = vadd.f32 %v3632, %v3888
      %v3932 = vadd.f32 %v3633, %v3890
      %v3933 = vadd.f32 %v3634, %v3893
      %v3934 = vadd.f32 %v3635, %v3895
      %v3935 = vadd.f32 %v3636, %v3898
      %v3936 = vadd.f32 %v3637, %v3900
      %v3937 = vadd.f32 %v3638, %v3903
      %v3938 = vadd.f32 %v3639, %v3905
      %v3939 = vld [vmem:[%s3640] sm:$0xf]
      %v3940 = vld [vmem:[%s3640 + $0x4] sm:$0xf]
      %v3941 = vld [vmem:[%s3640 + $0x8] sm:$0x1]
      %v3942 = vld [vmem:[%s3640 + $0xc] sm:$0xf]
      %v3943 = vld [vmem:[%s3640 + $0x10] sm:$0xf]
      %v3944 = vld [vmem:[%s3640 + $0x14] sm:$0x1]
      %v3945 = vld [vmem:[%s3640 + $0x18] sm:$0xf]
      %v3946 = vld [vmem:[%s3640 + $0x1c] sm:$0xf]
      %v3947 = vld [vmem:[%s3640 + $0x20] sm:$0x1]
      %v3948 = vld [vmem:[%s3640 + $0x24] sm:$0xf]
      %v3949 = vld [vmem:[%s3640 + $0x28] sm:$0xf]
      %v3950 = vld [vmem:[%s3640 + $0x2c] sm:$0x1]
      %v3951 = vld [vmem:[%s3640 + $0x30] sm:$0xf]
      %v3952 = vld [vmem:[%s3640 + $0x34] sm:$0xf]
      %v3953 = vld [vmem:[%s3640 + $0x38] sm:$0x1]
      %v3954 = vld [vmem:[%s3640 + $0x3c] sm:$0xf]
      %v3955 = vld [vmem:[%s3640 + $0x40] sm:$0xf]
      %v3956 = vld [vmem:[%s3640 + $0x44] sm:$0x1]
      %v3957 = vld [vmem:[%s3640 + $0x48] sm:$0xf]
      %v3958 = vld [vmem:[%s3640 + $0x4c] sm:$0xf]
      %v3959 = vld [vmem:[%s3640 + $0x50] sm:$0x1]
      %v3960 = vld [vmem:[%s3640 + $0x54] sm:$0xf]
      %v3961 = vld [vmem:[%s3640 + $0x58] sm:$0xf]
      %v3962 = vld [vmem:[%s3640 + $0x5c] sm:$0x1]
      %v3963 = vld [vmem:[%s3640 + $0x60] sm:$0xf]
      %v3964 = vld [vmem:[%s3640 + $0x64] sm:$0xf]
      %v3965 = vld [vmem:[%s3640 + $0x68] sm:$0x1]
      %v3966 = vld [vmem:[%s3640 + $0x6c] sm:$0xf]
      %v3967 = vld [vmem:[%s3640 + $0x70] sm:$0xf]
      %v3968 = vld [vmem:[%s3640 + $0x74] sm:$0x1]
      %v3969 = vld [vmem:[%s3640 + $0x78] sm:$0xf]
      %v3970 = vld [vmem:[%s3640 + $0x7c] sm:$0xf]
      %v3971 = vld [vmem:[%s3640 + $0x80] sm:$0x1]
      %v3972 = vld [vmem:[%s3640 + $0x84] sm:$0xf]
      %v3973 = vld [vmem:[%s3640 + $0x88] sm:$0xf]
      %v3974 = vld [vmem:[%s3640 + $0x8c] sm:$0x1]
      %v3975 = vld [vmem:[%s3640 + $0x90] sm:$0xf]
      %v3976 = vld [vmem:[%s3640 + $0x94] sm:$0xf]
      %v3977 = vld [vmem:[%s3640 + $0x98] sm:$0x1]
      %v3978 = vld [vmem:[%s3640 + $0x9c] sm:$0xf]
      %v3979 = vld [vmem:[%s3640 + $0xa0] sm:$0xf]
      %v3980 = vld [vmem:[%s3640 + $0xa4] sm:$0x1]
      %v3981 = vld [vmem:[%s3640 + $0xa8] sm:$0xf]
      %v3982 = vld [vmem:[%s3640 + $0xac] sm:$0xf]
      %v3983 = vld [vmem:[%s3640 + $0xb0] sm:$0x1]
      %v3984 = vld [vmem:[%s3640 + $0xb4] sm:$0xf]
      %v3985 = vld [vmem:[%s3640 + $0xb8] sm:$0xf]
      %v3986 = vld [vmem:[%s3640 + $0xbc] sm:$0x1]
      %v3988 = vshrl.u32 %v3939, 16
      %v3990 = vrot.slane %v3988, 4
      %v3991 = vshll.u32 %v3939, 16
      %v3993 = vrot.slane %v3991, 5
      %v3994 = vor.u32 %v3990, %v3993
      %v3995 = vrot.slane %v3994, 4
      %v3997 = vshll.u32 %v3940, 16
      %v3999 = vrot.slane %v3997, 5
      %v4000 = vsel %vm1052, %v3995, %v3999
      %v4001 = vshrl.u32 %v3940, 16
      %v4003 = vrot.slane %v4001, 4
      %v4004 = vor.u32 %v4003, %v3999
      %v4005 = vrot.slane %v4004, 4
      %v4007 = vshll.u32 %v3941, 16
      %v4009 = vrot.slane %v4007, 5
      %v4010 = vsel %vm1052, %v4005, %v4009
      %v4012 = vshrl.u32 %v3942, 16
      %v4014 = vrot.slane %v4012, 4
      %v4015 = vshll.u32 %v3942, 16
      %v4017 = vrot.slane %v4015, 5
      %v4018 = vor.u32 %v4014, %v4017
      %v4019 = vrot.slane %v4018, 4
      %v4021 = vshll.u32 %v3943, 16
      %v4023 = vrot.slane %v4021, 5
      %v4024 = vsel %vm1052, %v4019, %v4023
      %v4025 = vshrl.u32 %v3943, 16
      %v4027 = vrot.slane %v4025, 4
      %v4028 = vor.u32 %v4027, %v4023
      %v4029 = vrot.slane %v4028, 4
      %v4031 = vshll.u32 %v3944, 16
      %v4033 = vrot.slane %v4031, 5
      %v4034 = vsel %vm1052, %v4029, %v4033
      %v4036 = vshrl.u32 %v3945, 16
      %v4038 = vrot.slane %v4036, 4
      %v4039 = vshll.u32 %v3945, 16
      %v4041 = vrot.slane %v4039, 5
      %v4042 = vor.u32 %v4038, %v4041
      %v4043 = vrot.slane %v4042, 4
      %v4045 = vshll.u32 %v3946, 16
      %v4047 = vrot.slane %v4045, 5
      %v4048 = vsel %vm1052, %v4043, %v4047
      %v4049 = vshrl.u32 %v3946, 16
      %v4051 = vrot.slane %v4049, 4
      %v4052 = vor.u32 %v4051, %v4047
      %v4053 = vrot.slane %v4052, 4
      %v4055 = vshll.u32 %v3947, 16
      %v4057 = vrot.slane %v4055, 5
      %v4058 = vsel %vm1052, %v4053, %v4057
      %v4060 = vshrl.u32 %v3948, 16
      %v4062 = vrot.slane %v4060, 4
      %v4063 = vshll.u32 %v3948, 16
      %v4065 = vrot.slane %v4063, 5
      %v4066 = vor.u32 %v4062, %v4065
      %v4067 = vrot.slane %v4066, 4
      %v4069 = vshll.u32 %v3949, 16
      %v4071 = vrot.slane %v4069, 5
      %v4072 = vsel %vm1052, %v4067, %v4071
      %v4073 = vshrl.u32 %v3949, 16
      %v4075 = vrot.slane %v4073, 4
      %v4076 = vor.u32 %v4075, %v4071
      %v4077 = vrot.slane %v4076, 4
      %v4079 = vshll.u32 %v3950, 16
      %v4081 = vrot.slane %v4079, 5
      %v4082 = vsel %vm1052, %v4077, %v4081
      %v4084 = vshrl.u32 %v3951, 16
      %v4086 = vrot.slane %v4084, 4
      %v4087 = vshll.u32 %v3951, 16
      %v4089 = vrot.slane %v4087, 5
      %v4090 = vor.u32 %v4086, %v4089
      %v4091 = vrot.slane %v4090, 4
      %v4093 = vshll.u32 %v3952, 16
      %v4095 = vrot.slane %v4093, 5
      %v4096 = vsel %vm1052, %v4091, %v4095
      %v4097 = vshrl.u32 %v3952, 16
      %v4099 = vrot.slane %v4097, 4
      %v4100 = vor.u32 %v4099, %v4095
      %v4101 = vrot.slane %v4100, 4
      %v4103 = vshll.u32 %v3953, 16
      %v4105 = vrot.slane %v4103, 5
      %v4106 = vsel %vm1052, %v4101, %v4105
      %v4108 = vshrl.u32 %v3954, 16
      %v4110 = vrot.slane %v4108, 4
      %v4111 = vshll.u32 %v3954, 16
      %v4113 = vrot.slane %v4111, 5
      %v4114 = vor.u32 %v4110, %v4113
      %v4115 = vrot.slane %v4114, 4
      %v4117 = vshll.u32 %v3955, 16
      %v4119 = vrot.slane %v4117, 5
      %v4120 = vsel %vm1052, %v4115, %v4119
      %v4121 = vshrl.u32 %v3955, 16
      %v4123 = vrot.slane %v4121, 4
      %v4124 = vor.u32 %v4123, %v4119
      %v4125 = vrot.slane %v4124, 4
      %v4127 = vshll.u32 %v3956, 16
      %v4129 = vrot.slane %v4127, 5
      %v4130 = vsel %vm1052, %v4125, %v4129
      %v4132 = vshrl.u32 %v3957, 16
      %v4134 = vrot.slane %v4132, 4
      %v4135 = vshll.u32 %v3957, 16
      %v4137 = vrot.slane %v4135, 5
      %v4138 = vor.u32 %v4134, %v4137
      %v4139 = vrot.slane %v4138, 4
      %v4141 = vshll.u32 %v3958, 16
      %v4143 = vrot.slane %v4141, 5
      %v4144 = vsel %vm1052, %v4139, %v4143
      %v4145 = vshrl.u32 %v3958, 16
      %v4147 = vrot.slane %v4145, 4
      %v4148 = vor.u32 %v4147, %v4143
      %v4149 = vrot.slane %v4148, 4
      %v4151 = vshll.u32 %v3959, 16
      %v4153 = vrot.slane %v4151, 5
      %v4154 = vsel %vm1052, %v4149, %v4153
      %v4156 = vshrl.u32 %v3960, 16
      %v4158 = vrot.slane %v4156, 4
      %v4159 = vshll.u32 %v3960, 16
      %v4161 = vrot.slane %v4159, 5
      %v4162 = vor.u32 %v4158, %v4161
      %v4163 = vrot.slane %v4162, 4
      %v4165 = vshll.u32 %v3961, 16
      %v4167 = vrot.slane %v4165, 5
      %v4168 = vsel %vm1052, %v4163, %v4167
      %v4169 = vshrl.u32 %v3961, 16
      %v4171 = vrot.slane %v4169, 4
      %v4172 = vor.u32 %v4171, %v4167
      %v4173 = vrot.slane %v4172, 4
      %v4175 = vshll.u32 %v3962, 16
      %v4177 = vrot.slane %v4175, 5
      %v4178 = vsel %vm1052, %v4173, %v4177
      %v4180 = vshrl.u32 %v3963, 16
      %v4182 = vrot.slane %v4180, 4
      %v4183 = vshll.u32 %v3963, 16
      %v4185 = vrot.slane %v4183, 5
      %v4186 = vor.u32 %v4182, %v4185
      %v4187 = vrot.slane %v4186, 4
      %v4189 = vshll.u32 %v3964, 16
      %v4191 = vrot.slane %v4189, 5
      %v4192 = vsel %vm1052, %v4187, %v4191
      %v4193 = vshrl.u32 %v3964, 16
      %v4195 = vrot.slane %v4193, 4
      %v4196 = vor.u32 %v4195, %v4191
      %v4197 = vrot.slane %v4196, 4
      %v4199 = vshll.u32 %v3965, 16
      %v4201 = vrot.slane %v4199, 5
      %v4202 = vsel %vm1052, %v4197, %v4201
      %v4204 = vshrl.u32 %v3966, 16
      %v4206 = vrot.slane %v4204, 4
      %v4207 = vshll.u32 %v3966, 16
      %v4209 = vrot.slane %v4207, 5
      %v4210 = vor.u32 %v4206, %v4209
      %v4211 = vrot.slane %v4210, 4
      %v4213 = vshll.u32 %v3967, 16
      %v4215 = vrot.slane %v4213, 5
      %v4216 = vsel %vm1052, %v4211, %v4215
      %v4217 = vshrl.u32 %v3967, 16
      %v4219 = vrot.slane %v4217, 4
      %v4220 = vor.u32 %v4219, %v4215
      %v4221 = vrot.slane %v4220, 4
      %v4223 = vshll.u32 %v3968, 16
      %v4225 = vrot.slane %v4223, 5
      %v4226 = vsel %vm1052, %v4221, %v4225
      %v4228 = vshrl.u32 %v3969, 16
      %v4230 = vrot.slane %v4228, 4
      %v4231 = vshll.u32 %v3969, 16
      %v4233 = vrot.slane %v4231, 5
      %v4234 = vor.u32 %v4230, %v4233
      %v4235 = vrot.slane %v4234, 4
      %v4237 = vshll.u32 %v3970, 16
      %v4239 = vrot.slane %v4237, 5
      %v4240 = vsel %vm1052, %v4235, %v4239
      %v4241 = vshrl.u32 %v3970, 16
      %v4243 = vrot.slane %v4241, 4
      %v4244 = vor.u32 %v4243, %v4239
      %v4245 = vrot.slane %v4244, 4
      %v4247 = vshll.u32 %v3971, 16
      %v4249 = vrot.slane %v4247, 5
      %v4250 = vsel %vm1052, %v4245, %v4249
      %v4252 = vshrl.u32 %v3972, 16
      %v4254 = vrot.slane %v4252, 4
      %v4255 = vshll.u32 %v3972, 16
      %v4257 = vrot.slane %v4255, 5
      %v4258 = vor.u32 %v4254, %v4257
      %v4259 = vrot.slane %v4258, 4
      %v4261 = vshll.u32 %v3973, 16
      %v4263 = vrot.slane %v4261, 5
      %v4264 = vsel %vm1052, %v4259, %v4263
      %v4265 = vshrl.u32 %v3973, 16
      %v4267 = vrot.slane %v4265, 4
      %v4268 = vor.u32 %v4267, %v4263
      %v4269 = vrot.slane %v4268, 4
      %v4271 = vshll.u32 %v3974, 16
      %v4273 = vrot.slane %v4271, 5
      %v4274 = vsel %vm1052, %v4269, %v4273
      %v4276 = vshrl.u32 %v3975, 16
      %v4278 = vrot.slane %v4276, 4
      %v4279 = vshll.u32 %v3975, 16
      %v4281 = vrot.slane %v4279, 5
      %v4282 = vor.u32 %v4278, %v4281
      %v4283 = vrot.slane %v4282, 4
      %v4285 = vshll.u32 %v3976, 16
      %v4287 = vrot.slane %v4285, 5
      %v4288 = vsel %vm1052, %v4283, %v4287
      %v4289 = vshrl.u32 %v3976, 16
      %v4291 = vrot.slane %v4289, 4
      %v4292 = vor.u32 %v4291, %v4287
      %v4293 = vrot.slane %v4292, 4
      %v4295 = vshll.u32 %v3977, 16
      %v4297 = vrot.slane %v4295, 5
      %v4298 = vsel %vm1052, %v4293, %v4297
      %v4300 = vshrl.u32 %v3978, 16
      %v4302 = vrot.slane %v4300, 4
      %v4303 = vshll.u32 %v3978, 16
      %v4305 = vrot.slane %v4303, 5
      %v4306 = vor.u32 %v4302, %v4305
      %v4307 = vrot.slane %v4306, 4
      %v4309 = vshll.u32 %v3979, 16
      %v4311 = vrot.slane %v4309, 5
      %v4312 = vsel %vm1052, %v4307, %v4311
      %v4313 = vshrl.u32 %v3979, 16
      %v4315 = vrot.slane %v4313, 4
      %v4316 = vor.u32 %v4315, %v4311
      %v4317 = vrot.slane %v4316, 4
      %v4319 = vshll.u32 %v3980, 16
      %v4321 = vrot.slane %v4319, 5
      %v4322 = vsel %vm1052, %v4317, %v4321
      %v4324 = vshrl.u32 %v3981, 16
      %v4326 = vrot.slane %v4324, 4
      %v4327 = vshll.u32 %v3981, 16
      %v4329 = vrot.slane %v4327, 5
      %v4330 = vor.u32 %v4326, %v4329
      %v4331 = vrot.slane %v4330, 4
      %v4333 = vshll.u32 %v3982, 16
      %v4335 = vrot.slane %v4333, 5
      %v4336 = vsel %vm1052, %v4331, %v4335
      %v4337 = vshrl.u32 %v3982, 16
      %v4339 = vrot.slane %v4337, 4
      %v4340 = vor.u32 %v4339, %v4335
      %v4341 = vrot.slane %v4340, 4
      %v4343 = vshll.u32 %v3983, 16
      %v4345 = vrot.slane %v4343, 5
      %v4346 = vsel %vm1052, %v4341, %v4345
      %v4348 = vshrl.u32 %v3984, 16
      %v4350 = vrot.slane %v4348, 4
      %v4351 = vshll.u32 %v3984, 16
      %v4353 = vrot.slane %v4351, 5
      %v4354 = vor.u32 %v4350, %v4353
      %v4355 = vrot.slane %v4354, 4
      %v4357 = vshll.u32 %v3985, 16
      %v4359 = vrot.slane %v4357, 5
      %v4360 = vsel %vm1052, %v4355, %v4359
      %v4361 = vshrl.u32 %v3985, 16
      %v4363 = vrot.slane %v4361, 4
      %v4364 = vor.u32 %v4363, %v4359
      %v4365 = vrot.slane %v4364, 4
      %v4367 = vshll.u32 %v3986, 16
      %v4369 = vrot.slane %v4367, 5
      %v4370 = vsel %vm1052, %v4365, %v4369
      %s4371 = scalar_lea.vmem %s3, 112
      %v4372 = vld [vmem:[%s4371] sm:$0xf]
      %v4373 = vld [vmem:[%s4371 + $0x4] sm:$0xf]
      %v4374 = vld [vmem:[%s4371 + $0x8] sm:$0xf]
      %v4375 = vld [vmem:[%s4371 + $0xc] sm:$0xf]
      %v4376 = vunpack.c.l.b16 %v4000
      %v4377 = vunpack.c.l.b16 %v4010
      %v4378 = vunpack.c.l.b16 %v4024
      %v4379 = vunpack.c.l.b16 %v4034
      %v4380 = vunpack.c.l.b16 %v4048
      %v4381 = vunpack.c.l.b16 %v4058
      %v4382 = vunpack.c.l.b16 %v4072
      %v4383 = vunpack.c.l.b16 %v4082
      %v4384 = vunpack.c.l.b16 %v4096
      %v4385 = vunpack.c.l.b16 %v4106
      %v4386 = vunpack.c.l.b16 %v4120
      %v4387 = vunpack.c.l.b16 %v4130
      %v4388 = vunpack.c.l.b16 %v4144
      %v4389 = vunpack.c.l.b16 %v4154
      %v4390 = vunpack.c.l.b16 %v4168
      %v4391 = vunpack.c.l.b16 %v4178
      %v4392 = vunpack.c.l.b16 %v4192
      %v4393 = vunpack.c.l.b16 %v4202
      %v4394 = vunpack.c.l.b16 %v4216
      %v4395 = vunpack.c.l.b16 %v4226
      %v4396 = vunpack.c.l.b16 %v4240
      %v4397 = vunpack.c.l.b16 %v4250
      %v4398 = vunpack.c.l.b16 %v4264
      %v4399 = vunpack.c.l.b16 %v4274
      %v4400 = vunpack.c.l.b16 %v4288
      %v4401 = vunpack.c.l.b16 %v4298
      %v4402 = vunpack.c.l.b16 %v4312
      %v4403 = vunpack.c.l.b16 %v4322
      %v4404 = vunpack.c.l.b16 %v4336
      %v4405 = vunpack.c.l.b16 %v4346
      %v4406 = vunpack.c.l.b16 %v4360
      %v4407 = vunpack.c.l.b16 %v4370
      %v4408 = vpack.c.b16 %v4377, %v4376
      %v4409 = vpack.c.b16 %v4379, %v4378
      %v4410 = vpack.c.b16 %v4381, %v4380
      %v4411 = vpack.c.b16 %v4383, %v4382
      %v4412 = vpack.c.b16 %v4385, %v4384
      %v4413 = vpack.c.b16 %v4387, %v4386
      %v4414 = vpack.c.b16 %v4389, %v4388
      %v4415 = vpack.c.b16 %v4391, %v4390
      %v4416 = vpack.c.b16 %v4393, %v4392
      %v4417 = vpack.c.b16 %v4395, %v4394
      %v4418 = vpack.c.b16 %v4397, %v4396
      %v4419 = vpack.c.b16 %v4399, %v4398
      %v4420 = vpack.c.b16 %v4401, %v4400
      %v4421 = vpack.c.b16 %v4403, %v4402
      %v4422 = vpack.c.b16 %v4405, %v4404
      %v4423 = vpack.c.b16 %v4407, %v4406
      %v4428 = vunpack.c.l.b16 %v4372
      %v4429 = vunpack.c.l.b16 %v4373
      %v4430 = vunpack.c.l.b16 %v4374
      %v4431 = vunpack.c.l.b16 %v4375
      %v4432 = vpack.c.b16 %v4429, %v4428
      %v4433 = vpack.c.b16 %v4431, %v4430
      %v4437 = vsel %vm1502, %v4408, 0
      %v4440 = vsel %vm1502, %v4409, 0
      %v4443 = vsel %vm1502, %v4410, 0
      %v4446 = vsel %vm1502, %v4411, 0
      %v4449 = vsel %vm1502, %v4412, 0
      %v4452 = vsel %vm1502, %v4413, 0
      %v4455 = vsel %vm1502, %v4414, 0
      %v4458 = vsel %vm1502, %v4415, 0
      %v4461 = vsel %vm1502, %v4416, 0
      %v4464 = vsel %vm1502, %v4417, 0
      %v4467 = vsel %vm1502, %v4418, 0
      %v4470 = vsel %vm1502, %v4419, 0
      %v4473 = vsel %vm1502, %v4420, 0
      %v4476 = vsel %vm1502, %v4421, 0
      %v4479 = vsel %vm1502, %v4422, 0
      %v4482 = vsel %vm1502, %v4423, 0
      %4484 = vmatpush.bf16.msra.mxu0 0
      %4485 = vmatpush.bf16.msra.mxu0 0
      %4486 = vmatpush.bf16.msra.mxu0 0
      %4487 = vmatpush.bf16.msra.mxu0 0
      %4488 = vmatpush.bf16.msra.mxu0 0
      %4489 = vmatpush.bf16.msra.mxu0 0
      %4490 = vmatpush.bf16.msra.mxu0 %v4433
      %4491 = vmatpush.bf16.msra.mxu0 %v4432
      %4492 = vmatmul.bf16.gmra.mxu0 %v4437
      %v4493 = vpop.f32.mrf.mxu0
      %v4494 = vadd.f32 0.0, %v4493
      %v4495 = vpop.f32.mrf.mxu0
      %v4496 = vadd.f32 0.0, %v4495
      %4497 = vmatmul.bf16.gmra.mxu0 %v4440
      %v4498 = vpop.f32.mrf.mxu0
      %v4499 = vadd.f32 0.0, %v4498
      %v4500 = vpop.f32.mrf.mxu0
      %v4501 = vadd.f32 0.0, %v4500
      %4502 = vmatmul.bf16.gmra.mxu0 %v4443
      %v4503 = vpop.f32.mrf.mxu0
      %v4504 = vadd.f32 0.0, %v4503
      %v4505 = vpop.f32.mrf.mxu0
      %v4506 = vadd.f32 0.0, %v4505
      %4507 = vmatmul.bf16.gmra.mxu0 %v4446
      %v4508 = vpop.f32.mrf.mxu0
      %v4509 = vadd.f32 0.0, %v4508
      %v4510 = vpop.f32.mrf.mxu0
      %v4511 = vadd.f32 0.0, %v4510
      %4512 = vmatmul.bf16.gmra.mxu0 %v4449
      %v4513 = vpop.f32.mrf.mxu0
      %v4514 = vadd.f32 0.0, %v4513
      %v4515 = vpop.f32.mrf.mxu0
      %v4516 = vadd.f32 0.0, %v4515
      %4517 = vmatmul.bf16.gmra.mxu0 %v4452
      %v4518 = vpop.f32.mrf.mxu0
      %v4519 = vadd.f32 0.0, %v4518
      %v4520 = vpop.f32.mrf.mxu0
      %v4521 = vadd.f32 0.0, %v4520
      %4522 = vmatmul.bf16.gmra.mxu0 %v4455
      %v4523 = vpop.f32.mrf.mxu0
      %v4524 = vadd.f32 0.0, %v4523
      %v4525 = vpop.f32.mrf.mxu0
      %v4526 = vadd.f32 0.0, %v4525
      %4527 = vmatmul.bf16.gmra.mxu0 %v4458
      %v4528 = vpop.f32.mrf.mxu0
      %v4529 = vadd.f32 0.0, %v4528
      %v4530 = vpop.f32.mrf.mxu0
      %v4531 = vadd.f32 0.0, %v4530
      %4532 = vmatmul.bf16.gmra.mxu0 %v4461
      %v4533 = vpop.f32.mrf.mxu0
      %v4534 = vadd.f32 0.0, %v4533
      %v4535 = vpop.f32.mrf.mxu0
      %v4536 = vadd.f32 0.0, %v4535
      %4537 = vmatmul.bf16.gmra.mxu0 %v4464
      %v4538 = vpop.f32.mrf.mxu0
      %v4539 = vadd.f32 0.0, %v4538
      %v4540 = vpop.f32.mrf.mxu0
      %v4541 = vadd.f32 0.0, %v4540
      %4542 = vmatmul.bf16.gmra.mxu0 %v4467
      %v4543 = vpop.f32.mrf.mxu0
      %v4544 = vadd.f32 0.0, %v4543
      %v4545 = vpop.f32.mrf.mxu0
      %v4546 = vadd.f32 0.0, %v4545
      %4547 = vmatmul.bf16.gmra.mxu0 %v4470
      %v4548 = vpop.f32.mrf.mxu0
      %v4549 = vadd.f32 0.0, %v4548
      %v4550 = vpop.f32.mrf.mxu0
      %v4551 = vadd.f32 0.0, %v4550
      %4552 = vmatmul.bf16.gmra.mxu0 %v4473
      %v4553 = vpop.f32.mrf.mxu0
      %v4554 = vadd.f32 0.0, %v4553
      %v4555 = vpop.f32.mrf.mxu0
      %v4556 = vadd.f32 0.0, %v4555
      %4557 = vmatmul.bf16.gmra.mxu0 %v4476
      %v4558 = vpop.f32.mrf.mxu0
      %v4559 = vadd.f32 0.0, %v4558
      %v4560 = vpop.f32.mrf.mxu0
      %v4561 = vadd.f32 0.0, %v4560
      %4562 = vmatmul.bf16.gmra.mxu0 %v4479
      %v4563 = vpop.f32.mrf.mxu0
      %v4564 = vadd.f32 0.0, %v4563
      %v4565 = vpop.f32.mrf.mxu0
      %v4566 = vadd.f32 0.0, %v4565
      %4567 = vmatmul.bf16.gmra.mxu0 %v4482
      %v4568 = vpop.f32.mrf.mxu0
      %v4569 = vadd.f32 0.0, %v4568
      %v4570 = vpop.f32.mrf.mxu0
      %v4571 = vadd.f32 0.0, %v4570
      %4572 = vdwg.mxu0
      %v4573 = vadd.f32 %v3907, %v4494
      %v4574 = vadd.f32 %v3908, %v4496
      %v4575 = vadd.f32 %v3909, %v4499
      %v4576 = vadd.f32 %v3910, %v4501
      %v4577 = vadd.f32 %v3911, %v4504
      %v4578 = vadd.f32 %v3912, %v4506
      %v4579 = vadd.f32 %v3913, %v4509
      %v4580 = vadd.f32 %v3914, %v4511
      %v4581 = vadd.f32 %v3915, %v4514
      %v4582 = vadd.f32 %v3916, %v4516
      %v4583 = vadd.f32 %v3917, %v4519
      %v4584 = vadd.f32 %v3918, %v4521
      %v4585 = vadd.f32 %v3919, %v4524
      %v4586 = vadd.f32 %v3920, %v4526
      %v4587 = vadd.f32 %v3921, %v4529
      %v4588 = vadd.f32 %v3922, %v4531
      %v4589 = vadd.f32 %v3923, %v4534
      %v4590 = vadd.f32 %v3924, %v4536
      %v4591 = vadd.f32 %v3925, %v4539
      %v4592 = vadd.f32 %v3926, %v4541
      %v4593 = vadd.f32 %v3927, %v4544
      %v4594 = vadd.f32 %v3928, %v4546
      %v4595 = vadd.f32 %v3929, %v4549
      %v4596 = vadd.f32 %v3930, %v4551
      %v4597 = vadd.f32 %v3931, %v4554
      %v4598 = vadd.f32 %v3932, %v4556
      %v4599 = vadd.f32 %v3933, %v4559
      %v4600 = vadd.f32 %v3934, %v4561
      %v4601 = vadd.f32 %v3935, %v4564
      %v4602 = vadd.f32 %v3936, %v4566
      %v4603 = vadd.f32 %v3937, %v4569
      %v4604 = vadd.f32 %v3938, %v4571
      %v4605 = vld [vmem:[%s3640] sm:$0xe]
      %v4606 = vld [vmem:[%s3640 + $0xc] sm:$0xe]
      %v4607 = vld [vmem:[%s3640 + $0x18] sm:$0xe]
      %v4608 = vld [vmem:[%s3640 + $0x24] sm:$0xe]
      %v4609 = vld [vmem:[%s3640 + $0x30] sm:$0xe]
      %v4610 = vld [vmem:[%s3640 + $0x3c] sm:$0xe]
      %v4611 = vld [vmem:[%s3640 + $0x48] sm:$0xe]
      %v4612 = vld [vmem:[%s3640 + $0x54] sm:$0xe]
      %v4613 = vld [vmem:[%s3640 + $0x60] sm:$0xe]
      %v4614 = vld [vmem:[%s3640 + $0x6c] sm:$0xe]
      %v4615 = vld [vmem:[%s3640 + $0x78] sm:$0xe]
      %v4616 = vld [vmem:[%s3640 + $0x84] sm:$0xe]
      %v4617 = vld [vmem:[%s3640 + $0x90] sm:$0xe]
      %v4618 = vld [vmem:[%s3640 + $0x9c] sm:$0xe]
      %v4619 = vld [vmem:[%s3640 + $0xa8] sm:$0xe]
      %v4620 = vld [vmem:[%s3640 + $0xb4] sm:$0xe]
      %v4669 = vrot.slane %v4605, 5
      %v4670 = vrot.slane %v4669, 4
      %v4671 = vrot.slane %v3940, 5
      %v4672 = vsel %vm1919, %v4670, %v4671
      %v4673 = vrot.slane %v4671, 4
      %v4674 = vrot.slane %v3941, 5
      %v4675 = vsel %vm1919, %v4673, %v4674
      %v4676 = vrot.slane %v4606, 5
      %v4677 = vrot.slane %v4676, 4
      %v4678 = vrot.slane %v3943, 5
      %v4679 = vsel %vm1919, %v4677, %v4678
      %v4680 = vrot.slane %v4678, 4
      %v4681 = vrot.slane %v3944, 5
      %v4682 = vsel %vm1919, %v4680, %v4681
      %v4683 = vrot.slane %v4607, 5
      %v4684 = vrot.slane %v4683, 4
      %v4685 = vrot.slane %v3946, 5
      %v4686 = vsel %vm1919, %v4684, %v4685
      %v4687 = vrot.slane %v4685, 4
      %v4688 = vrot.slane %v3947, 5
      %v4689 = vsel %vm1919, %v4687, %v4688
      %v4690 = vrot.slane %v4608, 5
      %v4691 = vrot.slane %v4690, 4
      %v4692 = vrot.slane %v3949, 5
      %v4693 = vsel %vm1919, %v4691, %v4692
      %v4694 = vrot.slane %v4692, 4
      %v4695 = vrot.slane %v3950, 5
      %v4696 = vsel %vm1919, %v4694, %v4695
      %v4697 = vrot.slane %v4609, 5
      %v4698 = vrot.slane %v4697, 4
      %v4699 = vrot.slane %v3952, 5
      %v4700 = vsel %vm1919, %v4698, %v4699
      %v4701 = vrot.slane %v4699, 4
      %v4702 = vrot.slane %v3953, 5
      %v4703 = vsel %vm1919, %v4701, %v4702
      %v4704 = vrot.slane %v4610, 5
      %v4705 = vrot.slane %v4704, 4
      %v4706 = vrot.slane %v3955, 5
      %v4707 = vsel %vm1919, %v4705, %v4706
      %v4708 = vrot.slane %v4706, 4
      %v4709 = vrot.slane %v3956, 5
      %v4710 = vsel %vm1919, %v4708, %v4709
      %v4711 = vrot.slane %v4611, 5
      %v4712 = vrot.slane %v4711, 4
      %v4713 = vrot.slane %v3958, 5
      %v4714 = vsel %vm1919, %v4712, %v4713
      %v4715 = vrot.slane %v4713, 4
      %v4716 = vrot.slane %v3959, 5
      %v4717 = vsel %vm1919, %v4715, %v4716
      %v4718 = vrot.slane %v4612, 5
      %v4719 = vrot.slane %v4718, 4
      %v4720 = vrot.slane %v3961, 5
      %v4721 = vsel %vm1919, %v4719, %v4720
      %v4722 = vrot.slane %v4720, 4
      %v4723 = vrot.slane %v3962, 5
      %v4724 = vsel %vm1919, %v4722, %v4723
      %v4725 = vrot.slane %v4613, 5
      %v4726 = vrot.slane %v4725, 4
      %v4727 = vrot.slane %v3964, 5
      %v4728 = vsel %vm1919, %v4726, %v4727
      %v4729 = vrot.slane %v4727, 4
      %v4730 = vrot.slane %v3965, 5
      %v4731 = vsel %vm1919, %v4729, %v4730
      %v4732 = vrot.slane %v4614, 5
      %v4733 = vrot.slane %v4732, 4
      %v4734 = vrot.slane %v3967, 5
      %v4735 = vsel %vm1919, %v4733, %v4734
      %v4736 = vrot.slane %v4734, 4
      %v4737 = vrot.slane %v3968, 5
      %v4738 = vsel %vm1919, %v4736, %v4737
      %v4739 = vrot.slane %v4615, 5
      %v4740 = vrot.slane %v4739, 4
      %v4741 = vrot.slane %v3970, 5
      %v4742 = vsel %vm1919, %v4740, %v4741
      %v4743 = vrot.slane %v4741, 4
      %v4744 = vrot.slane %v3971, 5
      %v4745 = vsel %vm1919, %v4743, %v4744
      %v4746 = vrot.slane %v4616, 5
      %v4747 = vrot.slane %v4746, 4
      %v4748 = vrot.slane %v3973, 5
      %v4749 = vsel %vm1919, %v4747, %v4748
      %v4750 = vrot.slane %v4748, 4
      %v4751 = vrot.slane %v3974, 5
      %v4752 = vsel %vm1919, %v4750, %v4751
      %v4753 = vrot.slane %v4617, 5
      %v4754 = vrot.slane %v4753, 4
      %v4755 = vrot.slane %v3976, 5
      %v4756 = vsel %vm1919, %v4754, %v4755
      %v4757 = vrot.slane %v4755, 4
      %v4758 = vrot.slane %v3977, 5
      %v4759 = vsel %vm1919, %v4757, %v4758
      %v4760 = vrot.slane %v4618, 5
      %v4761 = vrot.slane %v4760, 4
      %v4762 = vrot.slane %v3979, 5
      %v4763 = vsel %vm1919, %v4761, %v4762
      %v4764 = vrot.slane %v4762, 4
      %v4765 = vrot.slane %v3980, 5
      %v4766 = vsel %vm1919, %v4764, %v4765
      %v4767 = vrot.slane %v4619, 5
      %v4768 = vrot.slane %v4767, 4
      %v4769 = vrot.slane %v3982, 5
      %v4770 = vsel %vm1919, %v4768, %v4769
      %v4771 = vrot.slane %v4769, 4
      %v4772 = vrot.slane %v3983, 5
      %v4773 = vsel %vm1919, %v4771, %v4772
      %v4774 = vrot.slane %v4620, 5
      %v4775 = vrot.slane %v4774, 4
      %v4776 = vrot.slane %v3985, 5
      %v4777 = vsel %vm1919, %v4775, %v4776
      %v4778 = vrot.slane %v4776, 4
      %v4779 = vrot.slane %v3986, 5
      %v4780 = vsel %vm1919, %v4778, %v4779
      %s4781 = scalar_lea.vmem %s3, 128
      %v4782 = vld [vmem:[%s4781] sm:$0xf]
      %v4783 = vld [vmem:[%s4781 + $0x4] sm:$0xf]
      %v4784 = vld [vmem:[%s4781 + $0x8] sm:$0xf]
      %v4785 = vld [vmem:[%s4781 + $0xc] sm:$0xf]
      %v4786 = vunpack.c.l.b16 %v4672
      %v4787 = vunpack.c.l.b16 %v4675
      %v4788 = vunpack.c.l.b16 %v4679
      %v4789 = vunpack.c.l.b16 %v4682
      %v4790 = vunpack.c.l.b16 %v4686
      %v4791 = vunpack.c.l.b16 %v4689
      %v4792 = vunpack.c.l.b16 %v4693
      %v4793 = vunpack.c.l.b16 %v4696
      %v4794 = vunpack.c.l.b16 %v4700
      %v4795 = vunpack.c.l.b16 %v4703
      %v4796 = vunpack.c.l.b16 %v4707
      %v4797 = vunpack.c.l.b16 %v4710
      %v4798 = vunpack.c.l.b16 %v4714
      %v4799 = vunpack.c.l.b16 %v4717
      %v4800 = vunpack.c.l.b16 %v4721
      %v4801 = vunpack.c.l.b16 %v4724
      %v4802 = vunpack.c.l.b16 %v4728
      %v4803 = vunpack.c.l.b16 %v4731
      %v4804 = vunpack.c.l.b16 %v4735
      %v4805 = vunpack.c.l.b16 %v4738
      %v4806 = vunpack.c.l.b16 %v4742
      %v4807 = vunpack.c.l.b16 %v4745
      %v4808 = vunpack.c.l.b16 %v4749
      %v4809 = vunpack.c.l.b16 %v4752
      %v4810 = vunpack.c.l.b16 %v4756
      %v4811 = vunpack.c.l.b16 %v4759
      %v4812 = vunpack.c.l.b16 %v4763
      %v4813 = vunpack.c.l.b16 %v4766
      %v4814 = vunpack.c.l.b16 %v4770
      %v4815 = vunpack.c.l.b16 %v4773
      %v4816 = vunpack.c.l.b16 %v4777
      %v4817 = vunpack.c.l.b16 %v4780
      %v4818 = vpack.c.b16 %v4787, %v4786
      %v4819 = vpack.c.b16 %v4789, %v4788
      %v4820 = vpack.c.b16 %v4791, %v4790
      %v4821 = vpack.c.b16 %v4793, %v4792
      %v4822 = vpack.c.b16 %v4795, %v4794
      %v4823 = vpack.c.b16 %v4797, %v4796
      %v4824 = vpack.c.b16 %v4799, %v4798
      %v4825 = vpack.c.b16 %v4801, %v4800
      %v4826 = vpack.c.b16 %v4803, %v4802
      %v4827 = vpack.c.b16 %v4805, %v4804
      %v4828 = vpack.c.b16 %v4807, %v4806
      %v4829 = vpack.c.b16 %v4809, %v4808
      %v4830 = vpack.c.b16 %v4811, %v4810
      %v4831 = vpack.c.b16 %v4813, %v4812
      %v4832 = vpack.c.b16 %v4815, %v4814
      %v4833 = vpack.c.b16 %v4817, %v4816
      %v4838 = vunpack.c.l.b16 %v4782
      %v4839 = vunpack.c.l.b16 %v4783
      %v4840 = vunpack.c.l.b16 %v4784
      %v4841 = vunpack.c.l.b16 %v4785
      %v4842 = vpack.c.b16 %v4839, %v4838
      %v4843 = vpack.c.b16 %v4841, %v4840
      %v4847 = vsel %vm1502, %v4818, 0
      %v4850 = vsel %vm1502, %v4819, 0
      %v4853 = vsel %vm1502, %v4820, 0
      %v4856 = vsel %vm1502, %v4821, 0
      %v4859 = vsel %vm1502, %v4822, 0
      %v4862 = vsel %vm1502, %v4823, 0
      %v4865 = vsel %vm1502, %v4824, 0
      %v4868 = vsel %vm1502, %v4825, 0
      %v4871 = vsel %vm1502, %v4826, 0
      %v4874 = vsel %vm1502, %v4827, 0
      %v4877 = vsel %vm1502, %v4828, 0
      %v4880 = vsel %vm1502, %v4829, 0
      %v4883 = vsel %vm1502, %v4830, 0
      %v4886 = vsel %vm1502, %v4831, 0
      %v4889 = vsel %vm1502, %v4832, 0
      %v4892 = vsel %vm1502, %v4833, 0
      %4894 = vmatpush.bf16.msra.mxu0 0
      %4895 = vmatpush.bf16.msra.mxu0 0
      %4896 = vmatpush.bf16.msra.mxu0 0
      %4897 = vmatpush.bf16.msra.mxu0 0
      %4898 = vmatpush.bf16.msra.mxu0 0
      %4899 = vmatpush.bf16.msra.mxu0 0
      %4900 = vmatpush.bf16.msra.mxu0 %v4843
      %4901 = vmatpush.bf16.msra.mxu0 %v4842
      %4902 = vmatmul.bf16.gmra.mxu0 %v4847
      %v4903 = vpop.f32.mrf.mxu0
      %v4904 = vadd.f32 0.0, %v4903
      %v4905 = vpop.f32.mrf.mxu0
      %v4906 = vadd.f32 0.0, %v4905
      %4907 = vmatmul.bf16.gmra.mxu0 %v4850
      %v4908 = vpop.f32.mrf.mxu0
      %v4909 = vadd.f32 0.0, %v4908
      %v4910 = vpop.f32.mrf.mxu0
      %v4911 = vadd.f32 0.0, %v4910
      %4912 = vmatmul.bf16.gmra.mxu0 %v4853
      %v4913 = vpop.f32.mrf.mxu0
      %v4914 = vadd.f32 0.0, %v4913
      %v4915 = vpop.f32.mrf.mxu0
      %v4916 = vadd.f32 0.0, %v4915
      %4917 = vmatmul.bf16.gmra.mxu0 %v4856
      %v4918 = vpop.f32.mrf.mxu0
      %v4919 = vadd.f32 0.0, %v4918
      %v4920 = vpop.f32.mrf.mxu0
      %v4921 = vadd.f32 0.0, %v4920
      %4922 = vmatmul.bf16.gmra.mxu0 %v4859
      %v4923 = vpop.f32.mrf.mxu0
      %v4924 = vadd.f32 0.0, %v4923
      %v4925 = vpop.f32.mrf.mxu0
      %v4926 = vadd.f32 0.0, %v4925
      %4927 = vmatmul.bf16.gmra.mxu0 %v4862
      %v4928 = vpop.f32.mrf.mxu0
      %v4929 = vadd.f32 0.0, %v4928
      %v4930 = vpop.f32.mrf.mxu0
      %v4931 = vadd.f32 0.0, %v4930
      %4932 = vmatmul.bf16.gmra.mxu0 %v4865
      %v4933 = vpop.f32.mrf.mxu0
      %v4934 = vadd.f32 0.0, %v4933
      %v4935 = vpop.f32.mrf.mxu0
      %v4936 = vadd.f32 0.0, %v4935
      %4937 = vmatmul.bf16.gmra.mxu0 %v4868
      %v4938 = vpop.f32.mrf.mxu0
      %v4939 = vadd.f32 0.0, %v4938
      %v4940 = vpop.f32.mrf.mxu0
      %v4941 = vadd.f32 0.0, %v4940
      %4942 = vmatmul.bf16.gmra.mxu0 %v4871
      %v4943 = vpop.f32.mrf.mxu0
      %v4944 = vadd.f32 0.0, %v4943
      %v4945 = vpop.f32.mrf.mxu0
      %v4946 = vadd.f32 0.0, %v4945
      %4947 = vmatmul.bf16.gmra.mxu0 %v4874
      %v4948 = vpop.f32.mrf.mxu0
      %v4949 = vadd.f32 0.0, %v4948
      %v4950 = vpop.f32.mrf.mxu0
      %v4951 = vadd.f32 0.0, %v4950
      %4952 = vmatmul.bf16.gmra.mxu0 %v4877
      %v4953 = vpop.f32.mrf.mxu0
      %v4954 = vadd.f32 0.0, %v4953
      %v4955 = vpop.f32.mrf.mxu0
      %v4956 = vadd.f32 0.0, %v4955
      %4957 = vmatmul.bf16.gmra.mxu0 %v4880
      %v4958 = vpop.f32.mrf.mxu0
      %v4959 = vadd.f32 0.0, %v4958
      %v4960 = vpop.f32.mrf.mxu0
      %v4961 = vadd.f32 0.0, %v4960
      %4962 = vmatmul.bf16.gmra.mxu0 %v4883
      %v4963 = vpop.f32.mrf.mxu0
      %v4964 = vadd.f32 0.0, %v4963
      %v4965 = vpop.f32.mrf.mxu0
      %v4966 = vadd.f32 0.0, %v4965
      %4967 = vmatmul.bf16.gmra.mxu0 %v4886
      %v4968 = vpop.f32.mrf.mxu0
      %v4969 = vadd.f32 0.0, %v4968
      %v4970 = vpop.f32.mrf.mxu0
      %v4971 = vadd.f32 0.0, %v4970
      %4972 = vmatmul.bf16.gmra.mxu0 %v4889
      %v4973 = vpop.f32.mrf.mxu0
      %v4974 = vadd.f32 0.0, %v4973
      %v4975 = vpop.f32.mrf.mxu0
      %v4976 = vadd.f32 0.0, %v4975
      %4977 = vmatmul.bf16.gmra.mxu0 %v4892
      %v4978 = vpop.f32.mrf.mxu0
      %v4979 = vadd.f32 0.0, %v4978
      %v4980 = vpop.f32.mrf.mxu0
      %v4981 = vadd.f32 0.0, %v4980
      %4982 = vdwg.mxu0
      %v4983 = vadd.f32 %v4573, %v4904
      %v4984 = vadd.f32 %v4574, %v4906
      %v4985 = vadd.f32 %v4575, %v4909
      %v4986 = vadd.f32 %v4576, %v4911
      %v4987 = vadd.f32 %v4577, %v4914
      %v4988 = vadd.f32 %v4578, %v4916
      %v4989 = vadd.f32 %v4579, %v4919
      %v4990 = vadd.f32 %v4580, %v4921
      %v4991 = vadd.f32 %v4581, %v4924
      %v4992 = vadd.f32 %v4582, %v4926
      %v4993 = vadd.f32 %v4583, %v4929
      %v4994 = vadd.f32 %v4584, %v4931
      %v4995 = vadd.f32 %v4585, %v4934
      %v4996 = vadd.f32 %v4586, %v4936
      %v4997 = vadd.f32 %v4587, %v4939
      %v4998 = vadd.f32 %v4588, %v4941
      %v4999 = vadd.f32 %v4589, %v4944
      %v5000 = vadd.f32 %v4590, %v4946
      %v5001 = vadd.f32 %v4591, %v4949
      %v5002 = vadd.f32 %v4592, %v4951
      %v5003 = vadd.f32 %v4593, %v4954
      %v5004 = vadd.f32 %v4594, %v4956
      %v5005 = vadd.f32 %v4595, %v4959
      %v5006 = vadd.f32 %v4596, %v4961
      %v5007 = vadd.f32 %v4597, %v4964
      %v5008 = vadd.f32 %v4598, %v4966
      %v5009 = vadd.f32 %v4599, %v4969
      %v5010 = vadd.f32 %v4600, %v4971
      %v5011 = vadd.f32 %v4601, %v4974
      %v5012 = vadd.f32 %v4602, %v4976
      %v5013 = vadd.f32 %v4603, %v4979
      %v5014 = vadd.f32 %v4604, %v4981
      %5015 = vst.msk [vmem:[%s262] sm:$0xff] %vm1502, %v4983
      %5016 = vst.msk [vmem:[%s262 + $0x8] sm:$0xff] %vm1502, %v4984
      %5017 = vst.msk [vmem:[%s262 + $0x10] sm:$0xff] %vm1502, %v4985
      %5018 = vst.msk [vmem:[%s262 + $0x18] sm:$0xff] %vm1502, %v4986
      %5019 = vst.msk [vmem:[%s262 + $0x20] sm:$0xff] %vm1502, %v4987
      %5020 = vst.msk [vmem:[%s262 + $0x28] sm:$0xff] %vm1502, %v4988
      %5021 = vst.msk [vmem:[%s262 + $0x30] sm:$0xff] %vm1502, %v4989
      %5022 = vst.msk [vmem:[%s262 + $0x38] sm:$0xff] %vm1502, %v4990
      %5023 = vst.msk [vmem:[%s262 + $0x40] sm:$0xff] %vm1502, %v4991
      %5024 = vst.msk [vmem:[%s262 + $0x48] sm:$0xff] %vm1502, %v4992
      %5025 = vst.msk [vmem:[%s262 + $0x50] sm:$0xff] %vm1502, %v4993
      %5026 = vst.msk [vmem:[%s262 + $0x58] sm:$0xff] %vm1502, %v4994
      %5027 = vst.msk [vmem:[%s262 + $0x60] sm:$0xff] %vm1502, %v4995
      %5028 = vst.msk [vmem:[%s262 + $0x68] sm:$0xff] %vm1502, %v4996
      %5029 = vst.msk [vmem:[%s262 + $0x70] sm:$0xff] %vm1502, %v4997
      %5030 = vst.msk [vmem:[%s262 + $0x78] sm:$0xff] %vm1502, %v4998
      %5031 = vst.msk [vmem:[%s262 + $0x80] sm:$0xff] %vm1502, %v4999
      %5032 = vst.msk [vmem:[%s262 + $0x88] sm:$0xff] %vm1502, %v5000
      %5033 = vst.msk [vmem:[%s262 + $0x90] sm:$0xff] %vm1502, %v5001
      %5034 = vst.msk [vmem:[%s262 + $0x98] sm:$0xff] %vm1502, %v5002
      %5035 = vst.msk [vmem:[%s262 + $0xa0] sm:$0xff] %vm1502, %v5003
      %5036 = vst.msk [vmem:[%s262 + $0xa8] sm:$0xff] %vm1502, %v5004
      %5037 = vst.msk [vmem:[%s262 + $0xb0] sm:$0xff] %vm1502, %v5005
      %5038 = vst.msk [vmem:[%s262 + $0xb8] sm:$0xff] %vm1502, %v5006
      %5039 = vst.msk [vmem:[%s262 + $0xc0] sm:$0xff] %vm1502, %v5007
      %5040 = vst.msk [vmem:[%s262 + $0xc8] sm:$0xff] %vm1502, %v5008
      %5041 = vst.msk [vmem:[%s262 + $0xd0] sm:$0xff] %vm1502, %v5009
      %5042 = vst.msk [vmem:[%s262 + $0xd8] sm:$0xff] %vm1502, %v5010
      %5043 = vst.msk [vmem:[%s262 + $0xe0] sm:$0xff] %vm1502, %v5011
      %5044 = vst.msk [vmem:[%s262 + $0xe8] sm:$0xff] %vm1502, %v5012
      %5045 = vst.msk [vmem:[%s262 + $0xf0] sm:$0xff] %vm1502, %v5013
      %5046 = vst.msk [vmem:[%s262 + $0xf8] sm:$0xff] %vm1502, %v5014
      %v5047 = vsel %vm1502, %v4983, 0.0
      %v5048 = vsel %vm1502, %v4984, 0.0
      %v5049 = vadd.f32 %v5047, %v5048
      %v5050 = vsel %vm1502, %v4985, 0.0
      %v5051 = vadd.f32 %v5049, %v5050
      %v5052 = vsel %vm1502, %v4986, 0.0
      %v5053 = vadd.f32 %v5051, %v5052
      %v5054 = vsel %vm1502, %v4987, 0.0
      %v5055 = vadd.f32 %v5053, %v5054
      %v5056 = vsel %vm1502, %v4988, 0.0
      %v5057 = vadd.f32 %v5055, %v5056
      %v5058 = vsel %vm1502, %v4989, 0.0
      %v5059 = vadd.f32 %v5057, %v5058
      %v5060 = vsel %vm1502, %v4990, 0.0
      %v5061 = vadd.f32 %v5059, %v5060
      %v5062 = vsel %vm1502, %v4991, 0.0
      %v5063 = vadd.f32 %v5061, %v5062
      %v5064 = vsel %vm1502, %v4992, 0.0
      %v5065 = vadd.f32 %v5063, %v5064
      %v5066 = vsel %vm1502, %v4993, 0.0
      %v5067 = vadd.f32 %v5065, %v5066
      %v5068 = vsel %vm1502, %v4994, 0.0
      %v5069 = vadd.f32 %v5067, %v5068
      %v5070 = vsel %vm1502, %v4995, 0.0
      %v5071 = vadd.f32 %v5069, %v5070
      %v5072 = vsel %vm1502, %v4996, 0.0
      %v5073 = vadd.f32 %v5071, %v5072
      %v5074 = vsel %vm1502, %v4997, 0.0
      %v5075 = vadd.f32 %v5073, %v5074
      %v5076 = vsel %vm1502, %v4998, 0.0
      %v5077 = vadd.f32 %v5075, %v5076
      %v5078 = vsel %vm1502, %v4999, 0.0
      %v5079 = vadd.f32 %v5077, %v5078
      %v5080 = vsel %vm1502, %v5000, 0.0
      %v5081 = vadd.f32 %v5079, %v5080
      %v5082 = vsel %vm1502, %v5001, 0.0
      %v5083 = vadd.f32 %v5081, %v5082
      %v5084 = vsel %vm1502, %v5002, 0.0
      %v5085 = vadd.f32 %v5083, %v5084
      %v5086 = vsel %vm1502, %v5003, 0.0
      %v5087 = vadd.f32 %v5085, %v5086
      %v5088 = vsel %vm1502, %v5004, 0.0
      %v5089 = vadd.f32 %v5087, %v5088
      %v5090 = vsel %vm1502, %v5005, 0.0
      %v5091 = vadd.f32 %v5089, %v5090
      %v5092 = vsel %vm1502, %v5006, 0.0
      %v5093 = vadd.f32 %v5091, %v5092
      %v5094 = vsel %vm1502, %v5007, 0.0
      %v5095 = vadd.f32 %v5093, %v5094
      %v5096 = vsel %vm1502, %v5008, 0.0
      %v5097 = vadd.f32 %v5095, %v5096
      %v5098 = vsel %vm1502, %v5009, 0.0
      %v5099 = vadd.f32 %v5097, %v5098
      %v5100 = vsel %vm1502, %v5010, 0.0
      %v5101 = vadd.f32 %v5099, %v5100
      %v5102 = vsel %vm1502, %v5011, 0.0
      %v5103 = vadd.f32 %v5101, %v5102
      %v5104 = vsel %vm1502, %v5012, 0.0
      %v5105 = vadd.f32 %v5103, %v5104
      %v5106 = vsel %vm1502, %v5013, 0.0
      %v5107 = vadd.f32 %v5105, %v5106
      %v5108 = vsel %vm1502, %v5014, 0.0
      %v5109 = vadd.f32 %v5107, %v5108
      %v5110 = vrot.slane %v5109, 4
      %v5111 = vadd.f32 %v5109, %v5110
      %v5112 = vrot.slane %v5111, 2
      %v5113 = vadd.f32 %v5111, %v5112
      %v5114 = vrot.slane %v5113, 1
      %v5115 = vadd.f32 %v5113, %v5114
      %5116 = vst.msk [vmem:[%s266] sm:$0x1] %vm410, %v5115
      %v5117 = vmul.f32 %v4983, %v4983
      %v5118 = vmul.f32 %v4984, %v4984
      %v5119 = vmul.f32 %v4985, %v4985
      %v5120 = vmul.f32 %v4986, %v4986
      %v5121 = vmul.f32 %v4987, %v4987
      %v5122 = vmul.f32 %v4988, %v4988
      %v5123 = vmul.f32 %v4989, %v4989
      %v5124 = vmul.f32 %v4990, %v4990
      %v5125 = vmul.f32 %v4991, %v4991
      %v5126 = vmul.f32 %v4992, %v4992
      %v5127 = vmul.f32 %v4993, %v4993
      %v5128 = vmul.f32 %v4994, %v4994
      %v5129 = vmul.f32 %v4995, %v4995
      %v5130 = vmul.f32 %v4996, %v4996
      %v5131 = vmul.f32 %v4997, %v4997
      %v5132 = vmul.f32 %v4998, %v4998
      %v5133 = vmul.f32 %v4999, %v4999
      %v5134 = vmul.f32 %v5000, %v5000
      %v5135 = vmul.f32 %v5001, %v5001
      %v5136 = vmul.f32 %v5002, %v5002
      %v5137 = vmul.f32 %v5003, %v5003
      %v5138 = vmul.f32 %v5004, %v5004
      %v5139 = vmul.f32 %v5005, %v5005
      %v5140 = vmul.f32 %v5006, %v5006
      %v5141 = vmul.f32 %v5007, %v5007
      %v5142 = vmul.f32 %v5008, %v5008
      %v5143 = vmul.f32 %v5009, %v5009
      %v5144 = vmul.f32 %v5010, %v5010
      %v5145 = vmul.f32 %v5011, %v5011
      %v5146 = vmul.f32 %v5012, %v5012
      %v5147 = vmul.f32 %v5013, %v5013
      %v5148 = vmul.f32 %v5014, %v5014
      %v5149 = vsel %vm1502, %v5117, 0.0
      %v5150 = vsel %vm1502, %v5118, 0.0
      %v5151 = vadd.f32 %v5149, %v5150
      %v5152 = vsel %vm1502, %v5119, 0.0
      %v5153 = vadd.f32 %v5151, %v5152
      %v5154 = vsel %vm1502, %v5120, 0.0
      %v5155 = vadd.f32 %v5153, %v5154
      %v5156 = vsel %vm1502, %v5121, 0.0
      %v5157 = vadd.f32 %v5155, %v5156
      %v5158 = vsel %vm1502, %v5122, 0.0
      %v5159 = vadd.f32 %v5157, %v5158
      %v5160 = vsel %vm1502, %v5123, 0.0
      %v5161 = vadd.f32 %v5159, %v5160
      %v5162 = vsel %vm1502, %v5124, 0.0
      %v5163 = vadd.f32 %v5161, %v5162
      %v5164 = vsel %vm1502, %v5125, 0.0
      %v5165 = vadd.f32 %v5163, %v5164
      %v5166 = vsel %vm1502, %v5126, 0.0
      %v5167 = vadd.f32 %v5165, %v5166
      %v5168 = vsel %vm1502, %v5127, 0.0
      %v5169 = vadd.f32 %v5167, %v5168
      %v5170 = vsel %vm1502, %v5128, 0.0
      %v5171 = vadd.f32 %v5169, %v5170
      %v5172 = vsel %vm1502, %v5129, 0.0
      %v5173 = vadd.f32 %v5171, %v5172
      %v5174 = vsel %vm1502, %v5130, 0.0
      %v5175 = vadd.f32 %v5173, %v5174
      %v5176 = vsel %vm1502, %v5131, 0.0
      %v5177 = vadd.f32 %v5175, %v5176
      %v5178 = vsel %vm1502, %v5132, 0.0
      %v5179 = vadd.f32 %v5177, %v5178
      %v5180 = vsel %vm1502, %v5133, 0.0
      %v5181 = vadd.f32 %v5179, %v5180
      %v5182 = vsel %vm1502, %v5134, 0.0
      %v5183 = vadd.f32 %v5181, %v5182
      %v5184 = vsel %vm1502, %v5135, 0.0
      %v5185 = vadd.f32 %v5183, %v5184
      %v5186 = vsel %vm1502, %v5136, 0.0
      %v5187 = vadd.f32 %v5185, %v5186
      %v5188 = vsel %vm1502, %v5137, 0.0
      %v5189 = vadd.f32 %v5187, %v5188
      %v5190 = vsel %vm1502, %v5138, 0.0
      %v5191 = vadd.f32 %v5189, %v5190
      %v5192 = vsel %vm1502, %v5139, 0.0
      %v5193 = vadd.f32 %v5191, %v5192
      %v5194 = vsel %vm1502, %v5140, 0.0
      %v5195 = vadd.f32 %v5193, %v5194
      %v5196 = vsel %vm1502, %v5141, 0.0
      %v5197 = vadd.f32 %v5195, %v5196
      %v5198 = vsel %vm1502, %v5142, 0.0
      %v5199 = vadd.f32 %v5197, %v5198
      %v5200 = vsel %vm1502, %v5143, 0.0
      %v5201 = vadd.f32 %v5199, %v5200
      %v5202 = vsel %vm1502, %v5144, 0.0
      %v5203 = vadd.f32 %v5201, %v5202
      %v5204 = vsel %vm1502, %v5145, 0.0
      %v5205 = vadd.f32 %v5203, %v5204
      %v5206 = vsel %vm1502, %v5146, 0.0
      %v5207 = vadd.f32 %v5205, %v5206
      %v5208 = vsel %vm1502, %v5147, 0.0
      %v5209 = vadd.f32 %v5207, %v5208
      %v5210 = vsel %vm1502, %v5148, 0.0
      %v5211 = vadd.f32 %v5209, %v5210
      %v5212 = vrot.slane %v5211, 4
      %v5213 = vadd.f32 %v5211, %v5212
      %v5214 = vrot.slane %v5213, 2
      %v5215 = vadd.f32 %v5213, %v5214
      %v5216 = vrot.slane %v5215, 1
      %v5217 = vadd.f32 %v5215, %v5216
      %5218 = vst.msk [vmem:[%s269] sm:$0x1] %vm410, %v5217
      %s5219 = smul.u32 32, %s18
      %p5220 = scmp.lt.s32.totalorder %s5219, 63
      %s5221 = scalar_select %p5220, %s5219, 63
      %s5222 = smul.addr %s5221, 8
      %s5223 = scalar_lea.vmem %s4, %s5222
      %p5224 = scmp.lt.s32.totalorder %s18, 1
      %s5225 = scalar_select %p5224, %s18, 1
      %s5226 = scalar_lea.vmem %s5, %s5225
      %p5227 = scmp.lt.s32.totalorder %s18, 1
      %s5228 = scalar_select %p5227, %s18, 1
      %s5229 = scalar_lea.vmem %s6, %s5228
      // Predicated region
      $region37: #{bottleneck_forward.5} parent=35 // pred_check
        %p5230 = pneg %p125
      $region38: #{bottleneck_forward.5} parent=35 // pred_check_branch
        %5232 = sbr.rel (%p5230) target = $region40
      $region39: #{bottleneck_forward.5} parent=35 // pred_region
        %s5233 = smul.u32 32, %s18
      $region40: #{bottleneck_forward.5} parent=35 // pred_fallthru
        _
      // Predicated region
      $region41: #{bottleneck_forward.5} parent=35 // pred_check
        %p5234 = pneg %p151
      $region42: #{bottleneck_forward.5} parent=35 // pred_check_branch
        %5236 = sbr.rel (%p5234) target = $region44
      $region43: #{bottleneck_forward.5} parent=35 // pred_region
        _
      $region44: #{bottleneck_forward.5} parent=35 // pred_fallthru
        _
      // Predicated region
      $region45: #{bottleneck_forward.5} parent=35 // pred_check
        %p5237 = pneg %p177
      $region46: #{bottleneck_forward.5} parent=35 // pred_check_branch
        %5239 = sbr.rel (%p5237) target = $region48
      $region47: #{bottleneck_forward.5} parent=35 // pred_region
        _
      $region48: #{bottleneck_forward.5} parent=35 // pred_fallthru
        _
    $region36: #{bottleneck_forward.5} parent=5 // pred_fallthru
      _
    %p5240 = scmp.le.s32.totalorder 2, %s13
    // Predicated region
    $region49: #{bottleneck_forward.5} parent=5 // pred_check
      %p5241 = pneg %p5240
    $region50: #{bottleneck_forward.5} parent=5 // pred_check_branch
      %5243 = sbr.rel (%p5241) target = $region52
    $region51: #{bottleneck_forward.5} parent=5 // pred_region
      %s5244 = ssub.s32 %s13, 2
      // Predicated region
      $region53: #{bottleneck_forward.5} parent=51 // pred_check
        %p5245 = pneg %p131
      $region54: #{bottleneck_forward.5} parent=51 // pred_check_branch
        %5247 = sbr.rel (%p5245) target = $region56
      $region55: #{bottleneck_forward.5} parent=51 // pred_region
        %s5248 = smul.u32 32, %s19
        %p5249 = scmp.lt.s32.totalorder %s5248, 63
        %s5250 = scalar_select %p5249, %s5248, 63
        %s5251 = smul.addr %s5250, 8
        %s5252 = scalar_lea.vmem %s4, %s5251
      $region56: #{bottleneck_forward.5} parent=51 // pred_fallthru
        _
      // Predicated region
      $region57: #{bottleneck_forward.5} parent=51 // pred_check
        %p5253 = pneg %p157
      $region58: #{bottleneck_forward.5} parent=51 // pred_check_branch
        %5255 = sbr.rel (%p5253) target = $region60
      $region59: #{bottleneck_forward.5} parent=51 // pred_region
        %p5256 = scmp.lt.s32.totalorder %s19, 1
        %s5257 = scalar_select %p5256, %s19, 1
        %s5258 = scalar_lea.vmem %s5, %s5257
      $region60: #{bottleneck_forward.5} parent=51 // pred_fallthru
        _
      // Predicated region
      $region61: #{bottleneck_forward.5} parent=51 // pred_check
        %p5259 = pneg %p183
      $region62: #{bottleneck_forward.5} parent=51 // pred_check_branch
        %5261 = sbr.rel (%p5259) target = $region64
      $region63: #{bottleneck_forward.5} parent=51 // pred_region
        %p5262 = scmp.lt.s32.totalorder %s19, 1
        %s5263 = scalar_select %p5262, %s19, 1
        %s5264 = scalar_lea.vmem %s6, %s5263
      $region64: #{bottleneck_forward.5} parent=51 // pred_fallthru
        _
    $region52: #{bottleneck_forward.5} parent=5 // pred_fallthru
      _
  $region6: #{bottleneck_forward.5} parent=0 // loop_footer
    %s17 = sadd.s32 1, %s13
  $region7: #{bottleneck_forward.5} parent=0 // loop_footer_branch
    %12 = sbr.rel target = $region3
  $region8: #{bottleneck_forward.5} parent=0 // loop_exit
    _

</llo_original>
